<compile_context>
chip_gen: v7x
topology: tpu7x:2x2x1
jax: 0.10.0
libtpu: 0.0.40
codegen_flags: <defaults>
</compile_context>

<pallas_src>
import jax
import jax.numpy as jnp
from jax.experimental import pallas as pl
from jax.experimental.pallas import tpu as pltpu

LANES = 128      # channels live on the 128-lane axis (zero-padded to 128)
_CPAD = 8        # left halo columns in the conv-2 scratch (sublane aligned)


def _round_up(x, m):
    return (x + m - 1) // m * m


def _vmem_limit_bytes():
    """Per-generation scoped-VMEM cap with headroom (~48MiB v7x, 96MiB v5e/v6e)."""
    try:
        phys = int(pltpu.get_tpu_info().vmem_capacity_bytes)
    except Exception:
        phys = 128 * 1024 * 1024
    return min(phys * 3 // 4, 96 * 1024 * 1024)


def _compiler_params(sem):
    return pltpu.CompilerParams(dimension_semantics=sem,
                                vmem_limit_bytes=_vmem_limit_bytes())


def _inv_std(std):
    d = std + 1e-5
    r = pl.reciprocal(d, approx=True)      # EUP slot (near free)
    return r * (2.0 - d * r)               # one Newton step -> ~f32-exact


# ---------------------------------------------------------------------------
# Kernel bodies
# ---------------------------------------------------------------------------
def _conv1_kernel(x_ref, w_ref, b_ref, y_ref, st_ref):
    """Conv1 (+bias) on an im2col row block: one MXU matmul with K = 9*Cin.

    x_ref : (1, RB, W, 9*Cin) bf16      y_ref : (1, RB, W, LANES) bf16
    w_ref : (9*Cin, LANES)    bf16      st_ref: (1, 1, 2, LANES)  f32
    b_ref : (1, LANES)        f32         [block sum, block centered sum-sq]
    """
    _, rb, w, k1 = x_ref.shape
    m = rb * w
    lhs = x_ref[0].reshape(m, k1)
    acc = jnp.dot(lhs, w_ref[...], preferred_element_type=jnp.float32) + b_ref[...]
    y_ref[0] = acc.reshape(rb, w, LANES).astype(y_ref.dtype)
    s = jnp.sum(acc, axis=0, keepdims=True)
    d = acc - s * (1.0 / m)
    st_ref[0, 0, 0:1, :] = s
    st_ref[0, 0, 1:2, :] = jnp.sum(d * d, axis=0, keepdims=True)


def _bn1_conv2_kernel(y1_ref, mean_ref, std_ref, w_ref, b_ref,
                      y2_ref, st_ref, xbuf, acc_ref):
    """Fused BN1(global stats)+ReLU -> conv2(+bias) -> BN2 partial stats.

    The normalized activation never leaves VMEM: it is written into `xbuf`
    (spatially padded, data columns start at the sublane-aligned offset _CPAD)
    and consumed by 9 row-batched (H*W, 128) x (128, 128) MXU matmuls.
    """
    _, h, w, c = y1_ref.shape
    wp = xbuf.shape[1]
    m = h * w

    # BN1 + ReLU straight into the padded VMEM scratch (bf16 for the MXU).
    inv = _inv_std(std_ref[...])
    xn = jnp.maximum((y1_ref[0].reshape(m, c).astype(jnp.float32)
                      - mean_ref[...]) * inv, 0.0)

    # Re-zero only the halo every step: scratch persists across grid steps and
    # the interior is fully overwritten; program_id==0 gating would be unsafe
    # when the "parallel" axis is split across TensorCores.
    xbuf[0] = jnp.zeros((wp, c), xbuf.dtype)
    xbuf[h + 1] = jnp.zeros((wp, c), xbuf.dtype)
    xbuf[:, 0:_CPAD, :] = jnp.zeros((h + 2, _CPAD, c), xbuf.dtype)
    xbuf[:, _CPAD + w:wp, :] = jnp.zeros((h + 2, wp - _CPAD - w, c), xbuf.dtype)
    xbuf[1:h + 1, _CPAD:_CPAD + w, :] = xn.reshape(h, w, c).astype(xbuf.dtype)

    # conv2: 9 shifted-window matmuls with M = H*W rows, accumulated in f32.
    acc_ref[...] = jnp.broadcast_to(b_ref[...], acc_ref.shape)
    for dy in range(3):
        for dx in range(3):
            c0 = _CPAD - 1 + dx
            lhs = xbuf[dy:dy + h, c0:c0 + w, :].reshape(m, c)
            acc_ref[...] += jnp.dot(lhs, w_ref[3 * dy + dx],
                                    preferred_element_type=jnp.float32)
    acc = acc_ref[...]
    y2_ref[0] = acc.reshape(h, w, c).astype(y2_ref.dtype)
    s = jnp.sum(acc, axis=0, keepdims=True)
    d = acc - s * (1.0 / m)
    st_ref[0, 0:1, :] = s
    st_ref[0, 1:2, :] = jnp.sum(d * d, axis=0, keepdims=True)


def _bn2_relu_pack_kernel(y_ref, mean_ref, std_ref, o_ref):
    """Final BN2+ReLU; emits a compact (Cout_pad, rows) f32 slab with channels
    on sublanes and rows on the lane axis (lane-dense, unmasked stores)."""
    inv = _inv_std(std_ref[...])
    xn = jnp.maximum((y_ref[...].astype(jnp.float32) - mean_ref[...]) * inv, 0.0)
    o_ref[...] = jnp.transpose(xn, (1, 0))[:o_ref.shape[0], :]


# ---------------------------------------------------------------------------
# pallas_call wrappers
# ---------------------------------------------------------------------------
def _conv1(xcol, w1, b1, rb):
    n, h, w, k1 = xcol.shape
    nrb = h // rb
    flops = 2 * n * h * w * k1 * LANES
    nbytes = 2 * xcol.size + 2 * w1.size + 2 * n * h * w * LANES
    return pl.pallas_call(
        _conv1_kernel,
        out_shape=(jax.ShapeDtypeStruct((n, h, w, LANES), jnp.bfloat16),
                   jax.ShapeDtypeStruct((n, nrb, 2, LANES), jnp.float32)),
        grid=(n, nrb),
        in_specs=[
            pl.BlockSpec((1, rb, w, k1), lambda i, j: (i, j, 0, 0)),
            pl.BlockSpec((k1, LANES), lambda i, j: (0, 0)),
            pl.BlockSpec((1, LANES), lambda i, j: (0, 0)),
        ],
        out_specs=(
            pl.BlockSpec((1, rb, w, LANES), lambda i, j: (i, j, 0, 0)),
            pl.BlockSpec((1, 1, 2, LANES), lambda i, j: (i, j, 0, 0)),
        ),
        compiler_params=_compiler_params(("parallel", "parallel")),
        cost_estimate=pl.CostEstimate(flops=int(flops), transcendentals=0,
                                      bytes_accessed=int(nbytes)),
    )(xcol, w1, b1)


def _bn1_relu_conv2(y1, mean1, std1, w2, b2):
    # TODO(synk): add a row-block grid axis with an explicit halo DMA
    # (memory_space=pl.ANY + make_async_copy) so whole-image blocks are not
    # required on v7x at large resolutions.
    n, h, w, c = y1.shape
    wp = _CPAD + _round_up(w + 1, 8)
    flops = 2 * n * h * w * 9 * c * c
    nbytes = 2 * y1.size + 2 * w2.size + 2 * n * h * w * c
    return pl.pallas_call(
        _bn1_conv2_kernel,
        out_shape=(jax.ShapeDtypeStruct((n, h, w, c), jnp.bfloat16),
                   jax.ShapeDtypeStruct((n, 2, c), jnp.float32)),
        grid=(n,),
        in_specs=[
            pl.BlockSpec((1, h, w, c), lambda i: (i, 0, 0, 0)),
            pl.BlockSpec((1, c), lambda i: (0, 0)),
            pl.BlockSpec((1, c), lambda i: (0, 0)),
            pl.BlockSpec((9, c, c), lambda i: (0, 0, 0)),
            pl.BlockSpec((1, c), lambda i: (0, 0)),
        ],
        out_specs=(
            pl.BlockSpec((1, h, w, c), lambda i: (i, 0, 0, 0)),
            pl.BlockSpec((1, 2, c), lambda i: (i, 0, 0)),
        ),
        scratch_shapes=[pltpu.VMEM((h + 2, wp, c), jnp.bfloat16),
                        pltpu.VMEM((h * w, c), jnp.float32)],
        compiler_params=_compiler_params(("parallel",)),
        cost_estimate=pl.CostEstimate(flops=int(flops), transcendentals=0,
                                      bytes_accessed=int(nbytes)),
    )(y1, mean1, std1, w2, b2)


def _pick_tm(m):
    for t in (512, 256, 128):
        if m % t == 0:
            return t
    return m


def _bn2_relu_pack(y2_flat, mean2, std2, cpad):
    m, c = y2_flat.shape
    tm = _pick_tm(m)
    return pl.pallas_call(
        _bn2_relu_pack_kernel,
        out_shape=jax.ShapeDtypeStruct((cpad, m), jnp.float32),
        grid=(m // tm,),
        in_specs=[
            pl.BlockSpec((tm, c), lambda i: (i, 0)),
            pl.BlockSpec((1, c), lambda i: (0, 0)),
            pl.BlockSpec((1, c), lambda i: (0, 0)),
        ],
        out_specs=pl.BlockSpec((cpad, tm), lambda i: (0, i)),
        compiler_params=_compiler_params(("parallel",)),
    )(y2_flat, mean2, std2)


# ---------------------------------------------------------------------------
# Parameter / input prep + stats combination + forward
# ---------------------------------------------------------------------------
def _prep_conv1_weights(w_oihw, b):
    cout, cin, kh, kw = w_oihw.shape
    w = jnp.transpose(w_oihw, (2, 3, 1, 0)).reshape(kh * kw * cin, cout)
    w = jnp.pad(w, ((0, 0), (0, LANES - cout)))
    b2 = jnp.pad(b.reshape(1, cout), ((0, 0), (0, LANES - cout)))
    return w.astype(jnp.bfloat16), b2.astype(jnp.float32)


def _prep_conv2_weights(w_oihw, b):
    cout, cin, kh, kw = w_oihw.shape
    w = jnp.transpose(w_oihw, (2, 3, 1, 0)).reshape(kh * kw, cin, cout)
    w = jnp.pad(w, ((0, 0), (0, LANES - cin), (0, LANES - cout)))
    b2 = jnp.pad(b.reshape(1, cout), ((0, 0), (0, LANES - cout)))
    return w.astype(jnp.bfloat16), b2.astype(jnp.float32)


def _im2col_3x3(x_nhwc):
    n, h, w, c = x_nhwc.shape
    xp = jnp.pad(x_nhwc, ((0, 0), (1, 1), (1, 1), (0, 0)))
    taps = [xp[:, dy:dy + h, dx:dx + w, :] for dy in range(3) for dx in range(3)]
    return jnp.concatenate(taps, axis=-1)          # (N, H, W, 9*Cin), dy/dx/c order


def _pick_rb1(h, w, k1, m_target=1024):
    """Largest divisor of H with RB*W <= m_target that fits the VMEM budget."""
    budget = _vmem_limit_bytes() // 2
    best = 1
    for rb in range(1, h + 1):
        if h % rb:
            continue
        m = rb * w
        vmem = 2 * (m * k1 * 2 + m * LANES * 2) + m * (k1 + LANES) * 4
        if vmem <= budget and (m <= m_target or best == 1):
            best = rb
    return best


def _combine_stats(partials, block_count):
    """partials: (..., 2, C) per-block [sum, centered sum-of-squares].

    Exact two-level (Chan) combination across equal-count blocks; avoids the
    catastrophic cancellation of the naive sum_sq - n*mean^2 form."""
    c = partials.shape[-1]
    p = partials.reshape(-1, 2, c)
    s, m2 = p[:, 0, :], p[:, 1, :]
    nblocks = p.shape[0]
    total = nblocks * block_count
    mean = jnp.sum(s, axis=0, keepdims=True) / total
    bmean = s * (1.0 / block_count)
    m2_tot = (jnp.sum(m2, axis=0, keepdims=True)
              + block_count * jnp.sum((bmean - mean) ** 2, axis=0, keepdims=True))
    var = m2_tot / (total - 1)                      # unbiased (torch std)
    std = jnp.sqrt(jnp.maximum(var, 0.0))
    return mean, std


@jax.jit
def double_conv_forward(x_nchw, params):
    """Pallas implementation of doubleConv.forward (input/output NCHW, f32)."""
    n, cin, h, w = x_nchw.shape
    cmid = params["w1_oihw"].shape[0]
    cout = params["w2_oihw"].shape[0]
    if cmid > LANES or cout > LANES:
        raise ValueError("channel counts > 128 not supported by this kernel")
    if w % 8:
        raise ValueError("W must be a multiple of 8 for this kernel")

    # NCHW -> NHWC once; fold the 9 taps' Cin onto the lane axis (K = 9*Cin).
    x = jnp.transpose(x_nchw, (0, 2, 3, 1))
    xcol = _im2col_3x3(x).astype(jnp.bfloat16)

    w1, b1 = _prep_conv1_weights(params["w1_oihw"], params["b1"])
    w2, b2 = _prep_conv2_weights(params["w2_oihw"], params["b2"])

    rb1 = _pick_rb1(h, w, xcol.shape[-1])
    y1, st1 = _conv1(xcol, w1, b1, rb1)                  # conv1 + bias (bf16)
    mean1, std1 = _combine_stats(st1, rb1 * w)           # global BN1 stats
    y2, st2 = _bn1_relu_conv2(y1, mean1, std1, w2, b2)   # BN1+ReLU fused in
    mean2, std2 = _combine_stats(st2, h * w)             # global BN2 stats

    cpad = _round_up(cout, 8)
    out_cm = _bn2_relu_pack(y2.reshape(n * h * w, LANES), mean2, std2, cpad)
    out = out_cm[:cout].reshape(cout, n, h, w)           # compact (Cout, N*H*W)
    return jnp.transpose(out, (1, 0, 2, 3))              # -> NCHW


# ---------------------------------------------------------------------------
# Pure-JAX reference (for sanity check)
# ---------------------------------------------------------------------------
def _ref_forward(x_nchw, params, conv_dtype=jnp.float32):
    def conv(x, w, b):
        y = jax.lax.conv_general_dilated(
            x.astype(conv_dtype), w.astype(conv_dtype),
            window_strides=(1, 1), padding=((1, 1), (1, 1)),
            dimension_numbers=("NCHW", "OIHW", "NCHW"),
            preferred_element_type=jnp.float32)
        return y + b[None, :, None, None].astype(jnp.float32)

    def bn(y):   # custom BN_: unbiased std over N*H*W, eps added to std
        cnt = y.shape[0] * y.shape[2] * y.shape[3]
        mean = y.mean(axis=(0, 2, 3), keepdims=True)
        var = ((y - mean) ** 2).sum(axis=(0, 2, 3), keepdims=True) / (cnt - 1)
        return (y - mean) / (jnp.sqrt(var) + 1e-5)

    y = jnp.maximum(bn(conv(x_nchw, params["w1_oihw"], params["b1"])), 0.0)
    y = jnp.maximum(bn(conv(y, params["w2_oihw"], params["b2"])), 0.0)
    return y


# ---------------------------------------------------------------------------
# Main
# ---------------------------------------------------------------------------
if __name__ == "__main__":
    key = jax.random.PRNGKey(0)
    k_x, k_w1, k_b1, k_w2, k_b2 = jax.random.split(key, 5)

    N, Cin, H, W = 2, 4, 16, 16
    Cout = 8                      # mid_channels defaults to out_channels

    x = jax.random.normal(k_x, (N, Cin, H, W), dtype=jnp.float32)
    params = {
        "w1_oihw": 0.1 * jax.random.normal(k_w1, (Cout, Cin, 3, 3), jnp.float32),
        "b1": 0.1 * jax.random.normal(k_b1, (Cout,), jnp.float32),
        "w2_oihw": 0.1 * jax.random.normal(k_w2, (Cout, Cout, 3, 3), jnp.float32),
        "b2": 0.1 * jax.random.normal(k_b2, (Cout,), jnp.float32),
    }

    out = jax.block_until_ready(double_conv_forward(x, params))

    # Check vs a reference with the same bf16 MXU input rounding (tight-ish),
    # and vs the exact f32 module semantics (bounds bf16 activation drift).
    ref_bf16 = jax.block_until_ready(_ref_forward(x, params, jnp.bfloat16))
    ref_f32 = jax.block_until_ready(_ref_forward(x, params, jnp.float32))

    assert out.shape == (N, Cout, H, W), out.shape
    assert jnp.allclose(out, ref_bf16, atol=5e-2, rtol=5e-2), \
        float(jnp.max(jnp.abs(out - ref_bf16)))
    assert jnp.allclose(out, ref_f32, atol=1e-1, rtol=1e-1), \
        float(jnp.max(jnp.abs(out - ref_f32)))

    print("KERNEL_OK")
</pallas_src>

<mosaic_0001>
module attributes {stable_mosaic.version = 11 : i64} {
  func.func @_conv1_kernel(%arg0: i32, %arg1: i32, %arg2: memref<1x16x16x36xbf16, #tpu.memory_space<vmem>>, %arg3: memref<36x128xbf16, #tpu.memory_space<vmem>>, %arg4: memref<1x128xf32, #tpu.memory_space<vmem>>, %arg5: memref<1x16x16x128xbf16, #tpu.memory_space<vmem>>, %arg6: memref<1x1x2x128xf32, #tpu.memory_space<vmem>>) attributes {dimension_semantics = [#tpu.dimension_semantics<parallel>, #tpu.dimension_semantics<parallel>], iteration_bounds = array<i64: 2, 1>, scalar_prefetch = 0 : i64, scratch_operands = 0 : i64, tpu.core_type = #tpu.core_type<tc>, window_params = [{transform_indices = @transform_0, window_bounds = array<i64: 1, 16, 16, 36>}, {pipeline_mode = #tpu.pipeline_mode<synchronous>, transform_indices = @transform_1, window_bounds = array<i64: 36, 128>}, {pipeline_mode = #tpu.pipeline_mode<synchronous>, transform_indices = @transform_2, window_bounds = array<i64: 1, 128>}, {transform_indices = @transform_3, window_bounds = array<i64: 1, 16, 16, 128>}, {transform_indices = @transform_4, window_bounds = array<i64: 1, 1, 2, 128>}]} {
    %c0 = arith.constant 0 : index
    %c0_0 = arith.constant 0 : index
    %c0_1 = arith.constant 0 : index
    %c0_2 = arith.constant 0 : index
    %0 = vector.load %arg2[%c0, %c0_0, %c0_1, %c0_2] : memref<1x16x16x36xbf16, #tpu.memory_space<vmem>>, vector<1x16x16x36xbf16>
    %1 = vector.shape_cast %0 : vector<1x16x16x36xbf16> to vector<16x16x36xbf16>
    %2 = vector.shape_cast %1 : vector<16x16x36xbf16> to vector<256x36xbf16>
    %c0_3 = arith.constant 0 : index
    %c0_4 = arith.constant 0 : index
    %3 = vector.load %arg3[%c0_3, %c0_4] : memref<36x128xbf16, #tpu.memory_space<vmem>>, vector<36x128xbf16>
    %cst = arith.constant dense<0.000000e+00> : vector<256x128xf32>
    %4 = tpu.matmul %2, %3, %cst {dimension_numbers = #tpu.dot_dimension_numbers<[1], [0], [0], [1], [0, 0, 1, 1], [], []>} : vector<256x36xbf16>, vector<36x128xbf16>, vector<256x128xf32> -> vector<256x128xf32>
    %c0_5 = arith.constant 0 : index
    %c0_6 = arith.constant 0 : index
    %5 = vector.load %arg4[%c0_5, %c0_6] : memref<1x128xf32, #tpu.memory_space<vmem>>, vector<1x128xf32>
    %6 = vector.broadcast %5 : vector<1x128xf32> to vector<256x128xf32>
    %7 = arith.addf %4, %6 : vector<256x128xf32>
    %8 = vector.shape_cast %7 : vector<256x128xf32> to vector<16x16x128xf32>
    %9 = arith.truncf %8 : vector<16x16x128xf32> to vector<16x16x128xbf16>
    %c0_7 = arith.constant 0 : index
    %c0_8 = arith.constant 0 : index
    %c0_9 = arith.constant 0 : index
    %c0_10 = arith.constant 0 : index
    %10 = vector.load %arg5[%c0_7, %c0_8, %c0_9, %c0_10] : memref<1x16x16x128xbf16, #tpu.memory_space<vmem>>, vector<1x16x16x128xbf16>
    %11 = vector.shape_cast %10 : vector<1x16x16x128xbf16> to vector<16x16x128xbf16>
    %12 = vector.shape_cast %9 : vector<16x16x128xbf16> to vector<1x16x16x128xbf16>
    tpu.vector_store %arg5[%c0_7, %c0_8, %c0_9, %c0_10], %12 {strides = array<i32>} : memref<1x16x16x128xbf16, #tpu.memory_space<vmem>>, vector<1x16x16x128xbf16>,
    %cst_11 = arith.constant dense<0.000000e+00> : vector<128xf32>
    %13 = vector.multi_reduction <add>, %7, %cst_11 [0] : vector<256x128xf32> to vector<128xf32>
    %14 = vector.shape_cast %13 : vector<128xf32> to vector<1x128xf32>
    %cst_12 = arith.constant 3.906250e-03 : f32
    %15 = vector.broadcast %cst_12 : f32 to vector<1x128xf32>
    %16 = arith.mulf %14, %15 : vector<1x128xf32>
    %17 = vector.broadcast %16 : vector<1x128xf32> to vector<256x128xf32>
    %18 = arith.subf %7, %17 : vector<256x128xf32>
    %c0_13 = arith.constant 0 : index
    %c0_14 = arith.constant 0 : index
    %c0_15 = arith.constant 0 : index
    %c0_16 = arith.constant 0 : index
    %19 = vector.load %arg6[%c0_13, %c0_14, %c0_15, %c0_16] : memref<1x1x2x128xf32, #tpu.memory_space<vmem>>, vector<1x1x1x128xf32>
    %20 = vector.shape_cast %19 : vector<1x1x1x128xf32> to vector<1x128xf32>
    %21 = vector.shape_cast %14 : vector<1x128xf32> to vector<1x1x1x128xf32>
    tpu.vector_store %arg6[%c0_13, %c0_14, %c0_15, %c0_16], %21 {strides = array<i32>} : memref<1x1x2x128xf32, #tpu.memory_space<vmem>>, vector<1x1x1x128xf32>,
    %22 = arith.mulf %18, %18 : vector<256x128xf32>
    %cst_17 = arith.constant dense<0.000000e+00> : vector<128xf32>
    %23 = vector.multi_reduction <add>, %22, %cst_17 [0] : vector<256x128xf32> to vector<128xf32>
    %24 = vector.shape_cast %23 : vector<128xf32> to vector<1x128xf32>
    %c0_18 = arith.constant 0 : index
    %c0_19 = arith.constant 0 : index
    %c1 = arith.constant 1 : index
    %c0_20 = arith.constant 0 : index
    %25 = vector.load %arg6[%c0_18, %c0_19, %c1, %c0_20] : memref<1x1x2x128xf32, #tpu.memory_space<vmem>>, vector<1x1x1x128xf32>
    %26 = vector.shape_cast %25 : vector<1x1x1x128xf32> to vector<1x128xf32>
    %27 = vector.shape_cast %24 : vector<1x128xf32> to vector<1x1x1x128xf32>
    tpu.vector_store %arg6[%c0_18, %c0_19, %c1, %c0_20], %27 {strides = array<i32>} : memref<1x1x2x128xf32, #tpu.memory_space<vmem>>, vector<1x1x1x128xf32>,
    return
  }
  func.func @transform_0(%arg0: i32, %arg1: i32) -> (i32, i32, i32, i32) {
    %c0_i32 = arith.constant 0 : i32
    %c0_i32_0 = arith.constant 0 : i32
    %c0_i32_1 = arith.constant 0 : i32
    return %arg0, %arg1, %c0_i32, %c0_i32_0 : i32, i32, i32, i32
  }
  func.func @transform_1(%arg0: i32, %arg1: i32) -> (i32, i32) {
    %c0_i32 = arith.constant 0 : i32
    %c0_i32_0 = arith.constant 0 : i32
    %c0_i32_1 = arith.constant 0 : i32
    return %c0_i32, %c0_i32_0 : i32, i32
  }
  func.func @transform_2(%arg0: i32, %arg1: i32) -> (i32, i32) {
    %c0_i32 = arith.constant 0 : i32
    %c0_i32_0 = arith.constant 0 : i32
    %c0_i32_1 = arith.constant 0 : i32
    return %c0_i32, %c0_i32_0 : i32, i32
  }
  func.func @transform_3(%arg0: i32, %arg1: i32) -> (i32, i32, i32, i32) {
    %c0_i32 = arith.constant 0 : i32
    %c0_i32_0 = arith.constant 0 : i32
    %c0_i32_1 = arith.constant 0 : i32
    return %arg0, %arg1, %c0_i32, %c0_i32_0 : i32, i32, i32, i32
  }
  func.func @transform_4(%arg0: i32, %arg1: i32) -> (i32, i32, i32, i32) {
    %c0_i32 = arith.constant 0 : i32
    %c0_i32_0 = arith.constant 0 : i32
    %c0_i32_1 = arith.constant 0 : i32
    return %arg0, %arg1, %c0_i32, %c0_i32_0 : i32, i32, i32, i32
  }
}

module attributes {stable_mosaic.version = 11 : i64} {
  func.func @_bn2_relu_pack_kernel(%arg0: i32, %arg1: memref<512x128xbf16, #tpu.memory_space<vmem>>, %arg2: memref<1x128xf32, #tpu.memory_space<vmem>>, %arg3: memref<1x128xf32, #tpu.memory_space<vmem>>, %arg4: memref<8x512xf32, #tpu.memory_space<vmem>>) attributes {dimension_semantics = [#tpu.dimension_semantics<parallel>], iteration_bounds = array<i64: 1>, scalar_prefetch = 0 : i64, scratch_operands = 0 : i64, tpu.core_type = #tpu.core_type<tc>, window_params = [{transform_indices = @transform_0, window_bounds = array<i64: 512, 128>}, {pipeline_mode = #tpu.pipeline_mode<synchronous>, transform_indices = @transform_1, window_bounds = array<i64: 1, 128>}, {pipeline_mode = #tpu.pipeline_mode<synchronous>, transform_indices = @transform_2, window_bounds = array<i64: 1, 128>}, {transform_indices = @transform_3, window_bounds = array<i64: 8, 512>}]} {
    %c0 = arith.constant 0 : index
    %c0_0 = arith.constant 0 : index
    %0 = vector.load %arg3[%c0, %c0_0] : memref<1x128xf32, #tpu.memory_space<vmem>>, vector<1x128xf32>
    %cst = arith.constant 9.99999974E-6 : f32
    %1 = vector.broadcast %cst : f32 to vector<1x128xf32>
    %2 = arith.addf %0, %1 : vector<1x128xf32>
    %3 = tpu.reciprocal %2 {approx = true} : vector<1x128xf32> -> vector<1x128xf32>
    %4 = arith.mulf %2, %3 : vector<1x128xf32>
    %cst_1 = arith.constant 2.000000e+00 : f32
    %5 = vector.broadcast %cst_1 : f32 to vector<1x128xf32>
    %6 = arith.subf %5, %4 : vector<1x128xf32>
    %7 = arith.mulf %3, %6 : vector<1x128xf32>
    %c0_2 = arith.constant 0 : index
    %c0_3 = arith.constant 0 : index
    %8 = vector.load %arg1[%c0_2, %c0_3] : memref<512x128xbf16, #tpu.memory_space<vmem>>, vector<512x128xbf16>
    %9 = arith.extf %8 : vector<512x128xbf16> to vector<512x128xf32>
    %c0_4 = arith.constant 0 : index
    %c0_5 = arith.constant 0 : index
    %10 = vector.load %arg2[%c0_4, %c0_5] : memref<1x128xf32, #tpu.memory_space<vmem>>, vector<1x128xf32>
    %11 = vector.broadcast %10 : vector<1x128xf32> to vector<512x128xf32>
    %12 = arith.subf %9, %11 : vector<512x128xf32>
    %13 = vector.broadcast %7 : vector<1x128xf32> to vector<512x128xf32>
    %14 = arith.mulf %12, %13 : vector<512x128xf32>
    %cst_6 = arith.constant 0.000000e+00 : f32
    %15 = vector.broadcast %cst_6 : f32 to vector<512x128xf32>
    %16 = arith.maximumf %14, %15 : vector<512x128xf32>
    %17 = tpu.transpose %16, [1, 0] : vector<512x128xf32> -> vector<128x512xf32>
    %18 = vector.extract_strided_slice %17 {offsets = [0, 0], sizes = [8, 512], strides = [1, 1]} : vector<128x512xf32> to vector<8x512xf32>
    %c0_7 = arith.constant 0 : index
    %c0_8 = arith.constant 0 : index
    %19 = vector.load %arg4[%c0_7, %c0_8] : memref<8x512xf32, #tpu.memory_space<vmem>>, vector<8x512xf32>
    tpu.vector_store %arg4[%c0_7, %c0_8], %18 {strides = array<i32>} : memref<8x512xf32, #tpu.memory_space<vmem>>, vector<8x512xf32>,
    return
  }
  func.func @transform_0(%arg0: i32) -> (i32, i32) {
    %c0_i32 = arith.constant 0 : i32
    %c0_i32_0 = arith.constant 0 : i32
    return %arg0, %c0_i32 : i32, i32
  }
  func.func @transform_1(%arg0: i32) -> (i32, i32) {
    %c0_i32 = arith.constant 0 : i32
    %c0_i32_0 = arith.constant 0 : i32
    %c0_i32_1 = arith.constant 0 : i32
    return %c0_i32, %c0_i32_0 : i32, i32
  }
  func.func @transform_2(%arg0: i32) -> (i32, i32) {
    %c0_i32 = arith.constant 0 : i32
    %c0_i32_0 = arith.constant 0 : i32
    %c0_i32_1 = arith.constant 0 : i32
    return %c0_i32, %c0_i32_0 : i32, i32
  }
  func.func @transform_3(%arg0: i32) -> (i32, i32) {
    %c0_i32 = arith.constant 0 : i32
    %c0_i32_0 = arith.constant 0 : i32
    return %c0_i32, %arg0 : i32, i32
  }
}

module attributes {stable_mosaic.version = 11 : i64} {
  func.func @_bn1_conv2_kernel(%arg0: i32, %arg1: memref<1x16x16x128xbf16, #tpu.memory_space<vmem>>, %arg2: memref<1x128xf32, #tpu.memory_space<vmem>>, %arg3: memref<1x128xf32, #tpu.memory_space<vmem>>, %arg4: memref<9x128x128xbf16, #tpu.memory_space<vmem>>, %arg5: memref<1x128xf32, #tpu.memory_space<vmem>>, %arg6: memref<1x16x16x128xbf16, #tpu.memory_space<vmem>>, %arg7: memref<1x2x128xf32, #tpu.memory_space<vmem>>, %arg8: memref<18x32x128xbf16, #tpu.memory_space<vmem>>, %arg9: memref<256x128xf32, #tpu.memory_space<vmem>>) attributes {dimension_semantics = [#tpu.dimension_semantics<parallel>], iteration_bounds = array<i64: 2>, scalar_prefetch = 0 : i64, scratch_operands = 2 : i64, tpu.core_type = #tpu.core_type<tc>, window_params = [{transform_indices = @transform_0, window_bounds = array<i64: 1, 16, 16, 128>}, {pipeline_mode = #tpu.pipeline_mode<synchronous>, transform_indices = @transform_1, window_bounds = array<i64: 1, 128>}, {pipeline_mode = #tpu.pipeline_mode<synchronous>, transform_indices = @transform_2, window_bounds = array<i64: 1, 128>}, {pipeline_mode = #tpu.pipeline_mode<synchronous>, transform_indices = @transform_3, window_bounds = array<i64: 9, 128, 128>}, {pipeline_mode = #tpu.pipeline_mode<synchronous>, transform_indices = @transform_4, window_bounds = array<i64: 1, 128>}, {transform_indices = @transform_5, window_bounds = array<i64: 1, 16, 16, 128>}, {transform_indices = @transform_6, window_bounds = array<i64: 1, 2, 128>}]} {
    %c0 = arith.constant 0 : index
    %c0_0 = arith.constant 0 : index
    %0 = vector.load %arg3[%c0, %c0_0] : memref<1x128xf32, #tpu.memory_space<vmem>>, vector<1x128xf32>
    %cst = arith.constant 9.99999974E-6 : f32
    %1 = vector.broadcast %cst : f32 to vector<1x128xf32>
    %2 = arith.addf %0, %1 : vector<1x128xf32>
    %3 = tpu.reciprocal %2 {approx = true} : vector<1x128xf32> -> vector<1x128xf32>
    %4 = arith.mulf %2, %3 : vector<1x128xf32>
    %cst_1 = arith.constant 2.000000e+00 : f32
    %5 = vector.broadcast %cst_1 : f32 to vector<1x128xf32>
    %6 = arith.subf %5, %4 : vector<1x128xf32>
    %7 = arith.mulf %3, %6 : vector<1x128xf32>
    %c0_2 = arith.constant 0 : index
    %c0_3 = arith.constant 0 : index
    %c0_4 = arith.constant 0 : index
    %c0_5 = arith.constant 0 : index
    %8 = vector.load %arg1[%c0_2, %c0_3, %c0_4, %c0_5] : memref<1x16x16x128xbf16, #tpu.memory_space<vmem>>, vector<1x16x16x128xbf16>
    %9 = vector.shape_cast %8 : vector<1x16x16x128xbf16> to vector<16x16x128xbf16>
    %10 = vector.shape_cast %9 : vector<16x16x128xbf16> to vector<256x128xbf16>
    %11 = arith.extf %10 : vector<256x128xbf16> to vector<256x128xf32>
    %c0_6 = arith.constant 0 : index
    %c0_7 = arith.constant 0 : index
    %12 = vector.load %arg2[%c0_6, %c0_7] : memref<1x128xf32, #tpu.memory_space<vmem>>, vector<1x128xf32>
    %13 = vector.broadcast %12 : vector<1x128xf32> to vector<256x128xf32>
    %14 = arith.subf %11, %13 : vector<256x128xf32>
    %15 = vector.broadcast %7 : vector<1x128xf32> to vector<256x128xf32>
    %16 = arith.mulf %14, %15 : vector<256x128xf32>
    %cst_8 = arith.constant 0.000000e+00 : f32
    %17 = vector.broadcast %cst_8 : f32 to vector<256x128xf32>
    %18 = arith.maximumf %16, %17 : vector<256x128xf32>
    %cst_9 = arith.constant 0.000000e+00 : bf16
    %19 = vector.broadcast %cst_9 : bf16 to vector<32x128xbf16>
    %c0_10 = arith.constant 0 : index
    %c0_11 = arith.constant 0 : index
    %c0_12 = arith.constant 0 : index
    %20 = vector.load %arg8[%c0_10, %c0_11, %c0_12] : memref<18x32x128xbf16, #tpu.memory_space<vmem>>, vector<1x32x128xbf16>
    %21 = vector.shape_cast %20 : vector<1x32x128xbf16> to vector<32x128xbf16>
    %22 = vector.shape_cast %19 : vector<32x128xbf16> to vector<1x32x128xbf16>
    tpu.vector_store %arg8[%c0_10, %c0_11, %c0_12], %22 {strides = array<i32>} : memref<18x32x128xbf16, #tpu.memory_space<vmem>>, vector<1x32x128xbf16>,
    %cst_13 = arith.constant 0.000000e+00 : bf16
    %23 = vector.broadcast %cst_13 : bf16 to vector<32x128xbf16>
    %c17 = arith.constant 17 : index
    %c0_14 = arith.constant 0 : index
    %c0_15 = arith.constant 0 : index
    %24 = vector.load %arg8[%c17, %c0_14, %c0_15] : memref<18x32x128xbf16, #tpu.memory_space<vmem>>, vector<1x32x128xbf16>
    %25 = vector.shape_cast %24 : vector<1x32x128xbf16> to vector<32x128xbf16>
    %26 = vector.shape_cast %23 : vector<32x128xbf16> to vector<1x32x128xbf16>
    tpu.vector_store %arg8[%c17, %c0_14, %c0_15], %26 {strides = array<i32>} : memref<18x32x128xbf16, #tpu.memory_space<vmem>>, vector<1x32x128xbf16>,
    %cst_16 = arith.constant 0.000000e+00 : bf16
    %27 = vector.broadcast %cst_16 : bf16 to vector<18x8x128xbf16>
    %c0_17 = arith.constant 0 : index
    %c0_18 = arith.constant 0 : index
    %c0_19 = arith.constant 0 : index
    %28 = vector.load %arg8[%c0_17, %c0_18, %c0_19] : memref<18x32x128xbf16, #tpu.memory_space<vmem>>, vector<18x8x128xbf16>
    tpu.vector_store %arg8[%c0_17, %c0_18, %c0_19], %27 {strides = array<i32>} : memref<18x32x128xbf16, #tpu.memory_space<vmem>>, vector<18x8x128xbf16>,
    %cst_20 = arith.constant 0.000000e+00 : bf16
    %29 = vector.broadcast %cst_20 : bf16 to vector<18x8x128xbf16>
    %c0_21 = arith.constant 0 : index
    %c24 = arith.constant 24 : index
    %c0_22 = arith.constant 0 : index
    %30 = vector.load %arg8[%c0_21, %c24, %c0_22] : memref<18x32x128xbf16, #tpu.memory_space<vmem>>, vector<18x8x128xbf16>
    tpu.vector_store %arg8[%c0_21, %c24, %c0_22], %29 {strides = array<i32>} : memref<18x32x128xbf16, #tpu.memory_space<vmem>>, vector<18x8x128xbf16>,
    %31 = vector.shape_cast %18 : vector<256x128xf32> to vector<16x16x128xf32>
    %32 = arith.truncf %31 : vector<16x16x128xf32> to vector<16x16x128xbf16>
    %c1 = arith.constant 1 : index
    %c8 = arith.constant 8 : index
    %c0_23 = arith.constant 0 : index
    %33 = vector.load %arg8[%c1, %c8, %c0_23] : memref<18x32x128xbf16, #tpu.memory_space<vmem>>, vector<16x16x128xbf16>
    tpu.vector_store %arg8[%c1, %c8, %c0_23], %32 {strides = array<i32>} : memref<18x32x128xbf16, #tpu.memory_space<vmem>>, vector<16x16x128xbf16>,
    %c0_24 = arith.constant 0 : index
    %c0_25 = arith.constant 0 : index
    %34 = vector.load %arg5[%c0_24, %c0_25] : memref<1x128xf32, #tpu.memory_space<vmem>>, vector<1x128xf32>
    %35 = vector.shape_cast %34 : vector<1x128xf32> to vector<1x128xf32>
    %36 = vector.broadcast %35 : vector<1x128xf32> to vector<256x128xf32>
    %c0_26 = arith.constant 0 : index
    %c0_27 = arith.constant 0 : index
    %37 = vector.load %arg9[%c0_26, %c0_27] : memref<256x128xf32, #tpu.memory_space<vmem>>, vector<256x128xf32>
    tpu.vector_store %arg9[%c0_26, %c0_27], %36 {strides = array<i32>} : memref<256x128xf32, #tpu.memory_space<vmem>>, vector<256x128xf32>,
    %c0_28 = arith.constant 0 : index
    %c7 = arith.constant 7 : index
    %c0_29 = arith.constant 0 : index
    %38 = vector.load %arg8[%c0_28, %c7, %c0_29] : memref<18x32x128xbf16, #tpu.memory_space<vmem>>, vector<16x16x128xbf16>
    %39 = vector.shape_cast %38 : vector<16x16x128xbf16> to vector<256x128xbf16>
    %c0_30 = arith.constant 0 : index
    %c0_31 = arith.constant 0 : index
    %40 = vector.load %arg9[%c0_30, %c0_31] : memref<256x128xf32, #tpu.memory_space<vmem>>, vector<256x128xf32>
    %c0_32 = arith.constant 0 : index
    %c0_33 = arith.constant 0 : index
    %c0_34 = arith.constant 0 : index
    %41 = vector.load %arg4[%c0_32, %c0_33, %c0_34] : memref<9x128x128xbf16, #tpu.memory_space<vmem>>, vector<1x128x128xbf16>
    %42 = vector.shape_cast %41 : vector<1x128x128xbf16> to vector<128x128xbf16>
    %cst_35 = arith.constant dense<0.000000e+00> : vector<256x128xf32>
    %43 = tpu.matmul %39, %42, %cst_35 {dimension_numbers = #tpu.dot_dimension_numbers<[1], [0], [0], [1], [0, 0, 1, 1], [], []>} : vector<256x128xbf16>, vector<128x128xbf16>, vector<256x128xf32> -> vector<256x128xf32>
    %44 = arith.addf %40, %43 : vector<256x128xf32>
    %c0_36 = arith.constant 0 : index
    %c0_37 = arith.constant 0 : index
    %45 = vector.load %arg9[%c0_36, %c0_37] : memref<256x128xf32, #tpu.memory_space<vmem>>, vector<256x128xf32>
    tpu.vector_store %arg9[%c0_36, %c0_37], %44 {strides = array<i32>} : memref<256x128xf32, #tpu.memory_space<vmem>>, vector<256x128xf32>,
    %c0_38 = arith.constant 0 : index
    %c8_39 = arith.constant 8 : index
    %c0_40 = arith.constant 0 : index
    %46 = vector.load %arg8[%c0_38, %c8_39, %c0_40] : memref<18x32x128xbf16, #tpu.memory_space<vmem>>, vector<16x16x128xbf16>
    %47 = vector.shape_cast %46 : vector<16x16x128xbf16> to vector<256x128xbf16>
    %c0_41 = arith.constant 0 : index
    %c0_42 = arith.constant 0 : index
    %48 = vector.load %arg9[%c0_41, %c0_42] : memref<256x128xf32, #tpu.memory_space<vmem>>, vector<256x128xf32>
    %c1_43 = arith.constant 1 : index
    %c0_44 = arith.constant 0 : index
    %c0_45 = arith.constant 0 : index
    %49 = vector.load %arg4[%c1_43, %c0_44, %c0_45] : memref<9x128x128xbf16, #tpu.memory_space<vmem>>, vector<1x128x128xbf16>
    %50 = vector.shape_cast %49 : vector<1x128x128xbf16> to vector<128x128xbf16>
    %cst_46 = arith.constant dense<0.000000e+00> : vector<256x128xf32>
    %51 = tpu.matmul %47, %50, %cst_46 {dimension_numbers = #tpu.dot_dimension_numbers<[1], [0], [0], [1], [0, 0, 1, 1], [], []>} : vector<256x128xbf16>, vector<128x128xbf16>, vector<256x128xf32> -> vector<256x128xf32>
    %52 = arith.addf %48, %51 : vector<256x128xf32>
    %c0_47 = arith.constant 0 : index
    %c0_48 = arith.constant 0 : index
    %53 = vector.load %arg9[%c0_47, %c0_48] : memref<256x128xf32, #tpu.memory_space<vmem>>, vector<256x128xf32>
    tpu.vector_store %arg9[%c0_47, %c0_48], %52 {strides = array<i32>} : memref<256x128xf32, #tpu.memory_space<vmem>>, vector<256x128xf32>,
    %c0_49 = arith.constant 0 : index
    %c9 = arith.constant 9 : index
    %c0_50 = arith.constant 0 : index
    %54 = vector.load %arg8[%c0_49, %c9, %c0_50] : memref<18x32x128xbf16, #tpu.memory_space<vmem>>, vector<16x16x128xbf16>
    %55 = vector.shape_cast %54 : vector<16x16x128xbf16> to vector<256x128xbf16>
    %c0_51 = arith.constant 0 : index
    %c0_52 = arith.constant 0 : index
    %56 = vector.load %arg9[%c0_51, %c0_52] : memref<256x128xf32, #tpu.memory_space<vmem>>, vector<256x128xf32>
    %c2 = arith.constant 2 : index
    %c0_53 = arith.constant 0 : index
    %c0_54 = arith.constant 0 : index
    %57 = vector.load %arg4[%c2, %c0_53, %c0_54] : memref<9x128x128xbf16, #tpu.memory_space<vmem>>, vector<1x128x128xbf16>
    %58 = vector.shape_cast %57 : vector<1x128x128xbf16> to vector<128x128xbf16>
    %cst_55 = arith.constant dense<0.000000e+00> : vector<256x128xf32>
    %59 = tpu.matmul %55, %58, %cst_55 {dimension_numbers = #tpu.dot_dimension_numbers<[1], [0], [0], [1], [0, 0, 1, 1], [], []>} : vector<256x128xbf16>, vector<128x128xbf16>, vector<256x128xf32> -> vector<256x128xf32>
    %60 = arith.addf %56, %59 : vector<256x128xf32>
    %c0_56 = arith.constant 0 : index
    %c0_57 = arith.constant 0 : index
    %61 = vector.load %arg9[%c0_56, %c0_57] : memref<256x128xf32, #tpu.memory_space<vmem>>, vector<256x128xf32>
    tpu.vector_store %arg9[%c0_56, %c0_57], %60 {strides = array<i32>} : memref<256x128xf32, #tpu.memory_space<vmem>>, vector<256x128xf32>,
    %c1_58 = arith.constant 1 : index
    %c7_59 = arith.constant 7 : index
    %c0_60 = arith.constant 0 : index
    %62 = vector.load %arg8[%c1_58, %c7_59, %c0_60] : memref<18x32x128xbf16, #tpu.memory_space<vmem>>, vector<16x16x128xbf16>
    %63 = vector.shape_cast %62 : vector<16x16x128xbf16> to vector<256x128xbf16>
    %c0_61 = arith.constant 0 : index
    %c0_62 = arith.constant 0 : index
    %64 = vector.load %arg9[%c0_61, %c0_62] : memref<256x128xf32, #tpu.memory_space<vmem>>, vector<256x128xf32>
    %c3 = arith.constant 3 : index
    %c0_63 = arith.constant 0 : index
    %c0_64 = arith.constant 0 : index
    %65 = vector.load %arg4[%c3, %c0_63, %c0_64] : memref<9x128x128xbf16, #tpu.memory_space<vmem>>, vector<1x128x128xbf16>
    %66 = vector.shape_cast %65 : vector<1x128x128xbf16> to vector<128x128xbf16>
    %cst_65 = arith.constant dense<0.000000e+00> : vector<256x128xf32>
    %67 = tpu.matmul %63, %66, %cst_65 {dimension_numbers = #tpu.dot_dimension_numbers<[1], [0], [0], [1], [0, 0, 1, 1], [], []>} : vector<256x128xbf16>, vector<128x128xbf16>, vector<256x128xf32> -> vector<256x128xf32>
    %68 = arith.addf %64, %67 : vector<256x128xf32>
    %c0_66 = arith.constant 0 : index
    %c0_67 = arith.constant 0 : index
    %69 = vector.load %arg9[%c0_66, %c0_67] : memref<256x128xf32, #tpu.memory_space<vmem>>, vector<256x128xf32>
    tpu.vector_store %arg9[%c0_66, %c0_67], %68 {strides = array<i32>} : memref<256x128xf32, #tpu.memory_space<vmem>>, vector<256x128xf32>,
    %c1_68 = arith.constant 1 : index
    %c8_69 = arith.constant 8 : index
    %c0_70 = arith.constant 0 : index
    %70 = vector.load %arg8[%c1_68, %c8_69, %c0_70] : memref<18x32x128xbf16, #tpu.memory_space<vmem>>, vector<16x16x128xbf16>
    %71 = vector.shape_cast %70 : vector<16x16x128xbf16> to vector<256x128xbf16>
    %c0_71 = arith.constant 0 : index
    %c0_72 = arith.constant 0 : index
    %72 = vector.load %arg9[%c0_71, %c0_72] : memref<256x128xf32, #tpu.memory_space<vmem>>, vector<256x128xf32>
    %c4 = arith.constant 4 : index
    %c0_73 = arith.constant 0 : index
    %c0_74 = arith.constant 0 : index
    %73 = vector.load %arg4[%c4, %c0_73, %c0_74] : memref<9x128x128xbf16, #tpu.memory_space<vmem>>, vector<1x128x128xbf16>
    %74 = vector.shape_cast %73 : vector<1x128x128xbf16> to vector<128x128xbf16>
    %cst_75 = arith.constant dense<0.000000e+00> : vector<256x128xf32>
    %75 = tpu.matmul %71, %74, %cst_75 {dimension_numbers = #tpu.dot_dimension_numbers<[1], [0], [0], [1], [0, 0, 1, 1], [], []>} : vector<256x128xbf16>, vector<128x128xbf16>, vector<256x128xf32> -> vector<256x128xf32>
    %76 = arith.addf %72, %75 : vector<256x128xf32>
    %c0_76 = arith.constant 0 : index
    %c0_77 = arith.constant 0 : index
    %77 = vector.load %arg9[%c0_76, %c0_77] : memref<256x128xf32, #tpu.memory_space<vmem>>, vector<256x128xf32>
    tpu.vector_store %arg9[%c0_76, %c0_77], %76 {strides = array<i32>} : memref<256x128xf32, #tpu.memory_space<vmem>>, vector<256x128xf32>,
    %c1_78 = arith.constant 1 : index
    %c9_79 = arith.constant 9 : index
    %c0_80 = arith.constant 0 : index
    %78 = vector.load %arg8[%c1_78, %c9_79, %c0_80] : memref<18x32x128xbf16, #tpu.memory_space<vmem>>, vector<16x16x128xbf16>
    %79 = vector.shape_cast %78 : vector<16x16x128xbf16> to vector<256x128xbf16>
    %c0_81 = arith.constant 0 : index
    %c0_82 = arith.constant 0 : index
    %80 = vector.load %arg9[%c0_81, %c0_82] : memref<256x128xf32, #tpu.memory_space<vmem>>, vector<256x128xf32>
    %c5 = arith.constant 5 : index
    %c0_83 = arith.constant 0 : index
    %c0_84 = arith.constant 0 : index
    %81 = vector.load %arg4[%c5, %c0_83, %c0_84] : memref<9x128x128xbf16, #tpu.memory_space<vmem>>, vector<1x128x128xbf16>
    %82 = vector.shape_cast %81 : vector<1x128x128xbf16> to vector<128x128xbf16>
    %cst_85 = arith.constant dense<0.000000e+00> : vector<256x128xf32>
    %83 = tpu.matmul %79, %82, %cst_85 {dimension_numbers = #tpu.dot_dimension_numbers<[1], [0], [0], [1], [0, 0, 1, 1], [], []>} : vector<256x128xbf16>, vector<128x128xbf16>, vector<256x128xf32> -> vector<256x128xf32>
    %84 = arith.addf %80, %83 : vector<256x128xf32>
    %c0_86 = arith.constant 0 : index
    %c0_87 = arith.constant 0 : index
    %85 = vector.load %arg9[%c0_86, %c0_87] : memref<256x128xf32, #tpu.memory_space<vmem>>, vector<256x128xf32>
    tpu.vector_store %arg9[%c0_86, %c0_87], %84 {strides = array<i32>} : memref<256x128xf32, #tpu.memory_space<vmem>>, vector<256x128xf32>,
    %c2_88 = arith.constant 2 : index
    %c7_89 = arith.constant 7 : index
    %c0_90 = arith.constant 0 : index
    %86 = vector.load %arg8[%c2_88, %c7_89, %c0_90] : memref<18x32x128xbf16, #tpu.memory_space<vmem>>, vector<16x16x128xbf16>
    %87 = vector.shape_cast %86 : vector<16x16x128xbf16> to vector<256x128xbf16>
    %c0_91 = arith.constant 0 : index
    %c0_92 = arith.constant 0 : index
    %88 = vector.load %arg9[%c0_91, %c0_92] : memref<256x128xf32, #tpu.memory_space<vmem>>, vector<256x128xf32>
    %c6 = arith.constant 6 : index
    %c0_93 = arith.constant 0 : index
    %c0_94 = arith.constant 0 : index
    %89 = vector.load %arg4[%c6, %c0_93, %c0_94] : memref<9x128x128xbf16, #tpu.memory_space<vmem>>, vector<1x128x128xbf16>
    %90 = vector.shape_cast %89 : vector<1x128x128xbf16> to vector<128x128xbf16>
    %cst_95 = arith.constant dense<0.000000e+00> : vector<256x128xf32>
    %91 = tpu.matmul %87, %90, %cst_95 {dimension_numbers = #tpu.dot_dimension_numbers<[1], [0], [0], [1], [0, 0, 1, 1], [], []>} : vector<256x128xbf16>, vector<128x128xbf16>, vector<256x128xf32> -> vector<256x128xf32>
    %92 = arith.addf %88, %91 : vector<256x128xf32>
    %c0_96 = arith.constant 0 : index
    %c0_97 = arith.constant 0 : index
    %93 = vector.load %arg9[%c0_96, %c0_97] : memref<256x128xf32, #tpu.memory_space<vmem>>, vector<256x128xf32>
    tpu.vector_store %arg9[%c0_96, %c0_97], %92 {strides = array<i32>} : memref<256x128xf32, #tpu.memory_space<vmem>>, vector<256x128xf32>,
    %c2_98 = arith.constant 2 : index
    %c8_99 = arith.constant 8 : index
    %c0_100 = arith.constant 0 : index
    %94 = vector.load %arg8[%c2_98, %c8_99, %c0_100] : memref<18x32x128xbf16, #tpu.memory_space<vmem>>, vector<16x16x128xbf16>
    %95 = vector.shape_cast %94 : vector<16x16x128xbf16> to vector<256x128xbf16>
    %c0_101 = arith.constant 0 : index
    %c0_102 = arith.constant 0 : index
    %96 = vector.load %arg9[%c0_101, %c0_102] : memref<256x128xf32, #tpu.memory_space<vmem>>, vector<256x128xf32>
    %c7_103 = arith.constant 7 : index
    %c0_104 = arith.constant 0 : index
    %c0_105 = arith.constant 0 : index
    %97 = vector.load %arg4[%c7_103, %c0_104, %c0_105] : memref<9x128x128xbf16, #tpu.memory_space<vmem>>, vector<1x128x128xbf16>
    %98 = vector.shape_cast %97 : vector<1x128x128xbf16> to vector<128x128xbf16>
    %cst_106 = arith.constant dense<0.000000e+00> : vector<256x128xf32>
    %99 = tpu.matmul %95, %98, %cst_106 {dimension_numbers = #tpu.dot_dimension_numbers<[1], [0], [0], [1], [0, 0, 1, 1], [], []>} : vector<256x128xbf16>, vector<128x128xbf16>, vector<256x128xf32> -> vector<256x128xf32>
    %100 = arith.addf %96, %99 : vector<256x128xf32>
    %c0_107 = arith.constant 0 : index
    %c0_108 = arith.constant 0 : index
    %101 = vector.load %arg9[%c0_107, %c0_108] : memref<256x128xf32, #tpu.memory_space<vmem>>, vector<256x128xf32>
    tpu.vector_store %arg9[%c0_107, %c0_108], %100 {strides = array<i32>} : memref<256x128xf32, #tpu.memory_space<vmem>>, vector<256x128xf32>,
    %c2_109 = arith.constant 2 : index
    %c9_110 = arith.constant 9 : index
    %c0_111 = arith.constant 0 : index
    %102 = vector.load %arg8[%c2_109, %c9_110, %c0_111] : memref<18x32x128xbf16, #tpu.memory_space<vmem>>, vector<16x16x128xbf16>
    %103 = vector.shape_cast %102 : vector<16x16x128xbf16> to vector<256x128xbf16>
    %c0_112 = arith.constant 0 : index
    %c0_113 = arith.constant 0 : index
    %104 = vector.load %arg9[%c0_112, %c0_113] : memref<256x128xf32, #tpu.memory_space<vmem>>, vector<256x128xf32>
    %c8_114 = arith.constant 8 : index
    %c0_115 = arith.constant 0 : index
    %c0_116 = arith.constant 0 : index
    %105 = vector.load %arg4[%c8_114, %c0_115, %c0_116] : memref<9x128x128xbf16, #tpu.memory_space<vmem>>, vector<1x128x128xbf16>
    %106 = vector.shape_cast %105 : vector<1x128x128xbf16> to vector<128x128xbf16>
    %cst_117 = arith.constant dense<0.000000e+00> : vector<256x128xf32>
    %107 = tpu.matmul %103, %106, %cst_117 {dimension_numbers = #tpu.dot_dimension_numbers<[1], [0], [0], [1], [0, 0, 1, 1], [], []>} : vector<256x128xbf16>, vector<128x128xbf16>, vector<256x128xf32> -> vector<256x128xf32>
    %108 = arith.addf %104, %107 : vector<256x128xf32>
    %c0_118 = arith.constant 0 : index
    %c0_119 = arith.constant 0 : index
    %109 = vector.load %arg9[%c0_118, %c0_119] : memref<256x128xf32, #tpu.memory_space<vmem>>, vector<256x128xf32>
    tpu.vector_store %arg9[%c0_118, %c0_119], %108 {strides = array<i32>} : memref<256x128xf32, #tpu.memory_space<vmem>>, vector<256x128xf32>,
    %c0_120 = arith.constant 0 : index
    %c0_121 = arith.constant 0 : index
    %110 = vector.load %arg9[%c0_120, %c0_121] : memref<256x128xf32, #tpu.memory_space<vmem>>, vector<256x128xf32>
    %111 = vector.shape_cast %110 : vector<256x128xf32> to vector<16x16x128xf32>
    %112 = arith.truncf %111 : vector<16x16x128xf32> to vector<16x16x128xbf16>
    %c0_122 = arith.constant 0 : index
    %c0_123 = arith.constant 0 : index
    %c0_124 = arith.constant 0 : index
    %c0_125 = arith.constant 0 : index
    %113 = vector.load %arg6[%c0_122, %c0_123, %c0_124, %c0_125] : memref<1x16x16x128xbf16, #tpu.memory_space<vmem>>, vector<1x16x16x128xbf16>
    %114 = vector.shape_cast %113 : vector<1x16x16x128xbf16> to vector<16x16x128xbf16>
    %115 = vector.shape_cast %112 : vector<16x16x128xbf16> to vector<1x16x16x128xbf16>
    tpu.vector_store %arg6[%c0_122, %c0_123, %c0_124, %c0_125], %115 {strides = array<i32>} : memref<1x16x16x128xbf16, #tpu.memory_space<vmem>>, vector<1x16x16x128xbf16>,
    %cst_126 = arith.constant dense<0.000000e+00> : vector<128xf32>
    %116 = vector.multi_reduction <add>, %110, %cst_126 [0] : vector<256x128xf32> to vector<128xf32>
    %117 = vector.shape_cast %116 : vector<128xf32> to vector<1x128xf32>
    %cst_127 = arith.constant 3.906250e-03 : f32
    %118 = vector.broadcast %cst_127 : f32 to vector<1x128xf32>
    %119 = arith.mulf %117, %118 : vector<1x128xf32>
    %120 = vector.broadcast %119 : vector<1x128xf32> to vector<256x128xf32>
    %121 = arith.subf %110, %120 : vector<256x128xf32>
    %c0_128 = arith.constant 0 : index
    %c0_129 = arith.constant 0 : index
    %c0_130 = arith.constant 0 : index
    %122 = vector.load %arg7[%c0_128, %c0_129, %c0_130] : memref<1x2x128xf32, #tpu.memory_space<vmem>>, vector<1x1x128xf32>
    %123 = vector.shape_cast %122 : vector<1x1x128xf32> to vector<1x128xf32>
    %124 = vector.shape_cast %117 : vector<1x128xf32> to vector<1x1x128xf32>
    tpu.vector_store %arg7[%c0_128, %c0_129, %c0_130], %124 {strides = array<i32>} : memref<1x2x128xf32, #tpu.memory_space<vmem>>, vector<1x1x128xf32>,
    %125 = arith.mulf %121, %121 : vector<256x128xf32>
    %cst_131 = arith.constant dense<0.000000e+00> : vector<128xf32>
    %126 = vector.multi_reduction <add>, %125, %cst_131 [0] : vector<256x128xf32> to vector<128xf32>
    %127 = vector.shape_cast %126 : vector<128xf32> to vector<1x128xf32>
    %c0_132 = arith.constant 0 : index
    %c1_133 = arith.constant 1 : index
    %c0_134 = arith.constant 0 : index
    %128 = vector.load %arg7[%c0_132, %c1_133, %c0_134] : memref<1x2x128xf32, #tpu.memory_space<vmem>>, vector<1x1x128xf32>
    %129 = vector.shape_cast %128 : vector<1x1x128xf32> to vector<1x128xf32>
    %130 = vector.shape_cast %127 : vector<1x128xf32> to vector<1x1x128xf32>
    tpu.vector_store %arg7[%c0_132, %c1_133, %c0_134], %130 {strides = array<i32>} : memref<1x2x128xf32, #tpu.memory_space<vmem>>, vector<1x1x128xf32>,
    return
  }
  func.func @transform_0(%arg0: i32) -> (i32, i32, i32, i32) {
    %c0_i32 = arith.constant 0 : i32
    %c0_i32_0 = arith.constant 0 : i32
    %c0_i32_1 = arith.constant 0 : i32
    %c0_i32_2 = arith.constant 0 : i32
    return %arg0, %c0_i32, %c0_i32_0, %c0_i32_1 : i32, i32, i32, i32
  }
  func.func @transform_1(%arg0: i32) -> (i32, i32) {
    %c0_i32 = arith.constant 0 : i32
    %c0_i32_0 = arith.constant 0 : i32
    %c0_i32_1 = arith.constant 0 : i32
    return %c0_i32, %c0_i32_0 : i32, i32
  }
  func.func @transform_2(%arg0: i32) -> (i32, i32) {
    %c0_i32 = arith.constant 0 : i32
    %c0_i32_0 = arith.constant 0 : i32
    %c0_i32_1 = arith.constant 0 : i32
    return %c0_i32, %c0_i32_0 : i32, i32
  }
  func.func @transform_3(%arg0: i32) -> (i32, i32, i32) {
    %c0_i32 = arith.constant 0 : i32
    %c0_i32_0 = arith.constant 0 : i32
    %c0_i32_1 = arith.constant 0 : i32
    %c0_i32_2 = arith.constant 0 : i32
    return %c0_i32, %c0_i32_0, %c0_i32_1 : i32, i32, i32
  }
  func.func @transform_4(%arg0: i32) -> (i32, i32) {
    %c0_i32 = arith.constant 0 : i32
    %c0_i32_0 = arith.constant 0 : i32
    %c0_i32_1 = arith.constant 0 : i32
    return %c0_i32, %c0_i32_0 : i32, i32
  }
  func.func @transform_5(%arg0: i32) -> (i32, i32, i32, i32) {
    %c0_i32 = arith.constant 0 : i32
    %c0_i32_0 = arith.constant 0 : i32
    %c0_i32_1 = arith.constant 0 : i32
    %c0_i32_2 = arith.constant 0 : i32
    return %arg0, %c0_i32, %c0_i32_0, %c0_i32_1 : i32, i32, i32, i32
  }
  func.func @transform_6(%arg0: i32) -> (i32, i32, i32) {
    %c0_i32 = arith.constant 0 : i32
    %c0_i32_0 = arith.constant 0 : i32
    %c0_i32_1 = arith.constant 0 : i32
    return %arg0, %c0_i32, %c0_i32_0 : i32, i32, i32
  }
}

</mosaic_0001>

<llo_original>
// kernel: double_conv_forward.3
$region0: #{double_conv_forward.3}
  #allocation0 [shape = 'u32[]', space=smem, size = 0x4, offset = 0x4, fixed_abs, tag = 'smem constant byte address 0x4 - core index']
  #allocation1 [shape = 'u32[144,128]{1,0:T(1,128)}', space=vmem, size = 0x12000, scoped, tag = 'internal scratch']
  %s0 = inlined_call_operand.hbm [shape: bf16[2,16,16,36], index: 0, kind: input, shape index: {}]
  %s1 = inlined_call_operand.hbm [shape: bf16[36,128], index: 1, kind: input, shape index: {}]
  %s2 = inlined_call_operand.hbm [shape: f32[1,128], index: 2, kind: input, shape index: {}]
  %s3 = inlined_call_operand.hbm [shape: bf16[2,16,16,128], index: 3, kind: output, shape index: {0}]
  %s4 = inlined_call_operand.hbm [shape: f32[2,1,2,128], index: 4, kind: output, shape index: {1}]
  %5 = xla_tuple %s3, %s4
  %s6 = sld [smem:[#allocation0]]
  $region65: #{double_conv_forward.3} parent=0
    _
  %s8 = ssub.s32 1, %s6
  %s9 = scalar_select 0, %s8, %s6
  $region1: #{double_conv_forward.3} parent=0
    #allocation2 [shape = 'u8[131072]{0}', space=vmem, size = 0x20000, scoped, tag = 'input window, operand 0']
    #allocation3 [shape = 's32[2]{0}', space=sflag, size = 0x8, scoped, tag = 'scoped memory for double_conv_forward.3']
    #allocation4 [shape = 's32[2]{0}', space=sflag, size = 0x8, scoped, tag = 'scoped memory for double_conv_forward.3']
    #allocation5 [shape = 'u8[10240]{0}', space=vmem, size = 0x2800, scoped, tag = 'input window, operand 1, single buffered']
    #allocation6 [shape = 's32[1]{0}', space=sflag, size = 0x4, scoped, tag = 'scoped memory for double_conv_forward.3']
    #allocation7 [shape = 'u8[512]{0}', space=vmem, size = 0x400, scoped, tag = 'input window, operand 2, single buffered']
    #allocation8 [shape = 'u8[131072]{0}', space=vmem, size = 0x20000, scoped, tag = 'output window, operand 0']
    #allocation9 [shape = 'u8[2048]{0}', space=vmem, size = 0x800, scoped, tag = 'output window, operand 1']
    #allocation10 [shape = 's32[2]{0}', space=sflag, size = 0x8, scoped, tag = 'scoped memory for double_conv_forward.3']
    %10 = vsyncpa [#allocation3], 0
    %s11 = scalar_lea.sflag [#allocation3], 1
    %12 = vsyncpa %s11, 0
    %13 = vsyncpa [#allocation6], 0
    %14 = vsyncpa [#allocation4], 0
    %s15 = scalar_lea.sflag [#allocation4], 1
    %16 = vsyncpa %s15, 0
    %17 = vsyncpa [#allocation10], 0
    %s18 = scalar_lea.sflag [#allocation10], 1
    %19 = vsyncpa %s18, 0
    loop: start=0, step=1, limit=4
    $region2: #{double_conv_forward.3} parent=1 // loop_pre_header
      _
    $region3: #{double_conv_forward.3} parent=1 // loop_header
      %s21 = sphi 0, %s25
      %p22 = scmp.ge.s32.totalorder %s21, 4
      %s28 = sphi 0, %s40
      %s29 = sphi 0, %s36
      %s30 = sphi 0, %s28
      %s31 = sphi 0, %s29
      %s32 = sphi 0, %s30
      %s33 = sphi 0, %s31
      %s45 = sphi 0, %s47
      %s48 = sphi 0, %s45
      %s49 = sphi 0, %s48
      %s65 = sphi 0, %s49
      %s69 = sphi 0, %s69
      %s71 = sphi 0, %s69
      %s72 = sphi 0, %s71
      %s86 = sphi 0, %s72
      %s90 = sphi 0, %s90
      %s92 = sphi 0, %s90
      %s93 = sphi 0, %s92
      %s107 = sphi 0, %s93
      %s115 = sphi 0, %s117
      %s118 = sphi 0, %s115
      %s119 = sphi 0, %s118
      %s135 = sphi 0, %s119
      %s143 = sphi 0, %s145
      %s146 = sphi 0, %s143
      %s147 = sphi 0, %s146
      %s163 = sphi 0, %s147
    $region4: #{double_conv_forward.3} parent=1 // loop_header_branch
      %24 = sbr.rel (%p22) target = $region8
    $region5: #{double_conv_forward.3} parent=1 // loop_body
      %s26 = ssub.s32 %s21, 1
      %s27 = ssub.s32 %s21, 2
      %s34 = sadd.s32 1, %s29
      %p35 = scmp.ge.s32.totalorder %s34, 1
      %s36 = scalar_select %p35, 0, %s34
      %s37 = sadd.s32 1, %s28
      %s38 = scalar_select %p35, %s37, %s28
      %p39 = scmp.ge.s32.totalorder %s38, 2
      %s40 = scalar_select %p39, 0, %s38
      %s41 = ssub.s32 %s28, %s40
      %s42 = ssub.s32 %s29, %s36
      %s43 = sor.u32 %s41, %s42
      %p44 = scmp.eq.s32.totalorder %s43, 0
      %s46 = sadd.s32 %s45, 1
      %s47 = scalar_select %p44, %s45, %s46
      %p50 = pneg %p44
      %p51 = scmp.eq.s32.totalorder %s21, 1
      %p52 = por %p50, %p51
      %p53 = scmp.ne.s32.totalorder %s45, %s48
      %p54 = scmp.eq.s32.totalorder %s21, 0
      %p55 = por %p53, %p54
      %p56 = scmp.ne.s32.totalorder %s45, %s48
      %p57 = scmp.eq.s32.totalorder %s26, 1
      %p58 = por %p56, %p57
      %p59 = scmp.ne.s32.totalorder %s48, %s49
      %p60 = scmp.eq.s32.totalorder %s26, 0
      %p61 = por %p59, %p60
      %p62 = scmp.ne.s32.totalorder %s48, %s49
      %p63 = scmp.eq.s32.totalorder %s27, 1
      %p64 = por %p62, %p63
      %p66 = scmp.ne.s32.totalorder %s49, %s65
      %p67 = scmp.eq.s32.totalorder %s27, 0
      %p68 = por %p66, %p67
      %s70 = sadd.s32 %s69, 1
      %p73 = scmp.eq.s32.totalorder %s21, 1
      %p74 = scmp.ne.s32.totalorder %s69, %s71
      %p75 = scmp.eq.s32.totalorder %s21, 0
      %p76 = por %p74, %p75
      %p77 = scmp.ne.s32.totalorder %s69, %s71
      %p78 = scmp.eq.s32.totalorder %s26, 1
      %p79 = por %p77, %p78
      %p80 = scmp.ne.s32.totalorder %s71, %s72
      %p81 = scmp.eq.s32.totalorder %s26, 0
      %p82 = por %p80, %p81
      %p83 = scmp.ne.s32.totalorder %s71, %s72
      %p84 = scmp.eq.s32.totalorder %s27, 1
      %p85 = por %p83, %p84
      %p87 = scmp.ne.s32.totalorder %s72, %s86
      %p88 = scmp.eq.s32.totalorder %s27, 0
      %p89 = por %p87, %p88
      %s91 = sadd.s32 %s90, 1
      %p94 = scmp.eq.s32.totalorder %s21, 1
      %p95 = scmp.ne.s32.totalorder %s90, %s92
      %p96 = scmp.eq.s32.totalorder %s21, 0
      %p97 = por %p95, %p96
      %p98 = scmp.ne.s32.totalorder %s90, %s92
      %p99 = scmp.eq.s32.totalorder %s26, 1
      %p100 = por %p98, %p99
      %p101 = scmp.ne.s32.totalorder %s92, %s93
      %p102 = scmp.eq.s32.totalorder %s26, 0
      %p103 = por %p101, %p102
      %p104 = scmp.ne.s32.totalorder %s92, %s93
      %p105 = scmp.eq.s32.totalorder %s27, 1
      %p106 = por %p104, %p105
      %p108 = scmp.ne.s32.totalorder %s93, %s107
      %p109 = scmp.eq.s32.totalorder %s27, 0
      %p110 = por %p108, %p109
      %s111 = ssub.s32 %s28, %s40
      %s112 = ssub.s32 %s29, %s36
      %s113 = sor.u32 %s111, %s112
      %p114 = scmp.eq.s32.totalorder %s113, 0
      %s116 = sadd.s32 %s115, 1
      %s117 = scalar_select %p114, %s115, %s116
      %p120 = pneg %p114
      %p121 = scmp.eq.s32.totalorder %s21, 1
      %p122 = por %p120, %p121
      %p123 = scmp.ne.s32.totalorder %s115, %s118
      %p124 = scmp.eq.s32.totalorder %s21, 0
      %p125 = por %p123, %p124
      %p126 = scmp.ne.s32.totalorder %s115, %s118
      %p127 = scmp.eq.s32.totalorder %s26, 1
      %p128 = por %p126, %p127
      %p129 = scmp.ne.s32.totalorder %s118, %s119
      %p130 = scmp.eq.s32.totalorder %s26, 0
      %p131 = por %p129, %p130
      %p132 = scmp.ne.s32.totalorder %s118, %s119
      %p133 = scmp.eq.s32.totalorder %s27, 1
      %p134 = por %p132, %p133
      %p136 = scmp.ne.s32.totalorder %s119, %s135
      %p137 = scmp.eq.s32.totalorder %s27, 0
      %p138 = por %p136, %p137
      %s139 = ssub.s32 %s28, %s40
      %s140 = ssub.s32 %s29, %s36
      %s141 = sor.u32 %s139, %s140
      %p142 = scmp.eq.s32.totalorder %s141, 0
      %s144 = sadd.s32 %s143, 1
      %s145 = scalar_select %p142, %s143, %s144
      %p148 = pneg %p142
      %p149 = scmp.eq.s32.totalorder %s21, 1
      %p150 = por %p148, %p149
      %p151 = scmp.ne.s32.totalorder %s143, %s146
      %p152 = scmp.eq.s32.totalorder %s21, 0
      %p153 = por %p151, %p152
      %p154 = scmp.ne.s32.totalorder %s143, %s146
      %p155 = scmp.eq.s32.totalorder %s26, 1
      %p156 = por %p154, %p155
      %p157 = scmp.ne.s32.totalorder %s146, %s147
      %p158 = scmp.eq.s32.totalorder %s26, 0
      %p159 = por %p157, %p158
      %p160 = scmp.ne.s32.totalorder %s146, %s147
      %p161 = scmp.eq.s32.totalorder %s27, 1
      %p162 = por %p160, %p161
      %p164 = scmp.ne.s32.totalorder %s147, %s163
      %p165 = scmp.eq.s32.totalorder %s27, 0
      %p166 = por %p164, %p165
      %p167 = scmp.le.s32.totalorder 1, %s21
      %p168 = scmp.lt.s32.totalorder %s21, 3
      %p169 = pnand %p167, %p168
      %p170 = pneg %p169
      // Predicated region
      $region9: #{double_conv_forward.3} parent=5 // pred_check
        _
      $region10: #{double_conv_forward.3} parent=5 // pred_check_branch
        %172 = sbr.rel (%p169) target = $region12
      $region11: #{double_conv_forward.3} parent=5 // pred_region
        %s173 = ssub.s32 %s21, 1
        // Predicated region
        $region13: #{double_conv_forward.3} parent=11 // pred_check
          %p174 = pneg %p82
        $region14: #{double_conv_forward.3} parent=11 // pred_check_branch
          %176 = sbr.rel (%p174) target = $region16
        $region15: #{double_conv_forward.3} parent=11 // pred_region
          %s178 = ssub.s32 320, 320
          %179 = vsyncadd [#allocation6], %s178
          %s180 = sshll.u32 [#allocation5], 4
          %s181 = int_to_ptr.vmem [resolvable:$true] %s180
          %186 = dma.hbm_to_vmem [thread:$0]  %s1, 320, %s181, [#allocation6], 64, 64, 4
        $region16: #{double_conv_forward.3} parent=11 // pred_fallthru
          _
        // Predicated region
        $region17: #{double_conv_forward.3} parent=11 // pred_check
          %p187 = pneg %p103
        $region18: #{double_conv_forward.3} parent=11 // pred_check_branch
          %189 = sbr.rel (%p187) target = $region20
        $region19: #{double_conv_forward.3} parent=11 // pred_region
          %s191 = ssub.s32 16, 16
          %192 = vsyncadd [#allocation6], %s191
          %s194 = sshll.u32 [#allocation7], 4
          %s195 = int_to_ptr.vmem [resolvable:$true] %s194
          %197 = dma.hbm_to_vmem [thread:$0]  %s2, 16, %s195, [#allocation6]
        $region20: #{double_conv_forward.3} parent=11 // pred_fallthru
          _
      $region12: #{double_conv_forward.3} parent=5 // pred_fallthru
        _
      %p198 = scmp.lt.s32.totalorder %s21, 2
      // Predicated region
      $region21: #{double_conv_forward.3} parent=5 // pred_check
        %p199 = pneg %p198
      $region22: #{double_conv_forward.3} parent=5 // pred_check_branch
        %201 = sbr.rel (%p199) target = $region24
      $region23: #{double_conv_forward.3} parent=5 // pred_region
        // Predicated region
        $region25: #{double_conv_forward.3} parent=23 // pred_check
          %p202 = pneg %p55
        $region26: #{double_conv_forward.3} parent=23 // pred_check_branch
          %204 = sbr.rel (%p202) target = $region28
        $region27: #{double_conv_forward.3} parent=23 // pred_region
          %s205 = sand.u32 %s45, 1
          %s206 = scalar_lea.sflag [#allocation3], %s205
          %s207 = sand.u32 %s45, 1
          %s208 = smul.addr %s207, 128
          %s209 = scalar_lea.vmem [#allocation2], %s208
          %s210 = smul.u32 16, %s29
          %s212 = ssub.s32 2048, 2048
          %213 = vsyncadd %s206, %s212
          %s214 = smul.addr %s210, 2
          %s215 = smul.addr %s28, 32
          %s216 = sadd.s32 %s214, %s215
          %s217 = smul.addr %s216, 64
          %s218 = scalar_lea.hbm %s0, %s217
          %s219 = sshll.u32 %s209, 4
          %s220 = int_to_ptr.vmem [resolvable:$true] %s219
          %225 = dma.hbm_to_vmem [thread:$0]  %s218, 2048, %s220, %s206, 64, 64, 4
        $region28: #{double_conv_forward.3} parent=23 // pred_fallthru
          _
      $region24: #{double_conv_forward.3} parent=5 // pred_fallthru
        _
      %p226 = scmp.le.s32.totalorder 1, %s21
      %p227 = scmp.lt.s32.totalorder %s21, 3
      %p228 = pnand %p226, %p227
      %p229 = pneg %p228
      // Predicated region
      $region29: #{double_conv_forward.3} parent=5 // pred_check
        _
      $region30: #{double_conv_forward.3} parent=5 // pred_check_branch
        %231 = sbr.rel (%p228) target = $region32
      $region31: #{double_conv_forward.3} parent=5 // pred_region
        %s232 = ssub.s32 %s21, 1
        %s233 = sand.u32 %s48, 1
        %s234 = scalar_lea.sflag [#allocation3], %s233
        %s235 = sand.u32 %s48, 1
        %s236 = smul.addr %s235, 128
        %s237 = scalar_lea.vmem [#allocation2], %s236
        // Predicated region
        $region33: #{double_conv_forward.3} parent=31 // pred_check
          %p238 = pneg %p61
        $region34: #{double_conv_forward.3} parent=31 // pred_check_branch
          %240 = sbr.rel (%p238) target = $region36
        $region35: #{double_conv_forward.3} parent=31 // pred_region
          %241 = dma.done %s234, 2048
        $region36: #{double_conv_forward.3} parent=31 // pred_fallthru
          _
        // Predicated region
        $region37: #{double_conv_forward.3} parent=31 // pred_check
          %p242 = pneg %p82
        $region38: #{double_conv_forward.3} parent=31 // pred_check_branch
          %244 = sbr.rel (%p242) target = $region40
        $region39: #{double_conv_forward.3} parent=31 // pred_region
          %245 = dma.done [#allocation6], 320
        $region40: #{double_conv_forward.3} parent=31 // pred_fallthru
          _
        // Predicated region
        $region41: #{double_conv_forward.3} parent=31 // pred_check
          %p246 = pneg %p103
        $region42: #{double_conv_forward.3} parent=31 // pred_check_branch
          %248 = sbr.rel (%p246) target = $region44
        $region43: #{double_conv_forward.3} parent=31 // pred_region
          %249 = dma.done [#allocation6], 16
        $region44: #{double_conv_forward.3} parent=31 // pred_fallthru
          _
        %s250 = sand.u32 %s48, 1
        %s251 = scalar_lea.sflag [#allocation3], %s250
        %s252 = sand.u32 %s48, 1
        %s253 = smul.addr %s252, 128
        %s254 = scalar_lea.vmem [#allocation2], %s253
        %p255 = pneg %p61
        %p256 = pneg %p58
        %p257 = pneg %p82
        %p258 = pneg %p79
        %p259 = pneg %p103
        %p260 = pneg %p100
        %p261 = pneg %p131
        %p262 = pneg %p128
        %s263 = sand.u32 %s118, 1
        %s264 = scalar_lea.sflag [#allocation4], %s263
        %s265 = sand.u32 %s118, 1
        %s266 = smul.addr %s265, 128
        %s267 = scalar_lea.vmem [#allocation8], %s266
        %p268 = pneg %p159
        %p269 = pneg %p156
        %s270 = sand.u32 %s146, 1
        %s271 = scalar_lea.sflag [#allocation10], %s270
        %s272 = sand.u32 %s146, 1
        %s273 = smul.addr %s272, 2
        %s274 = scalar_lea.vmem [#allocation9], %s273
        %s275 = smul.u32 16, %s31
        %s276 = smul.u32 16, %s31
        %v278 = vld [vmem:[%s237] sm:$0xf]
        %v279 = vld [vmem:[%s237 + $0x4] sm:$0xf]
        %v280 = vld [vmem:[%s237 + $0x8] sm:$0xf]
        %v281 = vld [vmem:[%s237 + $0xc] sm:$0xf]
        %v282 = vld [vmem:[%s237 + $0x10] sm:$0xf]
        %v283 = vld [vmem:[%s237 + $0x14] sm:$0xf]
        %v284 = vld [vmem:[%s237 + $0x18] sm:$0xf]
        %v285 = vld [vmem:[%s237 + $0x1c] sm:$0xf]
        %v286 = vld [vmem:[%s237 + $0x20] sm:$0xf]
        %v287 = vld [vmem:[%s237 + $0x24] sm:$0xf]
        %v288 = vld [vmem:[%s237 + $0x28] sm:$0xf]
        %v289 = vld [vmem:[%s237 + $0x2c] sm:$0xf]
        %v290 = vld [vmem:[%s237 + $0x30] sm:$0xf]
        %v291 = vld [vmem:[%s237 + $0x34] sm:$0xf]
        %v292 = vld [vmem:[%s237 + $0x38] sm:$0xf]
        %v293 = vld [vmem:[%s237 + $0x3c] sm:$0xf]
        %v294 = vld [vmem:[%s237 + $0x40] sm:$0xf]
        %v295 = vld [vmem:[%s237 + $0x44] sm:$0xf]
        %v296 = vld [vmem:[%s237 + $0x48] sm:$0xf]
        %v297 = vld [vmem:[%s237 + $0x4c] sm:$0xf]
        %v298 = vld [vmem:[%s237 + $0x50] sm:$0xf]
        %v299 = vld [vmem:[%s237 + $0x54] sm:$0xf]
        %v300 = vld [vmem:[%s237 + $0x58] sm:$0xf]
        %v301 = vld [vmem:[%s237 + $0x5c] sm:$0xf]
        %v302 = vld [vmem:[%s237 + $0x60] sm:$0xf]
        %v303 = vld [vmem:[%s237 + $0x64] sm:$0xf]
        %v304 = vld [vmem:[%s237 + $0x68] sm:$0xf]
        %v305 = vld [vmem:[%s237 + $0x6c] sm:$0xf]
        %v306 = vld [vmem:[%s237 + $0x70] sm:$0xf]
        %v307 = vld [vmem:[%s237 + $0x74] sm:$0xf]
        %v308 = vld [vmem:[%s237 + $0x78] sm:$0xf]
        %v309 = vld [vmem:[%s237 + $0x7c] sm:$0xf]
        %v310 = vld [vmem:[#allocation5] sm:$0xf]
        %v311 = vld [vmem:[#allocation5 + $0x4] sm:$0xf]
        %v312 = vld [vmem:[#allocation5 + $0x8] sm:$0xf]
        %v313 = vld [vmem:[#allocation5 + $0xc] sm:$0xf]
        %v314 = vld [vmem:[#allocation5 + $0x10] sm:$0x3]
        %v315 = vld [vmem:[#allocation7] sm:$0x1]
        %v317 = vlaneseq
        %v318 = vshrl.u32 %v317, 7
        %v319 = vsub.s32 0, %v318
        %v320 = vrot.slane %v315, %v319
        %v354 = vunpack.c.l.b16 %v278
        %v355 = vunpack.c.l.b16 %v279
        %v356 = vunpack.c.l.b16 %v280
        %v357 = vunpack.c.l.b16 %v281
        %v358 = vunpack.c.l.b16 %v282
        %v359 = vunpack.c.l.b16 %v283
        %v360 = vunpack.c.l.b16 %v284
        %v361 = vunpack.c.l.b16 %v285
        %v362 = vunpack.c.l.b16 %v286
        %v363 = vunpack.c.l.b16 %v287
        %v364 = vunpack.c.l.b16 %v288
        %v365 = vunpack.c.l.b16 %v289
        %v366 = vunpack.c.l.b16 %v290
        %v367 = vunpack.c.l.b16 %v291
        %v368 = vunpack.c.l.b16 %v292
        %v369 = vunpack.c.l.b16 %v293
        %v370 = vunpack.c.l.b16 %v294
        %v371 = vunpack.c.l.b16 %v295
        %v372 = vunpack.c.l.b16 %v296
        %v373 = vunpack.c.l.b16 %v297
        %v374 = vunpack.c.l.b16 %v298
        %v375 = vunpack.c.l.b16 %v299
        %v376 = vunpack.c.l.b16 %v300
        %v377 = vunpack.c.l.b16 %v301
        %v378 = vunpack.c.l.b16 %v302
        %v379 = vunpack.c.l.b16 %v303
        %v380 = vunpack.c.l.b16 %v304
        %v381 = vunpack.c.l.b16 %v305
        %v382 = vunpack.c.l.b16 %v306
        %v383 = vunpack.c.l.b16 %v307
        %v384 = vunpack.c.l.b16 %v308
        %v385 = vunpack.c.l.b16 %v309
        %v386 = vpack.c.b16 %v355, %v354
        %v387 = vpack.c.b16 %v357, %v356
        %v388 = vpack.c.b16 %v359, %v358
        %v389 = vpack.c.b16 %v361, %v360
        %v390 = vpack.c.b16 %v363, %v362
        %v391 = vpack.c.b16 %v365, %v364
        %v392 = vpack.c.b16 %v367, %v366
        %v393 = vpack.c.b16 %v369, %v368
        %v394 = vpack.c.b16 %v371, %v370
        %v395 = vpack.c.b16 %v373, %v372
        %v396 = vpack.c.b16 %v375, %v374
        %v397 = vpack.c.b16 %v377, %v376
        %v398 = vpack.c.b16 %v379, %v378
        %v399 = vpack.c.b16 %v381, %v380
        %v400 = vpack.c.b16 %v383, %v382
        %v401 = vpack.c.b16 %v385, %v384
        %v407 = vunpack.c.l.b16 %v310
        %v408 = vunpack.c.l.b16 %v311
        %v409 = vunpack.c.l.b16 %v312
        %v410 = vunpack.c.l.b16 %v313
        %v411 = vunpack.c.l.b16 %v314
        %v412 = vpack.c.b16 %v408, %v407
        %v413 = vpack.c.b16 %v410, %v409
        %v414 = vpack.c.b16 %v411, %v411
        %vm417 = vcmask 293888
        %v419 = vsel %vm417, %v386, 0
        %v422 = vsel %vm417, %v387, 0
        %v425 = vsel %vm417, %v388, 0
        %v428 = vsel %vm417, %v389, 0
        %v431 = vsel %vm417, %v390, 0
        %v434 = vsel %vm417, %v391, 0
        %v437 = vsel %vm417, %v392, 0
        %v440 = vsel %vm417, %v393, 0
        %v443 = vsel %vm417, %v394, 0
        %v446 = vsel %vm417, %v395, 0
        %v449 = vsel %vm417, %v396, 0
        %v452 = vsel %vm417, %v397, 0
        %v455 = vsel %vm417, %v398, 0
        %v458 = vsel %vm417, %v399, 0
        %v461 = vsel %vm417, %v400, 0
        %v464 = vsel %vm417, %v401, 0
        %vm466 = vcmask 1041408
        %v468 = vsel %vm466, %v414, 0
        %470 = vmatprep.subr.bf16.mxu0 0
        %471 = vmatpush1.bf16.msra.mxu0 %v412
        %472 = vmatprep.subr.bf16.mxu0 0
        %473 = vmatpush1.bf16.msra.mxu0 %v413
        %474 = vmatprep.subr.bf16.mxu0 0
        %475 = vmatpush1.bf16.msra.mxu0 %v468
        %476 = vmatprep.subr.bf16.mxu0 0
        %477 = vmatpush1.bf16.msra.mxu0 0
        %478 = vmatprep.subr.bf16.mxu0 0
        %479 = vmatpush1.bf16.msra.mxu0 0
        %480 = vmatprep.subr.bf16.mxu0 0
        %481 = vmatpush1.bf16.msra.mxu0 0
        %482 = vmatprep.subr.bf16.mxu0 0
        %483 = vmatpush1.bf16.msra.mxu0 0
        %484 = vmatprep.subr.bf16.mxu0 0
        %485 = vmatpush1.bf16.msra.mxu0 0
        %486 = vmatprep.subr.bf16.mxu0 0
        %487 = vmatpush1.bf16.msra.mxu0 0
        %488 = vmatprep.subr.bf16.mxu0 0
        %489 = vmatpush1.bf16.msra.mxu0 0
        %490 = vmatprep.subr.bf16.mxu0 0
        %491 = vmatpush1.bf16.msra.mxu0 0
        %492 = vmatprep.subr.bf16.mxu0 0
        %493 = vmatpush1.bf16.msra.mxu0 0
        %494 = vmatprep.subr.bf16.mxu0 0
        %495 = vmatpush1.bf16.msra.mxu0 0
        %496 = vmatprep.subr.bf16.mxu0 0
        %497 = vmatpush1.bf16.msra.mxu0 0
        %498 = vmatprep.subr.bf16.mxu0 0
        %499 = vmatpush1.bf16.msra.mxu0 0
        %500 = vmatprep.subr.bf16.mxu0 0
        %501 = vmatpush1.bf16.msra.mxu0 0
        %502 = vmatprep.mubr.bf16.mxu0 0
        %503 = vmatmul.mubr.bf16.gmra.mrb[0].mxu0 %v419
        %v504 = vpop.f32.mrb[0].mxu0
        %v505 = vadd.f32 %v320, %v504
        %v506 = vpop.f32.mrb[0].mxu0
        %v507 = vpop.f32.mrb[0].mxu0
        %v508 = vadd.f32 %v320, %v507
        %v509 = vpop.f32.mrb[0].mxu0
        %510 = vmatprep.mubr.bf16.mxu0 0
        %511 = vmatmul.mubr.bf16.gmra.mrb[0].mxu0 %v422
        %v512 = vpop.f32.mrb[0].mxu0
        %v513 = vadd.f32 %v320, %v512
        %v514 = vpop.f32.mrb[0].mxu0
        %v515 = vpop.f32.mrb[0].mxu0
        %v516 = vadd.f32 %v320, %v515
        %v517 = vpop.f32.mrb[0].mxu0
        %518 = vmatprep.mubr.bf16.mxu0 0
        %519 = vmatmul.mubr.bf16.gmra.mrb[0].mxu0 %v425
        %v520 = vpop.f32.mrb[0].mxu0
        %v521 = vadd.f32 %v320, %v520
        %v522 = vpop.f32.mrb[0].mxu0
        %v523 = vpop.f32.mrb[0].mxu0
        %v524 = vadd.f32 %v320, %v523
        %v525 = vpop.f32.mrb[0].mxu0
        %526 = vmatprep.mubr.bf16.mxu0 0
        %527 = vmatmul.mubr.bf16.gmra.mrb[0].mxu0 %v428
        %v528 = vpop.f32.mrb[0].mxu0
        %v529 = vadd.f32 %v320, %v528
        %v530 = vpop.f32.mrb[0].mxu0
        %v531 = vpop.f32.mrb[0].mxu0
        %v532 = vadd.f32 %v320, %v531
        %v533 = vpop.f32.mrb[0].mxu0
        %534 = vmatprep.mubr.bf16.mxu0 0
        %535 = vmatmul.mubr.bf16.gmra.mrb[0].mxu0 %v431
        %v536 = vpop.f32.mrb[0].mxu0
        %v537 = vadd.f32 %v320, %v536
        %v538 = vpop.f32.mrb[0].mxu0
        %v539 = vpop.f32.mrb[0].mxu0
        %v540 = vadd.f32 %v320, %v539
        %v541 = vpop.f32.mrb[0].mxu0
        %542 = vmatprep.mubr.bf16.mxu0 0
        %543 = vmatmul.mubr.bf16.gmra.mrb[0].mxu0 %v434
        %v544 = vpop.f32.mrb[0].mxu0
        %v545 = vadd.f32 %v320, %v544
        %v546 = vpop.f32.mrb[0].mxu0
        %v547 = vpop.f32.mrb[0].mxu0
        %v548 = vadd.f32 %v320, %v547
        %v549 = vpop.f32.mrb[0].mxu0
        %550 = vmatprep.mubr.bf16.mxu0 0
        %551 = vmatmul.mubr.bf16.gmra.mrb[0].mxu0 %v437
        %v552 = vpop.f32.mrb[0].mxu0
        %v553 = vadd.f32 %v320, %v552
        %v554 = vpop.f32.mrb[0].mxu0
        %v555 = vpop.f32.mrb[0].mxu0
        %v556 = vadd.f32 %v320, %v555
        %v557 = vpop.f32.mrb[0].mxu0
        %558 = vmatprep.mubr.bf16.mxu0 0
        %559 = vmatmul.mubr.bf16.gmra.mrb[0].mxu0 %v440
        %v560 = vpop.f32.mrb[0].mxu0
        %v561 = vadd.f32 %v320, %v560
        %v562 = vpop.f32.mrb[0].mxu0
        %v563 = vpop.f32.mrb[0].mxu0
        %v564 = vadd.f32 %v320, %v563
        %v565 = vpop.f32.mrb[0].mxu0
        %566 = vmatprep.mubr.bf16.mxu0 0
        %567 = vmatmul.mubr.bf16.gmra.mrb[0].mxu0 %v443
        %v568 = vpop.f32.mrb[0].mxu0
        %v569 = vadd.f32 %v320, %v568
        %v570 = vpop.f32.mrb[0].mxu0
        %v571 = vpop.f32.mrb[0].mxu0
        %v572 = vadd.f32 %v320, %v571
        %v573 = vpop.f32.mrb[0].mxu0
        %574 = vmatprep.mubr.bf16.mxu0 0
        %575 = vmatmul.mubr.bf16.gmra.mrb[0].mxu0 %v446
        %v576 = vpop.f32.mrb[0].mxu0
        %v577 = vadd.f32 %v320, %v576
        %v578 = vpop.f32.mrb[0].mxu0
        %v579 = vpop.f32.mrb[0].mxu0
        %v580 = vadd.f32 %v320, %v579
        %v581 = vpop.f32.mrb[0].mxu0
        %582 = vmatprep.mubr.bf16.mxu0 0
        %583 = vmatmul.mubr.bf16.gmra.mrb[0].mxu0 %v449
        %v584 = vpop.f32.mrb[0].mxu0
        %v585 = vadd.f32 %v320, %v584
        %v586 = vpop.f32.mrb[0].mxu0
        %v587 = vpop.f32.mrb[0].mxu0
        %v588 = vadd.f32 %v320, %v587
        %v589 = vpop.f32.mrb[0].mxu0
        %590 = vmatprep.mubr.bf16.mxu0 0
        %591 = vmatmul.mubr.bf16.gmra.mrb[0].mxu0 %v452
        %v592 = vpop.f32.mrb[0].mxu0
        %v593 = vadd.f32 %v320, %v592
        %v594 = vpop.f32.mrb[0].mxu0
        %v595 = vpop.f32.mrb[0].mxu0
        %v596 = vadd.f32 %v320, %v595
        %v597 = vpop.f32.mrb[0].mxu0
        %598 = vmatprep.mubr.bf16.mxu0 0
        %599 = vmatmul.mubr.bf16.gmra.mrb[0].mxu0 %v455
        %v600 = vpop.f32.mrb[0].mxu0
        %v601 = vadd.f32 %v320, %v600
        %v602 = vpop.f32.mrb[0].mxu0
        %v603 = vpop.f32.mrb[0].mxu0
        %v604 = vadd.f32 %v320, %v603
        %v605 = vpop.f32.mrb[0].mxu0
        %606 = vmatprep.mubr.bf16.mxu0 0
        %607 = vmatmul.mubr.bf16.gmra.mrb[0].mxu0 %v458
        %v608 = vpop.f32.mrb[0].mxu0
        %v609 = vadd.f32 %v320, %v608
        %v610 = vpop.f32.mrb[0].mxu0
        %v611 = vpop.f32.mrb[0].mxu0
        %v612 = vadd.f32 %v320, %v611
        %v613 = vpop.f32.mrb[0].mxu0
        %614 = vmatprep.mubr.bf16.mxu0 0
        %615 = vmatmul.mubr.bf16.gmra.mrb[0].mxu0 %v461
        %v616 = vpop.f32.mrb[0].mxu0
        %v617 = vadd.f32 %v320, %v616
        %v618 = vpop.f32.mrb[0].mxu0
        %v619 = vpop.f32.mrb[0].mxu0
        %v620 = vadd.f32 %v320, %v619
        %v621 = vpop.f32.mrb[0].mxu0
        %622 = vmatprep.mubr.bf16.mxu0 0
        %623 = vmatmul.mubr.bf16.gmra.mrb[0].mxu0 %v464
        %v624 = vpop.f32.mrb[0].mxu0
        %v625 = vadd.f32 %v320, %v624
        %v626 = vpop.f32.mrb[0].mxu0
        %v627 = vpop.f32.mrb[0].mxu0
        %v628 = vadd.f32 %v320, %v627
        %v629 = vpop.f32.mrb[0].mxu0
        %630 = vdwg.mxu0
        %v631 = vpack.c.bf16 %v508, %v505
        %v632 = vpack.c.bf16 %v516, %v513
        %v633 = vpack.c.bf16 %v524, %v521
        %v634 = vpack.c.bf16 %v532, %v529
        %v635 = vpack.c.bf16 %v540, %v537
        %v636 = vpack.c.bf16 %v548, %v545
        %v637 = vpack.c.bf16 %v556, %v553
        %v638 = vpack.c.bf16 %v564, %v561
        %v639 = vpack.c.bf16 %v572, %v569
        %v640 = vpack.c.bf16 %v580, %v577
        %v641 = vpack.c.bf16 %v588, %v585
        %v642 = vpack.c.bf16 %v596, %v593
        %v643 = vpack.c.bf16 %v604, %v601
        %v644 = vpack.c.bf16 %v612, %v609
        %v645 = vpack.c.bf16 %v620, %v617
        %v646 = vpack.c.bf16 %v628, %v625
        %v663 = vunpack.c.l.b16 %v631
        %v664 = vunpack.c.h.b16 %v631
        %v665 = vunpack.c.l.b16 %v632
        %v666 = vunpack.c.h.b16 %v632
        %v667 = vunpack.c.l.b16 %v633
        %v668 = vunpack.c.h.b16 %v633
        %v669 = vunpack.c.l.b16 %v634
        %v670 = vunpack.c.h.b16 %v634
        %v671 = vunpack.c.l.b16 %v635
        %v672 = vunpack.c.h.b16 %v635
        %v673 = vunpack.c.l.b16 %v636
        %v674 = vunpack.c.h.b16 %v636
        %v675 = vunpack.c.l.b16 %v637
        %v676 = vunpack.c.h.b16 %v637
        %v677 = vunpack.c.l.b16 %v638
        %v678 = vunpack.c.h.b16 %v638
        %v679 = vunpack.c.l.b16 %v639
        %v680 = vunpack.c.h.b16 %v639
        %v681 = vunpack.c.l.b16 %v640
        %v682 = vunpack.c.h.b16 %v640
        %v683 = vunpack.c.l.b16 %v641
        %v684 = vunpack.c.h.b16 %v641
        %v685 = vunpack.c.l.b16 %v642
        %v686 = vunpack.c.h.b16 %v642
        %v687 = vunpack.c.l.b16 %v643
        %v688 = vunpack.c.h.b16 %v643
        %v689 = vunpack.c.l.b16 %v644
        %v690 = vunpack.c.h.b16 %v644
        %v691 = vunpack.c.l.b16 %v645
        %v692 = vunpack.c.h.b16 %v645
        %v693 = vunpack.c.l.b16 %v646
        %v694 = vunpack.c.h.b16 %v646
        %v695 = vpack.c.b16 %v663, %v663
        %v696 = vpack.c.b16 %v664, %v664
        %v697 = vpack.c.b16 %v665, %v665
        %v698 = vpack.c.b16 %v666, %v666
        %v699 = vpack.c.b16 %v667, %v667
        %v700 = vpack.c.b16 %v668, %v668
        %v701 = vpack.c.b16 %v669, %v669
        %v702 = vpack.c.b16 %v670, %v670
        %v703 = vpack.c.b16 %v671, %v671
        %v704 = vpack.c.b16 %v672, %v672
        %v705 = vpack.c.b16 %v673, %v673
        %v706 = vpack.c.b16 %v674, %v674
        %v707 = vpack.c.b16 %v675, %v675
        %v708 = vpack.c.b16 %v676, %v676
        %v709 = vpack.c.b16 %v677, %v677
        %v710 = vpack.c.b16 %v678, %v678
        %v711 = vpack.c.b16 %v679, %v679
        %v712 = vpack.c.b16 %v680, %v680
        %v713 = vpack.c.b16 %v681, %v681
        %v714 = vpack.c.b16 %v682, %v682
        %v715 = vpack.c.b16 %v683, %v683
        %v716 = vpack.c.b16 %v684, %v684
        %v717 = vpack.c.b16 %v685, %v685
        %v718 = vpack.c.b16 %v686, %v686
        %v719 = vpack.c.b16 %v687, %v687
        %v720 = vpack.c.b16 %v688, %v688
        %v721 = vpack.c.b16 %v689, %v689
        %v722 = vpack.c.b16 %v690, %v690
        %v723 = vpack.c.b16 %v691, %v691
        %v724 = vpack.c.b16 %v692, %v692
        %v725 = vpack.c.b16 %v693, %v693
        %v726 = vpack.c.b16 %v694, %v694
        %759 = vst [vmem:[%s267] sm:$0xf] %v695
        %760 = vst [vmem:[%s267 + $0x4] sm:$0xf] %v696
        %761 = vst [vmem:[%s267 + $0x8] sm:$0xf] %v697
        %762 = vst [vmem:[%s267 + $0xc] sm:$0xf] %v698
        %763 = vst [vmem:[%s267 + $0x10] sm:$0xf] %v699
        %764 = vst [vmem:[%s267 + $0x14] sm:$0xf] %v700
        %765 = vst [vmem:[%s267 + $0x18] sm:$0xf] %v701
        %766 = vst [vmem:[%s267 + $0x1c] sm:$0xf] %v702
        %767 = vst [vmem:[%s267 + $0x20] sm:$0xf] %v703
        %768 = vst [vmem:[%s267 + $0x24] sm:$0xf] %v704
        %769 = vst [vmem:[%s267 + $0x28] sm:$0xf] %v705
        %770 = vst [vmem:[%s267 + $0x2c] sm:$0xf] %v706
        %771 = vst [vmem:[%s267 + $0x30] sm:$0xf] %v707
        %772 = vst [vmem:[%s267 + $0x34] sm:$0xf] %v708
        %773 = vst [vmem:[%s267 + $0x38] sm:$0xf] %v709
        %774 = vst [vmem:[%s267 + $0x3c] sm:$0xf] %v710
        %775 = vst [vmem:[%s267 + $0x40] sm:$0xf] %v711
        %776 = vst [vmem:[%s267 + $0x44] sm:$0xf] %v712
        %777 = vst [vmem:[%s267 + $0x48] sm:$0xf] %v713
        %778 = vst [vmem:[%s267 + $0x4c] sm:$0xf] %v714
        %779 = vst [vmem:[%s267 + $0x50] sm:$0xf] %v715
        %780 = vst [vmem:[%s267 + $0x54] sm:$0xf] %v716
        %781 = vst [vmem:[%s267 + $0x58] sm:$0xf] %v717
        %782 = vst [vmem:[%s267 + $0x5c] sm:$0xf] %v718
        %783 = vst [vmem:[%s267 + $0x60] sm:$0xf] %v719
        %784 = vst [vmem:[%s267 + $0x64] sm:$0xf] %v720
        %785 = vst [vmem:[%s267 + $0x68] sm:$0xf] %v721
        %786 = vst [vmem:[%s267 + $0x6c] sm:$0xf] %v722
        %787 = vst [vmem:[%s267 + $0x70] sm:$0xf] %v723
        %788 = vst [vmem:[%s267 + $0x74] sm:$0xf] %v724
        %789 = vst [vmem:[%s267 + $0x78] sm:$0xf] %v725
        %790 = vst [vmem:[%s267 + $0x7c] sm:$0xf] %v726
        %v791 = vadd.f32 %v505, %v508
        %v792 = vadd.f32 %v791, %v513
        %v793 = vadd.f32 %v792, %v516
        %v794 = vadd.f32 %v793, %v521
        %v795 = vadd.f32 %v794, %v524
        %v796 = vadd.f32 %v795, %v529
        %v797 = vadd.f32 %v796, %v532
        %v798 = vadd.f32 %v797, %v537
        %v799 = vadd.f32 %v798, %v540
        %v800 = vadd.f32 %v799, %v545
        %v801 = vadd.f32 %v800, %v548
        %v802 = vadd.f32 %v801, %v553
        %v803 = vadd.f32 %v802, %v556
        %v804 = vadd.f32 %v803, %v561
        %v805 = vadd.f32 %v804, %v564
        %v806 = vadd.f32 %v805, %v569
        %v807 = vadd.f32 %v806, %v572
        %v808 = vadd.f32 %v807, %v577
        %v809 = vadd.f32 %v808, %v580
        %v810 = vadd.f32 %v809, %v585
        %v811 = vadd.f32 %v810, %v588
        %v812 = vadd.f32 %v811, %v593
        %v813 = vadd.f32 %v812, %v596
        %v814 = vadd.f32 %v813, %v601
        %v815 = vadd.f32 %v814, %v604
        %v816 = vadd.f32 %v815, %v609
        %v817 = vadd.f32 %v816, %v612
        %v818 = vadd.f32 %v817, %v617
        %v819 = vadd.f32 %v818, %v620
        %v820 = vadd.f32 %v819, %v625
        %v821 = vadd.f32 %v820, %v628
        %v822 = vrot.slane %v821, 4
        %v823 = vadd.f32 %v821, %v822
        %v824 = vrot.slane %v823, 2
        %v825 = vadd.f32 %v823, %v824
        %v826 = vrot.slane %v825, 1
        %v827 = vadd.f32 %v825, %v826
        %v828 = vmul.f32 %v827, 0.00390625
        %v829 = vsub.f32 %v505, %v828
        %v830 = vsub.f32 %v508, %v828
        %v831 = vsub.f32 %v513, %v828
        %v832 = vsub.f32 %v516, %v828
        %v833 = vsub.f32 %v521, %v828
        %v834 = vsub.f32 %v524, %v828
        %v835 = vsub.f32 %v529, %v828
        %v836 = vsub.f32 %v532, %v828
        %v837 = vsub.f32 %v537, %v828
        %v838 = vsub.f32 %v540, %v828
        %v839 = vsub.f32 %v545, %v828
        %v840 = vsub.f32 %v548, %v828
        %v841 = vsub.f32 %v553, %v828
        %v842 = vsub.f32 %v556, %v828
        %v843 = vsub.f32 %v561, %v828
        %v844 = vsub.f32 %v564, %v828
        %v845 = vsub.f32 %v569, %v828
        %v846 = vsub.f32 %v572, %v828
        %v847 = vsub.f32 %v577, %v828
        %v848 = vsub.f32 %v580, %v828
        %v849 = vsub.f32 %v585, %v828
        %v850 = vsub.f32 %v588, %v828
        %v851 = vsub.f32 %v593, %v828
        %v852 = vsub.f32 %v596, %v828
        %v853 = vsub.f32 %v601, %v828
        %v854 = vsub.f32 %v604, %v828
        %v855 = vsub.f32 %v609, %v828
        %v856 = vsub.f32 %v612, %v828
        %v857 = vsub.f32 %v617, %v828
        %v858 = vsub.f32 %v620, %v828
        %v859 = vsub.f32 %v625, %v828
        %v860 = vsub.f32 %v628, %v828
        %861 = vst [vmem:[%s274] sm:$0x1] %v827
        %v862 = vmul.f32 %v829, %v829
        %v863 = vmul.f32 %v830, %v830
        %v864 = vmul.f32 %v831, %v831
        %v865 = vmul.f32 %v832, %v832
        %v866 = vmul.f32 %v833, %v833
        %v867 = vmul.f32 %v834, %v834
        %v868 = vmul.f32 %v835, %v835
        %v869 = vmul.f32 %v836, %v836
        %v870 = vmul.f32 %v837, %v837
        %v871 = vmul.f32 %v838, %v838
        %v872 = vmul.f32 %v839, %v839
        %v873 = vmul.f32 %v840, %v840
        %v874 = vmul.f32 %v841, %v841
        %v875 = vmul.f32 %v842, %v842
        %v876 = vmul.f32 %v843, %v843
        %v877 = vmul.f32 %v844, %v844
        %v878 = vmul.f32 %v845, %v845
        %v879 = vmul.f32 %v846, %v846
        %v880 = vmul.f32 %v847, %v847
        %v881 = vmul.f32 %v848, %v848
        %v882 = vmul.f32 %v849, %v849
        %v883 = vmul.f32 %v850, %v850
        %v884 = vmul.f32 %v851, %v851
        %v885 = vmul.f32 %v852, %v852
        %v886 = vmul.f32 %v853, %v853
        %v887 = vmul.f32 %v854, %v854
        %v888 = vmul.f32 %v855, %v855
        %v889 = vmul.f32 %v856, %v856
        %v890 = vmul.f32 %v857, %v857
        %v891 = vmul.f32 %v858, %v858
        %v892 = vmul.f32 %v859, %v859
        %v893 = vmul.f32 %v860, %v860
        %v894 = vadd.f32 %v862, %v863
        %v895 = vadd.f32 %v894, %v864
        %v896 = vadd.f32 %v895, %v865
        %v897 = vadd.f32 %v896, %v866
        %v898 = vadd.f32 %v897, %v867
        %v899 = vadd.f32 %v898, %v868
        %v900 = vadd.f32 %v899, %v869
        %v901 = vadd.f32 %v900, %v870
        %v902 = vadd.f32 %v901, %v871
        %v903 = vadd.f32 %v902, %v872
        %v904 = vadd.f32 %v903, %v873
        %v905 = vadd.f32 %v904, %v874
        %v906 = vadd.f32 %v905, %v875
        %v907 = vadd.f32 %v906, %v876
        %v908 = vadd.f32 %v907, %v877
        %v909 = vadd.f32 %v908, %v878
        %v910 = vadd.f32 %v909, %v879
        %v911 = vadd.f32 %v910, %v880
        %v912 = vadd.f32 %v911, %v881
        %v913 = vadd.f32 %v912, %v882
        %v914 = vadd.f32 %v913, %v883
        %v915 = vadd.f32 %v914, %v884
        %v916 = vadd.f32 %v915, %v885
        %v917 = vadd.f32 %v916, %v886
        %v918 = vadd.f32 %v917, %v887
        %v919 = vadd.f32 %v918, %v888
        %v920 = vadd.f32 %v919, %v889
        %v921 = vadd.f32 %v920, %v890
        %v922 = vadd.f32 %v921, %v891
        %v923 = vadd.f32 %v922, %v892
        %v924 = vadd.f32 %v923, %v893
        %v925 = vrot.slane %v924, 4
        %v926 = vadd.f32 %v924, %v925
        %v927 = vrot.slane %v926, 2
        %v928 = vadd.f32 %v926, %v927
        %v929 = vrot.slane %v928, 1
        %v930 = vadd.f32 %v928, %v929
        %931 = vst [vmem:[%s274 + $0x1] sm:$0x1] %v930
        %s932 = sand.u32 %s118, 1
        %s933 = scalar_lea.sflag [#allocation4], %s932
        %s934 = sand.u32 %s118, 1
        %s935 = smul.addr %s934, 128
        %s936 = scalar_lea.vmem [#allocation8], %s935
        %s937 = sand.u32 %s146, 1
        %s938 = scalar_lea.sflag [#allocation10], %s937
        %s939 = sand.u32 %s146, 1
        %s940 = smul.addr %s939, 2
        %s941 = scalar_lea.vmem [#allocation9], %s940
        // Predicated region
        $region45: #{double_conv_forward.3} parent=31 // pred_check
          %p942 = pneg %p128
        $region46: #{double_conv_forward.3} parent=31 // pred_check_branch
          %944 = sbr.rel (%p942) target = $region48
        $region47: #{double_conv_forward.3} parent=31 // pred_region
          %s945 = smul.u32 16, %s31
          %s947 = ssub.s32 2048, 2048
          %948 = vsyncadd %s933, %s947
          %s949 = smul.addr %s945, 2
          %s950 = smul.addr %s30, 32
          %s951 = sadd.s32 %s949, %s950
          %s952 = smul.addr %s951, 64
          %s953 = scalar_lea.hbm %s3, %s952
          %s954 = sshll.u32 %s936, 4
          %s955 = int_to_ptr.vmem [resolvable:$true] %s954
          %960 = dma.vmem_to_hbm [thread:$0]  %s955, 2048, %s953, %s933, 64, 64, 4
        $region48: #{double_conv_forward.3} parent=31 // pred_fallthru
          _
        // Predicated region
        $region49: #{double_conv_forward.3} parent=31 // pred_check
          %p961 = pneg %p156
        $region50: #{double_conv_forward.3} parent=31 // pred_check_branch
          %963 = sbr.rel (%p961) target = $region52
        $region51: #{double_conv_forward.3} parent=31 // pred_region
          %s965 = ssub.s32 32, 32
          %966 = vsyncadd %s938, %s965
          %s967 = sadd.s32 %s31, %s30
          %s968 = smul.addr %s967, 32
          %s969 = scalar_lea.hbm %s4, %s968
          %s971 = sshll.u32 %s941, 4
          %s972 = int_to_ptr.vmem [resolvable:$true] %s971
          %974 = dma.vmem_to_hbm [thread:$0]  %s972, 32, %s969, %s938
        $region52: #{double_conv_forward.3} parent=31 // pred_fallthru
          _
      $region32: #{double_conv_forward.3} parent=5 // pred_fallthru
        _
      %p975 = scmp.le.s32.totalorder 2, %s21
      // Predicated region
      $region53: #{double_conv_forward.3} parent=5 // pred_check
        %p976 = pneg %p975
      $region54: #{double_conv_forward.3} parent=5 // pred_check_branch
        %978 = sbr.rel (%p976) target = $region56
      $region55: #{double_conv_forward.3} parent=5 // pred_region
        %s979 = ssub.s32 %s21, 2
        // Predicated region
        $region57: #{double_conv_forward.3} parent=55 // pred_check
          %p980 = pneg %p134
        $region58: #{double_conv_forward.3} parent=55 // pred_check_branch
          %982 = sbr.rel (%p980) target = $region60
        $region59: #{double_conv_forward.3} parent=55 // pred_region
          %s983 = sand.u32 %s119, 1
          %s984 = scalar_lea.sflag [#allocation4], %s983
          %s985 = sand.u32 %s119, 1
          %s986 = smul.addr %s985, 128
          %s987 = scalar_lea.vmem [#allocation8], %s986
          %988 = dma.done %s984, 2048
        $region60: #{double_conv_forward.3} parent=55 // pred_fallthru
          _
        // Predicated region
        $region61: #{double_conv_forward.3} parent=55 // pred_check
          %p989 = pneg %p162
        $region62: #{double_conv_forward.3} parent=55 // pred_check_branch
          %991 = sbr.rel (%p989) target = $region64
        $region63: #{double_conv_forward.3} parent=55 // pred_region
          %s992 = sand.u32 %s147, 1
          %s993 = scalar_lea.sflag [#allocation10], %s992
          %s994 = sand.u32 %s147, 1
          %s995 = smul.addr %s994, 2
          %s996 = scalar_lea.vmem [#allocation9], %s995
          %997 = dma.done %s993, 32
        $region64: #{double_conv_forward.3} parent=55 // pred_fallthru
          _
      $region56: #{double_conv_forward.3} parent=5 // pred_fallthru
        _
    $region6: #{double_conv_forward.3} parent=1 // loop_footer
      %s25 = sadd.s32 1, %s21
    $region7: #{double_conv_forward.3} parent=1 // loop_footer_branch
      %20 = sbr.rel target = $region3
    $region8: #{double_conv_forward.3} parent=1 // loop_exit
      _
    %998 = vsyncpa [#allocation3], 1
    %s999 = scalar_lea.sflag [#allocation3], 1
    %1000 = vsyncpa %s999, 1
    %1001 = vsyncpa [#allocation6], 1
    %1002 = vsyncpa [#allocation4], 1
    %s1003 = scalar_lea.sflag [#allocation4], 1
    %1004 = vsyncpa %s1003, 1
    %1005 = vsyncpa [#allocation10], 1
    %s1006 = scalar_lea.sflag [#allocation10], 1
    %1007 = vsyncpa %s1006, 1

// kernel: double_conv_forward.5
$region0: #{double_conv_forward.5}
  #allocation0 [shape = 'u32[]', space=smem, size = 0x4, offset = 0x4, fixed_abs, tag = 'smem constant byte address 0x4 - core index']
  #allocation1 [shape = 'u32[144,128]{1,0:T(1,128)}', space=vmem, size = 0x12000, scoped, tag = 'internal scratch']
  %s0 = inlined_call_operand.hbm [shape: bf16[512,128], index: 0, kind: input, shape index: {}]
  %s1 = inlined_call_operand.hbm [shape: f32[1,128], index: 1, kind: input, shape index: {}]
  %s2 = inlined_call_operand.hbm [shape: f32[1,128], index: 2, kind: input, shape index: {}]
  %s3 = inlined_call_operand.hbm [shape: f32[8,512], index: 3, kind: output, shape index: {}]
  %s4 = sld [smem:[#allocation0]]
  $region34: #{double_conv_forward.5} parent=0
    _
  %s6 = ssub.s32 1, %s4
  %s7 = scalar_select 0, %s6, %s4
  $region1: #{double_conv_forward.5} parent=0
    #allocation2 [shape = 'u8[131072]{0}', space=vmem, size = 0x20000, scoped, tag = 'input window, operand 0, single buffered']
    #allocation3 [shape = 's32[1]{0}', space=sflag, size = 0x4, scoped, tag = 'scoped memory for double_conv_forward.5']
    #allocation4 [shape = 's32[1]{0}', space=sflag, size = 0x4, scoped, tag = 'scoped memory for double_conv_forward.5']
    #allocation5 [shape = 'u8[512]{0}', space=vmem, size = 0x400, scoped, tag = 'input window, operand 1, single buffered']
    #allocation6 [shape = 's32[1]{0}', space=sflag, size = 0x4, scoped, tag = 'scoped memory for double_conv_forward.5']
    #allocation7 [shape = 'u8[512]{0}', space=vmem, size = 0x400, scoped, tag = 'input window, operand 2, single buffered']
    #allocation8 [shape = 'u8[16384]{0}', space=vmem, size = 0x4000, scoped, tag = 'output window, operand 0, single buffered']
    %8 = vsyncpa [#allocation3], 0
    %9 = vsyncpa [#allocation6], 0
    %10 = vsyncpa [#allocation4], 0
    // Predicated region
    $region2: #{double_conv_forward.5} parent=1 // pred_check
      _
    $region3: #{double_conv_forward.5} parent=1 // pred_check_branch
      %12 = sbr.rel (0) target = $region5
    $region4: #{double_conv_forward.5} parent=1 // pred_region
      %s14 = ssub.s32 4096, 4096
      %15 = vsyncadd [#allocation3], %s14
      %s16 = sshll.u32 [#allocation2], 4
      %s17 = int_to_ptr.vmem [resolvable:$true] %s16
      %22 = dma.hbm_to_vmem [thread:$0]  %s0, 4096, %s17, [#allocation3], 64, 64, 4
    $region5: #{double_conv_forward.5} parent=1 // pred_fallthru
      _
    // Predicated region
    $region6: #{double_conv_forward.5} parent=1 // pred_check
      _
    $region7: #{double_conv_forward.5} parent=1 // pred_check_branch
      %24 = sbr.rel (0) target = $region9
    $region8: #{double_conv_forward.5} parent=1 // pred_region
      %s26 = ssub.s32 16, 16
      %27 = vsyncadd [#allocation6], %s26
      %s29 = sshll.u32 [#allocation5], 4
      %s30 = int_to_ptr.vmem [resolvable:$true] %s29
      %32 = dma.hbm_to_vmem [thread:$0]  %s1, 16, %s30, [#allocation6]
    $region9: #{double_conv_forward.5} parent=1 // pred_fallthru
      _
    // Predicated region
    $region10: #{double_conv_forward.5} parent=1 // pred_check
      _
    $region11: #{double_conv_forward.5} parent=1 // pred_check_branch
      %34 = sbr.rel (0) target = $region13
    $region12: #{double_conv_forward.5} parent=1 // pred_region
      %s36 = ssub.s32 16, 16
      %37 = vsyncadd [#allocation6], %s36
      %s39 = sshll.u32 [#allocation7], 4
      %s40 = int_to_ptr.vmem [resolvable:$true] %s39
      %42 = dma.hbm_to_vmem [thread:$0]  %s2, 16, %s40, [#allocation6]
    $region13: #{double_conv_forward.5} parent=1 // pred_fallthru
      _
    // Predicated region
    $region14: #{double_conv_forward.5} parent=1 // pred_check
      _
    $region15: #{double_conv_forward.5} parent=1 // pred_check_branch
      %44 = sbr.rel (0) target = $region17
    $region16: #{double_conv_forward.5} parent=1 // pred_region
      %45 = dma.done [#allocation3], 4096
    $region17: #{double_conv_forward.5} parent=1 // pred_fallthru
      _
    // Predicated region
    $region18: #{double_conv_forward.5} parent=1 // pred_check
      _
    $region19: #{double_conv_forward.5} parent=1 // pred_check_branch
      %47 = sbr.rel (0) target = $region21
    $region20: #{double_conv_forward.5} parent=1 // pred_region
      %48 = dma.done [#allocation6], 16
    $region21: #{double_conv_forward.5} parent=1 // pred_fallthru
      _
    // Predicated region
    $region22: #{double_conv_forward.5} parent=1 // pred_check
      _
    $region23: #{double_conv_forward.5} parent=1 // pred_check_branch
      %50 = sbr.rel (0) target = $region25
    $region24: #{double_conv_forward.5} parent=1 // pred_region
      %51 = dma.done [#allocation6], 16
    $region25: #{double_conv_forward.5} parent=1 // pred_fallthru
      _
    %v52 = vld [vmem:[#allocation7] sm:$0x1]
    %v53 = vadd.f32 %v52, 1e-05
    %v54 = vrcp.pop %v53
    %v55 = vmul.f32 %v53, %v54
    %v56 = vsub.f32 2.0, %v55
    %v57 = vmul.f32 %v54, %v56
    %v58 = vld [vmem:[#allocation2] sm:$0xf]
    %v59 = vld [vmem:[#allocation2 + $0x4] sm:$0xf]
    %v60 = vld [vmem:[#allocation2 + $0x8] sm:$0xf]
    %v61 = vld [vmem:[#allocation2 + $0xc] sm:$0xf]
    %v62 = vld [vmem:[#allocation2 + $0x10] sm:$0xf]
    %v63 = vld [vmem:[#allocation2 + $0x14] sm:$0xf]
    %v64 = vld [vmem:[#allocation2 + $0x18] sm:$0xf]
    %v65 = vld [vmem:[#allocation2 + $0x1c] sm:$0xf]
    %v66 = vld [vmem:[#allocation2 + $0x20] sm:$0xf]
    %v67 = vld [vmem:[#allocation2 + $0x24] sm:$0xf]
    %v68 = vld [vmem:[#allocation2 + $0x28] sm:$0xf]
    %v69 = vld [vmem:[#allocation2 + $0x2c] sm:$0xf]
    %v70 = vld [vmem:[#allocation2 + $0x30] sm:$0xf]
    %v71 = vld [vmem:[#allocation2 + $0x34] sm:$0xf]
    %v72 = vld [vmem:[#allocation2 + $0x38] sm:$0xf]
    %v73 = vld [vmem:[#allocation2 + $0x3c] sm:$0xf]
    %v74 = vld [vmem:[#allocation2 + $0x40] sm:$0xf]
    %v75 = vld [vmem:[#allocation2 + $0x44] sm:$0xf]
    %v76 = vld [vmem:[#allocation2 + $0x48] sm:$0xf]
    %v77 = vld [vmem:[#allocation2 + $0x4c] sm:$0xf]
    %v78 = vld [vmem:[#allocation2 + $0x50] sm:$0xf]
    %v79 = vld [vmem:[#allocation2 + $0x54] sm:$0xf]
    %v80 = vld [vmem:[#allocation2 + $0x58] sm:$0xf]
    %v81 = vld [vmem:[#allocation2 + $0x5c] sm:$0xf]
    %v82 = vld [vmem:[#allocation2 + $0x60] sm:$0xf]
    %v83 = vld [vmem:[#allocation2 + $0x64] sm:$0xf]
    %v84 = vld [vmem:[#allocation2 + $0x68] sm:$0xf]
    %v85 = vld [vmem:[#allocation2 + $0x6c] sm:$0xf]
    %v86 = vld [vmem:[#allocation2 + $0x70] sm:$0xf]
    %v87 = vld [vmem:[#allocation2 + $0x74] sm:$0xf]
    %v88 = vld [vmem:[#allocation2 + $0x78] sm:$0xf]
    %v89 = vld [vmem:[#allocation2 + $0x7c] sm:$0xf]
    %v90 = vld [vmem:[#allocation2 + $0x80] sm:$0xf]
    %v91 = vld [vmem:[#allocation2 + $0x84] sm:$0xf]
    %v92 = vld [vmem:[#allocation2 + $0x88] sm:$0xf]
    %v93 = vld [vmem:[#allocation2 + $0x8c] sm:$0xf]
    %v94 = vld [vmem:[#allocation2 + $0x90] sm:$0xf]
    %v95 = vld [vmem:[#allocation2 + $0x94] sm:$0xf]
    %v96 = vld [vmem:[#allocation2 + $0x98] sm:$0xf]
    %v97 = vld [vmem:[#allocation2 + $0x9c] sm:$0xf]
    %v98 = vld [vmem:[#allocation2 + $0xa0] sm:$0xf]
    %v99 = vld [vmem:[#allocation2 + $0xa4] sm:$0xf]
    %v100 = vld [vmem:[#allocation2 + $0xa8] sm:$0xf]
    %v101 = vld [vmem:[#allocation2 + $0xac] sm:$0xf]
    %v102 = vld [vmem:[#allocation2 + $0xb0] sm:$0xf]
    %v103 = vld [vmem:[#allocation2 + $0xb4] sm:$0xf]
    %v104 = vld [vmem:[#allocation2 + $0xb8] sm:$0xf]
    %v105 = vld [vmem:[#allocation2 + $0xbc] sm:$0xf]
    %v106 = vld [vmem:[#allocation2 + $0xc0] sm:$0xf]
    %v107 = vld [vmem:[#allocation2 + $0xc4] sm:$0xf]
    %v108 = vld [vmem:[#allocation2 + $0xc8] sm:$0xf]
    %v109 = vld [vmem:[#allocation2 + $0xcc] sm:$0xf]
    %v110 = vld [vmem:[#allocation2 + $0xd0] sm:$0xf]
    %v111 = vld [vmem:[#allocation2 + $0xd4] sm:$0xf]
    %v112 = vld [vmem:[#allocation2 + $0xd8] sm:$0xf]
    %v113 = vld [vmem:[#allocation2 + $0xdc] sm:$0xf]
    %v114 = vld [vmem:[#allocation2 + $0xe0] sm:$0xf]
    %v115 = vld [vmem:[#allocation2 + $0xe4] sm:$0xf]
    %v116 = vld [vmem:[#allocation2 + $0xe8] sm:$0xf]
    %v117 = vld [vmem:[#allocation2 + $0xec] sm:$0xf]
    %v118 = vld [vmem:[#allocation2 + $0xf0] sm:$0xf]
    %v119 = vld [vmem:[#allocation2 + $0xf4] sm:$0xf]
    %v120 = vld [vmem:[#allocation2 + $0xf8] sm:$0xf]
    %v121 = vld [vmem:[#allocation2 + $0xfc] sm:$0xf]
    %v122 = vunpack.c.l.bf16 %v58
    %v123 = vunpack.c.l.bf16 %v59
    %v124 = vunpack.c.l.bf16 %v60
    %v125 = vunpack.c.l.bf16 %v61
    %v126 = vunpack.c.l.bf16 %v62
    %v127 = vunpack.c.l.bf16 %v63
    %v128 = vunpack.c.l.bf16 %v64
    %v129 = vunpack.c.l.bf16 %v65
    %v130 = vunpack.c.l.bf16 %v66
    %v131 = vunpack.c.l.bf16 %v67
    %v132 = vunpack.c.l.bf16 %v68
    %v133 = vunpack.c.l.bf16 %v69
    %v134 = vunpack.c.l.bf16 %v70
    %v135 = vunpack.c.l.bf16 %v71
    %v136 = vunpack.c.l.bf16 %v72
    %v137 = vunpack.c.l.bf16 %v73
    %v138 = vunpack.c.l.bf16 %v74
    %v139 = vunpack.c.l.bf16 %v75
    %v140 = vunpack.c.l.bf16 %v76
    %v141 = vunpack.c.l.bf16 %v77
    %v142 = vunpack.c.l.bf16 %v78
    %v143 = vunpack.c.l.bf16 %v79
    %v144 = vunpack.c.l.bf16 %v80
    %v145 = vunpack.c.l.bf16 %v81
    %v146 = vunpack.c.l.bf16 %v82
    %v147 = vunpack.c.l.bf16 %v83
    %v148 = vunpack.c.l.bf16 %v84
    %v149 = vunpack.c.l.bf16 %v85
    %v150 = vunpack.c.l.bf16 %v86
    %v151 = vunpack.c.l.bf16 %v87
    %v152 = vunpack.c.l.bf16 %v88
    %v153 = vunpack.c.l.bf16 %v89
    %v154 = vunpack.c.l.bf16 %v90
    %v155 = vunpack.c.l.bf16 %v91
    %v156 = vunpack.c.l.bf16 %v92
    %v157 = vunpack.c.l.bf16 %v93
    %v158 = vunpack.c.l.bf16 %v94
    %v159 = vunpack.c.l.bf16 %v95
    %v160 = vunpack.c.l.bf16 %v96
    %v161 = vunpack.c.l.bf16 %v97
    %v162 = vunpack.c.l.bf16 %v98
    %v163 = vunpack.c.l.bf16 %v99
    %v164 = vunpack.c.l.bf16 %v100
    %v165 = vunpack.c.l.bf16 %v101
    %v166 = vunpack.c.l.bf16 %v102
    %v167 = vunpack.c.l.bf16 %v103
    %v168 = vunpack.c.l.bf16 %v104
    %v169 = vunpack.c.l.bf16 %v105
    %v170 = vunpack.c.l.bf16 %v106
    %v171 = vunpack.c.l.bf16 %v107
    %v172 = vunpack.c.l.bf16 %v108
    %v173 = vunpack.c.l.bf16 %v109
    %v174 = vunpack.c.l.bf16 %v110
    %v175 = vunpack.c.l.bf16 %v111
    %v176 = vunpack.c.l.bf16 %v112
    %v177 = vunpack.c.l.bf16 %v113
    %v178 = vunpack.c.l.bf16 %v114
    %v179 = vunpack.c.l.bf16 %v115
    %v180 = vunpack.c.l.bf16 %v116
    %v181 = vunpack.c.l.bf16 %v117
    %v182 = vunpack.c.l.bf16 %v118
    %v183 = vunpack.c.l.bf16 %v119
    %v184 = vunpack.c.l.bf16 %v120
    %v185 = vunpack.c.l.bf16 %v121
    %v186 = vld [vmem:[#allocation5] sm:$0x1]
    %v188 = vlaneseq
    %v189 = vshrl.u32 %v188, 7
    %v190 = vsub.s32 0, %v189
    %v191 = vrot.slane %v186, %v190
    %v193 = vsub.f32 %v122, %v191
    %v194 = vsub.f32 %v123, %v191
    %v195 = vsub.f32 %v124, %v191
    %v196 = vsub.f32 %v125, %v191
    %v197 = vsub.f32 %v126, %v191
    %v198 = vsub.f32 %v127, %v191
    %v199 = vsub.f32 %v128, %v191
    %v200 = vsub.f32 %v129, %v191
    %v201 = vsub.f32 %v130, %v191
    %v202 = vsub.f32 %v131, %v191
    %v203 = vsub.f32 %v132, %v191
    %v204 = vsub.f32 %v133, %v191
    %v205 = vsub.f32 %v134, %v191
    %v206 = vsub.f32 %v135, %v191
    %v207 = vsub.f32 %v136, %v191
    %v208 = vsub.f32 %v137, %v191
    %v209 = vsub.f32 %v138, %v191
    %v210 = vsub.f32 %v139, %v191
    %v211 = vsub.f32 %v140, %v191
    %v212 = vsub.f32 %v141, %v191
    %v213 = vsub.f32 %v142, %v191
    %v214 = vsub.f32 %v143, %v191
    %v215 = vsub.f32 %v144, %v191
    %v216 = vsub.f32 %v145, %v191
    %v217 = vsub.f32 %v146, %v191
    %v218 = vsub.f32 %v147, %v191
    %v219 = vsub.f32 %v148, %v191
    %v220 = vsub.f32 %v149, %v191
    %v221 = vsub.f32 %v150, %v191
    %v222 = vsub.f32 %v151, %v191
    %v223 = vsub.f32 %v152, %v191
    %v224 = vsub.f32 %v153, %v191
    %v225 = vsub.f32 %v154, %v191
    %v226 = vsub.f32 %v155, %v191
    %v227 = vsub.f32 %v156, %v191
    %v228 = vsub.f32 %v157, %v191
    %v229 = vsub.f32 %v158, %v191
    %v230 = vsub.f32 %v159, %v191
    %v231 = vsub.f32 %v160, %v191
    %v232 = vsub.f32 %v161, %v191
    %v233 = vsub.f32 %v162, %v191
    %v234 = vsub.f32 %v163, %v191
    %v235 = vsub.f32 %v164, %v191
    %v236 = vsub.f32 %v165, %v191
    %v237 = vsub.f32 %v166, %v191
    %v238 = vsub.f32 %v167, %v191
    %v239 = vsub.f32 %v168, %v191
    %v240 = vsub.f32 %v169, %v191
    %v241 = vsub.f32 %v170, %v191
    %v242 = vsub.f32 %v171, %v191
    %v243 = vsub.f32 %v172, %v191
    %v244 = vsub.f32 %v173, %v191
    %v245 = vsub.f32 %v174, %v191
    %v246 = vsub.f32 %v175, %v191
    %v247 = vsub.f32 %v176, %v191
    %v248 = vsub.f32 %v177, %v191
    %v249 = vsub.f32 %v178, %v191
    %v250 = vsub.f32 %v179, %v191
    %v251 = vsub.f32 %v180, %v191
    %v252 = vsub.f32 %v181, %v191
    %v253 = vsub.f32 %v182, %v191
    %v254 = vsub.f32 %v183, %v191
    %v255 = vsub.f32 %v184, %v191
    %v256 = vsub.f32 %v185, %v191
    %v258 = vlaneseq
    %v259 = vshrl.u32 %v258, 7
    %v260 = vsub.s32 0, %v259
    %v261 = vrot.slane %v57, %v260
    %v263 = vmul.f32 %v193, %v261
    %v264 = vmul.f32 %v194, %v261
    %v265 = vmul.f32 %v195, %v261
    %v266 = vmul.f32 %v196, %v261
    %v267 = vmul.f32 %v197, %v261
    %v268 = vmul.f32 %v198, %v261
    %v269 = vmul.f32 %v199, %v261
    %v270 = vmul.f32 %v200, %v261
    %v271 = vmul.f32 %v201, %v261
    %v272 = vmul.f32 %v202, %v261
    %v273 = vmul.f32 %v203, %v261
    %v274 = vmul.f32 %v204, %v261
    %v275 = vmul.f32 %v205, %v261
    %v276 = vmul.f32 %v206, %v261
    %v277 = vmul.f32 %v207, %v261
    %v278 = vmul.f32 %v208, %v261
    %v279 = vmul.f32 %v209, %v261
    %v280 = vmul.f32 %v210, %v261
    %v281 = vmul.f32 %v211, %v261
    %v282 = vmul.f32 %v212, %v261
    %v283 = vmul.f32 %v213, %v261
    %v284 = vmul.f32 %v214, %v261
    %v285 = vmul.f32 %v215, %v261
    %v286 = vmul.f32 %v216, %v261
    %v287 = vmul.f32 %v217, %v261
    %v288 = vmul.f32 %v218, %v261
    %v289 = vmul.f32 %v219, %v261
    %v290 = vmul.f32 %v220, %v261
    %v291 = vmul.f32 %v221, %v261
    %v292 = vmul.f32 %v222, %v261
    %v293 = vmul.f32 %v223, %v261
    %v294 = vmul.f32 %v224, %v261
    %v295 = vmul.f32 %v225, %v261
    %v296 = vmul.f32 %v226, %v261
    %v297 = vmul.f32 %v227, %v261
    %v298 = vmul.f32 %v228, %v261
    %v299 = vmul.f32 %v229, %v261
    %v300 = vmul.f32 %v230, %v261
    %v301 = vmul.f32 %v231, %v261
    %v302 = vmul.f32 %v232, %v261
    %v303 = vmul.f32 %v233, %v261
    %v304 = vmul.f32 %v234, %v261
    %v305 = vmul.f32 %v235, %v261
    %v306 = vmul.f32 %v236, %v261
    %v307 = vmul.f32 %v237, %v261
    %v308 = vmul.f32 %v238, %v261
    %v309 = vmul.f32 %v239, %v261
    %v310 = vmul.f32 %v240, %v261
    %v311 = vmul.f32 %v241, %v261
    %v312 = vmul.f32 %v242, %v261
    %v313 = vmul.f32 %v243, %v261
    %v314 = vmul.f32 %v244, %v261
    %v315 = vmul.f32 %v245, %v261
    %v316 = vmul.f32 %v246, %v261
    %v317 = vmul.f32 %v247, %v261
    %v318 = vmul.f32 %v248, %v261
    %v319 = vmul.f32 %v249, %v261
    %v320 = vmul.f32 %v250, %v261
    %v321 = vmul.f32 %v251, %v261
    %v322 = vmul.f32 %v252, %v261
    %v323 = vmul.f32 %v253, %v261
    %v324 = vmul.f32 %v254, %v261
    %v325 = vmul.f32 %v255, %v261
    %v326 = vmul.f32 %v256, %v261
    %v327 = vmax.f32 %v263, 0.0
    %v328 = vmax.f32 %v264, 0.0
    %v329 = vmax.f32 %v265, 0.0
    %v330 = vmax.f32 %v266, 0.0
    %v331 = vmax.f32 %v267, 0.0
    %v332 = vmax.f32 %v268, 0.0
    %v333 = vmax.f32 %v269, 0.0
    %v334 = vmax.f32 %v270, 0.0
    %v335 = vmax.f32 %v271, 0.0
    %v336 = vmax.f32 %v272, 0.0
    %v337 = vmax.f32 %v273, 0.0
    %v338 = vmax.f32 %v274, 0.0
    %v339 = vmax.f32 %v275, 0.0
    %v340 = vmax.f32 %v276, 0.0
    %v341 = vmax.f32 %v277, 0.0
    %v342 = vmax.f32 %v278, 0.0
    %v343 = vmax.f32 %v279, 0.0
    %v344 = vmax.f32 %v280, 0.0
    %v345 = vmax.f32 %v281, 0.0
    %v346 = vmax.f32 %v282, 0.0
    %v347 = vmax.f32 %v283, 0.0
    %v348 = vmax.f32 %v284, 0.0
    %v349 = vmax.f32 %v285, 0.0
    %v350 = vmax.f32 %v286, 0.0
    %v351 = vmax.f32 %v287, 0.0
    %v352 = vmax.f32 %v288, 0.0
    %v353 = vmax.f32 %v289, 0.0
    %v354 = vmax.f32 %v290, 0.0
    %v355 = vmax.f32 %v291, 0.0
    %v356 = vmax.f32 %v292, 0.0
    %v357 = vmax.f32 %v293, 0.0
    %v358 = vmax.f32 %v294, 0.0
    %v359 = vmax.f32 %v295, 0.0
    %v360 = vmax.f32 %v296, 0.0
    %v361 = vmax.f32 %v297, 0.0
    %v362 = vmax.f32 %v298, 0.0
    %v363 = vmax.f32 %v299, 0.0
    %v364 = vmax.f32 %v300, 0.0
    %v365 = vmax.f32 %v301, 0.0
    %v366 = vmax.f32 %v302, 0.0
    %v367 = vmax.f32 %v303, 0.0
    %v368 = vmax.f32 %v304, 0.0
    %v369 = vmax.f32 %v305, 0.0
    %v370 = vmax.f32 %v306, 0.0
    %v371 = vmax.f32 %v307, 0.0
    %v372 = vmax.f32 %v308, 0.0
    %v373 = vmax.f32 %v309, 0.0
    %v374 = vmax.f32 %v310, 0.0
    %v375 = vmax.f32 %v311, 0.0
    %v376 = vmax.f32 %v312, 0.0
    %v377 = vmax.f32 %v313, 0.0
    %v378 = vmax.f32 %v314, 0.0
    %v379 = vmax.f32 %v315, 0.0
    %v380 = vmax.f32 %v316, 0.0
    %v381 = vmax.f32 %v317, 0.0
    %v382 = vmax.f32 %v318, 0.0
    %v383 = vmax.f32 %v319, 0.0
    %v384 = vmax.f32 %v320, 0.0
    %v385 = vmax.f32 %v321, 0.0
    %v386 = vmax.f32 %v322, 0.0
    %v387 = vmax.f32 %v323, 0.0
    %v388 = vmax.f32 %v324, 0.0
    %v389 = vmax.f32 %v325, 0.0
    %v390 = vmax.f32 %v326, 0.0
    %391 = vxpose.xlu0.b32.start [1/16] %v327, 128
    %392 = vxpose.xlu0.b32.cont [2/16] %v328, 128
    %393 = vxpose.xlu0.b32.cont [3/16] %v329, 128
    %394 = vxpose.xlu0.b32.cont [4/16] %v330, 128
    %395 = vxpose.xlu0.b32.cont [5/16] %v331, 128
    %396 = vxpose.xlu0.b32.cont [6/16] %v332, 128
    %397 = vxpose.xlu0.b32.cont [7/16] %v333, 128
    %398 = vxpose.xlu0.b32.cont [8/16] %v334, 128
    %399 = vxpose.xlu0.b32.cont [9/16] %v335, 128
    %400 = vxpose.xlu0.b32.cont [10/16] %v336, 128
    %401 = vxpose.xlu0.b32.cont [11/16] %v337, 128
    %402 = vxpose.xlu0.b32.cont [12/16] %v338, 128
    %403 = vxpose.xlu0.b32.cont [13/16] %v339, 128
    %404 = vxpose.xlu0.b32.cont [14/16] %v340, 128
    %405 = vxpose.xlu0.b32.cont [15/16] %v341, 128
    %406 = vxpose.xlu0.b32.end [16/16] %v342, 128
    %v407 = vpop.trf.xlu0
    %v408 = vpop.trf.xlu0
    %v409 = vpop.trf.xlu0
    %v410 = vpop.trf.xlu0
    %v411 = vpop.trf.xlu0
    %v412 = vpop.trf.xlu0
    %v413 = vpop.trf.xlu0
    %v414 = vpop.trf.xlu0
    %v415 = vpop.trf.xlu0
    %v416 = vpop.trf.xlu0
    %v417 = vpop.trf.xlu0
    %v418 = vpop.trf.xlu0
    %v419 = vpop.trf.xlu0
    %v420 = vpop.trf.xlu0
    %v421 = vpop.trf.xlu0
    %v422 = vpop.trf.xlu0
    %423 = vxpose.xlu0.b32.start [1/16] %v343, 128
    %424 = vxpose.xlu0.b32.cont [2/16] %v344, 128
    %425 = vxpose.xlu0.b32.cont [3/16] %v345, 128
    %426 = vxpose.xlu0.b32.cont [4/16] %v346, 128
    %427 = vxpose.xlu0.b32.cont [5/16] %v347, 128
    %428 = vxpose.xlu0.b32.cont [6/16] %v348, 128
    %429 = vxpose.xlu0.b32.cont [7/16] %v349, 128
    %430 = vxpose.xlu0.b32.cont [8/16] %v350, 128
    %431 = vxpose.xlu0.b32.cont [9/16] %v351, 128
    %432 = vxpose.xlu0.b32.cont [10/16] %v352, 128
    %433 = vxpose.xlu0.b32.cont [11/16] %v353, 128
    %434 = vxpose.xlu0.b32.cont [12/16] %v354, 128
    %435 = vxpose.xlu0.b32.cont [13/16] %v355, 128
    %436 = vxpose.xlu0.b32.cont [14/16] %v356, 128
    %437 = vxpose.xlu0.b32.cont [15/16] %v357, 128
    %438 = vxpose.xlu0.b32.end [16/16] %v358, 128
    %v439 = vpop.trf.xlu0
    %v440 = vpop.trf.xlu0
    %v441 = vpop.trf.xlu0
    %v442 = vpop.trf.xlu0
    %v443 = vpop.trf.xlu0
    %v444 = vpop.trf.xlu0
    %v445 = vpop.trf.xlu0
    %v446 = vpop.trf.xlu0
    %v447 = vpop.trf.xlu0
    %v448 = vpop.trf.xlu0
    %v449 = vpop.trf.xlu0
    %v450 = vpop.trf.xlu0
    %v451 = vpop.trf.xlu0
    %v452 = vpop.trf.xlu0
    %v453 = vpop.trf.xlu0
    %v454 = vpop.trf.xlu0
    %455 = vxpose.xlu0.b32.start [1/16] %v359, 128
    %456 = vxpose.xlu0.b32.cont [2/16] %v360, 128
    %457 = vxpose.xlu0.b32.cont [3/16] %v361, 128
    %458 = vxpose.xlu0.b32.cont [4/16] %v362, 128
    %459 = vxpose.xlu0.b32.cont [5/16] %v363, 128
    %460 = vxpose.xlu0.b32.cont [6/16] %v364, 128
    %461 = vxpose.xlu0.b32.cont [7/16] %v365, 128
    %462 = vxpose.xlu0.b32.cont [8/16] %v366, 128
    %463 = vxpose.xlu0.b32.cont [9/16] %v367, 128
    %464 = vxpose.xlu0.b32.cont [10/16] %v368, 128
    %465 = vxpose.xlu0.b32.cont [11/16] %v369, 128
    %466 = vxpose.xlu0.b32.cont [12/16] %v370, 128
    %467 = vxpose.xlu0.b32.cont [13/16] %v371, 128
    %468 = vxpose.xlu0.b32.cont [14/16] %v372, 128
    %469 = vxpose.xlu0.b32.cont [15/16] %v373, 128
    %470 = vxpose.xlu0.b32.end [16/16] %v374, 128
    %v471 = vpop.trf.xlu0
    %v472 = vpop.trf.xlu0
    %v473 = vpop.trf.xlu0
    %v474 = vpop.trf.xlu0
    %v475 = vpop.trf.xlu0
    %v476 = vpop.trf.xlu0
    %v477 = vpop.trf.xlu0
    %v478 = vpop.trf.xlu0
    %v479 = vpop.trf.xlu0
    %v480 = vpop.trf.xlu0
    %v481 = vpop.trf.xlu0
    %v482 = vpop.trf.xlu0
    %v483 = vpop.trf.xlu0
    %v484 = vpop.trf.xlu0
    %v485 = vpop.trf.xlu0
    %v486 = vpop.trf.xlu0
    %487 = vxpose.xlu0.b32.start [1/16] %v375, 128
    %488 = vxpose.xlu0.b32.cont [2/16] %v376, 128
    %489 = vxpose.xlu0.b32.cont [3/16] %v377, 128
    %490 = vxpose.xlu0.b32.cont [4/16] %v378, 128
    %491 = vxpose.xlu0.b32.cont [5/16] %v379, 128
    %492 = vxpose.xlu0.b32.cont [6/16] %v380, 128
    %493 = vxpose.xlu0.b32.cont [7/16] %v381, 128
    %494 = vxpose.xlu0.b32.cont [8/16] %v382, 128
    %495 = vxpose.xlu0.b32.cont [9/16] %v383, 128
    %496 = vxpose.xlu0.b32.cont [10/16] %v384, 128
    %497 = vxpose.xlu0.b32.cont [11/16] %v385, 128
    %498 = vxpose.xlu0.b32.cont [12/16] %v386, 128
    %499 = vxpose.xlu0.b32.cont [13/16] %v387, 128
    %500 = vxpose.xlu0.b32.cont [14/16] %v388, 128
    %501 = vxpose.xlu0.b32.cont [15/16] %v389, 128
    %502 = vxpose.xlu0.b32.end [16/16] %v390, 128
    %v503 = vpop.trf.xlu0
    %v504 = vpop.trf.xlu0
    %v505 = vpop.trf.xlu0
    %v506 = vpop.trf.xlu0
    %v507 = vpop.trf.xlu0
    %v508 = vpop.trf.xlu0
    %v509 = vpop.trf.xlu0
    %v510 = vpop.trf.xlu0
    %v511 = vpop.trf.xlu0
    %v512 = vpop.trf.xlu0
    %v513 = vpop.trf.xlu0
    %v514 = vpop.trf.xlu0
    %v515 = vpop.trf.xlu0
    %v516 = vpop.trf.xlu0
    %v517 = vpop.trf.xlu0
    %v518 = vpop.trf.xlu0
    %519 = vst [vmem:[#allocation8] sm:$0xff] %v407
    %520 = vst [vmem:[#allocation8 + $0x8] sm:$0xff] %v439
    %521 = vst [vmem:[#allocation8 + $0x10] sm:$0xff] %v471
    %522 = vst [vmem:[#allocation8 + $0x18] sm:$0xff] %v503
    // Predicated region
    $region26: #{double_conv_forward.5} parent=1 // pred_check
      _
    $region27: #{double_conv_forward.5} parent=1 // pred_check_branch
      %524 = sbr.rel (0) target = $region29
    $region28: #{double_conv_forward.5} parent=1 // pred_region
      %s526 = ssub.s32 512, 512
      %527 = vsyncadd [#allocation4], %s526
      %s529 = sshll.u32 [#allocation8], 4
      %s530 = int_to_ptr.vmem [resolvable:$true] %s529
      %532 = dma.vmem_to_hbm [thread:$0]  %s530, 512, %s3, [#allocation4]
    $region29: #{double_conv_forward.5} parent=1 // pred_fallthru
      _
    // Predicated region
    $region30: #{double_conv_forward.5} parent=1 // pred_check
      _
    $region31: #{double_conv_forward.5} parent=1 // pred_check_branch
      %534 = sbr.rel (0) target = $region33
    $region32: #{double_conv_forward.5} parent=1 // pred_region
      %535 = dma.done [#allocation4], 512
    $region33: #{double_conv_forward.5} parent=1 // pred_fallthru
      _
    %536 = vsyncpa [#allocation3], 1
    %537 = vsyncpa [#allocation6], 1
    %538 = vsyncpa [#allocation4], 1

// kernel: double_conv_forward.4
$region0: #{double_conv_forward.4}
  #allocation0 [shape = 'u32[]', space=smem, size = 0x4, offset = 0x4, fixed_abs, tag = 'smem constant byte address 0x4 - core index']
  #allocation1 [shape = 'u32[144,128]{1,0:T(1,128)}', space=vmem, size = 0x12000, scoped, tag = 'internal scratch']
  #allocation2 [shape = 'bf16[18,32,128]{2,1,0:T(16,128)(2,1)}', space=vmem, size = 0x24000, scoped, tag = 'scratch operand']
  #allocation3 [shape = 'f32[256,128]{1,0:T(8,128)}', space=vmem, size = 0x20000, scoped, tag = 'scratch operand']
  %s0 = inlined_call_operand.hbm [shape: bf16[2,16,16,128], index: 0, kind: input, shape index: {}]
  %s1 = inlined_call_operand.hbm [shape: f32[1,128], index: 1, kind: input, shape index: {}]
  %s2 = inlined_call_operand.hbm [shape: f32[1,128], index: 2, kind: input, shape index: {}]
  %s3 = inlined_call_operand.hbm [shape: bf16[9,128,128], index: 3, kind: input, shape index: {}]
  %s4 = inlined_call_operand.hbm [shape: f32[1,128], index: 4, kind: input, shape index: {}]
  %s5 = inlined_call_operand.hbm [shape: bf16[2,16,16,128], index: 5, kind: output, shape index: {0}]
  %s6 = inlined_call_operand.hbm [shape: f32[2,2,128], index: 6, kind: output, shape index: {1}]
  %7 = xla_tuple %s5, %s6
  %s8 = sld [smem:[#allocation0]]
  $region81: #{double_conv_forward.4} parent=0
    _
  %s10 = ssub.s32 1, %s8
  %s11 = scalar_select 0, %s10, %s8
  $region1: #{double_conv_forward.4} parent=0
    #allocation4 [shape = 'u8[131072]{0}', space=vmem, size = 0x20000, scoped, tag = 'input window, operand 0']
    #allocation5 [shape = 's32[2]{0}', space=sflag, size = 0x8, scoped, tag = 'scoped memory for double_conv_forward.4']
    #allocation6 [shape = 's32[2]{0}', space=sflag, size = 0x8, scoped, tag = 'scoped memory for double_conv_forward.4']
    #allocation7 [shape = 'u8[512]{0}', space=vmem, size = 0x400, scoped, tag = 'input window, operand 1, single buffered']
    #allocation8 [shape = 's32[1]{0}', space=sflag, size = 0x4, scoped, tag = 'scoped memory for double_conv_forward.4']
    #allocation9 [shape = 'u8[512]{0}', space=vmem, size = 0x400, scoped, tag = 'input window, operand 2, single buffered']
    #allocation10 [shape = 'u8[294912]{0}', space=vmem, size = 0x48000, scoped, tag = 'input window, operand 3, single buffered']
    #allocation11 [shape = 's32[1]{0}', space=sflag, size = 0x4, scoped, tag = 'scoped memory for double_conv_forward.4']
    #allocation12 [shape = 'u8[512]{0}', space=vmem, size = 0x400, scoped, tag = 'input window, operand 4, single buffered']
    #allocation13 [shape = 'u8[131072]{0}', space=vmem, size = 0x20000, scoped, tag = 'output window, operand 0']
    #allocation14 [shape = 'u8[2048]{0}', space=vmem, size = 0x800, scoped, tag = 'output window, operand 1']
    #allocation15 [shape = 's32[2]{0}', space=sflag, size = 0x8, scoped, tag = 'scoped memory for double_conv_forward.4']
    %12 = vsyncpa [#allocation5], 0
    %s13 = scalar_lea.sflag [#allocation5], 1
    %14 = vsyncpa %s13, 0
    %15 = vsyncpa [#allocation8], 0
    %16 = vsyncpa [#allocation11], 0
    %17 = vsyncpa [#allocation6], 0
    %s18 = scalar_lea.sflag [#allocation6], 1
    %19 = vsyncpa %s18, 0
    %20 = vsyncpa [#allocation15], 0
    %s21 = scalar_lea.sflag [#allocation15], 1
    %22 = vsyncpa %s21, 0
    loop: start=0, step=1, limit=4
    $region2: #{double_conv_forward.4} parent=1 // loop_pre_header
      _
    $region3: #{double_conv_forward.4} parent=1 // loop_header
      %s24 = sphi 0, %s28
      %p25 = scmp.ge.s32.totalorder %s24, 4
      %s34 = sphi 0, %s36
      %s37 = sphi 0, %s34
      %s38 = sphi 0, %s37
      %s54 = sphi 0, %s38
      %s58 = sphi 0, %s58
      %s60 = sphi 0, %s58
      %s61 = sphi 0, %s60
      %s75 = sphi 0, %s61
      %s79 = sphi 0, %s79
      %s81 = sphi 0, %s79
      %s82 = sphi 0, %s81
      %s96 = sphi 0, %s82
      %s100 = sphi 0, %s100
      %s102 = sphi 0, %s100
      %s103 = sphi 0, %s102
      %s117 = sphi 0, %s103
      %s121 = sphi 0, %s121
      %s123 = sphi 0, %s121
      %s124 = sphi 0, %s123
      %s138 = sphi 0, %s124
      %s144 = sphi 0, %s146
      %s147 = sphi 0, %s144
      %s148 = sphi 0, %s147
      %s164 = sphi 0, %s148
      %s170 = sphi 0, %s172
      %s173 = sphi 0, %s170
      %s174 = sphi 0, %s173
      %s190 = sphi 0, %s174
    $region4: #{double_conv_forward.4} parent=1 // loop_header_branch
      %27 = sbr.rel (%p25) target = $region8
    $region5: #{double_conv_forward.4} parent=1 // loop_body
      %s29 = ssub.s32 %s24, 1
      %s30 = ssub.s32 %s24, 2
      %s31 = sadd.s32 %s24, 1
      %s32 = ssub.s32 %s24, %s31
      %p33 = scmp.eq.s32.totalorder %s32, 0
      %s35 = sadd.s32 %s34, 1
      %s36 = scalar_select %p33, %s34, %s35
      %p39 = pneg %p33
      %p40 = scmp.eq.s32.totalorder %s24, 1
      %p41 = por %p39, %p40
      %p42 = scmp.ne.s32.totalorder %s34, %s37
      %p43 = scmp.eq.s32.totalorder %s24, 0
      %p44 = por %p42, %p43
      %p45 = scmp.ne.s32.totalorder %s34, %s37
      %p46 = scmp.eq.s32.totalorder %s29, 1
      %p47 = por %p45, %p46
      %p48 = scmp.ne.s32.totalorder %s37, %s38
      %p49 = scmp.eq.s32.totalorder %s29, 0
      %p50 = por %p48, %p49
      %p51 = scmp.ne.s32.totalorder %s37, %s38
      %p52 = scmp.eq.s32.totalorder %s30, 1
      %p53 = por %p51, %p52
      %p55 = scmp.ne.s32.totalorder %s38, %s54
      %p56 = scmp.eq.s32.totalorder %s30, 0
      %p57 = por %p55, %p56
      %s59 = sadd.s32 %s58, 1
      %p62 = scmp.eq.s32.totalorder %s24, 1
      %p63 = scmp.ne.s32.totalorder %s58, %s60
      %p64 = scmp.eq.s32.totalorder %s24, 0
      %p65 = por %p63, %p64
      %p66 = scmp.ne.s32.totalorder %s58, %s60
      %p67 = scmp.eq.s32.totalorder %s29, 1
      %p68 = por %p66, %p67
      %p69 = scmp.ne.s32.totalorder %s60, %s61
      %p70 = scmp.eq.s32.totalorder %s29, 0
      %p71 = por %p69, %p70
      %p72 = scmp.ne.s32.totalorder %s60, %s61
      %p73 = scmp.eq.s32.totalorder %s30, 1
      %p74 = por %p72, %p73
      %p76 = scmp.ne.s32.totalorder %s61, %s75
      %p77 = scmp.eq.s32.totalorder %s30, 0
      %p78 = por %p76, %p77
      %s80 = sadd.s32 %s79, 1
      %p83 = scmp.eq.s32.totalorder %s24, 1
      %p84 = scmp.ne.s32.totalorder %s79, %s81
      %p85 = scmp.eq.s32.totalorder %s24, 0
      %p86 = por %p84, %p85
      %p87 = scmp.ne.s32.totalorder %s79, %s81
      %p88 = scmp.eq.s32.totalorder %s29, 1
      %p89 = por %p87, %p88
      %p90 = scmp.ne.s32.totalorder %s81, %s82
      %p91 = scmp.eq.s32.totalorder %s29, 0
      %p92 = por %p90, %p91
      %p93 = scmp.ne.s32.totalorder %s81, %s82
      %p94 = scmp.eq.s32.totalorder %s30, 1
      %p95 = por %p93, %p94
      %p97 = scmp.ne.s32.totalorder %s82, %s96
      %p98 = scmp.eq.s32.totalorder %s30, 0
      %p99 = por %p97, %p98
      %s101 = sadd.s32 %s100, 1
      %p104 = scmp.eq.s32.totalorder %s24, 1
      %p105 = scmp.ne.s32.totalorder %s100, %s102
      %p106 = scmp.eq.s32.totalorder %s24, 0
      %p107 = por %p105, %p106
      %p108 = scmp.ne.s32.totalorder %s100, %s102
      %p109 = scmp.eq.s32.totalorder %s29, 1
      %p110 = por %p108, %p109
      %p111 = scmp.ne.s32.totalorder %s102, %s103
      %p112 = scmp.eq.s32.totalorder %s29, 0
      %p113 = por %p111, %p112
      %p114 = scmp.ne.s32.totalorder %s102, %s103
      %p115 = scmp.eq.s32.totalorder %s30, 1
      %p116 = por %p114, %p115
      %p118 = scmp.ne.s32.totalorder %s103, %s117
      %p119 = scmp.eq.s32.totalorder %s30, 0
      %p120 = por %p118, %p119
      %s122 = sadd.s32 %s121, 1
      %p125 = scmp.eq.s32.totalorder %s24, 1
      %p126 = scmp.ne.s32.totalorder %s121, %s123
      %p127 = scmp.eq.s32.totalorder %s24, 0
      %p128 = por %p126, %p127
      %p129 = scmp.ne.s32.totalorder %s121, %s123
      %p130 = scmp.eq.s32.totalorder %s29, 1
      %p131 = por %p129, %p130
      %p132 = scmp.ne.s32.totalorder %s123, %s124
      %p133 = scmp.eq.s32.totalorder %s29, 0
      %p134 = por %p132, %p133
      %p135 = scmp.ne.s32.totalorder %s123, %s124
      %p136 = scmp.eq.s32.totalorder %s30, 1
      %p137 = por %p135, %p136
      %p139 = scmp.ne.s32.totalorder %s124, %s138
      %p140 = scmp.eq.s32.totalorder %s30, 0
      %p141 = por %p139, %p140
      %s142 = ssub.s32 %s24, %s31
      %p143 = scmp.eq.s32.totalorder %s142, 0
      %s145 = sadd.s32 %s144, 1
      %s146 = scalar_select %p143, %s144, %s145
      %p149 = pneg %p143
      %p150 = scmp.eq.s32.totalorder %s24, 1
      %p151 = por %p149, %p150
      %p152 = scmp.ne.s32.totalorder %s144, %s147
      %p153 = scmp.eq.s32.totalorder %s24, 0
      %p154 = por %p152, %p153
      %p155 = scmp.ne.s32.totalorder %s144, %s147
      %p156 = scmp.eq.s32.totalorder %s29, 1
      %p157 = por %p155, %p156
      %p158 = scmp.ne.s32.totalorder %s147, %s148
      %p159 = scmp.eq.s32.totalorder %s29, 0
      %p160 = por %p158, %p159
      %p161 = scmp.ne.s32.totalorder %s147, %s148
      %p162 = scmp.eq.s32.totalorder %s30, 1
      %p163 = por %p161, %p162
      %p165 = scmp.ne.s32.totalorder %s148, %s164
      %p166 = scmp.eq.s32.totalorder %s30, 0
      %p167 = por %p165, %p166
      %s168 = ssub.s32 %s24, %s31
      %p169 = scmp.eq.s32.totalorder %s168, 0
      %s171 = sadd.s32 %s170, 1
      %s172 = scalar_select %p169, %s170, %s171
      %p175 = pneg %p169
      %p176 = scmp.eq.s32.totalorder %s24, 1
      %p177 = por %p175, %p176
      %p178 = scmp.ne.s32.totalorder %s170, %s173
      %p179 = scmp.eq.s32.totalorder %s24, 0
      %p180 = por %p178, %p179
      %p181 = scmp.ne.s32.totalorder %s170, %s173
      %p182 = scmp.eq.s32.totalorder %s29, 1
      %p183 = por %p181, %p182
      %p184 = scmp.ne.s32.totalorder %s173, %s174
      %p185 = scmp.eq.s32.totalorder %s29, 0
      %p186 = por %p184, %p185
      %p187 = scmp.ne.s32.totalorder %s173, %s174
      %p188 = scmp.eq.s32.totalorder %s30, 1
      %p189 = por %p187, %p188
      %p191 = scmp.ne.s32.totalorder %s174, %s190
      %p192 = scmp.eq.s32.totalorder %s30, 0
      %p193 = por %p191, %p192
      %p194 = scmp.le.s32.totalorder 1, %s24
      %p195 = scmp.lt.s32.totalorder %s24, 3
      %p196 = pnand %p194, %p195
      %p197 = pneg %p196
      // Predicated region
      $region9: #{double_conv_forward.4} parent=5 // pred_check
        _
      $region10: #{double_conv_forward.4} parent=5 // pred_check_branch
        %199 = sbr.rel (%p196) target = $region12
      $region11: #{double_conv_forward.4} parent=5 // pred_region
        %s200 = ssub.s32 %s24, 1
        // Predicated region
        $region13: #{double_conv_forward.4} parent=11 // pred_check
          %p201 = pneg %p71
        $region14: #{double_conv_forward.4} parent=11 // pred_check_branch
          %203 = sbr.rel (%p201) target = $region16
        $region15: #{double_conv_forward.4} parent=11 // pred_region
          %s205 = ssub.s32 16, 16
          %206 = vsyncadd [#allocation8], %s205
          %s208 = sshll.u32 [#allocation7], 4
          %s209 = int_to_ptr.vmem [resolvable:$true] %s208
          %211 = dma.hbm_to_vmem [thread:$0]  %s1, 16, %s209, [#allocation8]
        $region16: #{double_conv_forward.4} parent=11 // pred_fallthru
          _
        // Predicated region
        $region17: #{double_conv_forward.4} parent=11 // pred_check
          %p212 = pneg %p92
        $region18: #{double_conv_forward.4} parent=11 // pred_check_branch
          %214 = sbr.rel (%p212) target = $region20
        $region19: #{double_conv_forward.4} parent=11 // pred_region
          %s216 = ssub.s32 16, 16
          %217 = vsyncadd [#allocation8], %s216
          %s219 = sshll.u32 [#allocation9], 4
          %s220 = int_to_ptr.vmem [resolvable:$true] %s219
          %222 = dma.hbm_to_vmem [thread:$0]  %s2, 16, %s220, [#allocation8]
        $region20: #{double_conv_forward.4} parent=11 // pred_fallthru
          _
        // Predicated region
        $region21: #{double_conv_forward.4} parent=11 // pred_check
          %p223 = pneg %p113
        $region22: #{double_conv_forward.4} parent=11 // pred_check_branch
          %225 = sbr.rel (%p223) target = $region24
        $region23: #{double_conv_forward.4} parent=11 // pred_region
          %s227 = ssub.s32 9216, 9216
          %228 = vsyncadd [#allocation11], %s227
          %s229 = sshll.u32 [#allocation10], 4
          %s230 = int_to_ptr.vmem [resolvable:$true] %s229
          %235 = dma.hbm_to_vmem [thread:$0]  %s3, 9216, %s230, [#allocation11], 64, 64, 4
        $region24: #{double_conv_forward.4} parent=11 // pred_fallthru
          _
        // Predicated region
        $region25: #{double_conv_forward.4} parent=11 // pred_check
          %p236 = pneg %p134
        $region26: #{double_conv_forward.4} parent=11 // pred_check_branch
          %238 = sbr.rel (%p236) target = $region28
        $region27: #{double_conv_forward.4} parent=11 // pred_region
          %s240 = ssub.s32 16, 16
          %241 = vsyncadd [#allocation11], %s240
          %s243 = sshll.u32 [#allocation12], 4
          %s244 = int_to_ptr.vmem [resolvable:$true] %s243
          %246 = dma.hbm_to_vmem [thread:$0]  %s4, 16, %s244, [#allocation11]
        $region28: #{double_conv_forward.4} parent=11 // pred_fallthru
          _
      $region12: #{double_conv_forward.4} parent=5 // pred_fallthru
        _
      %p247 = scmp.lt.s32.totalorder %s24, 2
      // Predicated region
      $region29: #{double_conv_forward.4} parent=5 // pred_check
        %p248 = pneg %p247
      $region30: #{double_conv_forward.4} parent=5 // pred_check_branch
        %250 = sbr.rel (%p248) target = $region32
      $region31: #{double_conv_forward.4} parent=5 // pred_region
        // Predicated region
        $region33: #{double_conv_forward.4} parent=31 // pred_check
          %p251 = pneg %p44
        $region34: #{double_conv_forward.4} parent=31 // pred_check_branch
          %253 = sbr.rel (%p251) target = $region36
        $region35: #{double_conv_forward.4} parent=31 // pred_region
          %s254 = sand.u32 %s34, 1
          %s255 = scalar_lea.sflag [#allocation5], %s254
          %s256 = sand.u32 %s34, 1
          %s257 = smul.addr %s256, 128
          %s258 = scalar_lea.vmem [#allocation4], %s257
          %s260 = ssub.s32 2048, 2048
          %261 = vsyncadd %s255, %s260
          %s262 = smul.addr %s24, 32
          %s263 = smul.addr %s262, 64
          %s264 = scalar_lea.hbm %s0, %s263
          %s265 = sshll.u32 %s258, 4
          %s266 = int_to_ptr.vmem [resolvable:$true] %s265
          %271 = dma.hbm_to_vmem [thread:$0]  %s264, 2048, %s266, %s255, 64, 64, 4
        $region36: #{double_conv_forward.4} parent=31 // pred_fallthru
          _
      $region32: #{double_conv_forward.4} parent=5 // pred_fallthru
        _
      %p272 = scmp.le.s32.totalorder 1, %s24
      %p273 = scmp.lt.s32.totalorder %s24, 3
      %p274 = pnand %p272, %p273
      %p275 = pneg %p274
      // Predicated region
      $region37: #{double_conv_forward.4} parent=5 // pred_check
        _
      $region38: #{double_conv_forward.4} parent=5 // pred_check_branch
        %277 = sbr.rel (%p274) target = $region40
      $region39: #{double_conv_forward.4} parent=5 // pred_region
        %s278 = ssub.s32 %s24, 1
        %s279 = sand.u32 %s37, 1
        %s280 = scalar_lea.sflag [#allocation5], %s279
        %s281 = sand.u32 %s37, 1
        %s282 = smul.addr %s281, 128
        %s283 = scalar_lea.vmem [#allocation4], %s282
        // Predicated region
        $region41: #{double_conv_forward.4} parent=39 // pred_check
          %p284 = pneg %p50
        $region42: #{double_conv_forward.4} parent=39 // pred_check_branch
          %286 = sbr.rel (%p284) target = $region44
        $region43: #{double_conv_forward.4} parent=39 // pred_region
          %287 = dma.done %s280, 2048
        $region44: #{double_conv_forward.4} parent=39 // pred_fallthru
          _
        // Predicated region
        $region45: #{double_conv_forward.4} parent=39 // pred_check
          %p288 = pneg %p71
        $region46: #{double_conv_forward.4} parent=39 // pred_check_branch
          %290 = sbr.rel (%p288) target = $region48
        $region47: #{double_conv_forward.4} parent=39 // pred_region
          %291 = dma.done [#allocation8], 16
        $region48: #{double_conv_forward.4} parent=39 // pred_fallthru
          _
        // Predicated region
        $region49: #{double_conv_forward.4} parent=39 // pred_check
          %p292 = pneg %p92
        $region50: #{double_conv_forward.4} parent=39 // pred_check_branch
          %294 = sbr.rel (%p292) target = $region52
        $region51: #{double_conv_forward.4} parent=39 // pred_region
          %295 = dma.done [#allocation8], 16
        $region52: #{double_conv_forward.4} parent=39 // pred_fallthru
          _
        // Predicated region
        $region53: #{double_conv_forward.4} parent=39 // pred_check
          %p296 = pneg %p113
        $region54: #{double_conv_forward.4} parent=39 // pred_check_branch
          %298 = sbr.rel (%p296) target = $region56
        $region55: #{double_conv_forward.4} parent=39 // pred_region
          %299 = dma.done [#allocation11], 9216
        $region56: #{double_conv_forward.4} parent=39 // pred_fallthru
          _
        // Predicated region
        $region57: #{double_conv_forward.4} parent=39 // pred_check
          %p300 = pneg %p134
        $region58: #{double_conv_forward.4} parent=39 // pred_check_branch
          %302 = sbr.rel (%p300) target = $region60
        $region59: #{double_conv_forward.4} parent=39 // pred_region
          %303 = dma.done [#allocation11], 16
        $region60: #{double_conv_forward.4} parent=39 // pred_fallthru
          _
        %s304 = sand.u32 %s37, 1
        %s305 = scalar_lea.sflag [#allocation5], %s304
        %s306 = sand.u32 %s37, 1
        %s307 = smul.addr %s306, 128
        %s308 = scalar_lea.vmem [#allocation4], %s307
        %p309 = pneg %p50
        %p310 = pneg %p47
        %p311 = pneg %p71
        %p312 = pneg %p68
        %p313 = pneg %p92
        %p314 = pneg %p89
        %p315 = pneg %p113
        %p316 = pneg %p110
        %p317 = pneg %p134
        %p318 = pneg %p131
        %p319 = pneg %p160
        %p320 = pneg %p157
        %s321 = sand.u32 %s147, 1
        %s322 = scalar_lea.sflag [#allocation6], %s321
        %s323 = sand.u32 %s147, 1
        %s324 = smul.addr %s323, 128
        %s325 = scalar_lea.vmem [#allocation13], %s324
        %p326 = pneg %p186
        %p327 = pneg %p183
        %s328 = sand.u32 %s173, 1
        %s329 = scalar_lea.sflag [#allocation15], %s328
        %s330 = sand.u32 %s173, 1
        %s331 = smul.addr %s330, 2
        %s332 = scalar_lea.vmem [#allocation14], %s331
        %v334 = vld [vmem:[#allocation9] sm:$0x1]
        %v335 = vadd.f32 %v334, 1e-05
        %v336 = vrcp.pop %v335
        %v337 = vmul.f32 %v335, %v336
        %v338 = vsub.f32 2.0, %v337
        %v339 = vmul.f32 %v336, %v338
        %v340 = vld [vmem:[%s283] sm:$0xf]
        %v341 = vld [vmem:[%s283 + $0x4] sm:$0xf]
        %v342 = vld [vmem:[%s283 + $0x8] sm:$0xf]
        %v343 = vld [vmem:[%s283 + $0xc] sm:$0xf]
        %v344 = vld [vmem:[%s283 + $0x10] sm:$0xf]
        %v345 = vld [vmem:[%s283 + $0x14] sm:$0xf]
        %v346 = vld [vmem:[%s283 + $0x18] sm:$0xf]
        %v347 = vld [vmem:[%s283 + $0x1c] sm:$0xf]
        %v348 = vld [vmem:[%s283 + $0x20] sm:$0xf]
        %v349 = vld [vmem:[%s283 + $0x24] sm:$0xf]
        %v350 = vld [vmem:[%s283 + $0x28] sm:$0xf]
        %v351 = vld [vmem:[%s283 + $0x2c] sm:$0xf]
        %v352 = vld [vmem:[%s283 + $0x30] sm:$0xf]
        %v353 = vld [vmem:[%s283 + $0x34] sm:$0xf]
        %v354 = vld [vmem:[%s283 + $0x38] sm:$0xf]
        %v355 = vld [vmem:[%s283 + $0x3c] sm:$0xf]
        %v356 = vld [vmem:[%s283 + $0x40] sm:$0xf]
        %v357 = vld [vmem:[%s283 + $0x44] sm:$0xf]
        %v358 = vld [vmem:[%s283 + $0x48] sm:$0xf]
        %v359 = vld [vmem:[%s283 + $0x4c] sm:$0xf]
        %v360 = vld [vmem:[%s283 + $0x50] sm:$0xf]
        %v361 = vld [vmem:[%s283 + $0x54] sm:$0xf]
        %v362 = vld [vmem:[%s283 + $0x58] sm:$0xf]
        %v363 = vld [vmem:[%s283 + $0x5c] sm:$0xf]
        %v364 = vld [vmem:[%s283 + $0x60] sm:$0xf]
        %v365 = vld [vmem:[%s283 + $0x64] sm:$0xf]
        %v366 = vld [vmem:[%s283 + $0x68] sm:$0xf]
        %v367 = vld [vmem:[%s283 + $0x6c] sm:$0xf]
        %v368 = vld [vmem:[%s283 + $0x70] sm:$0xf]
        %v369 = vld [vmem:[%s283 + $0x74] sm:$0xf]
        %v370 = vld [vmem:[%s283 + $0x78] sm:$0xf]
        %v371 = vld [vmem:[%s283 + $0x7c] sm:$0xf]
        %v372 = vunpack.c.l.bf16 %v340
        %v373 = vunpack.c.l.bf16 %v341
        %v374 = vunpack.c.l.bf16 %v342
        %v375 = vunpack.c.l.bf16 %v343
        %v376 = vunpack.c.l.bf16 %v344
        %v377 = vunpack.c.l.bf16 %v345
        %v378 = vunpack.c.l.bf16 %v346
        %v379 = vunpack.c.l.bf16 %v347
        %v380 = vunpack.c.l.bf16 %v348
        %v381 = vunpack.c.l.bf16 %v349
        %v382 = vunpack.c.l.bf16 %v350
        %v383 = vunpack.c.l.bf16 %v351
        %v384 = vunpack.c.l.bf16 %v352
        %v385 = vunpack.c.l.bf16 %v353
        %v386 = vunpack.c.l.bf16 %v354
        %v387 = vunpack.c.l.bf16 %v355
        %v388 = vunpack.c.l.bf16 %v356
        %v389 = vunpack.c.l.bf16 %v357
        %v390 = vunpack.c.l.bf16 %v358
        %v391 = vunpack.c.l.bf16 %v359
        %v392 = vunpack.c.l.bf16 %v360
        %v393 = vunpack.c.l.bf16 %v361
        %v394 = vunpack.c.l.bf16 %v362
        %v395 = vunpack.c.l.bf16 %v363
        %v396 = vunpack.c.l.bf16 %v364
        %v397 = vunpack.c.l.bf16 %v365
        %v398 = vunpack.c.l.bf16 %v366
        %v399 = vunpack.c.l.bf16 %v367
        %v400 = vunpack.c.l.bf16 %v368
        %v401 = vunpack.c.l.bf16 %v369
        %v402 = vunpack.c.l.bf16 %v370
        %v403 = vunpack.c.l.bf16 %v371
        %v404 = vld [vmem:[#allocation7] sm:$0x1]
        %v406 = vlaneseq
        %v407 = vshrl.u32 %v406, 7
        %v408 = vsub.s32 0, %v407
        %v409 = vrot.slane %v404, %v408
        %v411 = vsub.f32 %v372, %v409
        %v412 = vsub.f32 %v373, %v409
        %v413 = vsub.f32 %v374, %v409
        %v414 = vsub.f32 %v375, %v409
        %v415 = vsub.f32 %v376, %v409
        %v416 = vsub.f32 %v377, %v409
        %v417 = vsub.f32 %v378, %v409
        %v418 = vsub.f32 %v379, %v409
        %v419 = vsub.f32 %v380, %v409
        %v420 = vsub.f32 %v381, %v409
        %v421 = vsub.f32 %v382, %v409
        %v422 = vsub.f32 %v383, %v409
        %v423 = vsub.f32 %v384, %v409
        %v424 = vsub.f32 %v385, %v409
        %v425 = vsub.f32 %v386, %v409
        %v426 = vsub.f32 %v387, %v409
        %v427 = vsub.f32 %v388, %v409
        %v428 = vsub.f32 %v389, %v409
        %v429 = vsub.f32 %v390, %v409
        %v430 = vsub.f32 %v391, %v409
        %v431 = vsub.f32 %v392, %v409
        %v432 = vsub.f32 %v393, %v409
        %v433 = vsub.f32 %v394, %v409
        %v434 = vsub.f32 %v395, %v409
        %v435 = vsub.f32 %v396, %v409
        %v436 = vsub.f32 %v397, %v409
        %v437 = vsub.f32 %v398, %v409
        %v438 = vsub.f32 %v399, %v409
        %v439 = vsub.f32 %v400, %v409
        %v440 = vsub.f32 %v401, %v409
        %v441 = vsub.f32 %v402, %v409
        %v442 = vsub.f32 %v403, %v409
        %v444 = vlaneseq
        %v445 = vshrl.u32 %v444, 7
        %v446 = vsub.s32 0, %v445
        %v447 = vrot.slane %v339, %v446
        %v449 = vmul.f32 %v411, %v447
        %v450 = vmul.f32 %v412, %v447
        %v451 = vmul.f32 %v413, %v447
        %v452 = vmul.f32 %v414, %v447
        %v453 = vmul.f32 %v415, %v447
        %v454 = vmul.f32 %v416, %v447
        %v455 = vmul.f32 %v417, %v447
        %v456 = vmul.f32 %v418, %v447
        %v457 = vmul.f32 %v419, %v447
        %v458 = vmul.f32 %v420, %v447
        %v459 = vmul.f32 %v421, %v447
        %v460 = vmul.f32 %v422, %v447
        %v461 = vmul.f32 %v423, %v447
        %v462 = vmul.f32 %v424, %v447
        %v463 = vmul.f32 %v425, %v447
        %v464 = vmul.f32 %v426, %v447
        %v465 = vmul.f32 %v427, %v447
        %v466 = vmul.f32 %v428, %v447
        %v467 = vmul.f32 %v429, %v447
        %v468 = vmul.f32 %v430, %v447
        %v469 = vmul.f32 %v431, %v447
        %v470 = vmul.f32 %v432, %v447
        %v471 = vmul.f32 %v433, %v447
        %v472 = vmul.f32 %v434, %v447
        %v473 = vmul.f32 %v435, %v447
        %v474 = vmul.f32 %v436, %v447
        %v475 = vmul.f32 %v437, %v447
        %v476 = vmul.f32 %v438, %v447
        %v477 = vmul.f32 %v439, %v447
        %v478 = vmul.f32 %v440, %v447
        %v479 = vmul.f32 %v441, %v447
        %v480 = vmul.f32 %v442, %v447
        %v481 = vmax.f32 %v449, 0.0
        %v482 = vmax.f32 %v450, 0.0
        %v483 = vmax.f32 %v451, 0.0
        %v484 = vmax.f32 %v452, 0.0
        %v485 = vmax.f32 %v453, 0.0
        %v486 = vmax.f32 %v454, 0.0
        %v487 = vmax.f32 %v455, 0.0
        %v488 = vmax.f32 %v456, 0.0
        %v489 = vmax.f32 %v457, 0.0
        %v490 = vmax.f32 %v458, 0.0
        %v491 = vmax.f32 %v459, 0.0
        %v492 = vmax.f32 %v460, 0.0
        %v493 = vmax.f32 %v461, 0.0
        %v494 = vmax.f32 %v462, 0.0
        %v495 = vmax.f32 %v463, 0.0
        %v496 = vmax.f32 %v464, 0.0
        %v497 = vmax.f32 %v465, 0.0
        %v498 = vmax.f32 %v466, 0.0
        %v499 = vmax.f32 %v467, 0.0
        %v500 = vmax.f32 %v468, 0.0
        %v501 = vmax.f32 %v469, 0.0
        %v502 = vmax.f32 %v470, 0.0
        %v503 = vmax.f32 %v471, 0.0
        %v504 = vmax.f32 %v472, 0.0
        %v505 = vmax.f32 %v473, 0.0
        %v506 = vmax.f32 %v474, 0.0
        %v507 = vmax.f32 %v475, 0.0
        %v508 = vmax.f32 %v476, 0.0
        %v509 = vmax.f32 %v477, 0.0
        %v510 = vmax.f32 %v478, 0.0
        %v511 = vmax.f32 %v479, 0.0
        %v512 = vmax.f32 %v480, 0.0
        %513 = vst [vmem:[#allocation2] sm:$0xff] 0
        %514 = vst [vmem:[#allocation2 + $0x8] sm:$0xff] 0
        %s515 = scalar_lea.vmem [#allocation2], 272
        %516 = vst [vmem:[%s515] sm:$0xff] 0
        %517 = vst [vmem:[%s515 + $0x8] sm:$0xff] 0
        %518 = vst [vmem:[#allocation2] sm:$0xf] 0
        %519 = vst [vmem:[#allocation2 + $0x10] sm:$0xf] 0
        %520 = vst [vmem:[#allocation2 + $0x20] sm:$0xf] 0
        %521 = vst [vmem:[#allocation2 + $0x30] sm:$0xf] 0
        %522 = vst [vmem:[#allocation2 + $0x40] sm:$0xf] 0
        %523 = vst [vmem:[#allocation2 + $0x50] sm:$0xf] 0
        %524 = vst [vmem:[#allocation2 + $0x60] sm:$0xf] 0
        %525 = vst [vmem:[#allocation2 + $0x70] sm:$0xf] 0
        %526 = vst [vmem:[#allocation2 + $0x80] sm:$0xf] 0
        %527 = vst [vmem:[#allocation2 + $0x90] sm:$0xf] 0
        %528 = vst [vmem:[#allocation2 + $0xa0] sm:$0xf] 0
        %529 = vst [vmem:[#allocation2 + $0xb0] sm:$0xf] 0
        %530 = vst [vmem:[#allocation2 + $0xc0] sm:$0xf] 0
        %531 = vst [vmem:[#allocation2 + $0xd0] sm:$0xf] 0
        %532 = vst [vmem:[#allocation2 + $0xe0] sm:$0xf] 0
        %533 = vst [vmem:[#allocation2 + $0xf0] sm:$0xf] 0
        %534 = vst [vmem:[#allocation2 + $0x100] sm:$0xf] 0
        %535 = vst [vmem:[#allocation2 + $0x110] sm:$0xf] 0
        %536 = vst [vmem:[#allocation2 + $0x8] sm:$0xf0] 0
        %537 = vst [vmem:[#allocation2 + $0x18] sm:$0xf0] 0
        %538 = vst [vmem:[#allocation2 + $0x28] sm:$0xf0] 0
        %539 = vst [vmem:[#allocation2 + $0x38] sm:$0xf0] 0
        %540 = vst [vmem:[#allocation2 + $0x48] sm:$0xf0] 0
        %541 = vst [vmem:[#allocation2 + $0x58] sm:$0xf0] 0
        %542 = vst [vmem:[#allocation2 + $0x68] sm:$0xf0] 0
        %543 = vst [vmem:[#allocation2 + $0x78] sm:$0xf0] 0
        %544 = vst [vmem:[#allocation2 + $0x88] sm:$0xf0] 0
        %545 = vst [vmem:[#allocation2 + $0x98] sm:$0xf0] 0
        %546 = vst [vmem:[#allocation2 + $0xa8] sm:$0xf0] 0
        %547 = vst [vmem:[#allocation2 + $0xb8] sm:$0xf0] 0
        %548 = vst [vmem:[#allocation2 + $0xc8] sm:$0xf0] 0
        %549 = vst [vmem:[#allocation2 + $0xd8] sm:$0xf0] 0
        %550 = vst [vmem:[#allocation2 + $0xe8] sm:$0xf0] 0
        %551 = vst [vmem:[#allocation2 + $0xf8] sm:$0xf0] 0
        %552 = vst [vmem:[#allocation2 + $0x108] sm:$0xf0] 0
        %553 = vst [vmem:[#allocation2 + $0x118] sm:$0xf0] 0
        %v554 = vpack.c.bf16 %v482, %v481
        %v555 = vpack.c.bf16 %v484, %v483
        %v556 = vpack.c.bf16 %v486, %v485
        %v557 = vpack.c.bf16 %v488, %v487
        %v558 = vpack.c.bf16 %v490, %v489
        %v559 = vpack.c.bf16 %v492, %v491
        %v560 = vpack.c.bf16 %v494, %v493
        %v561 = vpack.c.bf16 %v496, %v495
        %v562 = vpack.c.bf16 %v498, %v497
        %v563 = vpack.c.bf16 %v500, %v499
        %v564 = vpack.c.bf16 %v502, %v501
        %v565 = vpack.c.bf16 %v504, %v503
        %v566 = vpack.c.bf16 %v506, %v505
        %v567 = vpack.c.bf16 %v508, %v507
        %v568 = vpack.c.bf16 %v510, %v509
        %v569 = vpack.c.bf16 %v512, %v511
        %v586 = vrot.slane %v554, 4
        %v587 = vrot.slane %v555, 4
        %v588 = vrot.slane %v556, 4
        %v589 = vrot.slane %v557, 4
        %v590 = vrot.slane %v558, 4
        %v591 = vrot.slane %v559, 4
        %v592 = vrot.slane %v560, 4
        %v593 = vrot.slane %v561, 4
        %v594 = vrot.slane %v562, 4
        %v595 = vrot.slane %v563, 4
        %v596 = vrot.slane %v564, 4
        %v597 = vrot.slane %v565, 4
        %v598 = vrot.slane %v566, 4
        %v599 = vrot.slane %v567, 4
        %v600 = vrot.slane %v568, 4
        %v601 = vrot.slane %v569, 4
        %s618 = scalar_lea.vmem [#allocation2], 16
        %619 = vst [vmem:[%s618] sm:$0xf0] %v586
        %620 = vst [vmem:[%s618 + $0x8] sm:$0xf] %v586
        %621 = vst [vmem:[%s618 + $0x10] sm:$0xf0] %v587
        %622 = vst [vmem:[%s618 + $0x18] sm:$0xf] %v587
        %623 = vst [vmem:[%s618 + $0x20] sm:$0xf0] %v588
        %624 = vst [vmem:[%s618 + $0x28] sm:$0xf] %v588
        %625 = vst [vmem:[%s618 + $0x30] sm:$0xf0] %v589
        %626 = vst [vmem:[%s618 + $0x38] sm:$0xf] %v589
        %627 = vst [vmem:[%s618 + $0x40] sm:$0xf0] %v590
        %628 = vst [vmem:[%s618 + $0x48] sm:$0xf] %v590
        %629 = vst [vmem:[%s618 + $0x50] sm:$0xf0] %v591
        %630 = vst [vmem:[%s618 + $0x58] sm:$0xf] %v591
        %631 = vst [vmem:[%s618 + $0x60] sm:$0xf0] %v592
        %632 = vst [vmem:[%s618 + $0x68] sm:$0xf] %v592
        %633 = vst [vmem:[%s618 + $0x70] sm:$0xf0] %v593
        %634 = vst [vmem:[%s618 + $0x78] sm:$0xf] %v593
        %635 = vst [vmem:[%s618 + $0x80] sm:$0xf0] %v594
        %636 = vst [vmem:[%s618 + $0x88] sm:$0xf] %v594
        %637 = vst [vmem:[%s618 + $0x90] sm:$0xf0] %v595
        %638 = vst [vmem:[%s618 + $0x98] sm:$0xf] %v595
        %639 = vst [vmem:[%s618 + $0xa0] sm:$0xf0] %v596
        %640 = vst [vmem:[%s618 + $0xa8] sm:$0xf] %v596
        %641 = vst [vmem:[%s618 + $0xb0] sm:$0xf0] %v597
        %642 = vst [vmem:[%s618 + $0xb8] sm:$0xf] %v597
        %643 = vst [vmem:[%s618 + $0xc0] sm:$0xf0] %v598
        %644 = vst [vmem:[%s618 + $0xc8] sm:$0xf] %v598
        %645 = vst [vmem:[%s618 + $0xd0] sm:$0xf0] %v599
        %646 = vst [vmem:[%s618 + $0xd8] sm:$0xf] %v599
        %647 = vst [vmem:[%s618 + $0xe0] sm:$0xf0] %v600
        %648 = vst [vmem:[%s618 + $0xe8] sm:$0xf] %v600
        %649 = vst [vmem:[%s618 + $0xf0] sm:$0xf0] %v601
        %650 = vst [vmem:[%s618 + $0xf8] sm:$0xf] %v601
        %v651 = vld [vmem:[#allocation12] sm:$0x1]
        %v653 = vlaneseq
        %v654 = vshrl.u32 %v653, 7
        %v655 = vsub.s32 0, %v654
        %v656 = vrot.slane %v651, %v655
        %658 = vst [vmem:[#allocation3] sm:$0xff] %v656
        %659 = vst [vmem:[#allocation3 + $0x8] sm:$0xff] %v656
        %660 = vst [vmem:[#allocation3 + $0x10] sm:$0xff] %v656
        %661 = vst [vmem:[#allocation3 + $0x18] sm:$0xff] %v656
        %662 = vst [vmem:[#allocation3 + $0x20] sm:$0xff] %v656
        %663 = vst [vmem:[#allocation3 + $0x28] sm:$0xff] %v656
        %664 = vst [vmem:[#allocation3 + $0x30] sm:$0xff] %v656
        %665 = vst [vmem:[#allocation3 + $0x38] sm:$0xff] %v656
        %666 = vst [vmem:[#allocation3 + $0x40] sm:$0xff] %v656
        %667 = vst [vmem:[#allocation3 + $0x48] sm:$0xff] %v656
        %668 = vst [vmem:[#allocation3 + $0x50] sm:$0xff] %v656
        %669 = vst [vmem:[#allocation3 + $0x58] sm:$0xff] %v656
        %670 = vst [vmem:[#allocation3 + $0x60] sm:$0xff] %v656
        %671 = vst [vmem:[#allocation3 + $0x68] sm:$0xff] %v656
        %672 = vst [vmem:[#allocation3 + $0x70] sm:$0xff] %v656
        %673 = vst [vmem:[#allocation3 + $0x78] sm:$0xff] %v656
        %674 = vst [vmem:[#allocation3 + $0x80] sm:$0xff] %v656
        %675 = vst [vmem:[#allocation3 + $0x88] sm:$0xff] %v656
        %676 = vst [vmem:[#allocation3 + $0x90] sm:$0xff] %v656
        %677 = vst [vmem:[#allocation3 + $0x98] sm:$0xff] %v656
        %678 = vst [vmem:[#allocation3 + $0xa0] sm:$0xff] %v656
        %679 = vst [vmem:[#allocation3 + $0xa8] sm:$0xff] %v656
        %680 = vst [vmem:[#allocation3 + $0xb0] sm:$0xff] %v656
        %681 = vst [vmem:[#allocation3 + $0xb8] sm:$0xff] %v656
        %682 = vst [vmem:[#allocation3 + $0xc0] sm:$0xff] %v656
        %683 = vst [vmem:[#allocation3 + $0xc8] sm:$0xff] %v656
        %684 = vst [vmem:[#allocation3 + $0xd0] sm:$0xff] %v656
        %685 = vst [vmem:[#allocation3 + $0xd8] sm:$0xff] %v656
        %686 = vst [vmem:[#allocation3 + $0xe0] sm:$0xff] %v656
        %687 = vst [vmem:[#allocation3 + $0xe8] sm:$0xff] %v656
        %688 = vst [vmem:[#allocation3 + $0xf0] sm:$0xff] %v656
        %689 = vst [vmem:[#allocation3 + $0xf8] sm:$0xff] %v656
        %v690 = vld [vmem:[#allocation2] sm:$0xf8]
        %v691 = vld [vmem:[#allocation2 + $0x8] sm:$0xf]
        %v692 = vld [vmem:[#allocation2 + $0x10] sm:$0xf8]
        %v693 = vld [vmem:[#allocation2 + $0x18] sm:$0xf]
        %v694 = vld [vmem:[#allocation2 + $0x20] sm:$0xf8]
        %v695 = vld [vmem:[#allocation2 + $0x28] sm:$0xf]
        %v696 = vld [vmem:[#allocation2 + $0x30] sm:$0xf8]
        %v697 = vld [vmem:[#allocation2 + $0x38] sm:$0xf]
        %v698 = vld [vmem:[#allocation2 + $0x40] sm:$0xf8]
        %v699 = vld [vmem:[#allocation2 + $0x48] sm:$0xf]
        %v700 = vld [vmem:[#allocation2 + $0x50] sm:$0xf8]
        %v701 = vld [vmem:[#allocation2 + $0x58] sm:$0xf]
        %v702 = vld [vmem:[#allocation2 + $0x60] sm:$0xf8]
        %v703 = vld [vmem:[#allocation2 + $0x68] sm:$0xf]
        %v704 = vld [vmem:[#allocation2 + $0x70] sm:$0xf8]
        %v705 = vld [vmem:[#allocation2 + $0x78] sm:$0xf]
        %v706 = vld [vmem:[#allocation2 + $0x80] sm:$0xf8]
        %v707 = vld [vmem:[#allocation2 + $0x88] sm:$0xf]
        %v708 = vld [vmem:[#allocation2 + $0x90] sm:$0xf8]
        %v709 = vld [vmem:[#allocation2 + $0x98] sm:$0xf]
        %v710 = vld [vmem:[#allocation2 + $0xa0] sm:$0xf8]
        %v711 = vld [vmem:[#allocation2 + $0xa8] sm:$0xf]
        %v712 = vld [vmem:[#allocation2 + $0xb0] sm:$0xf8]
        %v713 = vld [vmem:[#allocation2 + $0xb8] sm:$0xf]
        %v714 = vld [vmem:[#allocation2 + $0xc0] sm:$0xf8]
        %v715 = vld [vmem:[#allocation2 + $0xc8] sm:$0xf]
        %v716 = vld [vmem:[#allocation2 + $0xd0] sm:$0xf8]
        %v717 = vld [vmem:[#allocation2 + $0xd8] sm:$0xf]
        %v718 = vld [vmem:[#allocation2 + $0xe0] sm:$0xf8]
        %v719 = vld [vmem:[#allocation2 + $0xe8] sm:$0xf]
        %v720 = vld [vmem:[#allocation2 + $0xf0] sm:$0xf8]
        %v721 = vld [vmem:[#allocation2 + $0xf8] sm:$0xf]
        %vm722 = vsmask.f32 4352
        %v724 = vshrl.u32 %v690, 16
        %v726 = vrot.slane %v724, 3
        %v727 = vshll.u32 %v690, 16
        %v729 = vrot.slane %v727, 4
        %v730 = vor.u32 %v726, %v729
        %v732 = vshrl.u32 %v691, 16
        %v734 = vrot.slane %v732, 3
        %v735 = vshll.u32 %v691, 16
        %v737 = vrot.slane %v735, 4
        %v738 = vor.u32 %v734, %v737
        %v739 = vsel %vm722, %v730, %v738
        %v741 = vshrl.u32 %v692, 16
        %v743 = vrot.slane %v741, 3
        %v744 = vshll.u32 %v692, 16
        %v746 = vrot.slane %v744, 4
        %v747 = vor.u32 %v743, %v746
        %v749 = vshrl.u32 %v693, 16
        %v751 = vrot.slane %v749, 3
        %v752 = vshll.u32 %v693, 16
        %v754 = vrot.slane %v752, 4
        %v755 = vor.u32 %v751, %v754
        %v756 = vsel %vm722, %v747, %v755
        %v758 = vshrl.u32 %v694, 16
        %v760 = vrot.slane %v758, 3
        %v761 = vshll.u32 %v694, 16
        %v763 = vrot.slane %v761, 4
        %v764 = vor.u32 %v760, %v763
        %v766 = vshrl.u32 %v695, 16
        %v768 = vrot.slane %v766, 3
        %v769 = vshll.u32 %v695, 16
        %v771 = vrot.slane %v769, 4
        %v772 = vor.u32 %v768, %v771
        %v773 = vsel %vm722, %v764, %v772
        %v775 = vshrl.u32 %v696, 16
        %v777 = vrot.slane %v775, 3
        %v778 = vshll.u32 %v696, 16
        %v780 = vrot.slane %v778, 4
        %v781 = vor.u32 %v777, %v780
        %v783 = vshrl.u32 %v697, 16
        %v785 = vrot.slane %v783, 3
        %v786 = vshll.u32 %v697, 16
        %v788 = vrot.slane %v786, 4
        %v789 = vor.u32 %v785, %v788
        %v790 = vsel %vm722, %v781, %v789
        %v792 = vshrl.u32 %v698, 16
        %v794 = vrot.slane %v792, 3
        %v795 = vshll.u32 %v698, 16
        %v797 = vrot.slane %v795, 4
        %v798 = vor.u32 %v794, %v797
        %v800 = vshrl.u32 %v699, 16
        %v802 = vrot.slane %v800, 3
        %v803 = vshll.u32 %v699, 16
        %v805 = vrot.slane %v803, 4
        %v806 = vor.u32 %v802, %v805
        %v807 = vsel %vm722, %v798, %v806
        %v809 = vshrl.u32 %v700, 16
        %v811 = vrot.slane %v809, 3
        %v812 = vshll.u32 %v700, 16
        %v814 = vrot.slane %v812, 4
        %v815 = vor.u32 %v811, %v814
        %v817 = vshrl.u32 %v701, 16
        %v819 = vrot.slane %v817, 3
        %v820 = vshll.u32 %v701, 16
        %v822 = vrot.slane %v820, 4
        %v823 = vor.u32 %v819, %v822
        %v824 = vsel %vm722, %v815, %v823
        %v826 = vshrl.u32 %v702, 16
        %v828 = vrot.slane %v826, 3
        %v829 = vshll.u32 %v702, 16
        %v831 = vrot.slane %v829, 4
        %v832 = vor.u32 %v828, %v831
        %v834 = vshrl.u32 %v703, 16
        %v836 = vrot.slane %v834, 3
        %v837 = vshll.u32 %v703, 16
        %v839 = vrot.slane %v837, 4
        %v840 = vor.u32 %v836, %v839
        %v841 = vsel %vm722, %v832, %v840
        %v843 = vshrl.u32 %v704, 16
        %v845 = vrot.slane %v843, 3
        %v846 = vshll.u32 %v704, 16
        %v848 = vrot.slane %v846, 4
        %v849 = vor.u32 %v845, %v848
        %v851 = vshrl.u32 %v705, 16
        %v853 = vrot.slane %v851, 3
        %v854 = vshll.u32 %v705, 16
        %v856 = vrot.slane %v854, 4
        %v857 = vor.u32 %v853, %v856
        %v858 = vsel %vm722, %v849, %v857
        %v860 = vshrl.u32 %v706, 16
        %v862 = vrot.slane %v860, 3
        %v863 = vshll.u32 %v706, 16
        %v865 = vrot.slane %v863, 4
        %v866 = vor.u32 %v862, %v865
        %v868 = vshrl.u32 %v707, 16
        %v870 = vrot.slane %v868, 3
        %v871 = vshll.u32 %v707, 16
        %v873 = vrot.slane %v871, 4
        %v874 = vor.u32 %v870, %v873
        %v875 = vsel %vm722, %v866, %v874
        %v877 = vshrl.u32 %v708, 16
        %v879 = vrot.slane %v877, 3
        %v880 = vshll.u32 %v708, 16
        %v882 = vrot.slane %v880, 4
        %v883 = vor.u32 %v879, %v882
        %v885 = vshrl.u32 %v709, 16
        %v887 = vrot.slane %v885, 3
        %v888 = vshll.u32 %v709, 16
        %v890 = vrot.slane %v888, 4
        %v891 = vor.u32 %v887, %v890
        %v892 = vsel %vm722, %v883, %v891
        %v894 = vshrl.u32 %v710, 16
        %v896 = vrot.slane %v894, 3
        %v897 = vshll.u32 %v710, 16
        %v899 = vrot.slane %v897, 4
        %v900 = vor.u32 %v896, %v899
        %v902 = vshrl.u32 %v711, 16
        %v904 = vrot.slane %v902, 3
        %v905 = vshll.u32 %v711, 16
        %v907 = vrot.slane %v905, 4
        %v908 = vor.u32 %v904, %v907
        %v909 = vsel %vm722, %v900, %v908
        %v911 = vshrl.u32 %v712, 16
        %v913 = vrot.slane %v911, 3
        %v914 = vshll.u32 %v712, 16
        %v916 = vrot.slane %v914, 4
        %v917 = vor.u32 %v913, %v916
        %v919 = vshrl.u32 %v713, 16
        %v921 = vrot.slane %v919, 3
        %v922 = vshll.u32 %v713, 16
        %v924 = vrot.slane %v922, 4
        %v925 = vor.u32 %v921, %v924
        %v926 = vsel %vm722, %v917, %v925
        %v928 = vshrl.u32 %v714, 16
        %v930 = vrot.slane %v928, 3
        %v931 = vshll.u32 %v714, 16
        %v933 = vrot.slane %v931, 4
        %v934 = vor.u32 %v930, %v933
        %v936 = vshrl.u32 %v715, 16
        %v938 = vrot.slane %v936, 3
        %v939 = vshll.u32 %v715, 16
        %v941 = vrot.slane %v939, 4
        %v942 = vor.u32 %v938, %v941
        %v943 = vsel %vm722, %v934, %v942
        %v945 = vshrl.u32 %v716, 16
        %v947 = vrot.slane %v945, 3
        %v948 = vshll.u32 %v716, 16
        %v950 = vrot.slane %v948, 4
        %v951 = vor.u32 %v947, %v950
        %v953 = vshrl.u32 %v717, 16
        %v955 = vrot.slane %v953, 3
        %v956 = vshll.u32 %v717, 16
        %v958 = vrot.slane %v956, 4
        %v959 = vor.u32 %v955, %v958
        %v960 = vsel %vm722, %v951, %v959
        %v962 = vshrl.u32 %v718, 16
        %v964 = vrot.slane %v962, 3
        %v965 = vshll.u32 %v718, 16
        %v967 = vrot.slane %v965, 4
        %v968 = vor.u32 %v964, %v967
        %v970 = vshrl.u32 %v719, 16
        %v972 = vrot.slane %v970, 3
        %v973 = vshll.u32 %v719, 16
        %v975 = vrot.slane %v973, 4
        %v976 = vor.u32 %v972, %v975
        %v977 = vsel %vm722, %v968, %v976
        %v979 = vshrl.u32 %v720, 16
        %v981 = vrot.slane %v979, 3
        %v982 = vshll.u32 %v720, 16
        %v984 = vrot.slane %v982, 4
        %v985 = vor.u32 %v981, %v984
        %v987 = vshrl.u32 %v721, 16
        %v989 = vrot.slane %v987, 3
        %v990 = vshll.u32 %v721, 16
        %v992 = vrot.slane %v990, 4
        %v993 = vor.u32 %v989, %v992
        %v994 = vsel %vm722, %v985, %v993
        %v1011 = vld [vmem:[#allocation3] sm:$0xff]
        %v1012 = vld [vmem:[#allocation3 + $0x8] sm:$0xff]
        %v1013 = vld [vmem:[#allocation3 + $0x10] sm:$0xff]
        %v1014 = vld [vmem:[#allocation3 + $0x18] sm:$0xff]
        %v1015 = vld [vmem:[#allocation3 + $0x20] sm:$0xff]
        %v1016 = vld [vmem:[#allocation3 + $0x28] sm:$0xff]
        %v1017 = vld [vmem:[#allocation3 + $0x30] sm:$0xff]
        %v1018 = vld [vmem:[#allocation3 + $0x38] sm:$0xff]
        %v1019 = vld [vmem:[#allocation3 + $0x40] sm:$0xff]
        %v1020 = vld [vmem:[#allocation3 + $0x48] sm:$0xff]
        %v1021 = vld [vmem:[#allocation3 + $0x50] sm:$0xff]
        %v1022 = vld [vmem:[#allocation3 + $0x58] sm:$0xff]
        %v1023 = vld [vmem:[#allocation3 + $0x60] sm:$0xff]
        %v1024 = vld [vmem:[#allocation3 + $0x68] sm:$0xff]
        %v1025 = vld [vmem:[#allocation3 + $0x70] sm:$0xff]
        %v1026 = vld [vmem:[#allocation3 + $0x78] sm:$0xff]
        %v1027 = vld [vmem:[#allocation3 + $0x80] sm:$0xff]
        %v1028 = vld [vmem:[#allocation3 + $0x88] sm:$0xff]
        %v1029 = vld [vmem:[#allocation3 + $0x90] sm:$0xff]
        %v1030 = vld [vmem:[#allocation3 + $0x98] sm:$0xff]
        %v1031 = vld [vmem:[#allocation3 + $0xa0] sm:$0xff]
        %v1032 = vld [vmem:[#allocation3 + $0xa8] sm:$0xff]
        %v1033 = vld [vmem:[#allocation3 + $0xb0] sm:$0xff]
        %v1034 = vld [vmem:[#allocation3 + $0xb8] sm:$0xff]
        %v1035 = vld [vmem:[#allocation3 + $0xc0] sm:$0xff]
        %v1036 = vld [vmem:[#allocation3 + $0xc8] sm:$0xff]
        %v1037 = vld [vmem:[#allocation3 + $0xd0] sm:$0xff]
        %v1038 = vld [vmem:[#allocation3 + $0xd8] sm:$0xff]
        %v1039 = vld [vmem:[#allocation3 + $0xe0] sm:$0xff]
        %v1040 = vld [vmem:[#allocation3 + $0xe8] sm:$0xff]
        %v1041 = vld [vmem:[#allocation3 + $0xf0] sm:$0xff]
        %v1042 = vld [vmem:[#allocation3 + $0xf8] sm:$0xff]
        %v1043 = vld [vmem:[#allocation10] sm:$0xf]
        %v1044 = vld [vmem:[#allocation10 + $0x4] sm:$0xf]
        %v1045 = vld [vmem:[#allocation10 + $0x8] sm:$0xf]
        %v1046 = vld [vmem:[#allocation10 + $0xc] sm:$0xf]
        %v1047 = vld [vmem:[#allocation10 + $0x10] sm:$0xf]
        %v1048 = vld [vmem:[#allocation10 + $0x14] sm:$0xf]
        %v1049 = vld [vmem:[#allocation10 + $0x18] sm:$0xf]
        %v1050 = vld [vmem:[#allocation10 + $0x1c] sm:$0xf]
        %v1051 = vld [vmem:[#allocation10 + $0x20] sm:$0xf]
        %v1052 = vld [vmem:[#allocation10 + $0x24] sm:$0xf]
        %v1053 = vld [vmem:[#allocation10 + $0x28] sm:$0xf]
        %v1054 = vld [vmem:[#allocation10 + $0x2c] sm:$0xf]
        %v1055 = vld [vmem:[#allocation10 + $0x30] sm:$0xf]
        %v1056 = vld [vmem:[#allocation10 + $0x34] sm:$0xf]
        %v1057 = vld [vmem:[#allocation10 + $0x38] sm:$0xf]
        %v1058 = vld [vmem:[#allocation10 + $0x3c] sm:$0xf]
        %v1075 = vunpack.c.l.b16 %v1043
        %v1076 = vunpack.c.l.b16 %v1044
        %v1077 = vunpack.c.l.b16 %v1045
        %v1078 = vunpack.c.l.b16 %v1046
        %v1079 = vunpack.c.l.b16 %v1047
        %v1080 = vunpack.c.l.b16 %v1048
        %v1081 = vunpack.c.l.b16 %v1049
        %v1082 = vunpack.c.l.b16 %v1050
        %v1083 = vunpack.c.l.b16 %v1051
        %v1084 = vunpack.c.l.b16 %v1052
        %v1085 = vunpack.c.l.b16 %v1053
        %v1086 = vunpack.c.l.b16 %v1054
        %v1087 = vunpack.c.l.b16 %v1055
        %v1088 = vunpack.c.l.b16 %v1056
        %v1089 = vunpack.c.l.b16 %v1057
        %v1090 = vunpack.c.l.b16 %v1058
        %v1091 = vpack.c.b16 %v1076, %v1075
        %v1092 = vpack.c.b16 %v1078, %v1077
        %v1093 = vpack.c.b16 %v1080, %v1079
        %v1094 = vpack.c.b16 %v1082, %v1081
        %v1095 = vpack.c.b16 %v1084, %v1083
        %v1096 = vpack.c.b16 %v1086, %v1085
        %v1097 = vpack.c.b16 %v1088, %v1087
        %v1098 = vpack.c.b16 %v1090, %v1089
        %1107 = vmatprep.subr.bf16.mxu0 0
        %1108 = vmatpush1.bf16.msra.mxu0 %v1091
        %1109 = vmatprep.subr.bf16.mxu0 0
        %1110 = vmatpush1.bf16.msra.mxu0 %v1092
        %1111 = vmatprep.subr.bf16.mxu0 0
        %1112 = vmatpush1.bf16.msra.mxu0 %v1093
        %1113 = vmatprep.subr.bf16.mxu0 0
        %1114 = vmatpush1.bf16.msra.mxu0 %v1094
        %1115 = vmatprep.subr.bf16.mxu0 0
        %1116 = vmatpush1.bf16.msra.mxu0 %v1095
        %1117 = vmatprep.subr.bf16.mxu0 0
        %1118 = vmatpush1.bf16.msra.mxu0 %v1096
        %1119 = vmatprep.subr.bf16.mxu0 0
        %1120 = vmatpush1.bf16.msra.mxu0 %v1097
        %1121 = vmatprep.subr.bf16.mxu0 0
        %1122 = vmatpush1.bf16.msra.mxu0 %v1098
        %1123 = vmatprep.subr.bf16.mxu0 0
        %1124 = vmatpush1.bf16.msra.mxu0 0
        %1125 = vmatprep.subr.bf16.mxu0 0
        %1126 = vmatpush1.bf16.msra.mxu0 0
        %1127 = vmatprep.subr.bf16.mxu0 0
        %1128 = vmatpush1.bf16.msra.mxu0 0
        %1129 = vmatprep.subr.bf16.mxu0 0
        %1130 = vmatpush1.bf16.msra.mxu0 0
        %1131 = vmatprep.subr.bf16.mxu0 0
        %1132 = vmatpush1.bf16.msra.mxu0 0
        %1133 = vmatprep.subr.bf16.mxu0 0
        %1134 = vmatpush1.bf16.msra.mxu0 0
        %1135 = vmatprep.subr.bf16.mxu0 0
        %1136 = vmatpush1.bf16.msra.mxu0 0
        %1137 = vmatprep.subr.bf16.mxu0 0
        %1138 = vmatpush1.bf16.msra.mxu0 0
        %1139 = vmatprep.mubr.bf16.mxu0 0
        %1140 = vmatmul.mubr.bf16.gmra.mrb[0].mxu0 %v739
        %v1141 = vpop.f32.mrb[0].mxu0
        %v1142 = vadd.f32 0.0, %v1141
        %v1143 = vpop.f32.mrb[0].mxu0
        %v1144 = vpop.f32.mrb[0].mxu0
        %v1145 = vadd.f32 0.0, %v1144
        %v1146 = vpop.f32.mrb[0].mxu0
        %1147 = vmatprep.mubr.bf16.mxu0 0
        %1148 = vmatmul.mubr.bf16.gmra.mrb[0].mxu0 %v756
        %v1149 = vpop.f32.mrb[0].mxu0
        %v1150 = vadd.f32 0.0, %v1149
        %v1151 = vpop.f32.mrb[0].mxu0
        %v1152 = vpop.f32.mrb[0].mxu0
        %v1153 = vadd.f32 0.0, %v1152
        %v1154 = vpop.f32.mrb[0].mxu0
        %1155 = vmatprep.mubr.bf16.mxu0 0
        %1156 = vmatmul.mubr.bf16.gmra.mrb[0].mxu0 %v773
        %v1157 = vpop.f32.mrb[0].mxu0
        %v1158 = vadd.f32 0.0, %v1157
        %v1159 = vpop.f32.mrb[0].mxu0
        %v1160 = vpop.f32.mrb[0].mxu0
        %v1161 = vadd.f32 0.0, %v1160
        %v1162 = vpop.f32.mrb[0].mxu0
        %1163 = vmatprep.mubr.bf16.mxu0 0
        %1164 = vmatmul.mubr.bf16.gmra.mrb[0].mxu0 %v790
        %v1165 = vpop.f32.mrb[0].mxu0
        %v1166 = vadd.f32 0.0, %v1165
        %v1167 = vpop.f32.mrb[0].mxu0
        %v1168 = vpop.f32.mrb[0].mxu0
        %v1169 = vadd.f32 0.0, %v1168
        %v1170 = vpop.f32.mrb[0].mxu0
        %1171 = vmatprep.mubr.bf16.mxu0 0
        %1172 = vmatmul.mubr.bf16.gmra.mrb[0].mxu0 %v807
        %v1173 = vpop.f32.mrb[0].mxu0
        %v1174 = vadd.f32 0.0, %v1173
        %v1175 = vpop.f32.mrb[0].mxu0
        %v1176 = vpop.f32.mrb[0].mxu0
        %v1177 = vadd.f32 0.0, %v1176
        %v1178 = vpop.f32.mrb[0].mxu0
        %1179 = vmatprep.mubr.bf16.mxu0 0
        %1180 = vmatmul.mubr.bf16.gmra.mrb[0].mxu0 %v824
        %v1181 = vpop.f32.mrb[0].mxu0
        %v1182 = vadd.f32 0.0, %v1181
        %v1183 = vpop.f32.mrb[0].mxu0
        %v1184 = vpop.f32.mrb[0].mxu0
        %v1185 = vadd.f32 0.0, %v1184
        %v1186 = vpop.f32.mrb[0].mxu0
        %1187 = vmatprep.mubr.bf16.mxu0 0
        %1188 = vmatmul.mubr.bf16.gmra.mrb[0].mxu0 %v841
        %v1189 = vpop.f32.mrb[0].mxu0
        %v1190 = vadd.f32 0.0, %v1189
        %v1191 = vpop.f32.mrb[0].mxu0
        %v1192 = vpop.f32.mrb[0].mxu0
        %v1193 = vadd.f32 0.0, %v1192
        %v1194 = vpop.f32.mrb[0].mxu0
        %1195 = vmatprep.mubr.bf16.mxu0 0
        %1196 = vmatmul.mubr.bf16.gmra.mrb[0].mxu0 %v858
        %v1197 = vpop.f32.mrb[0].mxu0
        %v1198 = vadd.f32 0.0, %v1197
        %v1199 = vpop.f32.mrb[0].mxu0
        %v1200 = vpop.f32.mrb[0].mxu0
        %v1201 = vadd.f32 0.0, %v1200
        %v1202 = vpop.f32.mrb[0].mxu0
        %1203 = vmatprep.mubr.bf16.mxu0 0
        %1204 = vmatmul.mubr.bf16.gmra.mrb[0].mxu0 %v875
        %v1205 = vpop.f32.mrb[0].mxu0
        %v1206 = vadd.f32 0.0, %v1205
        %v1207 = vpop.f32.mrb[0].mxu0
        %v1208 = vpop.f32.mrb[0].mxu0
        %v1209 = vadd.f32 0.0, %v1208
        %v1210 = vpop.f32.mrb[0].mxu0
        %1211 = vmatprep.mubr.bf16.mxu0 0
        %1212 = vmatmul.mubr.bf16.gmra.mrb[0].mxu0 %v892
        %v1213 = vpop.f32.mrb[0].mxu0
        %v1214 = vadd.f32 0.0, %v1213
        %v1215 = vpop.f32.mrb[0].mxu0
        %v1216 = vpop.f32.mrb[0].mxu0
        %v1217 = vadd.f32 0.0, %v1216
        %v1218 = vpop.f32.mrb[0].mxu0
        %1219 = vmatprep.mubr.bf16.mxu0 0
        %1220 = vmatmul.mubr.bf16.gmra.mrb[0].mxu0 %v909
        %v1221 = vpop.f32.mrb[0].mxu0
        %v1222 = vadd.f32 0.0, %v1221
        %v1223 = vpop.f32.mrb[0].mxu0
        %v1224 = vpop.f32.mrb[0].mxu0
        %v1225 = vadd.f32 0.0, %v1224
        %v1226 = vpop.f32.mrb[0].mxu0
        %1227 = vmatprep.mubr.bf16.mxu0 0
        %1228 = vmatmul.mubr.bf16.gmra.mrb[0].mxu0 %v926
        %v1229 = vpop.f32.mrb[0].mxu0
        %v1230 = vadd.f32 0.0, %v1229
        %v1231 = vpop.f32.mrb[0].mxu0
        %v1232 = vpop.f32.mrb[0].mxu0
        %v1233 = vadd.f32 0.0, %v1232
        %v1234 = vpop.f32.mrb[0].mxu0
        %1235 = vmatprep.mubr.bf16.mxu0 0
        %1236 = vmatmul.mubr.bf16.gmra.mrb[0].mxu0 %v943
        %v1237 = vpop.f32.mrb[0].mxu0
        %v1238 = vadd.f32 0.0, %v1237
        %v1239 = vpop.f32.mrb[0].mxu0
        %v1240 = vpop.f32.mrb[0].mxu0
        %v1241 = vadd.f32 0.0, %v1240
        %v1242 = vpop.f32.mrb[0].mxu0
        %1243 = vmatprep.mubr.bf16.mxu0 0
        %1244 = vmatmul.mubr.bf16.gmra.mrb[0].mxu0 %v960
        %v1245 = vpop.f32.mrb[0].mxu0
        %v1246 = vadd.f32 0.0, %v1245
        %v1247 = vpop.f32.mrb[0].mxu0
        %v1248 = vpop.f32.mrb[0].mxu0
        %v1249 = vadd.f32 0.0, %v1248
        %v1250 = vpop.f32.mrb[0].mxu0
        %1251 = vmatprep.mubr.bf16.mxu0 0
        %1252 = vmatmul.mubr.bf16.gmra.mrb[0].mxu0 %v977
        %v1253 = vpop.f32.mrb[0].mxu0
        %v1254 = vadd.f32 0.0, %v1253
        %v1255 = vpop.f32.mrb[0].mxu0
        %v1256 = vpop.f32.mrb[0].mxu0
        %v1257 = vadd.f32 0.0, %v1256
        %v1258 = vpop.f32.mrb[0].mxu0
        %1259 = vmatprep.mubr.bf16.mxu0 0
        %1260 = vmatmul.mubr.bf16.gmra.mrb[0].mxu0 %v994
        %v1261 = vpop.f32.mrb[0].mxu0
        %v1262 = vadd.f32 0.0, %v1261
        %v1263 = vpop.f32.mrb[0].mxu0
        %v1264 = vpop.f32.mrb[0].mxu0
        %v1265 = vadd.f32 0.0, %v1264
        %v1266 = vpop.f32.mrb[0].mxu0
        %1267 = vdwg.mxu0
        %v1268 = vadd.f32 %v1011, %v1142
        %v1269 = vadd.f32 %v1012, %v1145
        %v1270 = vadd.f32 %v1013, %v1150
        %v1271 = vadd.f32 %v1014, %v1153
        %v1272 = vadd.f32 %v1015, %v1158
        %v1273 = vadd.f32 %v1016, %v1161
        %v1274 = vadd.f32 %v1017, %v1166
        %v1275 = vadd.f32 %v1018, %v1169
        %v1276 = vadd.f32 %v1019, %v1174
        %v1277 = vadd.f32 %v1020, %v1177
        %v1278 = vadd.f32 %v1021, %v1182
        %v1279 = vadd.f32 %v1022, %v1185
        %v1280 = vadd.f32 %v1023, %v1190
        %v1281 = vadd.f32 %v1024, %v1193
        %v1282 = vadd.f32 %v1025, %v1198
        %v1283 = vadd.f32 %v1026, %v1201
        %v1284 = vadd.f32 %v1027, %v1206
        %v1285 = vadd.f32 %v1028, %v1209
        %v1286 = vadd.f32 %v1029, %v1214
        %v1287 = vadd.f32 %v1030, %v1217
        %v1288 = vadd.f32 %v1031, %v1222
        %v1289 = vadd.f32 %v1032, %v1225
        %v1290 = vadd.f32 %v1033, %v1230
        %v1291 = vadd.f32 %v1034, %v1233
        %v1292 = vadd.f32 %v1035, %v1238
        %v1293 = vadd.f32 %v1036, %v1241
        %v1294 = vadd.f32 %v1037, %v1246
        %v1295 = vadd.f32 %v1038, %v1249
        %v1296 = vadd.f32 %v1039, %v1254
        %v1297 = vadd.f32 %v1040, %v1257
        %v1298 = vadd.f32 %v1041, %v1262
        %v1299 = vadd.f32 %v1042, %v1265
        %1300 = vst [vmem:[#allocation3] sm:$0xff] %v1268
        %1301 = vst [vmem:[#allocation3 + $0x8] sm:$0xff] %v1269
        %1302 = vst [vmem:[#allocation3 + $0x10] sm:$0xff] %v1270
        %1303 = vst [vmem:[#allocation3 + $0x18] sm:$0xff] %v1271
        %1304 = vst [vmem:[#allocation3 + $0x20] sm:$0xff] %v1272
        %1305 = vst [vmem:[#allocation3 + $0x28] sm:$0xff] %v1273
        %1306 = vst [vmem:[#allocation3 + $0x30] sm:$0xff] %v1274
        %1307 = vst [vmem:[#allocation3 + $0x38] sm:$0xff] %v1275
        %1308 = vst [vmem:[#allocation3 + $0x40] sm:$0xff] %v1276
        %1309 = vst [vmem:[#allocation3 + $0x48] sm:$0xff] %v1277
        %1310 = vst [vmem:[#allocation3 + $0x50] sm:$0xff] %v1278
        %1311 = vst [vmem:[#allocation3 + $0x58] sm:$0xff] %v1279
        %1312 = vst [vmem:[#allocation3 + $0x60] sm:$0xff] %v1280
        %1313 = vst [vmem:[#allocation3 + $0x68] sm:$0xff] %v1281
        %1314 = vst [vmem:[#allocation3 + $0x70] sm:$0xff] %v1282
        %1315 = vst [vmem:[#allocation3 + $0x78] sm:$0xff] %v1283
        %1316 = vst [vmem:[#allocation3 + $0x80] sm:$0xff] %v1284
        %1317 = vst [vmem:[#allocation3 + $0x88] sm:$0xff] %v1285
        %1318 = vst [vmem:[#allocation3 + $0x90] sm:$0xff] %v1286
        %1319 = vst [vmem:[#allocation3 + $0x98] sm:$0xff] %v1287
        %1320 = vst [vmem:[#allocation3 + $0xa0] sm:$0xff] %v1288
        %1321 = vst [vmem:[#allocation3 + $0xa8] sm:$0xff] %v1289
        %1322 = vst [vmem:[#allocation3 + $0xb0] sm:$0xff] %v1290
        %1323 = vst [vmem:[#allocation3 + $0xb8] sm:$0xff] %v1291
        %1324 = vst [vmem:[#allocation3 + $0xc0] sm:$0xff] %v1292
        %1325 = vst [vmem:[#allocation3 + $0xc8] sm:$0xff] %v1293
        %1326 = vst [vmem:[#allocation3 + $0xd0] sm:$0xff] %v1294
        %1327 = vst [vmem:[#allocation3 + $0xd8] sm:$0xff] %v1295
        %1328 = vst [vmem:[#allocation3 + $0xe0] sm:$0xff] %v1296
        %1329 = vst [vmem:[#allocation3 + $0xe8] sm:$0xff] %v1297
        %1330 = vst [vmem:[#allocation3 + $0xf0] sm:$0xff] %v1298
        %1331 = vst [vmem:[#allocation3 + $0xf8] sm:$0xff] %v1299
        %v1332 = vld [vmem:[#allocation2] sm:$0xf0]
        %v1333 = vld [vmem:[#allocation2 + $0x8] sm:$0xf]
        %v1334 = vld [vmem:[#allocation2 + $0x10] sm:$0xf0]
        %v1335 = vld [vmem:[#allocation2 + $0x18] sm:$0xf]
        %v1336 = vld [vmem:[#allocation2 + $0x20] sm:$0xf0]
        %v1337 = vld [vmem:[#allocation2 + $0x28] sm:$0xf]
        %v1338 = vld [vmem:[#allocation2 + $0x30] sm:$0xf0]
        %v1339 = vld [vmem:[#allocation2 + $0x38] sm:$0xf]
        %v1340 = vld [vmem:[#allocation2 + $0x40] sm:$0xf0]
        %v1341 = vld [vmem:[#allocation2 + $0x48] sm:$0xf]
        %v1342 = vld [vmem:[#allocation2 + $0x50] sm:$0xf0]
        %v1343 = vld [vmem:[#allocation2 + $0x58] sm:$0xf]
        %v1344 = vld [vmem:[#allocation2 + $0x60] sm:$0xf0]
        %v1345 = vld [vmem:[#allocation2 + $0x68] sm:$0xf]
        %v1346 = vld [vmem:[#allocation2 + $0x70] sm:$0xf0]
        %v1347 = vld [vmem:[#allocation2 + $0x78] sm:$0xf]
        %v1348 = vld [vmem:[#allocation2 + $0x80] sm:$0xf0]
        %v1349 = vld [vmem:[#allocation2 + $0x88] sm:$0xf]
        %v1350 = vld [vmem:[#allocation2 + $0x90] sm:$0xf0]
        %v1351 = vld [vmem:[#allocation2 + $0x98] sm:$0xf]
        %v1352 = vld [vmem:[#allocation2 + $0xa0] sm:$0xf0]
        %v1353 = vld [vmem:[#allocation2 + $0xa8] sm:$0xf]
        %v1354 = vld [vmem:[#allocation2 + $0xb0] sm:$0xf0]
        %v1355 = vld [vmem:[#allocation2 + $0xb8] sm:$0xf]
        %v1356 = vld [vmem:[#allocation2 + $0xc0] sm:$0xf0]
        %v1357 = vld [vmem:[#allocation2 + $0xc8] sm:$0xf]
        %v1358 = vld [vmem:[#allocation2 + $0xd0] sm:$0xf0]
        %v1359 = vld [vmem:[#allocation2 + $0xd8] sm:$0xf]
        %v1360 = vld [vmem:[#allocation2 + $0xe0] sm:$0xf0]
        %v1361 = vld [vmem:[#allocation2 + $0xe8] sm:$0xf]
        %v1362 = vld [vmem:[#allocation2 + $0xf0] sm:$0xf0]
        %v1363 = vld [vmem:[#allocation2 + $0xf8] sm:$0xf]
        %vm1396 = vcmask 1043456
        %v1397 = vrot.slane %v1332, 4
        %v1398 = vrot.slane %v1333, 4
        %v1399 = vsel %vm1396, %v1397, %v1398
        %v1400 = vrot.slane %v1334, 4
        %v1401 = vrot.slane %v1335, 4
        %v1402 = vsel %vm1396, %v1400, %v1401
        %v1403 = vrot.slane %v1336, 4
        %v1404 = vrot.slane %v1337, 4
        %v1405 = vsel %vm1396, %v1403, %v1404
        %v1406 = vrot.slane %v1338, 4
        %v1407 = vrot.slane %v1339, 4
        %v1408 = vsel %vm1396, %v1406, %v1407
        %v1409 = vrot.slane %v1340, 4
        %v1410 = vrot.slane %v1341, 4
        %v1411 = vsel %vm1396, %v1409, %v1410
        %v1412 = vrot.slane %v1342, 4
        %v1413 = vrot.slane %v1343, 4
        %v1414 = vsel %vm1396, %v1412, %v1413
        %v1415 = vrot.slane %v1344, 4
        %v1416 = vrot.slane %v1345, 4
        %v1417 = vsel %vm1396, %v1415, %v1416
        %v1418 = vrot.slane %v1346, 4
        %v1419 = vrot.slane %v1347, 4
        %v1420 = vsel %vm1396, %v1418, %v1419
        %v1421 = vrot.slane %v1348, 4
        %v1422 = vrot.slane %v1349, 4
        %v1423 = vsel %vm1396, %v1421, %v1422
        %v1424 = vrot.slane %v1350, 4
        %v1425 = vrot.slane %v1351, 4
        %v1426 = vsel %vm1396, %v1424, %v1425
        %v1427 = vrot.slane %v1352, 4
        %v1428 = vrot.slane %v1353, 4
        %v1429 = vsel %vm1396, %v1427, %v1428
        %v1430 = vrot.slane %v1354, 4
        %v1431 = vrot.slane %v1355, 4
        %v1432 = vsel %vm1396, %v1430, %v1431
        %v1433 = vrot.slane %v1356, 4
        %v1434 = vrot.slane %v1357, 4
        %v1435 = vsel %vm1396, %v1433, %v1434
        %v1436 = vrot.slane %v1358, 4
        %v1437 = vrot.slane %v1359, 4
        %v1438 = vsel %vm1396, %v1436, %v1437
        %v1439 = vrot.slane %v1360, 4
        %v1440 = vrot.slane %v1361, 4
        %v1441 = vsel %vm1396, %v1439, %v1440
        %v1442 = vrot.slane %v1362, 4
        %v1443 = vrot.slane %v1363, 4
        %v1444 = vsel %vm1396, %v1442, %v1443
        %v1461 = vld [vmem:[#allocation3] sm:$0xff]
        %v1462 = vld [vmem:[#allocation3 + $0x8] sm:$0xff]
        %v1463 = vld [vmem:[#allocation3 + $0x10] sm:$0xff]
        %v1464 = vld [vmem:[#allocation3 + $0x18] sm:$0xff]
        %v1465 = vld [vmem:[#allocation3 + $0x20] sm:$0xff]
        %v1466 = vld [vmem:[#allocation3 + $0x28] sm:$0xff]
        %v1467 = vld [vmem:[#allocation3 + $0x30] sm:$0xff]
        %v1468 = vld [vmem:[#allocation3 + $0x38] sm:$0xff]
        %v1469 = vld [vmem:[#allocation3 + $0x40] sm:$0xff]
        %v1470 = vld [vmem:[#allocation3 + $0x48] sm:$0xff]
        %v1471 = vld [vmem:[#allocation3 + $0x50] sm:$0xff]
        %v1472 = vld [vmem:[#allocation3 + $0x58] sm:$0xff]
        %v1473 = vld [vmem:[#allocation3 + $0x60] sm:$0xff]
        %v1474 = vld [vmem:[#allocation3 + $0x68] sm:$0xff]
        %v1475 = vld [vmem:[#allocation3 + $0x70] sm:$0xff]
        %v1476 = vld [vmem:[#allocation3 + $0x78] sm:$0xff]
        %v1477 = vld [vmem:[#allocation3 + $0x80] sm:$0xff]
        %v1478 = vld [vmem:[#allocation3 + $0x88] sm:$0xff]
        %v1479 = vld [vmem:[#allocation3 + $0x90] sm:$0xff]
        %v1480 = vld [vmem:[#allocation3 + $0x98] sm:$0xff]
        %v1481 = vld [vmem:[#allocation3 + $0xa0] sm:$0xff]
        %v1482 = vld [vmem:[#allocation3 + $0xa8] sm:$0xff]
        %v1483 = vld [vmem:[#allocation3 + $0xb0] sm:$0xff]
        %v1484 = vld [vmem:[#allocation3 + $0xb8] sm:$0xff]
        %v1485 = vld [vmem:[#allocation3 + $0xc0] sm:$0xff]
        %v1486 = vld [vmem:[#allocation3 + $0xc8] sm:$0xff]
        %v1487 = vld [vmem:[#allocation3 + $0xd0] sm:$0xff]
        %v1488 = vld [vmem:[#allocation3 + $0xd8] sm:$0xff]
        %v1489 = vld [vmem:[#allocation3 + $0xe0] sm:$0xff]
        %v1490 = vld [vmem:[#allocation3 + $0xe8] sm:$0xff]
        %v1491 = vld [vmem:[#allocation3 + $0xf0] sm:$0xff]
        %v1492 = vld [vmem:[#allocation3 + $0xf8] sm:$0xff]
        %s1493 = scalar_lea.vmem [#allocation10], 64
        %v1494 = vld [vmem:[%s1493] sm:$0xf]
        %v1495 = vld [vmem:[%s1493 + $0x4] sm:$0xf]
        %v1496 = vld [vmem:[%s1493 + $0x8] sm:$0xf]
        %v1497 = vld [vmem:[%s1493 + $0xc] sm:$0xf]
        %v1498 = vld [vmem:[%s1493 + $0x10] sm:$0xf]
        %v1499 = vld [vmem:[%s1493 + $0x14] sm:$0xf]
        %v1500 = vld [vmem:[%s1493 + $0x18] sm:$0xf]
        %v1501 = vld [vmem:[%s1493 + $0x1c] sm:$0xf]
        %v1502 = vld [vmem:[%s1493 + $0x20] sm:$0xf]
        %v1503 = vld [vmem:[%s1493 + $0x24] sm:$0xf]
        %v1504 = vld [vmem:[%s1493 + $0x28] sm:$0xf]
        %v1505 = vld [vmem:[%s1493 + $0x2c] sm:$0xf]
        %v1506 = vld [vmem:[%s1493 + $0x30] sm:$0xf]
        %v1507 = vld [vmem:[%s1493 + $0x34] sm:$0xf]
        %v1508 = vld [vmem:[%s1493 + $0x38] sm:$0xf]
        %v1509 = vld [vmem:[%s1493 + $0x3c] sm:$0xf]
        %v1526 = vunpack.c.l.b16 %v1494
        %v1527 = vunpack.c.l.b16 %v1495
        %v1528 = vunpack.c.l.b16 %v1496
        %v1529 = vunpack.c.l.b16 %v1497
        %v1530 = vunpack.c.l.b16 %v1498
        %v1531 = vunpack.c.l.b16 %v1499
        %v1532 = vunpack.c.l.b16 %v1500
        %v1533 = vunpack.c.l.b16 %v1501
        %v1534 = vunpack.c.l.b16 %v1502
        %v1535 = vunpack.c.l.b16 %v1503
        %v1536 = vunpack.c.l.b16 %v1504
        %v1537 = vunpack.c.l.b16 %v1505
        %v1538 = vunpack.c.l.b16 %v1506
        %v1539 = vunpack.c.l.b16 %v1507
        %v1540 = vunpack.c.l.b16 %v1508
        %v1541 = vunpack.c.l.b16 %v1509
        %v1542 = vpack.c.b16 %v1527, %v1526
        %v1543 = vpack.c.b16 %v1529, %v1528
        %v1544 = vpack.c.b16 %v1531, %v1530
        %v1545 = vpack.c.b16 %v1533, %v1532
        %v1546 = vpack.c.b16 %v1535, %v1534
        %v1547 = vpack.c.b16 %v1537, %v1536
        %v1548 = vpack.c.b16 %v1539, %v1538
        %v1549 = vpack.c.b16 %v1541, %v1540
        %1558 = vmatprep.subr.bf16.mxu0 0
        %1559 = vmatpush1.bf16.msra.mxu0 %v1542
        %1560 = vmatprep.subr.bf16.mxu0 0
        %1561 = vmatpush1.bf16.msra.mxu0 %v1543
        %1562 = vmatprep.subr.bf16.mxu0 0
        %1563 = vmatpush1.bf16.msra.mxu0 %v1544
        %1564 = vmatprep.subr.bf16.mxu0 0
        %1565 = vmatpush1.bf16.msra.mxu0 %v1545
        %1566 = vmatprep.subr.bf16.mxu0 0
        %1567 = vmatpush1.bf16.msra.mxu0 %v1546
        %1568 = vmatprep.subr.bf16.mxu0 0
        %1569 = vmatpush1.bf16.msra.mxu0 %v1547
        %1570 = vmatprep.subr.bf16.mxu0 0
        %1571 = vmatpush1.bf16.msra.mxu0 %v1548
        %1572 = vmatprep.subr.bf16.mxu0 0
        %1573 = vmatpush1.bf16.msra.mxu0 %v1549
        %1574 = vmatprep.subr.bf16.mxu0 0
        %1575 = vmatpush1.bf16.msra.mxu0 0
        %1576 = vmatprep.subr.bf16.mxu0 0
        %1577 = vmatpush1.bf16.msra.mxu0 0
        %1578 = vmatprep.subr.bf16.mxu0 0
        %1579 = vmatpush1.bf16.msra.mxu0 0
        %1580 = vmatprep.subr.bf16.mxu0 0
        %1581 = vmatpush1.bf16.msra.mxu0 0
        %1582 = vmatprep.subr.bf16.mxu0 0
        %1583 = vmatpush1.bf16.msra.mxu0 0
        %1584 = vmatprep.subr.bf16.mxu0 0
        %1585 = vmatpush1.bf16.msra.mxu0 0
        %1586 = vmatprep.subr.bf16.mxu0 0
        %1587 = vmatpush1.bf16.msra.mxu0 0
        %1588 = vmatprep.subr.bf16.mxu0 0
        %1589 = vmatpush1.bf16.msra.mxu0 0
        %1590 = vmatprep.mubr.bf16.mxu0 0
        %1591 = vmatmul.mubr.bf16.gmra.mrb[0].mxu0 %v1399
        %v1592 = vpop.f32.mrb[0].mxu0
        %v1593 = vadd.f32 0.0, %v1592
        %v1594 = vpop.f32.mrb[0].mxu0
        %v1595 = vpop.f32.mrb[0].mxu0
        %v1596 = vadd.f32 0.0, %v1595
        %v1597 = vpop.f32.mrb[0].mxu0
        %1598 = vmatprep.mubr.bf16.mxu0 0
        %1599 = vmatmul.mubr.bf16.gmra.mrb[0].mxu0 %v1402
        %v1600 = vpop.f32.mrb[0].mxu0
        %v1601 = vadd.f32 0.0, %v1600
        %v1602 = vpop.f32.mrb[0].mxu0
        %v1603 = vpop.f32.mrb[0].mxu0
        %v1604 = vadd.f32 0.0, %v1603
        %v1605 = vpop.f32.mrb[0].mxu0
        %1606 = vmatprep.mubr.bf16.mxu0 0
        %1607 = vmatmul.mubr.bf16.gmra.mrb[0].mxu0 %v1405
        %v1608 = vpop.f32.mrb[0].mxu0
        %v1609 = vadd.f32 0.0, %v1608
        %v1610 = vpop.f32.mrb[0].mxu0
        %v1611 = vpop.f32.mrb[0].mxu0
        %v1612 = vadd.f32 0.0, %v1611
        %v1613 = vpop.f32.mrb[0].mxu0
        %1614 = vmatprep.mubr.bf16.mxu0 0
        %1615 = vmatmul.mubr.bf16.gmra.mrb[0].mxu0 %v1408
        %v1616 = vpop.f32.mrb[0].mxu0
        %v1617 = vadd.f32 0.0, %v1616
        %v1618 = vpop.f32.mrb[0].mxu0
        %v1619 = vpop.f32.mrb[0].mxu0
        %v1620 = vadd.f32 0.0, %v1619
        %v1621 = vpop.f32.mrb[0].mxu0
        %1622 = vmatprep.mubr.bf16.mxu0 0
        %1623 = vmatmul.mubr.bf16.gmra.mrb[0].mxu0 %v1411
        %v1624 = vpop.f32.mrb[0].mxu0
        %v1625 = vadd.f32 0.0, %v1624
        %v1626 = vpop.f32.mrb[0].mxu0
        %v1627 = vpop.f32.mrb[0].mxu0
        %v1628 = vadd.f32 0.0, %v1627
        %v1629 = vpop.f32.mrb[0].mxu0
        %1630 = vmatprep.mubr.bf16.mxu0 0
        %1631 = vmatmul.mubr.bf16.gmra.mrb[0].mxu0 %v1414
        %v1632 = vpop.f32.mrb[0].mxu0
        %v1633 = vadd.f32 0.0, %v1632
        %v1634 = vpop.f32.mrb[0].mxu0
        %v1635 = vpop.f32.mrb[0].mxu0
        %v1636 = vadd.f32 0.0, %v1635
        %v1637 = vpop.f32.mrb[0].mxu0
        %1638 = vmatprep.mubr.bf16.mxu0 0
        %1639 = vmatmul.mubr.bf16.gmra.mrb[0].mxu0 %v1417
        %v1640 = vpop.f32.mrb[0].mxu0
        %v1641 = vadd.f32 0.0, %v1640
        %v1642 = vpop.f32.mrb[0].mxu0
        %v1643 = vpop.f32.mrb[0].mxu0
        %v1644 = vadd.f32 0.0, %v1643
        %v1645 = vpop.f32.mrb[0].mxu0
        %1646 = vmatprep.mubr.bf16.mxu0 0
        %1647 = vmatmul.mubr.bf16.gmra.mrb[0].mxu0 %v1420
        %v1648 = vpop.f32.mrb[0].mxu0
        %v1649 = vadd.f32 0.0, %v1648
        %v1650 = vpop.f32.mrb[0].mxu0
        %v1651 = vpop.f32.mrb[0].mxu0
        %v1652 = vadd.f32 0.0, %v1651
        %v1653 = vpop.f32.mrb[0].mxu0
        %1654 = vmatprep.mubr.bf16.mxu0 0
        %1655 = vmatmul.mubr.bf16.gmra.mrb[0].mxu0 %v1423
        %v1656 = vpop.f32.mrb[0].mxu0
        %v1657 = vadd.f32 0.0, %v1656
        %v1658 = vpop.f32.mrb[0].mxu0
        %v1659 = vpop.f32.mrb[0].mxu0
        %v1660 = vadd.f32 0.0, %v1659
        %v1661 = vpop.f32.mrb[0].mxu0
        %1662 = vmatprep.mubr.bf16.mxu0 0
        %1663 = vmatmul.mubr.bf16.gmra.mrb[0].mxu0 %v1426
        %v1664 = vpop.f32.mrb[0].mxu0
        %v1665 = vadd.f32 0.0, %v1664
        %v1666 = vpop.f32.mrb[0].mxu0
        %v1667 = vpop.f32.mrb[0].mxu0
        %v1668 = vadd.f32 0.0, %v1667
        %v1669 = vpop.f32.mrb[0].mxu0
        %1670 = vmatprep.mubr.bf16.mxu0 0
        %1671 = vmatmul.mubr.bf16.gmra.mrb[0].mxu0 %v1429
        %v1672 = vpop.f32.mrb[0].mxu0
        %v1673 = vadd.f32 0.0, %v1672
        %v1674 = vpop.f32.mrb[0].mxu0
        %v1675 = vpop.f32.mrb[0].mxu0
        %v1676 = vadd.f32 0.0, %v1675
        %v1677 = vpop.f32.mrb[0].mxu0
        %1678 = vmatprep.mubr.bf16.mxu0 0
        %1679 = vmatmul.mubr.bf16.gmra.mrb[0].mxu0 %v1432
        %v1680 = vpop.f32.mrb[0].mxu0
        %v1681 = vadd.f32 0.0, %v1680
        %v1682 = vpop.f32.mrb[0].mxu0
        %v1683 = vpop.f32.mrb[0].mxu0
        %v1684 = vadd.f32 0.0, %v1683
        %v1685 = vpop.f32.mrb[0].mxu0
        %1686 = vmatprep.mubr.bf16.mxu0 0
        %1687 = vmatmul.mubr.bf16.gmra.mrb[0].mxu0 %v1435
        %v1688 = vpop.f32.mrb[0].mxu0
        %v1689 = vadd.f32 0.0, %v1688
        %v1690 = vpop.f32.mrb[0].mxu0
        %v1691 = vpop.f32.mrb[0].mxu0
        %v1692 = vadd.f32 0.0, %v1691
        %v1693 = vpop.f32.mrb[0].mxu0
        %1694 = vmatprep.mubr.bf16.mxu0 0
        %1695 = vmatmul.mubr.bf16.gmra.mrb[0].mxu0 %v1438
        %v1696 = vpop.f32.mrb[0].mxu0
        %v1697 = vadd.f32 0.0, %v1696
        %v1698 = vpop.f32.mrb[0].mxu0
        %v1699 = vpop.f32.mrb[0].mxu0
        %v1700 = vadd.f32 0.0, %v1699
        %v1701 = vpop.f32.mrb[0].mxu0
        %1702 = vmatprep.mubr.bf16.mxu0 0
        %1703 = vmatmul.mubr.bf16.gmra.mrb[0].mxu0 %v1441
        %v1704 = vpop.f32.mrb[0].mxu0
        %v1705 = vadd.f32 0.0, %v1704
        %v1706 = vpop.f32.mrb[0].mxu0
        %v1707 = vpop.f32.mrb[0].mxu0
        %v1708 = vadd.f32 0.0, %v1707
        %v1709 = vpop.f32.mrb[0].mxu0
        %1710 = vmatprep.mubr.bf16.mxu0 0
        %1711 = vmatmul.mubr.bf16.gmra.mrb[0].mxu0 %v1444
        %v1712 = vpop.f32.mrb[0].mxu0
        %v1713 = vadd.f32 0.0, %v1712
        %v1714 = vpop.f32.mrb[0].mxu0
        %v1715 = vpop.f32.mrb[0].mxu0
        %v1716 = vadd.f32 0.0, %v1715
        %v1717 = vpop.f32.mrb[0].mxu0
        %1718 = vdwg.mxu0
        %v1719 = vadd.f32 %v1461, %v1593
        %v1720 = vadd.f32 %v1462, %v1596
        %v1721 = vadd.f32 %v1463, %v1601
        %v1722 = vadd.f32 %v1464, %v1604
        %v1723 = vadd.f32 %v1465, %v1609
        %v1724 = vadd.f32 %v1466, %v1612
        %v1725 = vadd.f32 %v1467, %v1617
        %v1726 = vadd.f32 %v1468, %v1620
        %v1727 = vadd.f32 %v1469, %v1625
        %v1728 = vadd.f32 %v1470, %v1628
        %v1729 = vadd.f32 %v1471, %v1633
        %v1730 = vadd.f32 %v1472, %v1636
        %v1731 = vadd.f32 %v1473, %v1641
        %v1732 = vadd.f32 %v1474, %v1644
        %v1733 = vadd.f32 %v1475, %v1649
        %v1734 = vadd.f32 %v1476, %v1652
        %v1735 = vadd.f32 %v1477, %v1657
        %v1736 = vadd.f32 %v1478, %v1660
        %v1737 = vadd.f32 %v1479, %v1665
        %v1738 = vadd.f32 %v1480, %v1668
        %v1739 = vadd.f32 %v1481, %v1673
        %v1740 = vadd.f32 %v1482, %v1676
        %v1741 = vadd.f32 %v1483, %v1681
        %v1742 = vadd.f32 %v1484, %v1684
        %v1743 = vadd.f32 %v1485, %v1689
        %v1744 = vadd.f32 %v1486, %v1692
        %v1745 = vadd.f32 %v1487, %v1697
        %v1746 = vadd.f32 %v1488, %v1700
        %v1747 = vadd.f32 %v1489, %v1705
        %v1748 = vadd.f32 %v1490, %v1708
        %v1749 = vadd.f32 %v1491, %v1713
        %v1750 = vadd.f32 %v1492, %v1716
        %1751 = vst [vmem:[#allocation3] sm:$0xff] %v1719
        %1752 = vst [vmem:[#allocation3 + $0x8] sm:$0xff] %v1720
        %1753 = vst [vmem:[#allocation3 + $0x10] sm:$0xff] %v1721
        %1754 = vst [vmem:[#allocation3 + $0x18] sm:$0xff] %v1722
        %1755 = vst [vmem:[#allocation3 + $0x20] sm:$0xff] %v1723
        %1756 = vst [vmem:[#allocation3 + $0x28] sm:$0xff] %v1724
        %1757 = vst [vmem:[#allocation3 + $0x30] sm:$0xff] %v1725
        %1758 = vst [vmem:[#allocation3 + $0x38] sm:$0xff] %v1726
        %1759 = vst [vmem:[#allocation3 + $0x40] sm:$0xff] %v1727
        %1760 = vst [vmem:[#allocation3 + $0x48] sm:$0xff] %v1728
        %1761 = vst [vmem:[#allocation3 + $0x50] sm:$0xff] %v1729
        %1762 = vst [vmem:[#allocation3 + $0x58] sm:$0xff] %v1730
        %1763 = vst [vmem:[#allocation3 + $0x60] sm:$0xff] %v1731
        %1764 = vst [vmem:[#allocation3 + $0x68] sm:$0xff] %v1732
        %1765 = vst [vmem:[#allocation3 + $0x70] sm:$0xff] %v1733
        %1766 = vst [vmem:[#allocation3 + $0x78] sm:$0xff] %v1734
        %1767 = vst [vmem:[#allocation3 + $0x80] sm:$0xff] %v1735
        %1768 = vst [vmem:[#allocation3 + $0x88] sm:$0xff] %v1736
        %1769 = vst [vmem:[#allocation3 + $0x90] sm:$0xff] %v1737
        %1770 = vst [vmem:[#allocation3 + $0x98] sm:$0xff] %v1738
        %1771 = vst [vmem:[#allocation3 + $0xa0] sm:$0xff] %v1739
        %1772 = vst [vmem:[#allocation3 + $0xa8] sm:$0xff] %v1740
        %1773 = vst [vmem:[#allocation3 + $0xb0] sm:$0xff] %v1741
        %1774 = vst [vmem:[#allocation3 + $0xb8] sm:$0xff] %v1742
        %1775 = vst [vmem:[#allocation3 + $0xc0] sm:$0xff] %v1743
        %1776 = vst [vmem:[#allocation3 + $0xc8] sm:$0xff] %v1744
        %1777 = vst [vmem:[#allocation3 + $0xd0] sm:$0xff] %v1745
        %1778 = vst [vmem:[#allocation3 + $0xd8] sm:$0xff] %v1746
        %1779 = vst [vmem:[#allocation3 + $0xe0] sm:$0xff] %v1747
        %1780 = vst [vmem:[#allocation3 + $0xe8] sm:$0xff] %v1748
        %1781 = vst [vmem:[#allocation3 + $0xf0] sm:$0xff] %v1749
        %1782 = vst [vmem:[#allocation3 + $0xf8] sm:$0xff] %v1750
        %v1783 = vld [vmem:[#allocation2] sm:$0xf0]
        %v1784 = vld [vmem:[#allocation2 + $0x8] sm:$0x1f]
        %v1785 = vld [vmem:[#allocation2 + $0x10] sm:$0xf0]
        %v1786 = vld [vmem:[#allocation2 + $0x18] sm:$0x1f]
        %v1787 = vld [vmem:[#allocation2 + $0x20] sm:$0xf0]
        %v1788 = vld [vmem:[#allocation2 + $0x28] sm:$0x1f]
        %v1789 = vld [vmem:[#allocation2 + $0x30] sm:$0xf0]
        %v1790 = vld [vmem:[#allocation2 + $0x38] sm:$0x1f]
        %v1791 = vld [vmem:[#allocation2 + $0x40] sm:$0xf0]
        %v1792 = vld [vmem:[#allocation2 + $0x48] sm:$0x1f]
        %v1793 = vld [vmem:[#allocation2 + $0x50] sm:$0xf0]
        %v1794 = vld [vmem:[#allocation2 + $0x58] sm:$0x1f]
        %v1795 = vld [vmem:[#allocation2 + $0x60] sm:$0xf0]
        %v1796 = vld [vmem:[#allocation2 + $0x68] sm:$0x1f]
        %v1797 = vld [vmem:[#allocation2 + $0x70] sm:$0xf0]
        %v1798 = vld [vmem:[#allocation2 + $0x78] sm:$0x1f]
        %v1799 = vld [vmem:[#allocation2 + $0x80] sm:$0xf0]
        %v1800 = vld [vmem:[#allocation2 + $0x88] sm:$0x1f]
        %v1801 = vld [vmem:[#allocation2 + $0x90] sm:$0xf0]
        %v1802 = vld [vmem:[#allocation2 + $0x98] sm:$0x1f]
        %v1803 = vld [vmem:[#allocation2 + $0xa0] sm:$0xf0]
        %v1804 = vld [vmem:[#allocation2 + $0xa8] sm:$0x1f]
        %v1805 = vld [vmem:[#allocation2 + $0xb0] sm:$0xf0]
        %v1806 = vld [vmem:[#allocation2 + $0xb8] sm:$0x1f]
        %v1807 = vld [vmem:[#allocation2 + $0xc0] sm:$0xf0]
        %v1808 = vld [vmem:[#allocation2 + $0xc8] sm:$0x1f]
        %v1809 = vld [vmem:[#allocation2 + $0xd0] sm:$0xf0]
        %v1810 = vld [vmem:[#allocation2 + $0xd8] sm:$0x1f]
        %v1811 = vld [vmem:[#allocation2 + $0xe0] sm:$0xf0]
        %v1812 = vld [vmem:[#allocation2 + $0xe8] sm:$0x1f]
        %v1813 = vld [vmem:[#allocation2 + $0xf0] sm:$0xf0]
        %v1814 = vld [vmem:[#allocation2 + $0xf8] sm:$0x1f]
        %vm1815 = vsmask.f32 3328
        %v1817 = vshrl.u32 %v1783, 16
        %v1819 = vrot.slane %v1817, 4
        %v1820 = vshll.u32 %v1783, 16
        %v1822 = vrot.slane %v1820, 5
        %v1823 = vor.u32 %v1819, %v1822
        %v1825 = vshrl.u32 %v1784, 16
        %v1827 = vrot.slane %v1825, 4
        %v1828 = vshll.u32 %v1784, 16
        %v1830 = vrot.slane %v1828, 5
        %v1831 = vor.u32 %v1827, %v1830
        %v1832 = vsel %vm1815, %v1823, %v1831
        %v1834 = vshrl.u32 %v1785, 16
        %v1836 = vrot.slane %v1834, 4
        %v1837 = vshll.u32 %v1785, 16
        %v1839 = vrot.slane %v1837, 5
        %v1840 = vor.u32 %v1836, %v1839
        %v1842 = vshrl.u32 %v1786, 16
        %v1844 = vrot.slane %v1842, 4
        %v1845 = vshll.u32 %v1786, 16
        %v1847 = vrot.slane %v1845, 5
        %v1848 = vor.u32 %v1844, %v1847
        %v1849 = vsel %vm1815, %v1840, %v1848
        %v1851 = vshrl.u32 %v1787, 16
        %v1853 = vrot.slane %v1851, 4
        %v1854 = vshll.u32 %v1787, 16
        %v1856 = vrot.slane %v1854, 5
        %v1857 = vor.u32 %v1853, %v1856
        %v1859 = vshrl.u32 %v1788, 16
        %v1861 = vrot.slane %v1859, 4
        %v1862 = vshll.u32 %v1788, 16
        %v1864 = vrot.slane %v1862, 5
        %v1865 = vor.u32 %v1861, %v1864
        %v1866 = vsel %vm1815, %v1857, %v1865
        %v1868 = vshrl.u32 %v1789, 16
        %v1870 = vrot.slane %v1868, 4
        %v1871 = vshll.u32 %v1789, 16
        %v1873 = vrot.slane %v1871, 5
        %v1874 = vor.u32 %v1870, %v1873
        %v1876 = vshrl.u32 %v1790, 16
        %v1878 = vrot.slane %v1876, 4
        %v1879 = vshll.u32 %v1790, 16
        %v1881 = vrot.slane %v1879, 5
        %v1882 = vor.u32 %v1878, %v1881
        %v1883 = vsel %vm1815, %v1874, %v1882
        %v1885 = vshrl.u32 %v1791, 16
        %v1887 = vrot.slane %v1885, 4
        %v1888 = vshll.u32 %v1791, 16
        %v1890 = vrot.slane %v1888, 5
        %v1891 = vor.u32 %v1887, %v1890
        %v1893 = vshrl.u32 %v1792, 16
        %v1895 = vrot.slane %v1893, 4
        %v1896 = vshll.u32 %v1792, 16
        %v1898 = vrot.slane %v1896, 5
        %v1899 = vor.u32 %v1895, %v1898
        %v1900 = vsel %vm1815, %v1891, %v1899
        %v1902 = vshrl.u32 %v1793, 16
        %v1904 = vrot.slane %v1902, 4
        %v1905 = vshll.u32 %v1793, 16
        %v1907 = vrot.slane %v1905, 5
        %v1908 = vor.u32 %v1904, %v1907
        %v1910 = vshrl.u32 %v1794, 16
        %v1912 = vrot.slane %v1910, 4
        %v1913 = vshll.u32 %v1794, 16
        %v1915 = vrot.slane %v1913, 5
        %v1916 = vor.u32 %v1912, %v1915
        %v1917 = vsel %vm1815, %v1908, %v1916
        %v1919 = vshrl.u32 %v1795, 16
        %v1921 = vrot.slane %v1919, 4
        %v1922 = vshll.u32 %v1795, 16
        %v1924 = vrot.slane %v1922, 5
        %v1925 = vor.u32 %v1921, %v1924
        %v1927 = vshrl.u32 %v1796, 16
        %v1929 = vrot.slane %v1927, 4
        %v1930 = vshll.u32 %v1796, 16
        %v1932 = vrot.slane %v1930, 5
        %v1933 = vor.u32 %v1929, %v1932
        %v1934 = vsel %vm1815, %v1925, %v1933
        %v1936 = vshrl.u32 %v1797, 16
        %v1938 = vrot.slane %v1936, 4
        %v1939 = vshll.u32 %v1797, 16
        %v1941 = vrot.slane %v1939, 5
        %v1942 = vor.u32 %v1938, %v1941
        %v1944 = vshrl.u32 %v1798, 16
        %v1946 = vrot.slane %v1944, 4
        %v1947 = vshll.u32 %v1798, 16
        %v1949 = vrot.slane %v1947, 5
        %v1950 = vor.u32 %v1946, %v1949
        %v1951 = vsel %vm1815, %v1942, %v1950
        %v1953 = vshrl.u32 %v1799, 16
        %v1955 = vrot.slane %v1953, 4
        %v1956 = vshll.u32 %v1799, 16
        %v1958 = vrot.slane %v1956, 5
        %v1959 = vor.u32 %v1955, %v1958
        %v1961 = vshrl.u32 %v1800, 16
        %v1963 = vrot.slane %v1961, 4
        %v1964 = vshll.u32 %v1800, 16
        %v1966 = vrot.slane %v1964, 5
        %v1967 = vor.u32 %v1963, %v1966
        %v1968 = vsel %vm1815, %v1959, %v1967
        %v1970 = vshrl.u32 %v1801, 16
        %v1972 = vrot.slane %v1970, 4
        %v1973 = vshll.u32 %v1801, 16
        %v1975 = vrot.slane %v1973, 5
        %v1976 = vor.u32 %v1972, %v1975
        %v1978 = vshrl.u32 %v1802, 16
        %v1980 = vrot.slane %v1978, 4
        %v1981 = vshll.u32 %v1802, 16
        %v1983 = vrot.slane %v1981, 5
        %v1984 = vor.u32 %v1980, %v1983
        %v1985 = vsel %vm1815, %v1976, %v1984
        %v1987 = vshrl.u32 %v1803, 16
        %v1989 = vrot.slane %v1987, 4
        %v1990 = vshll.u32 %v1803, 16
        %v1992 = vrot.slane %v1990, 5
        %v1993 = vor.u32 %v1989, %v1992
        %v1995 = vshrl.u32 %v1804, 16
        %v1997 = vrot.slane %v1995, 4
        %v1998 = vshll.u32 %v1804, 16
        %v2000 = vrot.slane %v1998, 5
        %v2001 = vor.u32 %v1997, %v2000
        %v2002 = vsel %vm1815, %v1993, %v2001
        %v2004 = vshrl.u32 %v1805, 16
        %v2006 = vrot.slane %v2004, 4
        %v2007 = vshll.u32 %v1805, 16
        %v2009 = vrot.slane %v2007, 5
        %v2010 = vor.u32 %v2006, %v2009
        %v2012 = vshrl.u32 %v1806, 16
        %v2014 = vrot.slane %v2012, 4
        %v2015 = vshll.u32 %v1806, 16
        %v2017 = vrot.slane %v2015, 5
        %v2018 = vor.u32 %v2014, %v2017
        %v2019 = vsel %vm1815, %v2010, %v2018
        %v2021 = vshrl.u32 %v1807, 16
        %v2023 = vrot.slane %v2021, 4
        %v2024 = vshll.u32 %v1807, 16
        %v2026 = vrot.slane %v2024, 5
        %v2027 = vor.u32 %v2023, %v2026
        %v2029 = vshrl.u32 %v1808, 16
        %v2031 = vrot.slane %v2029, 4
        %v2032 = vshll.u32 %v1808, 16
        %v2034 = vrot.slane %v2032, 5
        %v2035 = vor.u32 %v2031, %v2034
        %v2036 = vsel %vm1815, %v2027, %v2035
        %v2038 = vshrl.u32 %v1809, 16
        %v2040 = vrot.slane %v2038, 4
        %v2041 = vshll.u32 %v1809, 16
        %v2043 = vrot.slane %v2041, 5
        %v2044 = vor.u32 %v2040, %v2043
        %v2046 = vshrl.u32 %v1810, 16
        %v2048 = vrot.slane %v2046, 4
        %v2049 = vshll.u32 %v1810, 16
        %v2051 = vrot.slane %v2049, 5
        %v2052 = vor.u32 %v2048, %v2051
        %v2053 = vsel %vm1815, %v2044, %v2052
        %v2055 = vshrl.u32 %v1811, 16
        %v2057 = vrot.slane %v2055, 4
        %v2058 = vshll.u32 %v1811, 16
        %v2060 = vrot.slane %v2058, 5
        %v2061 = vor.u32 %v2057, %v2060
        %v2063 = vshrl.u32 %v1812, 16
        %v2065 = vrot.slane %v2063, 4
        %v2066 = vshll.u32 %v1812, 16
        %v2068 = vrot.slane %v2066, 5
        %v2069 = vor.u32 %v2065, %v2068
        %v2070 = vsel %vm1815, %v2061, %v2069
        %v2072 = vshrl.u32 %v1813, 16
        %v2074 = vrot.slane %v2072, 4
        %v2075 = vshll.u32 %v1813, 16
        %v2077 = vrot.slane %v2075, 5
        %v2078 = vor.u32 %v2074, %v2077
        %v2080 = vshrl.u32 %v1814, 16
        %v2082 = vrot.slane %v2080, 4
        %v2083 = vshll.u32 %v1814, 16
        %v2085 = vrot.slane %v2083, 5
        %v2086 = vor.u32 %v2082, %v2085
        %v2087 = vsel %vm1815, %v2078, %v2086
        %v2104 = vld [vmem:[#allocation3] sm:$0xff]
        %v2105 = vld [vmem:[#allocation3 + $0x8] sm:$0xff]
        %v2106 = vld [vmem:[#allocation3 + $0x10] sm:$0xff]
        %v2107 = vld [vmem:[#allocation3 + $0x18] sm:$0xff]
        %v2108 = vld [vmem:[#allocation3 + $0x20] sm:$0xff]
        %v2109 = vld [vmem:[#allocation3 + $0x28] sm:$0xff]
        %v2110 = vld [vmem:[#allocation3 + $0x30] sm:$0xff]
        %v2111 = vld [vmem:[#allocation3 + $0x38] sm:$0xff]
        %v2112 = vld [vmem:[#allocation3 + $0x40] sm:$0xff]
        %v2113 = vld [vmem:[#allocation3 + $0x48] sm:$0xff]
        %v2114 = vld [vmem:[#allocation3 + $0x50] sm:$0xff]
        %v2115 = vld [vmem:[#allocation3 + $0x58] sm:$0xff]
        %v2116 = vld [vmem:[#allocation3 + $0x60] sm:$0xff]
        %v2117 = vld [vmem:[#allocation3 + $0x68] sm:$0xff]
        %v2118 = vld [vmem:[#allocation3 + $0x70] sm:$0xff]
        %v2119 = vld [vmem:[#allocation3 + $0x78] sm:$0xff]
        %v2120 = vld [vmem:[#allocation3 + $0x80] sm:$0xff]
        %v2121 = vld [vmem:[#allocation3 + $0x88] sm:$0xff]
        %v2122 = vld [vmem:[#allocation3 + $0x90] sm:$0xff]
        %v2123 = vld [vmem:[#allocation3 + $0x98] sm:$0xff]
        %v2124 = vld [vmem:[#allocation3 + $0xa0] sm:$0xff]
        %v2125 = vld [vmem:[#allocation3 + $0xa8] sm:$0xff]
        %v2126 = vld [vmem:[#allocation3 + $0xb0] sm:$0xff]
        %v2127 = vld [vmem:[#allocation3 + $0xb8] sm:$0xff]
        %v2128 = vld [vmem:[#allocation3 + $0xc0] sm:$0xff]
        %v2129 = vld [vmem:[#allocation3 + $0xc8] sm:$0xff]
        %v2130 = vld [vmem:[#allocation3 + $0xd0] sm:$0xff]
        %v2131 = vld [vmem:[#allocation3 + $0xd8] sm:$0xff]
        %v2132 = vld [vmem:[#allocation3 + $0xe0] sm:$0xff]
        %v2133 = vld [vmem:[#allocation3 + $0xe8] sm:$0xff]
        %v2134 = vld [vmem:[#allocation3 + $0xf0] sm:$0xff]
        %v2135 = vld [vmem:[#allocation3 + $0xf8] sm:$0xff]
        %s2136 = scalar_lea.vmem [#allocation10], 128
        %v2137 = vld [vmem:[%s2136] sm:$0xf]
        %v2138 = vld [vmem:[%s2136 + $0x4] sm:$0xf]
        %v2139 = vld [vmem:[%s2136 + $0x8] sm:$0xf]
        %v2140 = vld [vmem:[%s2136 + $0xc] sm:$0xf]
        %v2141 = vld [vmem:[%s2136 + $0x10] sm:$0xf]
        %v2142 = vld [vmem:[%s2136 + $0x14] sm:$0xf]
        %v2143 = vld [vmem:[%s2136 + $0x18] sm:$0xf]
        %v2144 = vld [vmem:[%s2136 + $0x1c] sm:$0xf]
        %v2145 = vld [vmem:[%s2136 + $0x20] sm:$0xf]
        %v2146 = vld [vmem:[%s2136 + $0x24] sm:$0xf]
        %v2147 = vld [vmem:[%s2136 + $0x28] sm:$0xf]
        %v2148 = vld [vmem:[%s2136 + $0x2c] sm:$0xf]
        %v2149 = vld [vmem:[%s2136 + $0x30] sm:$0xf]
        %v2150 = vld [vmem:[%s2136 + $0x34] sm:$0xf]
        %v2151 = vld [vmem:[%s2136 + $0x38] sm:$0xf]
        %v2152 = vld [vmem:[%s2136 + $0x3c] sm:$0xf]
        %v2169 = vunpack.c.l.b16 %v2137
        %v2170 = vunpack.c.l.b16 %v2138
        %v2171 = vunpack.c.l.b16 %v2139
        %v2172 = vunpack.c.l.b16 %v2140
        %v2173 = vunpack.c.l.b16 %v2141
        %v2174 = vunpack.c.l.b16 %v2142
        %v2175 = vunpack.c.l.b16 %v2143
        %v2176 = vunpack.c.l.b16 %v2144
        %v2177 = vunpack.c.l.b16 %v2145
        %v2178 = vunpack.c.l.b16 %v2146
        %v2179 = vunpack.c.l.b16 %v2147
        %v2180 = vunpack.c.l.b16 %v2148
        %v2181 = vunpack.c.l.b16 %v2149
        %v2182 = vunpack.c.l.b16 %v2150
        %v2183 = vunpack.c.l.b16 %v2151
        %v2184 = vunpack.c.l.b16 %v2152
        %v2185 = vpack.c.b16 %v2170, %v2169
        %v2186 = vpack.c.b16 %v2172, %v2171
        %v2187 = vpack.c.b16 %v2174, %v2173
        %v2188 = vpack.c.b16 %v2176, %v2175
        %v2189 = vpack.c.b16 %v2178, %v2177
        %v2190 = vpack.c.b16 %v2180, %v2179
        %v2191 = vpack.c.b16 %v2182, %v2181
        %v2192 = vpack.c.b16 %v2184, %v2183
        %2201 = vmatprep.subr.bf16.mxu0 0
        %2202 = vmatpush1.bf16.msra.mxu0 %v2185
        %2203 = vmatprep.subr.bf16.mxu0 0
        %2204 = vmatpush1.bf16.msra.mxu0 %v2186
        %2205 = vmatprep.subr.bf16.mxu0 0
        %2206 = vmatpush1.bf16.msra.mxu0 %v2187
        %2207 = vmatprep.subr.bf16.mxu0 0
        %2208 = vmatpush1.bf16.msra.mxu0 %v2188
        %2209 = vmatprep.subr.bf16.mxu0 0
        %2210 = vmatpush1.bf16.msra.mxu0 %v2189
        %2211 = vmatprep.subr.bf16.mxu0 0
        %2212 = vmatpush1.bf16.msra.mxu0 %v2190
        %2213 = vmatprep.subr.bf16.mxu0 0
        %2214 = vmatpush1.bf16.msra.mxu0 %v2191
        %2215 = vmatprep.subr.bf16.mxu0 0
        %2216 = vmatpush1.bf16.msra.mxu0 %v2192
        %2217 = vmatprep.subr.bf16.mxu0 0
        %2218 = vmatpush1.bf16.msra.mxu0 0
        %2219 = vmatprep.subr.bf16.mxu0 0
        %2220 = vmatpush1.bf16.msra.mxu0 0
        %2221 = vmatprep.subr.bf16.mxu0 0
        %2222 = vmatpush1.bf16.msra.mxu0 0
        %2223 = vmatprep.subr.bf16.mxu0 0
        %2224 = vmatpush1.bf16.msra.mxu0 0
        %2225 = vmatprep.subr.bf16.mxu0 0
        %2226 = vmatpush1.bf16.msra.mxu0 0
        %2227 = vmatprep.subr.bf16.mxu0 0
        %2228 = vmatpush1.bf16.msra.mxu0 0
        %2229 = vmatprep.subr.bf16.mxu0 0
        %2230 = vmatpush1.bf16.msra.mxu0 0
        %2231 = vmatprep.subr.bf16.mxu0 0
        %2232 = vmatpush1.bf16.msra.mxu0 0
        %2233 = vmatprep.mubr.bf16.mxu0 0
        %2234 = vmatmul.mubr.bf16.gmra.mrb[0].mxu0 %v1832
        %v2235 = vpop.f32.mrb[0].mxu0
        %v2236 = vadd.f32 0.0, %v2235
        %v2237 = vpop.f32.mrb[0].mxu0
        %v2238 = vpop.f32.mrb[0].mxu0
        %v2239 = vadd.f32 0.0, %v2238
        %v2240 = vpop.f32.mrb[0].mxu0
        %2241 = vmatprep.mubr.bf16.mxu0 0
        %2242 = vmatmul.mubr.bf16.gmra.mrb[0].mxu0 %v1849
        %v2243 = vpop.f32.mrb[0].mxu0
        %v2244 = vadd.f32 0.0, %v2243
        %v2245 = vpop.f32.mrb[0].mxu0
        %v2246 = vpop.f32.mrb[0].mxu0
        %v2247 = vadd.f32 0.0, %v2246
        %v2248 = vpop.f32.mrb[0].mxu0
        %2249 = vmatprep.mubr.bf16.mxu0 0
        %2250 = vmatmul.mubr.bf16.gmra.mrb[0].mxu0 %v1866
        %v2251 = vpop.f32.mrb[0].mxu0
        %v2252 = vadd.f32 0.0, %v2251
        %v2253 = vpop.f32.mrb[0].mxu0
        %v2254 = vpop.f32.mrb[0].mxu0
        %v2255 = vadd.f32 0.0, %v2254
        %v2256 = vpop.f32.mrb[0].mxu0
        %2257 = vmatprep.mubr.bf16.mxu0 0
        %2258 = vmatmul.mubr.bf16.gmra.mrb[0].mxu0 %v1883
        %v2259 = vpop.f32.mrb[0].mxu0
        %v2260 = vadd.f32 0.0, %v2259
        %v2261 = vpop.f32.mrb[0].mxu0
        %v2262 = vpop.f32.mrb[0].mxu0
        %v2263 = vadd.f32 0.0, %v2262
        %v2264 = vpop.f32.mrb[0].mxu0
        %2265 = vmatprep.mubr.bf16.mxu0 0
        %2266 = vmatmul.mubr.bf16.gmra.mrb[0].mxu0 %v1900
        %v2267 = vpop.f32.mrb[0].mxu0
        %v2268 = vadd.f32 0.0, %v2267
        %v2269 = vpop.f32.mrb[0].mxu0
        %v2270 = vpop.f32.mrb[0].mxu0
        %v2271 = vadd.f32 0.0, %v2270
        %v2272 = vpop.f32.mrb[0].mxu0
        %2273 = vmatprep.mubr.bf16.mxu0 0
        %2274 = vmatmul.mubr.bf16.gmra.mrb[0].mxu0 %v1917
        %v2275 = vpop.f32.mrb[0].mxu0
        %v2276 = vadd.f32 0.0, %v2275
        %v2277 = vpop.f32.mrb[0].mxu0
        %v2278 = vpop.f32.mrb[0].mxu0
        %v2279 = vadd.f32 0.0, %v2278
        %v2280 = vpop.f32.mrb[0].mxu0
        %2281 = vmatprep.mubr.bf16.mxu0 0
        %2282 = vmatmul.mubr.bf16.gmra.mrb[0].mxu0 %v1934
        %v2283 = vpop.f32.mrb[0].mxu0
        %v2284 = vadd.f32 0.0, %v2283
        %v2285 = vpop.f32.mrb[0].mxu0
        %v2286 = vpop.f32.mrb[0].mxu0
        %v2287 = vadd.f32 0.0, %v2286
        %v2288 = vpop.f32.mrb[0].mxu0
        %2289 = vmatprep.mubr.bf16.mxu0 0
        %2290 = vmatmul.mubr.bf16.gmra.mrb[0].mxu0 %v1951
        %v2291 = vpop.f32.mrb[0].mxu0
        %v2292 = vadd.f32 0.0, %v2291
        %v2293 = vpop.f32.mrb[0].mxu0
        %v2294 = vpop.f32.mrb[0].mxu0
        %v2295 = vadd.f32 0.0, %v2294
        %v2296 = vpop.f32.mrb[0].mxu0
        %2297 = vmatprep.mubr.bf16.mxu0 0
        %2298 = vmatmul.mubr.bf16.gmra.mrb[0].mxu0 %v1968
        %v2299 = vpop.f32.mrb[0].mxu0
        %v2300 = vadd.f32 0.0, %v2299
        %v2301 = vpop.f32.mrb[0].mxu0
        %v2302 = vpop.f32.mrb[0].mxu0
        %v2303 = vadd.f32 0.0, %v2302
        %v2304 = vpop.f32.mrb[0].mxu0
        %2305 = vmatprep.mubr.bf16.mxu0 0
        %2306 = vmatmul.mubr.bf16.gmra.mrb[0].mxu0 %v1985
        %v2307 = vpop.f32.mrb[0].mxu0
        %v2308 = vadd.f32 0.0, %v2307
        %v2309 = vpop.f32.mrb[0].mxu0
        %v2310 = vpop.f32.mrb[0].mxu0
        %v2311 = vadd.f32 0.0, %v2310
        %v2312 = vpop.f32.mrb[0].mxu0
        %2313 = vmatprep.mubr.bf16.mxu0 0
        %2314 = vmatmul.mubr.bf16.gmra.mrb[0].mxu0 %v2002
        %v2315 = vpop.f32.mrb[0].mxu0
        %v2316 = vadd.f32 0.0, %v2315
        %v2317 = vpop.f32.mrb[0].mxu0
        %v2318 = vpop.f32.mrb[0].mxu0
        %v2319 = vadd.f32 0.0, %v2318
        %v2320 = vpop.f32.mrb[0].mxu0
        %2321 = vmatprep.mubr.bf16.mxu0 0
        %2322 = vmatmul.mubr.bf16.gmra.mrb[0].mxu0 %v2019
        %v2323 = vpop.f32.mrb[0].mxu0
        %v2324 = vadd.f32 0.0, %v2323
        %v2325 = vpop.f32.mrb[0].mxu0
        %v2326 = vpop.f32.mrb[0].mxu0
        %v2327 = vadd.f32 0.0, %v2326
        %v2328 = vpop.f32.mrb[0].mxu0
        %2329 = vmatprep.mubr.bf16.mxu0 0
        %2330 = vmatmul.mubr.bf16.gmra.mrb[0].mxu0 %v2036
        %v2331 = vpop.f32.mrb[0].mxu0
        %v2332 = vadd.f32 0.0, %v2331
        %v2333 = vpop.f32.mrb[0].mxu0
        %v2334 = vpop.f32.mrb[0].mxu0
        %v2335 = vadd.f32 0.0, %v2334
        %v2336 = vpop.f32.mrb[0].mxu0
        %2337 = vmatprep.mubr.bf16.mxu0 0
        %2338 = vmatmul.mubr.bf16.gmra.mrb[0].mxu0 %v2053
        %v2339 = vpop.f32.mrb[0].mxu0
        %v2340 = vadd.f32 0.0, %v2339
        %v2341 = vpop.f32.mrb[0].mxu0
        %v2342 = vpop.f32.mrb[0].mxu0
        %v2343 = vadd.f32 0.0, %v2342
        %v2344 = vpop.f32.mrb[0].mxu0
        %2345 = vmatprep.mubr.bf16.mxu0 0
        %2346 = vmatmul.mubr.bf16.gmra.mrb[0].mxu0 %v2070
        %v2347 = vpop.f32.mrb[0].mxu0
        %v2348 = vadd.f32 0.0, %v2347
        %v2349 = vpop.f32.mrb[0].mxu0
        %v2350 = vpop.f32.mrb[0].mxu0
        %v2351 = vadd.f32 0.0, %v2350
        %v2352 = vpop.f32.mrb[0].mxu0
        %2353 = vmatprep.mubr.bf16.mxu0 0
        %2354 = vmatmul.mubr.bf16.gmra.mrb[0].mxu0 %v2087
        %v2355 = vpop.f32.mrb[0].mxu0
        %v2356 = vadd.f32 0.0, %v2355
        %v2357 = vpop.f32.mrb[0].mxu0
        %v2358 = vpop.f32.mrb[0].mxu0
        %v2359 = vadd.f32 0.0, %v2358
        %v2360 = vpop.f32.mrb[0].mxu0
        %2361 = vdwg.mxu0
        %v2362 = vadd.f32 %v2104, %v2236
        %v2363 = vadd.f32 %v2105, %v2239
        %v2364 = vadd.f32 %v2106, %v2244
        %v2365 = vadd.f32 %v2107, %v2247
        %v2366 = vadd.f32 %v2108, %v2252
        %v2367 = vadd.f32 %v2109, %v2255
        %v2368 = vadd.f32 %v2110, %v2260
        %v2369 = vadd.f32 %v2111, %v2263
        %v2370 = vadd.f32 %v2112, %v2268
        %v2371 = vadd.f32 %v2113, %v2271
        %v2372 = vadd.f32 %v2114, %v2276
        %v2373 = vadd.f32 %v2115, %v2279
        %v2374 = vadd.f32 %v2116, %v2284
        %v2375 = vadd.f32 %v2117, %v2287
        %v2376 = vadd.f32 %v2118, %v2292
        %v2377 = vadd.f32 %v2119, %v2295
        %v2378 = vadd.f32 %v2120, %v2300
        %v2379 = vadd.f32 %v2121, %v2303
        %v2380 = vadd.f32 %v2122, %v2308
        %v2381 = vadd.f32 %v2123, %v2311
        %v2382 = vadd.f32 %v2124, %v2316
        %v2383 = vadd.f32 %v2125, %v2319
        %v2384 = vadd.f32 %v2126, %v2324
        %v2385 = vadd.f32 %v2127, %v2327
        %v2386 = vadd.f32 %v2128, %v2332
        %v2387 = vadd.f32 %v2129, %v2335
        %v2388 = vadd.f32 %v2130, %v2340
        %v2389 = vadd.f32 %v2131, %v2343
        %v2390 = vadd.f32 %v2132, %v2348
        %v2391 = vadd.f32 %v2133, %v2351
        %v2392 = vadd.f32 %v2134, %v2356
        %v2393 = vadd.f32 %v2135, %v2359
        %2394 = vst [vmem:[#allocation3] sm:$0xff] %v2362
        %2395 = vst [vmem:[#allocation3 + $0x8] sm:$0xff] %v2363
        %2396 = vst [vmem:[#allocation3 + $0x10] sm:$0xff] %v2364
        %2397 = vst [vmem:[#allocation3 + $0x18] sm:$0xff] %v2365
        %2398 = vst [vmem:[#allocation3 + $0x20] sm:$0xff] %v2366
        %2399 = vst [vmem:[#allocation3 + $0x28] sm:$0xff] %v2367
        %2400 = vst [vmem:[#allocation3 + $0x30] sm:$0xff] %v2368
        %2401 = vst [vmem:[#allocation3 + $0x38] sm:$0xff] %v2369
        %2402 = vst [vmem:[#allocation3 + $0x40] sm:$0xff] %v2370
        %2403 = vst [vmem:[#allocation3 + $0x48] sm:$0xff] %v2371
        %2404 = vst [vmem:[#allocation3 + $0x50] sm:$0xff] %v2372
        %2405 = vst [vmem:[#allocation3 + $0x58] sm:$0xff] %v2373
        %2406 = vst [vmem:[#allocation3 + $0x60] sm:$0xff] %v2374
        %2407 = vst [vmem:[#allocation3 + $0x68] sm:$0xff] %v2375
        %2408 = vst [vmem:[#allocation3 + $0x70] sm:$0xff] %v2376
        %2409 = vst [vmem:[#allocation3 + $0x78] sm:$0xff] %v2377
        %2410 = vst [vmem:[#allocation3 + $0x80] sm:$0xff] %v2378
        %2411 = vst [vmem:[#allocation3 + $0x88] sm:$0xff] %v2379
        %2412 = vst [vmem:[#allocation3 + $0x90] sm:$0xff] %v2380
        %2413 = vst [vmem:[#allocation3 + $0x98] sm:$0xff] %v2381
        %2414 = vst [vmem:[#allocation3 + $0xa0] sm:$0xff] %v2382
        %2415 = vst [vmem:[#allocation3 + $0xa8] sm:$0xff] %v2383
        %2416 = vst [vmem:[#allocation3 + $0xb0] sm:$0xff] %v2384
        %2417 = vst [vmem:[#allocation3 + $0xb8] sm:$0xff] %v2385
        %2418 = vst [vmem:[#allocation3 + $0xc0] sm:$0xff] %v2386
        %2419 = vst [vmem:[#allocation3 + $0xc8] sm:$0xff] %v2387
        %2420 = vst [vmem:[#allocation3 + $0xd0] sm:$0xff] %v2388
        %2421 = vst [vmem:[#allocation3 + $0xd8] sm:$0xff] %v2389
        %2422 = vst [vmem:[#allocation3 + $0xe0] sm:$0xff] %v2390
        %2423 = vst [vmem:[#allocation3 + $0xe8] sm:$0xff] %v2391
        %2424 = vst [vmem:[#allocation3 + $0xf0] sm:$0xff] %v2392
        %2425 = vst [vmem:[#allocation3 + $0xf8] sm:$0xff] %v2393
        %v2426 = vld [vmem:[%s618] sm:$0xf8]
        %v2427 = vld [vmem:[%s618 + $0x8] sm:$0xf]
        %v2428 = vld [vmem:[%s618 + $0x10] sm:$0xf8]
        %v2429 = vld [vmem:[%s618 + $0x18] sm:$0xf]
        %v2430 = vld [vmem:[%s618 + $0x20] sm:$0xf8]
        %v2431 = vld [vmem:[%s618 + $0x28] sm:$0xf]
        %v2432 = vld [vmem:[%s618 + $0x30] sm:$0xf8]
        %v2433 = vld [vmem:[%s618 + $0x38] sm:$0xf]
        %v2434 = vld [vmem:[%s618 + $0x40] sm:$0xf8]
        %v2435 = vld [vmem:[%s618 + $0x48] sm:$0xf]
        %v2436 = vld [vmem:[%s618 + $0x50] sm:$0xf8]
        %v2437 = vld [vmem:[%s618 + $0x58] sm:$0xf]
        %v2438 = vld [vmem:[%s618 + $0x60] sm:$0xf8]
        %v2439 = vld [vmem:[%s618 + $0x68] sm:$0xf]
        %v2440 = vld [vmem:[%s618 + $0x70] sm:$0xf8]
        %v2441 = vld [vmem:[%s618 + $0x78] sm:$0xf]
        %v2442 = vld [vmem:[%s618 + $0x80] sm:$0xf8]
        %v2443 = vld [vmem:[%s618 + $0x88] sm:$0xf]
        %v2444 = vld [vmem:[%s618 + $0x90] sm:$0xf8]
        %v2445 = vld [vmem:[%s618 + $0x98] sm:$0xf]
        %v2446 = vld [vmem:[%s618 + $0xa0] sm:$0xf8]
        %v2447 = vld [vmem:[%s618 + $0xa8] sm:$0xf]
        %v2448 = vld [vmem:[%s618 + $0xb0] sm:$0xf8]
        %v2449 = vld [vmem:[%s618 + $0xb8] sm:$0xf]
        %v2450 = vld [vmem:[%s618 + $0xc0] sm:$0xf8]
        %v2451 = vld [vmem:[%s618 + $0xc8] sm:$0xf]
        %v2452 = vld [vmem:[%s618 + $0xd0] sm:$0xf8]
        %v2453 = vld [vmem:[%s618 + $0xd8] sm:$0xf]
        %v2454 = vld [vmem:[%s618 + $0xe0] sm:$0xf8]
        %v2455 = vld [vmem:[%s618 + $0xe8] sm:$0xf]
        %v2456 = vld [vmem:[%s618 + $0xf0] sm:$0xf8]
        %v2457 = vld [vmem:[%s618 + $0xf8] sm:$0xf]
        %v2459 = vshrl.u32 %v2426, 16
        %v2461 = vrot.slane %v2459, 3
        %v2462 = vshll.u32 %v2426, 16
        %v2464 = vrot.slane %v2462, 4
        %v2465 = vor.u32 %v2461, %v2464
        %v2467 = vshrl.u32 %v2427, 16
        %v2469 = vrot.slane %v2467, 3
        %v2470 = vshll.u32 %v2427, 16
        %v2472 = vrot.slane %v2470, 4
        %v2473 = vor.u32 %v2469, %v2472
        %v2474 = vsel %vm722, %v2465, %v2473
        %v2476 = vshrl.u32 %v2428, 16
        %v2478 = vrot.slane %v2476, 3
        %v2479 = vshll.u32 %v2428, 16
        %v2481 = vrot.slane %v2479, 4
        %v2482 = vor.u32 %v2478, %v2481
        %v2484 = vshrl.u32 %v2429, 16
        %v2486 = vrot.slane %v2484, 3
        %v2487 = vshll.u32 %v2429, 16
        %v2489 = vrot.slane %v2487, 4
        %v2490 = vor.u32 %v2486, %v2489
        %v2491 = vsel %vm722, %v2482, %v2490
        %v2493 = vshrl.u32 %v2430, 16
        %v2495 = vrot.slane %v2493, 3
        %v2496 = vshll.u32 %v2430, 16
        %v2498 = vrot.slane %v2496, 4
        %v2499 = vor.u32 %v2495, %v2498
        %v2501 = vshrl.u32 %v2431, 16
        %v2503 = vrot.slane %v2501, 3
        %v2504 = vshll.u32 %v2431, 16
        %v2506 = vrot.slane %v2504, 4
        %v2507 = vor.u32 %v2503, %v2506
        %v2508 = vsel %vm722, %v2499, %v2507
        %v2510 = vshrl.u32 %v2432, 16
        %v2512 = vrot.slane %v2510, 3
        %v2513 = vshll.u32 %v2432, 16
        %v2515 = vrot.slane %v2513, 4
        %v2516 = vor.u32 %v2512, %v2515
        %v2518 = vshrl.u32 %v2433, 16
        %v2520 = vrot.slane %v2518, 3
        %v2521 = vshll.u32 %v2433, 16
        %v2523 = vrot.slane %v2521, 4
        %v2524 = vor.u32 %v2520, %v2523
        %v2525 = vsel %vm722, %v2516, %v2524
        %v2527 = vshrl.u32 %v2434, 16
        %v2529 = vrot.slane %v2527, 3
        %v2530 = vshll.u32 %v2434, 16
        %v2532 = vrot.slane %v2530, 4
        %v2533 = vor.u32 %v2529, %v2532
        %v2535 = vshrl.u32 %v2435, 16
        %v2537 = vrot.slane %v2535, 3
        %v2538 = vshll.u32 %v2435, 16
        %v2540 = vrot.slane %v2538, 4
        %v2541 = vor.u32 %v2537, %v2540
        %v2542 = vsel %vm722, %v2533, %v2541
        %v2544 = vshrl.u32 %v2436, 16
        %v2546 = vrot.slane %v2544, 3
        %v2547 = vshll.u32 %v2436, 16
        %v2549 = vrot.slane %v2547, 4
        %v2550 = vor.u32 %v2546, %v2549
        %v2552 = vshrl.u32 %v2437, 16
        %v2554 = vrot.slane %v2552, 3
        %v2555 = vshll.u32 %v2437, 16
        %v2557 = vrot.slane %v2555, 4
        %v2558 = vor.u32 %v2554, %v2557
        %v2559 = vsel %vm722, %v2550, %v2558
        %v2561 = vshrl.u32 %v2438, 16
        %v2563 = vrot.slane %v2561, 3
        %v2564 = vshll.u32 %v2438, 16
        %v2566 = vrot.slane %v2564, 4
        %v2567 = vor.u32 %v2563, %v2566
        %v2569 = vshrl.u32 %v2439, 16
        %v2571 = vrot.slane %v2569, 3
        %v2572 = vshll.u32 %v2439, 16
        %v2574 = vrot.slane %v2572, 4
        %v2575 = vor.u32 %v2571, %v2574
        %v2576 = vsel %vm722, %v2567, %v2575
        %v2578 = vshrl.u32 %v2440, 16
        %v2580 = vrot.slane %v2578, 3
        %v2581 = vshll.u32 %v2440, 16
        %v2583 = vrot.slane %v2581, 4
        %v2584 = vor.u32 %v2580, %v2583
        %v2586 = vshrl.u32 %v2441, 16
        %v2588 = vrot.slane %v2586, 3
        %v2589 = vshll.u32 %v2441, 16
        %v2591 = vrot.slane %v2589, 4
        %v2592 = vor.u32 %v2588, %v2591
        %v2593 = vsel %vm722, %v2584, %v2592
        %v2595 = vshrl.u32 %v2442, 16
        %v2597 = vrot.slane %v2595, 3
        %v2598 = vshll.u32 %v2442, 16
        %v2600 = vrot.slane %v2598, 4
        %v2601 = vor.u32 %v2597, %v2600
        %v2603 = vshrl.u32 %v2443, 16
        %v2605 = vrot.slane %v2603, 3
        %v2606 = vshll.u32 %v2443, 16
        %v2608 = vrot.slane %v2606, 4
        %v2609 = vor.u32 %v2605, %v2608
        %v2610 = vsel %vm722, %v2601, %v2609
        %v2612 = vshrl.u32 %v2444, 16
        %v2614 = vrot.slane %v2612, 3
        %v2615 = vshll.u32 %v2444, 16
        %v2617 = vrot.slane %v2615, 4
        %v2618 = vor.u32 %v2614, %v2617
        %v2620 = vshrl.u32 %v2445, 16
        %v2622 = vrot.slane %v2620, 3
        %v2623 = vshll.u32 %v2445, 16
        %v2625 = vrot.slane %v2623, 4
        %v2626 = vor.u32 %v2622, %v2625
        %v2627 = vsel %vm722, %v2618, %v2626
        %v2629 = vshrl.u32 %v2446, 16
        %v2631 = vrot.slane %v2629, 3
        %v2632 = vshll.u32 %v2446, 16
        %v2634 = vrot.slane %v2632, 4
        %v2635 = vor.u32 %v2631, %v2634
        %v2637 = vshrl.u32 %v2447, 16
        %v2639 = vrot.slane %v2637, 3
        %v2640 = vshll.u32 %v2447, 16
        %v2642 = vrot.slane %v2640, 4
        %v2643 = vor.u32 %v2639, %v2642
        %v2644 = vsel %vm722, %v2635, %v2643
        %v2646 = vshrl.u32 %v2448, 16
        %v2648 = vrot.slane %v2646, 3
        %v2649 = vshll.u32 %v2448, 16
        %v2651 = vrot.slane %v2649, 4
        %v2652 = vor.u32 %v2648, %v2651
        %v2654 = vshrl.u32 %v2449, 16
        %v2656 = vrot.slane %v2654, 3
        %v2657 = vshll.u32 %v2449, 16
        %v2659 = vrot.slane %v2657, 4
        %v2660 = vor.u32 %v2656, %v2659
        %v2661 = vsel %vm722, %v2652, %v2660
        %v2663 = vshrl.u32 %v2450, 16
        %v2665 = vrot.slane %v2663, 3
        %v2666 = vshll.u32 %v2450, 16
        %v2668 = vrot.slane %v2666, 4
        %v2669 = vor.u32 %v2665, %v2668
        %v2671 = vshrl.u32 %v2451, 16
        %v2673 = vrot.slane %v2671, 3
        %v2674 = vshll.u32 %v2451, 16
        %v2676 = vrot.slane %v2674, 4
        %v2677 = vor.u32 %v2673, %v2676
        %v2678 = vsel %vm722, %v2669, %v2677
        %v2680 = vshrl.u32 %v2452, 16
        %v2682 = vrot.slane %v2680, 3
        %v2683 = vshll.u32 %v2452, 16
        %v2685 = vrot.slane %v2683, 4
        %v2686 = vor.u32 %v2682, %v2685
        %v2688 = vshrl.u32 %v2453, 16
        %v2690 = vrot.slane %v2688, 3
        %v2691 = vshll.u32 %v2453, 16
        %v2693 = vrot.slane %v2691, 4
        %v2694 = vor.u32 %v2690, %v2693
        %v2695 = vsel %vm722, %v2686, %v2694
        %v2697 = vshrl.u32 %v2454, 16
        %v2699 = vrot.slane %v2697, 3
        %v2700 = vshll.u32 %v2454, 16
        %v2702 = vrot.slane %v2700, 4
        %v2703 = vor.u32 %v2699, %v2702
        %v2705 = vshrl.u32 %v2455, 16
        %v2707 = vrot.slane %v2705, 3
        %v2708 = vshll.u32 %v2455, 16
        %v2710 = vrot.slane %v2708, 4
        %v2711 = vor.u32 %v2707, %v2710
        %v2712 = vsel %vm722, %v2703, %v2711
        %v2714 = vshrl.u32 %v2456, 16
        %v2716 = vrot.slane %v2714, 3
        %v2717 = vshll.u32 %v2456, 16
        %v2719 = vrot.slane %v2717, 4
        %v2720 = vor.u32 %v2716, %v2719
        %v2722 = vshrl.u32 %v2457, 16
        %v2724 = vrot.slane %v2722, 3
        %v2725 = vshll.u32 %v2457, 16
        %v2727 = vrot.slane %v2725, 4
        %v2728 = vor.u32 %v2724, %v2727
        %v2729 = vsel %vm722, %v2720, %v2728
        %v2746 = vld [vmem:[#allocation3] sm:$0xff]
        %v2747 = vld [vmem:[#allocation3 + $0x8] sm:$0xff]
        %v2748 = vld [vmem:[#allocation3 + $0x10] sm:$0xff]
        %v2749 = vld [vmem:[#allocation3 + $0x18] sm:$0xff]
        %v2750 = vld [vmem:[#allocation3 + $0x20] sm:$0xff]
        %v2751 = vld [vmem:[#allocation3 + $0x28] sm:$0xff]
        %v2752 = vld [vmem:[#allocation3 + $0x30] sm:$0xff]
        %v2753 = vld [vmem:[#allocation3 + $0x38] sm:$0xff]
        %v2754 = vld [vmem:[#allocation3 + $0x40] sm:$0xff]
        %v2755 = vld [vmem:[#allocation3 + $0x48] sm:$0xff]
        %v2756 = vld [vmem:[#allocation3 + $0x50] sm:$0xff]
        %v2757 = vld [vmem:[#allocation3 + $0x58] sm:$0xff]
        %v2758 = vld [vmem:[#allocation3 + $0x60] sm:$0xff]
        %v2759 = vld [vmem:[#allocation3 + $0x68] sm:$0xff]
        %v2760 = vld [vmem:[#allocation3 + $0x70] sm:$0xff]
        %v2761 = vld [vmem:[#allocation3 + $0x78] sm:$0xff]
        %v2762 = vld [vmem:[#allocation3 + $0x80] sm:$0xff]
        %v2763 = vld [vmem:[#allocation3 + $0x88] sm:$0xff]
        %v2764 = vld [vmem:[#allocation3 + $0x90] sm:$0xff]
        %v2765 = vld [vmem:[#allocation3 + $0x98] sm:$0xff]
        %v2766 = vld [vmem:[#allocation3 + $0xa0] sm:$0xff]
        %v2767 = vld [vmem:[#allocation3 + $0xa8] sm:$0xff]
        %v2768 = vld [vmem:[#allocation3 + $0xb0] sm:$0xff]
        %v2769 = vld [vmem:[#allocation3 + $0xb8] sm:$0xff]
        %v2770 = vld [vmem:[#allocation3 + $0xc0] sm:$0xff]
        %v2771 = vld [vmem:[#allocation3 + $0xc8] sm:$0xff]
        %v2772 = vld [vmem:[#allocation3 + $0xd0] sm:$0xff]
        %v2773 = vld [vmem:[#allocation3 + $0xd8] sm:$0xff]
        %v2774 = vld [vmem:[#allocation3 + $0xe0] sm:$0xff]
        %v2775 = vld [vmem:[#allocation3 + $0xe8] sm:$0xff]
        %v2776 = vld [vmem:[#allocation3 + $0xf0] sm:$0xff]
        %v2777 = vld [vmem:[#allocation3 + $0xf8] sm:$0xff]
        %s2778 = scalar_lea.vmem [#allocation10], 192
        %v2779 = vld [vmem:[%s2778] sm:$0xf]
        %v2780 = vld [vmem:[%s2778 + $0x4] sm:$0xf]
        %v2781 = vld [vmem:[%s2778 + $0x8] sm:$0xf]
        %v2782 = vld [vmem:[%s2778 + $0xc] sm:$0xf]
        %v2783 = vld [vmem:[%s2778 + $0x10] sm:$0xf]
        %v2784 = vld [vmem:[%s2778 + $0x14] sm:$0xf]
        %v2785 = vld [vmem:[%s2778 + $0x18] sm:$0xf]
        %v2786 = vld [vmem:[%s2778 + $0x1c] sm:$0xf]
        %v2787 = vld [vmem:[%s2778 + $0x20] sm:$0xf]
        %v2788 = vld [vmem:[%s2778 + $0x24] sm:$0xf]
        %v2789 = vld [vmem:[%s2778 + $0x28] sm:$0xf]
        %v2790 = vld [vmem:[%s2778 + $0x2c] sm:$0xf]
        %v2791 = vld [vmem:[%s2778 + $0x30] sm:$0xf]
        %v2792 = vld [vmem:[%s2778 + $0x34] sm:$0xf]
        %v2793 = vld [vmem:[%s2778 + $0x38] sm:$0xf]
        %v2794 = vld [vmem:[%s2778 + $0x3c] sm:$0xf]
        %v2811 = vunpack.c.l.b16 %v2779
        %v2812 = vunpack.c.l.b16 %v2780
        %v2813 = vunpack.c.l.b16 %v2781
        %v2814 = vunpack.c.l.b16 %v2782
        %v2815 = vunpack.c.l.b16 %v2783
        %v2816 = vunpack.c.l.b16 %v2784
        %v2817 = vunpack.c.l.b16 %v2785
        %v2818 = vunpack.c.l.b16 %v2786
        %v2819 = vunpack.c.l.b16 %v2787
        %v2820 = vunpack.c.l.b16 %v2788
        %v2821 = vunpack.c.l.b16 %v2789
        %v2822 = vunpack.c.l.b16 %v2790
        %v2823 = vunpack.c.l.b16 %v2791
        %v2824 = vunpack.c.l.b16 %v2792
        %v2825 = vunpack.c.l.b16 %v2793
        %v2826 = vunpack.c.l.b16 %v2794
        %v2827 = vpack.c.b16 %v2812, %v2811
        %v2828 = vpack.c.b16 %v2814, %v2813
        %v2829 = vpack.c.b16 %v2816, %v2815
        %v2830 = vpack.c.b16 %v2818, %v2817
        %v2831 = vpack.c.b16 %v2820, %v2819
        %v2832 = vpack.c.b16 %v2822, %v2821
        %v2833 = vpack.c.b16 %v2824, %v2823
        %v2834 = vpack.c.b16 %v2826, %v2825
        %2843 = vmatprep.subr.bf16.mxu0 0
        %2844 = vmatpush1.bf16.msra.mxu0 %v2827
        %2845 = vmatprep.subr.bf16.mxu0 0
        %2846 = vmatpush1.bf16.msra.mxu0 %v2828
        %2847 = vmatprep.subr.bf16.mxu0 0
        %2848 = vmatpush1.bf16.msra.mxu0 %v2829
        %2849 = vmatprep.subr.bf16.mxu0 0
        %2850 = vmatpush1.bf16.msra.mxu0 %v2830
        %2851 = vmatprep.subr.bf16.mxu0 0
        %2852 = vmatpush1.bf16.msra.mxu0 %v2831
        %2853 = vmatprep.subr.bf16.mxu0 0
        %2854 = vmatpush1.bf16.msra.mxu0 %v2832
        %2855 = vmatprep.subr.bf16.mxu0 0
        %2856 = vmatpush1.bf16.msra.mxu0 %v2833
        %2857 = vmatprep.subr.bf16.mxu0 0
        %2858 = vmatpush1.bf16.msra.mxu0 %v2834
        %2859 = vmatprep.subr.bf16.mxu0 0
        %2860 = vmatpush1.bf16.msra.mxu0 0
        %2861 = vmatprep.subr.bf16.mxu0 0
        %2862 = vmatpush1.bf16.msra.mxu0 0
        %2863 = vmatprep.subr.bf16.mxu0 0
        %2864 = vmatpush1.bf16.msra.mxu0 0
        %2865 = vmatprep.subr.bf16.mxu0 0
        %2866 = vmatpush1.bf16.msra.mxu0 0
        %2867 = vmatprep.subr.bf16.mxu0 0
        %2868 = vmatpush1.bf16.msra.mxu0 0
        %2869 = vmatprep.subr.bf16.mxu0 0
        %2870 = vmatpush1.bf16.msra.mxu0 0
        %2871 = vmatprep.subr.bf16.mxu0 0
        %2872 = vmatpush1.bf16.msra.mxu0 0
        %2873 = vmatprep.subr.bf16.mxu0 0
        %2874 = vmatpush1.bf16.msra.mxu0 0
        %2875 = vmatprep.mubr.bf16.mxu0 0
        %2876 = vmatmul.mubr.bf16.gmra.mrb[0].mxu0 %v2474
        %v2877 = vpop.f32.mrb[0].mxu0
        %v2878 = vadd.f32 0.0, %v2877
        %v2879 = vpop.f32.mrb[0].mxu0
        %v2880 = vpop.f32.mrb[0].mxu0
        %v2881 = vadd.f32 0.0, %v2880
        %v2882 = vpop.f32.mrb[0].mxu0
        %2883 = vmatprep.mubr.bf16.mxu0 0
        %2884 = vmatmul.mubr.bf16.gmra.mrb[0].mxu0 %v2491
        %v2885 = vpop.f32.mrb[0].mxu0
        %v2886 = vadd.f32 0.0, %v2885
        %v2887 = vpop.f32.mrb[0].mxu0
        %v2888 = vpop.f32.mrb[0].mxu0
        %v2889 = vadd.f32 0.0, %v2888
        %v2890 = vpop.f32.mrb[0].mxu0
        %2891 = vmatprep.mubr.bf16.mxu0 0
        %2892 = vmatmul.mubr.bf16.gmra.mrb[0].mxu0 %v2508
        %v2893 = vpop.f32.mrb[0].mxu0
        %v2894 = vadd.f32 0.0, %v2893
        %v2895 = vpop.f32.mrb[0].mxu0
        %v2896 = vpop.f32.mrb[0].mxu0
        %v2897 = vadd.f32 0.0, %v2896
        %v2898 = vpop.f32.mrb[0].mxu0
        %2899 = vmatprep.mubr.bf16.mxu0 0
        %2900 = vmatmul.mubr.bf16.gmra.mrb[0].mxu0 %v2525
        %v2901 = vpop.f32.mrb[0].mxu0
        %v2902 = vadd.f32 0.0, %v2901
        %v2903 = vpop.f32.mrb[0].mxu0
        %v2904 = vpop.f32.mrb[0].mxu0
        %v2905 = vadd.f32 0.0, %v2904
        %v2906 = vpop.f32.mrb[0].mxu0
        %2907 = vmatprep.mubr.bf16.mxu0 0
        %2908 = vmatmul.mubr.bf16.gmra.mrb[0].mxu0 %v2542
        %v2909 = vpop.f32.mrb[0].mxu0
        %v2910 = vadd.f32 0.0, %v2909
        %v2911 = vpop.f32.mrb[0].mxu0
        %v2912 = vpop.f32.mrb[0].mxu0
        %v2913 = vadd.f32 0.0, %v2912
        %v2914 = vpop.f32.mrb[0].mxu0
        %2915 = vmatprep.mubr.bf16.mxu0 0
        %2916 = vmatmul.mubr.bf16.gmra.mrb[0].mxu0 %v2559
        %v2917 = vpop.f32.mrb[0].mxu0
        %v2918 = vadd.f32 0.0, %v2917
        %v2919 = vpop.f32.mrb[0].mxu0
        %v2920 = vpop.f32.mrb[0].mxu0
        %v2921 = vadd.f32 0.0, %v2920
        %v2922 = vpop.f32.mrb[0].mxu0
        %2923 = vmatprep.mubr.bf16.mxu0 0
        %2924 = vmatmul.mubr.bf16.gmra.mrb[0].mxu0 %v2576
        %v2925 = vpop.f32.mrb[0].mxu0
        %v2926 = vadd.f32 0.0, %v2925
        %v2927 = vpop.f32.mrb[0].mxu0
        %v2928 = vpop.f32.mrb[0].mxu0
        %v2929 = vadd.f32 0.0, %v2928
        %v2930 = vpop.f32.mrb[0].mxu0
        %2931 = vmatprep.mubr.bf16.mxu0 0
        %2932 = vmatmul.mubr.bf16.gmra.mrb[0].mxu0 %v2593
        %v2933 = vpop.f32.mrb[0].mxu0
        %v2934 = vadd.f32 0.0, %v2933
        %v2935 = vpop.f32.mrb[0].mxu0
        %v2936 = vpop.f32.mrb[0].mxu0
        %v2937 = vadd.f32 0.0, %v2936
        %v2938 = vpop.f32.mrb[0].mxu0
        %2939 = vmatprep.mubr.bf16.mxu0 0
        %2940 = vmatmul.mubr.bf16.gmra.mrb[0].mxu0 %v2610
        %v2941 = vpop.f32.mrb[0].mxu0
        %v2942 = vadd.f32 0.0, %v2941
        %v2943 = vpop.f32.mrb[0].mxu0
        %v2944 = vpop.f32.mrb[0].mxu0
        %v2945 = vadd.f32 0.0, %v2944
        %v2946 = vpop.f32.mrb[0].mxu0
        %2947 = vmatprep.mubr.bf16.mxu0 0
        %2948 = vmatmul.mubr.bf16.gmra.mrb[0].mxu0 %v2627
        %v2949 = vpop.f32.mrb[0].mxu0
        %v2950 = vadd.f32 0.0, %v2949
        %v2951 = vpop.f32.mrb[0].mxu0
        %v2952 = vpop.f32.mrb[0].mxu0
        %v2953 = vadd.f32 0.0, %v2952
        %v2954 = vpop.f32.mrb[0].mxu0
        %2955 = vmatprep.mubr.bf16.mxu0 0
        %2956 = vmatmul.mubr.bf16.gmra.mrb[0].mxu0 %v2644
        %v2957 = vpop.f32.mrb[0].mxu0
        %v2958 = vadd.f32 0.0, %v2957
        %v2959 = vpop.f32.mrb[0].mxu0
        %v2960 = vpop.f32.mrb[0].mxu0
        %v2961 = vadd.f32 0.0, %v2960
        %v2962 = vpop.f32.mrb[0].mxu0
        %2963 = vmatprep.mubr.bf16.mxu0 0
        %2964 = vmatmul.mubr.bf16.gmra.mrb[0].mxu0 %v2661
        %v2965 = vpop.f32.mrb[0].mxu0
        %v2966 = vadd.f32 0.0, %v2965
        %v2967 = vpop.f32.mrb[0].mxu0
        %v2968 = vpop.f32.mrb[0].mxu0
        %v2969 = vadd.f32 0.0, %v2968
        %v2970 = vpop.f32.mrb[0].mxu0
        %2971 = vmatprep.mubr.bf16.mxu0 0
        %2972 = vmatmul.mubr.bf16.gmra.mrb[0].mxu0 %v2678
        %v2973 = vpop.f32.mrb[0].mxu0
        %v2974 = vadd.f32 0.0, %v2973
        %v2975 = vpop.f32.mrb[0].mxu0
        %v2976 = vpop.f32.mrb[0].mxu0
        %v2977 = vadd.f32 0.0, %v2976
        %v2978 = vpop.f32.mrb[0].mxu0
        %2979 = vmatprep.mubr.bf16.mxu0 0
        %2980 = vmatmul.mubr.bf16.gmra.mrb[0].mxu0 %v2695
        %v2981 = vpop.f32.mrb[0].mxu0
        %v2982 = vadd.f32 0.0, %v2981
        %v2983 = vpop.f32.mrb[0].mxu0
        %v2984 = vpop.f32.mrb[0].mxu0
        %v2985 = vadd.f32 0.0, %v2984
        %v2986 = vpop.f32.mrb[0].mxu0
        %2987 = vmatprep.mubr.bf16.mxu0 0
        %2988 = vmatmul.mubr.bf16.gmra.mrb[0].mxu0 %v2712
        %v2989 = vpop.f32.mrb[0].mxu0
        %v2990 = vadd.f32 0.0, %v2989
        %v2991 = vpop.f32.mrb[0].mxu0
        %v2992 = vpop.f32.mrb[0].mxu0
        %v2993 = vadd.f32 0.0, %v2992
        %v2994 = vpop.f32.mrb[0].mxu0
        %2995 = vmatprep.mubr.bf16.mxu0 0
        %2996 = vmatmul.mubr.bf16.gmra.mrb[0].mxu0 %v2729
        %v2997 = vpop.f32.mrb[0].mxu0
        %v2998 = vadd.f32 0.0, %v2997
        %v2999 = vpop.f32.mrb[0].mxu0
        %v3000 = vpop.f32.mrb[0].mxu0
        %v3001 = vadd.f32 0.0, %v3000
        %v3002 = vpop.f32.mrb[0].mxu0
        %3003 = vdwg.mxu0
        %v3004 = vadd.f32 %v2746, %v2878
        %v3005 = vadd.f32 %v2747, %v2881
        %v3006 = vadd.f32 %v2748, %v2886
        %v3007 = vadd.f32 %v2749, %v2889
        %v3008 = vadd.f32 %v2750, %v2894
        %v3009 = vadd.f32 %v2751, %v2897
        %v3010 = vadd.f32 %v2752, %v2902
        %v3011 = vadd.f32 %v2753, %v2905
        %v3012 = vadd.f32 %v2754, %v2910
        %v3013 = vadd.f32 %v2755, %v2913
        %v3014 = vadd.f32 %v2756, %v2918
        %v3015 = vadd.f32 %v2757, %v2921
        %v3016 = vadd.f32 %v2758, %v2926
        %v3017 = vadd.f32 %v2759, %v2929
        %v3018 = vadd.f32 %v2760, %v2934
        %v3019 = vadd.f32 %v2761, %v2937
        %v3020 = vadd.f32 %v2762, %v2942
        %v3021 = vadd.f32 %v2763, %v2945
        %v3022 = vadd.f32 %v2764, %v2950
        %v3023 = vadd.f32 %v2765, %v2953
        %v3024 = vadd.f32 %v2766, %v2958
        %v3025 = vadd.f32 %v2767, %v2961
        %v3026 = vadd.f32 %v2768, %v2966
        %v3027 = vadd.f32 %v2769, %v2969
        %v3028 = vadd.f32 %v2770, %v2974
        %v3029 = vadd.f32 %v2771, %v2977
        %v3030 = vadd.f32 %v2772, %v2982
        %v3031 = vadd.f32 %v2773, %v2985
        %v3032 = vadd.f32 %v2774, %v2990
        %v3033 = vadd.f32 %v2775, %v2993
        %v3034 = vadd.f32 %v2776, %v2998
        %v3035 = vadd.f32 %v2777, %v3001
        %3036 = vst [vmem:[#allocation3] sm:$0xff] %v3004
        %3037 = vst [vmem:[#allocation3 + $0x8] sm:$0xff] %v3005
        %3038 = vst [vmem:[#allocation3 + $0x10] sm:$0xff] %v3006
        %3039 = vst [vmem:[#allocation3 + $0x18] sm:$0xff] %v3007
        %3040 = vst [vmem:[#allocation3 + $0x20] sm:$0xff] %v3008
        %3041 = vst [vmem:[#allocation3 + $0x28] sm:$0xff] %v3009
        %3042 = vst [vmem:[#allocation3 + $0x30] sm:$0xff] %v3010
        %3043 = vst [vmem:[#allocation3 + $0x38] sm:$0xff] %v3011
        %3044 = vst [vmem:[#allocation3 + $0x40] sm:$0xff] %v3012
        %3045 = vst [vmem:[#allocation3 + $0x48] sm:$0xff] %v3013
        %3046 = vst [vmem:[#allocation3 + $0x50] sm:$0xff] %v3014
        %3047 = vst [vmem:[#allocation3 + $0x58] sm:$0xff] %v3015
        %3048 = vst [vmem:[#allocation3 + $0x60] sm:$0xff] %v3016
        %3049 = vst [vmem:[#allocation3 + $0x68] sm:$0xff] %v3017
        %3050 = vst [vmem:[#allocation3 + $0x70] sm:$0xff] %v3018
        %3051 = vst [vmem:[#allocation3 + $0x78] sm:$0xff] %v3019
        %3052 = vst [vmem:[#allocation3 + $0x80] sm:$0xff] %v3020
        %3053 = vst [vmem:[#allocation3 + $0x88] sm:$0xff] %v3021
        %3054 = vst [vmem:[#allocation3 + $0x90] sm:$0xff] %v3022
        %3055 = vst [vmem:[#allocation3 + $0x98] sm:$0xff] %v3023
        %3056 = vst [vmem:[#allocation3 + $0xa0] sm:$0xff] %v3024
        %3057 = vst [vmem:[#allocation3 + $0xa8] sm:$0xff] %v3025
        %3058 = vst [vmem:[#allocation3 + $0xb0] sm:$0xff] %v3026
        %3059 = vst [vmem:[#allocation3 + $0xb8] sm:$0xff] %v3027
        %3060 = vst [vmem:[#allocation3 + $0xc0] sm:$0xff] %v3028
        %3061 = vst [vmem:[#allocation3 + $0xc8] sm:$0xff] %v3029
        %3062 = vst [vmem:[#allocation3 + $0xd0] sm:$0xff] %v3030
        %3063 = vst [vmem:[#allocation3 + $0xd8] sm:$0xff] %v3031
        %3064 = vst [vmem:[#allocation3 + $0xe0] sm:$0xff] %v3032
        %3065 = vst [vmem:[#allocation3 + $0xe8] sm:$0xff] %v3033
        %3066 = vst [vmem:[#allocation3 + $0xf0] sm:$0xff] %v3034
        %3067 = vst [vmem:[#allocation3 + $0xf8] sm:$0xff] %v3035
        %v3068 = vld [vmem:[%s618] sm:$0xf0]
        %v3069 = vld [vmem:[%s618 + $0x8] sm:$0xf]
        %v3070 = vld [vmem:[%s618 + $0x10] sm:$0xf0]
        %v3071 = vld [vmem:[%s618 + $0x18] sm:$0xf]
        %v3072 = vld [vmem:[%s618 + $0x20] sm:$0xf0]
        %v3073 = vld [vmem:[%s618 + $0x28] sm:$0xf]
        %v3074 = vld [vmem:[%s618 + $0x30] sm:$0xf0]
        %v3075 = vld [vmem:[%s618 + $0x38] sm:$0xf]
        %v3076 = vld [vmem:[%s618 + $0x40] sm:$0xf0]
        %v3077 = vld [vmem:[%s618 + $0x48] sm:$0xf]
        %v3078 = vld [vmem:[%s618 + $0x50] sm:$0xf0]
        %v3079 = vld [vmem:[%s618 + $0x58] sm:$0xf]
        %v3080 = vld [vmem:[%s618 + $0x60] sm:$0xf0]
        %v3081 = vld [vmem:[%s618 + $0x68] sm:$0xf]
        %v3082 = vld [vmem:[%s618 + $0x70] sm:$0xf0]
        %v3083 = vld [vmem:[%s618 + $0x78] sm:$0xf]
        %v3084 = vld [vmem:[%s618 + $0x80] sm:$0xf0]
        %v3085 = vld [vmem:[%s618 + $0x88] sm:$0xf]
        %v3086 = vld [vmem:[%s618 + $0x90] sm:$0xf0]
        %v3087 = vld [vmem:[%s618 + $0x98] sm:$0xf]
        %v3088 = vld [vmem:[%s618 + $0xa0] sm:$0xf0]
        %v3089 = vld [vmem:[%s618 + $0xa8] sm:$0xf]
        %v3090 = vld [vmem:[%s618 + $0xb0] sm:$0xf0]
        %v3091 = vld [vmem:[%s618 + $0xb8] sm:$0xf]
        %v3092 = vld [vmem:[%s618 + $0xc0] sm:$0xf0]
        %v3093 = vld [vmem:[%s618 + $0xc8] sm:$0xf]
        %v3094 = vld [vmem:[%s618 + $0xd0] sm:$0xf0]
        %v3095 = vld [vmem:[%s618 + $0xd8] sm:$0xf]
        %v3096 = vld [vmem:[%s618 + $0xe0] sm:$0xf0]
        %v3097 = vld [vmem:[%s618 + $0xe8] sm:$0xf]
        %v3098 = vld [vmem:[%s618 + $0xf0] sm:$0xf0]
        %v3099 = vld [vmem:[%s618 + $0xf8] sm:$0xf]
        %v3132 = vrot.slane %v3068, 4
        %v3133 = vrot.slane %v3069, 4
        %v3134 = vsel %vm1396, %v3132, %v3133
        %v3135 = vrot.slane %v3070, 4
        %v3136 = vrot.slane %v3071, 4
        %v3137 = vsel %vm1396, %v3135, %v3136
        %v3138 = vrot.slane %v3072, 4
        %v3139 = vrot.slane %v3073, 4
        %v3140 = vsel %vm1396, %v3138, %v3139
        %v3141 = vrot.slane %v3074, 4
        %v3142 = vrot.slane %v3075, 4
        %v3143 = vsel %vm1396, %v3141, %v3142
        %v3144 = vrot.slane %v3076, 4
        %v3145 = vrot.slane %v3077, 4
        %v3146 = vsel %vm1396, %v3144, %v3145
        %v3147 = vrot.slane %v3078, 4
        %v3148 = vrot.slane %v3079, 4
        %v3149 = vsel %vm1396, %v3147, %v3148
        %v3150 = vrot.slane %v3080, 4
        %v3151 = vrot.slane %v3081, 4
        %v3152 = vsel %vm1396, %v3150, %v3151
        %v3153 = vrot.slane %v3082, 4
        %v3154 = vrot.slane %v3083, 4
        %v3155 = vsel %vm1396, %v3153, %v3154
        %v3156 = vrot.slane %v3084, 4
        %v3157 = vrot.slane %v3085, 4
        %v3158 = vsel %vm1396, %v3156, %v3157
        %v3159 = vrot.slane %v3086, 4
        %v3160 = vrot.slane %v3087, 4
        %v3161 = vsel %vm1396, %v3159, %v3160
        %v3162 = vrot.slane %v3088, 4
        %v3163 = vrot.slane %v3089, 4
        %v3164 = vsel %vm1396, %v3162, %v3163
        %v3165 = vrot.slane %v3090, 4
        %v3166 = vrot.slane %v3091, 4
        %v3167 = vsel %vm1396, %v3165, %v3166
        %v3168 = vrot.slane %v3092, 4
        %v3169 = vrot.slane %v3093, 4
        %v3170 = vsel %vm1396, %v3168, %v3169
        %v3171 = vrot.slane %v3094, 4
        %v3172 = vrot.slane %v3095, 4
        %v3173 = vsel %vm1396, %v3171, %v3172
        %v3174 = vrot.slane %v3096, 4
        %v3175 = vrot.slane %v3097, 4
        %v3176 = vsel %vm1396, %v3174, %v3175
        %v3177 = vrot.slane %v3098, 4
        %v3178 = vrot.slane %v3099, 4
        %v3179 = vsel %vm1396, %v3177, %v3178
        %v3196 = vld [vmem:[#allocation3] sm:$0xff]
        %v3197 = vld [vmem:[#allocation3 + $0x8] sm:$0xff]
        %v3198 = vld [vmem:[#allocation3 + $0x10] sm:$0xff]
        %v3199 = vld [vmem:[#allocation3 + $0x18] sm:$0xff]
        %v3200 = vld [vmem:[#allocation3 + $0x20] sm:$0xff]
        %v3201 = vld [vmem:[#allocation3 + $0x28] sm:$0xff]
        %v3202 = vld [vmem:[#allocation3 + $0x30] sm:$0xff]
        %v3203 = vld [vmem:[#allocation3 + $0x38] sm:$0xff]
        %v3204 = vld [vmem:[#allocation3 + $0x40] sm:$0xff]
        %v3205 = vld [vmem:[#allocation3 + $0x48] sm:$0xff]
        %v3206 = vld [vmem:[#allocation3 + $0x50] sm:$0xff]
        %v3207 = vld [vmem:[#allocation3 + $0x58] sm:$0xff]
        %v3208 = vld [vmem:[#allocation3 + $0x60] sm:$0xff]
        %v3209 = vld [vmem:[#allocation3 + $0x68] sm:$0xff]
        %v3210 = vld [vmem:[#allocation3 + $0x70] sm:$0xff]
        %v3211 = vld [vmem:[#allocation3 + $0x78] sm:$0xff]
        %v3212 = vld [vmem:[#allocation3 + $0x80] sm:$0xff]
        %v3213 = vld [vmem:[#allocation3 + $0x88] sm:$0xff]
        %v3214 = vld [vmem:[#allocation3 + $0x90] sm:$0xff]
        %v3215 = vld [vmem:[#allocation3 + $0x98] sm:$0xff]
        %v3216 = vld [vmem:[#allocation3 + $0xa0] sm:$0xff]
        %v3217 = vld [vmem:[#allocation3 + $0xa8] sm:$0xff]
        %v3218 = vld [vmem:[#allocation3 + $0xb0] sm:$0xff]
        %v3219 = vld [vmem:[#allocation3 + $0xb8] sm:$0xff]
        %v3220 = vld [vmem:[#allocation3 + $0xc0] sm:$0xff]
        %v3221 = vld [vmem:[#allocation3 + $0xc8] sm:$0xff]
        %v3222 = vld [vmem:[#allocation3 + $0xd0] sm:$0xff]
        %v3223 = vld [vmem:[#allocation3 + $0xd8] sm:$0xff]
        %v3224 = vld [vmem:[#allocation3 + $0xe0] sm:$0xff]
        %v3225 = vld [vmem:[#allocation3 + $0xe8] sm:$0xff]
        %v3226 = vld [vmem:[#allocation3 + $0xf0] sm:$0xff]
        %v3227 = vld [vmem:[#allocation3 + $0xf8] sm:$0xff]
        %s3228 = scalar_lea.vmem [#allocation10], 256
        %v3229 = vld [vmem:[%s3228] sm:$0xf]
        %v3230 = vld [vmem:[%s3228 + $0x4] sm:$0xf]
        %v3231 = vld [vmem:[%s3228 + $0x8] sm:$0xf]
        %v3232 = vld [vmem:[%s3228 + $0xc] sm:$0xf]
        %v3233 = vld [vmem:[%s3228 + $0x10] sm:$0xf]
        %v3234 = vld [vmem:[%s3228 + $0x14] sm:$0xf]
        %v3235 = vld [vmem:[%s3228 + $0x18] sm:$0xf]
        %v3236 = vld [vmem:[%s3228 + $0x1c] sm:$0xf]
        %v3237 = vld [vmem:[%s3228 + $0x20] sm:$0xf]
        %v3238 = vld [vmem:[%s3228 + $0x24] sm:$0xf]
        %v3239 = vld [vmem:[%s3228 + $0x28] sm:$0xf]
        %v3240 = vld [vmem:[%s3228 + $0x2c] sm:$0xf]
        %v3241 = vld [vmem:[%s3228 + $0x30] sm:$0xf]
        %v3242 = vld [vmem:[%s3228 + $0x34] sm:$0xf]
        %v3243 = vld [vmem:[%s3228 + $0x38] sm:$0xf]
        %v3244 = vld [vmem:[%s3228 + $0x3c] sm:$0xf]
        %v3261 = vunpack.c.l.b16 %v3229
        %v3262 = vunpack.c.l.b16 %v3230
        %v3263 = vunpack.c.l.b16 %v3231
        %v3264 = vunpack.c.l.b16 %v3232
        %v3265 = vunpack.c.l.b16 %v3233
        %v3266 = vunpack.c.l.b16 %v3234
        %v3267 = vunpack.c.l.b16 %v3235
        %v3268 = vunpack.c.l.b16 %v3236
        %v3269 = vunpack.c.l.b16 %v3237
        %v3270 = vunpack.c.l.b16 %v3238
        %v3271 = vunpack.c.l.b16 %v3239
        %v3272 = vunpack.c.l.b16 %v3240
        %v3273 = vunpack.c.l.b16 %v3241
        %v3274 = vunpack.c.l.b16 %v3242
        %v3275 = vunpack.c.l.b16 %v3243
        %v3276 = vunpack.c.l.b16 %v3244
        %v3277 = vpack.c.b16 %v3262, %v3261
        %v3278 = vpack.c.b16 %v3264, %v3263
        %v3279 = vpack.c.b16 %v3266, %v3265
        %v3280 = vpack.c.b16 %v3268, %v3267
        %v3281 = vpack.c.b16 %v3270, %v3269
        %v3282 = vpack.c.b16 %v3272, %v3271
        %v3283 = vpack.c.b16 %v3274, %v3273
        %v3284 = vpack.c.b16 %v3276, %v3275
        %3293 = vmatprep.subr.bf16.mxu0 0
        %3294 = vmatpush1.bf16.msra.mxu0 %v3277
        %3295 = vmatprep.subr.bf16.mxu0 0
        %3296 = vmatpush1.bf16.msra.mxu0 %v3278
        %3297 = vmatprep.subr.bf16.mxu0 0
        %3298 = vmatpush1.bf16.msra.mxu0 %v3279
        %3299 = vmatprep.subr.bf16.mxu0 0
        %3300 = vmatpush1.bf16.msra.mxu0 %v3280
        %3301 = vmatprep.subr.bf16.mxu0 0
        %3302 = vmatpush1.bf16.msra.mxu0 %v3281
        %3303 = vmatprep.subr.bf16.mxu0 0
        %3304 = vmatpush1.bf16.msra.mxu0 %v3282
        %3305 = vmatprep.subr.bf16.mxu0 0
        %3306 = vmatpush1.bf16.msra.mxu0 %v3283
        %3307 = vmatprep.subr.bf16.mxu0 0
        %3308 = vmatpush1.bf16.msra.mxu0 %v3284
        %3309 = vmatprep.subr.bf16.mxu0 0
        %3310 = vmatpush1.bf16.msra.mxu0 0
        %3311 = vmatprep.subr.bf16.mxu0 0
        %3312 = vmatpush1.bf16.msra.mxu0 0
        %3313 = vmatprep.subr.bf16.mxu0 0
        %3314 = vmatpush1.bf16.msra.mxu0 0
        %3315 = vmatprep.subr.bf16.mxu0 0
        %3316 = vmatpush1.bf16.msra.mxu0 0
        %3317 = vmatprep.subr.bf16.mxu0 0
        %3318 = vmatpush1.bf16.msra.mxu0 0
        %3319 = vmatprep.subr.bf16.mxu0 0
        %3320 = vmatpush1.bf16.msra.mxu0 0
        %3321 = vmatprep.subr.bf16.mxu0 0
        %3322 = vmatpush1.bf16.msra.mxu0 0
        %3323 = vmatprep.subr.bf16.mxu0 0
        %3324 = vmatpush1.bf16.msra.mxu0 0
        %3325 = vmatprep.mubr.bf16.mxu0 0
        %3326 = vmatmul.mubr.bf16.gmra.mrb[0].mxu0 %v3134
        %v3327 = vpop.f32.mrb[0].mxu0
        %v3328 = vadd.f32 0.0, %v3327
        %v3329 = vpop.f32.mrb[0].mxu0
        %v3330 = vpop.f32.mrb[0].mxu0
        %v3331 = vadd.f32 0.0, %v3330
        %v3332 = vpop.f32.mrb[0].mxu0
        %3333 = vmatprep.mubr.bf16.mxu0 0
        %3334 = vmatmul.mubr.bf16.gmra.mrb[0].mxu0 %v3137
        %v3335 = vpop.f32.mrb[0].mxu0
        %v3336 = vadd.f32 0.0, %v3335
        %v3337 = vpop.f32.mrb[0].mxu0
        %v3338 = vpop.f32.mrb[0].mxu0
        %v3339 = vadd.f32 0.0, %v3338
        %v3340 = vpop.f32.mrb[0].mxu0
        %3341 = vmatprep.mubr.bf16.mxu0 0
        %3342 = vmatmul.mubr.bf16.gmra.mrb[0].mxu0 %v3140
        %v3343 = vpop.f32.mrb[0].mxu0
        %v3344 = vadd.f32 0.0, %v3343
        %v3345 = vpop.f32.mrb[0].mxu0
        %v3346 = vpop.f32.mrb[0].mxu0
        %v3347 = vadd.f32 0.0, %v3346
        %v3348 = vpop.f32.mrb[0].mxu0
        %3349 = vmatprep.mubr.bf16.mxu0 0
        %3350 = vmatmul.mubr.bf16.gmra.mrb[0].mxu0 %v3143
        %v3351 = vpop.f32.mrb[0].mxu0
        %v3352 = vadd.f32 0.0, %v3351
        %v3353 = vpop.f32.mrb[0].mxu0
        %v3354 = vpop.f32.mrb[0].mxu0
        %v3355 = vadd.f32 0.0, %v3354
        %v3356 = vpop.f32.mrb[0].mxu0
        %3357 = vmatprep.mubr.bf16.mxu0 0
        %3358 = vmatmul.mubr.bf16.gmra.mrb[0].mxu0 %v3146
        %v3359 = vpop.f32.mrb[0].mxu0
        %v3360 = vadd.f32 0.0, %v3359
        %v3361 = vpop.f32.mrb[0].mxu0
        %v3362 = vpop.f32.mrb[0].mxu0
        %v3363 = vadd.f32 0.0, %v3362
        %v3364 = vpop.f32.mrb[0].mxu0
        %3365 = vmatprep.mubr.bf16.mxu0 0
        %3366 = vmatmul.mubr.bf16.gmra.mrb[0].mxu0 %v3149
        %v3367 = vpop.f32.mrb[0].mxu0
        %v3368 = vadd.f32 0.0, %v3367
        %v3369 = vpop.f32.mrb[0].mxu0
        %v3370 = vpop.f32.mrb[0].mxu0
        %v3371 = vadd.f32 0.0, %v3370
        %v3372 = vpop.f32.mrb[0].mxu0
        %3373 = vmatprep.mubr.bf16.mxu0 0
        %3374 = vmatmul.mubr.bf16.gmra.mrb[0].mxu0 %v3152
        %v3375 = vpop.f32.mrb[0].mxu0
        %v3376 = vadd.f32 0.0, %v3375
        %v3377 = vpop.f32.mrb[0].mxu0
        %v3378 = vpop.f32.mrb[0].mxu0
        %v3379 = vadd.f32 0.0, %v3378
        %v3380 = vpop.f32.mrb[0].mxu0
        %3381 = vmatprep.mubr.bf16.mxu0 0
        %3382 = vmatmul.mubr.bf16.gmra.mrb[0].mxu0 %v3155
        %v3383 = vpop.f32.mrb[0].mxu0
        %v3384 = vadd.f32 0.0, %v3383
        %v3385 = vpop.f32.mrb[0].mxu0
        %v3386 = vpop.f32.mrb[0].mxu0
        %v3387 = vadd.f32 0.0, %v3386
        %v3388 = vpop.f32.mrb[0].mxu0
        %3389 = vmatprep.mubr.bf16.mxu0 0
        %3390 = vmatmul.mubr.bf16.gmra.mrb[0].mxu0 %v3158
        %v3391 = vpop.f32.mrb[0].mxu0
        %v3392 = vadd.f32 0.0, %v3391
        %v3393 = vpop.f32.mrb[0].mxu0
        %v3394 = vpop.f32.mrb[0].mxu0
        %v3395 = vadd.f32 0.0, %v3394
        %v3396 = vpop.f32.mrb[0].mxu0
        %3397 = vmatprep.mubr.bf16.mxu0 0
        %3398 = vmatmul.mubr.bf16.gmra.mrb[0].mxu0 %v3161
        %v3399 = vpop.f32.mrb[0].mxu0
        %v3400 = vadd.f32 0.0, %v3399
        %v3401 = vpop.f32.mrb[0].mxu0
        %v3402 = vpop.f32.mrb[0].mxu0
        %v3403 = vadd.f32 0.0, %v3402
        %v3404 = vpop.f32.mrb[0].mxu0
        %3405 = vmatprep.mubr.bf16.mxu0 0
        %3406 = vmatmul.mubr.bf16.gmra.mrb[0].mxu0 %v3164
        %v3407 = vpop.f32.mrb[0].mxu0
        %v3408 = vadd.f32 0.0, %v3407
        %v3409 = vpop.f32.mrb[0].mxu0
        %v3410 = vpop.f32.mrb[0].mxu0
        %v3411 = vadd.f32 0.0, %v3410
        %v3412 = vpop.f32.mrb[0].mxu0
        %3413 = vmatprep.mubr.bf16.mxu0 0
        %3414 = vmatmul.mubr.bf16.gmra.mrb[0].mxu0 %v3167
        %v3415 = vpop.f32.mrb[0].mxu0
        %v3416 = vadd.f32 0.0, %v3415
        %v3417 = vpop.f32.mrb[0].mxu0
        %v3418 = vpop.f32.mrb[0].mxu0
        %v3419 = vadd.f32 0.0, %v3418
        %v3420 = vpop.f32.mrb[0].mxu0
        %3421 = vmatprep.mubr.bf16.mxu0 0
        %3422 = vmatmul.mubr.bf16.gmra.mrb[0].mxu0 %v3170
        %v3423 = vpop.f32.mrb[0].mxu0
        %v3424 = vadd.f32 0.0, %v3423
        %v3425 = vpop.f32.mrb[0].mxu0
        %v3426 = vpop.f32.mrb[0].mxu0
        %v3427 = vadd.f32 0.0, %v3426
        %v3428 = vpop.f32.mrb[0].mxu0
        %3429 = vmatprep.mubr.bf16.mxu0 0
        %3430 = vmatmul.mubr.bf16.gmra.mrb[0].mxu0 %v3173
        %v3431 = vpop.f32.mrb[0].mxu0
        %v3432 = vadd.f32 0.0, %v3431
        %v3433 = vpop.f32.mrb[0].mxu0
        %v3434 = vpop.f32.mrb[0].mxu0
        %v3435 = vadd.f32 0.0, %v3434
        %v3436 = vpop.f32.mrb[0].mxu0
        %3437 = vmatprep.mubr.bf16.mxu0 0
        %3438 = vmatmul.mubr.bf16.gmra.mrb[0].mxu0 %v3176
        %v3439 = vpop.f32.mrb[0].mxu0
        %v3440 = vadd.f32 0.0, %v3439
        %v3441 = vpop.f32.mrb[0].mxu0
        %v3442 = vpop.f32.mrb[0].mxu0
        %v3443 = vadd.f32 0.0, %v3442
        %v3444 = vpop.f32.mrb[0].mxu0
        %3445 = vmatprep.mubr.bf16.mxu0 0
        %3446 = vmatmul.mubr.bf16.gmra.mrb[0].mxu0 %v3179
        %v3447 = vpop.f32.mrb[0].mxu0
        %v3448 = vadd.f32 0.0, %v3447
        %v3449 = vpop.f32.mrb[0].mxu0
        %v3450 = vpop.f32.mrb[0].mxu0
        %v3451 = vadd.f32 0.0, %v3450
        %v3452 = vpop.f32.mrb[0].mxu0
        %3453 = vdwg.mxu0
        %v3454 = vadd.f32 %v3196, %v3328
        %v3455 = vadd.f32 %v3197, %v3331
        %v3456 = vadd.f32 %v3198, %v3336
        %v3457 = vadd.f32 %v3199, %v3339
        %v3458 = vadd.f32 %v3200, %v3344
        %v3459 = vadd.f32 %v3201, %v3347
        %v3460 = vadd.f32 %v3202, %v3352
        %v3461 = vadd.f32 %v3203, %v3355
        %v3462 = vadd.f32 %v3204, %v3360
        %v3463 = vadd.f32 %v3205, %v3363
        %v3464 = vadd.f32 %v3206, %v3368
        %v3465 = vadd.f32 %v3207, %v3371
        %v3466 = vadd.f32 %v3208, %v3376
        %v3467 = vadd.f32 %v3209, %v3379
        %v3468 = vadd.f32 %v3210, %v3384
        %v3469 = vadd.f32 %v3211, %v3387
        %v3470 = vadd.f32 %v3212, %v3392
        %v3471 = vadd.f32 %v3213, %v3395
        %v3472 = vadd.f32 %v3214, %v3400
        %v3473 = vadd.f32 %v3215, %v3403
        %v3474 = vadd.f32 %v3216, %v3408
        %v3475 = vadd.f32 %v3217, %v3411
        %v3476 = vadd.f32 %v3218, %v3416
        %v3477 = vadd.f32 %v3219, %v3419
        %v3478 = vadd.f32 %v3220, %v3424
        %v3479 = vadd.f32 %v3221, %v3427
        %v3480 = vadd.f32 %v3222, %v3432
        %v3481 = vadd.f32 %v3223, %v3435
        %v3482 = vadd.f32 %v3224, %v3440
        %v3483 = vadd.f32 %v3225, %v3443
        %v3484 = vadd.f32 %v3226, %v3448
        %v3485 = vadd.f32 %v3227, %v3451
        %3486 = vst [vmem:[#allocation3] sm:$0xff] %v3454
        %3487 = vst [vmem:[#allocation3 + $0x8] sm:$0xff] %v3455
        %3488 = vst [vmem:[#allocation3 + $0x10] sm:$0xff] %v3456
        %3489 = vst [vmem:[#allocation3 + $0x18] sm:$0xff] %v3457
        %3490 = vst [vmem:[#allocation3 + $0x20] sm:$0xff] %v3458
        %3491 = vst [vmem:[#allocation3 + $0x28] sm:$0xff] %v3459
        %3492 = vst [vmem:[#allocation3 + $0x30] sm:$0xff] %v3460
        %3493 = vst [vmem:[#allocation3 + $0x38] sm:$0xff] %v3461
        %3494 = vst [vmem:[#allocation3 + $0x40] sm:$0xff] %v3462
        %3495 = vst [vmem:[#allocation3 + $0x48] sm:$0xff] %v3463
        %3496 = vst [vmem:[#allocation3 + $0x50] sm:$0xff] %v3464
        %3497 = vst [vmem:[#allocation3 + $0x58] sm:$0xff] %v3465
        %3498 = vst [vmem:[#allocation3 + $0x60] sm:$0xff] %v3466
        %3499 = vst [vmem:[#allocation3 + $0x68] sm:$0xff] %v3467
        %3500 = vst [vmem:[#allocation3 + $0x70] sm:$0xff] %v3468
        %3501 = vst [vmem:[#allocation3 + $0x78] sm:$0xff] %v3469
        %3502 = vst [vmem:[#allocation3 + $0x80] sm:$0xff] %v3470
        %3503 = vst [vmem:[#allocation3 + $0x88] sm:$0xff] %v3471
        %3504 = vst [vmem:[#allocation3 + $0x90] sm:$0xff] %v3472
        %3505 = vst [vmem:[#allocation3 + $0x98] sm:$0xff] %v3473
        %3506 = vst [vmem:[#allocation3 + $0xa0] sm:$0xff] %v3474
        %3507 = vst [vmem:[#allocation3 + $0xa8] sm:$0xff] %v3475
        %3508 = vst [vmem:[#allocation3 + $0xb0] sm:$0xff] %v3476
        %3509 = vst [vmem:[#allocation3 + $0xb8] sm:$0xff] %v3477
        %3510 = vst [vmem:[#allocation3 + $0xc0] sm:$0xff] %v3478
        %3511 = vst [vmem:[#allocation3 + $0xc8] sm:$0xff] %v3479
        %3512 = vst [vmem:[#allocation3 + $0xd0] sm:$0xff] %v3480
        %3513 = vst [vmem:[#allocation3 + $0xd8] sm:$0xff] %v3481
        %3514 = vst [vmem:[#allocation3 + $0xe0] sm:$0xff] %v3482
        %3515 = vst [vmem:[#allocation3 + $0xe8] sm:$0xff] %v3483
        %3516 = vst [vmem:[#allocation3 + $0xf0] sm:$0xff] %v3484
        %3517 = vst [vmem:[#allocation3 + $0xf8] sm:$0xff] %v3485
        %v3518 = vld [vmem:[%s618] sm:$0xf0]
        %v3519 = vld [vmem:[%s618 + $0x8] sm:$0x1f]
        %v3520 = vld [vmem:[%s618 + $0x10] sm:$0xf0]
        %v3521 = vld [vmem:[%s618 + $0x18] sm:$0x1f]
        %v3522 = vld [vmem:[%s618 + $0x20] sm:$0xf0]
        %v3523 = vld [vmem:[%s618 + $0x28] sm:$0x1f]
        %v3524 = vld [vmem:[%s618 + $0x30] sm:$0xf0]
        %v3525 = vld [vmem:[%s618 + $0x38] sm:$0x1f]
        %v3526 = vld [vmem:[%s618 + $0x40] sm:$0xf0]
        %v3527 = vld [vmem:[%s618 + $0x48] sm:$0x1f]
        %v3528 = vld [vmem:[%s618 + $0x50] sm:$0xf0]
        %v3529 = vld [vmem:[%s618 + $0x58] sm:$0x1f]
        %v3530 = vld [vmem:[%s618 + $0x60] sm:$0xf0]
        %v3531 = vld [vmem:[%s618 + $0x68] sm:$0x1f]
        %v3532 = vld [vmem:[%s618 + $0x70] sm:$0xf0]
        %v3533 = vld [vmem:[%s618 + $0x78] sm:$0x1f]
        %v3534 = vld [vmem:[%s618 + $0x80] sm:$0xf0]
        %v3535 = vld [vmem:[%s618 + $0x88] sm:$0x1f]
        %v3536 = vld [vmem:[%s618 + $0x90] sm:$0xf0]
        %v3537 = vld [vmem:[%s618 + $0x98] sm:$0x1f]
        %v3538 = vld [vmem:[%s618 + $0xa0] sm:$0xf0]
        %v3539 = vld [vmem:[%s618 + $0xa8] sm:$0x1f]
        %v3540 = vld [vmem:[%s618 + $0xb0] sm:$0xf0]
        %v3541 = vld [vmem:[%s618 + $0xb8] sm:$0x1f]
        %v3542 = vld [vmem:[%s618 + $0xc0] sm:$0xf0]
        %v3543 = vld [vmem:[%s618 + $0xc8] sm:$0x1f]
        %v3544 = vld [vmem:[%s618 + $0xd0] sm:$0xf0]
        %v3545 = vld [vmem:[%s618 + $0xd8] sm:$0x1f]
        %v3546 = vld [vmem:[%s618 + $0xe0] sm:$0xf0]
        %v3547 = vld [vmem:[%s618 + $0xe8] sm:$0x1f]
        %v3548 = vld [vmem:[%s618 + $0xf0] sm:$0xf0]
        %v3549 = vld [vmem:[%s618 + $0xf8] sm:$0x1f]
        %v3551 = vshrl.u32 %v3518, 16
        %v3553 = vrot.slane %v3551, 4
        %v3554 = vshll.u32 %v3518, 16
        %v3556 = vrot.slane %v3554, 5
        %v3557 = vor.u32 %v3553, %v3556
        %v3559 = vshrl.u32 %v3519, 16
        %v3561 = vrot.slane %v3559, 4
        %v3562 = vshll.u32 %v3519, 16
        %v3564 = vrot.slane %v3562, 5
        %v3565 = vor.u32 %v3561, %v3564
        %v3566 = vsel %vm1815, %v3557, %v3565
        %v3568 = vshrl.u32 %v3520, 16
        %v3570 = vrot.slane %v3568, 4
        %v3571 = vshll.u32 %v3520, 16
        %v3573 = vrot.slane %v3571, 5
        %v3574 = vor.u32 %v3570, %v3573
        %v3576 = vshrl.u32 %v3521, 16
        %v3578 = vrot.slane %v3576, 4
        %v3579 = vshll.u32 %v3521, 16
        %v3581 = vrot.slane %v3579, 5
        %v3582 = vor.u32 %v3578, %v3581
        %v3583 = vsel %vm1815, %v3574, %v3582
        %v3585 = vshrl.u32 %v3522, 16
        %v3587 = vrot.slane %v3585, 4
        %v3588 = vshll.u32 %v3522, 16
        %v3590 = vrot.slane %v3588, 5
        %v3591 = vor.u32 %v3587, %v3590
        %v3593 = vshrl.u32 %v3523, 16
        %v3595 = vrot.slane %v3593, 4
        %v3596 = vshll.u32 %v3523, 16
        %v3598 = vrot.slane %v3596, 5
        %v3599 = vor.u32 %v3595, %v3598
        %v3600 = vsel %vm1815, %v3591, %v3599
        %v3602 = vshrl.u32 %v3524, 16
        %v3604 = vrot.slane %v3602, 4
        %v3605 = vshll.u32 %v3524, 16
        %v3607 = vrot.slane %v3605, 5
        %v3608 = vor.u32 %v3604, %v3607
        %v3610 = vshrl.u32 %v3525, 16
        %v3612 = vrot.slane %v3610, 4
        %v3613 = vshll.u32 %v3525, 16
        %v3615 = vrot.slane %v3613, 5
        %v3616 = vor.u32 %v3612, %v3615
        %v3617 = vsel %vm1815, %v3608, %v3616
        %v3619 = vshrl.u32 %v3526, 16
        %v3621 = vrot.slane %v3619, 4
        %v3622 = vshll.u32 %v3526, 16
        %v3624 = vrot.slane %v3622, 5
        %v3625 = vor.u32 %v3621, %v3624
        %v3627 = vshrl.u32 %v3527, 16
        %v3629 = vrot.slane %v3627, 4
        %v3630 = vshll.u32 %v3527, 16
        %v3632 = vrot.slane %v3630, 5
        %v3633 = vor.u32 %v3629, %v3632
        %v3634 = vsel %vm1815, %v3625, %v3633
        %v3636 = vshrl.u32 %v3528, 16
        %v3638 = vrot.slane %v3636, 4
        %v3639 = vshll.u32 %v3528, 16
        %v3641 = vrot.slane %v3639, 5
        %v3642 = vor.u32 %v3638, %v3641
        %v3644 = vshrl.u32 %v3529, 16
        %v3646 = vrot.slane %v3644, 4
        %v3647 = vshll.u32 %v3529, 16
        %v3649 = vrot.slane %v3647, 5
        %v3650 = vor.u32 %v3646, %v3649
        %v3651 = vsel %vm1815, %v3642, %v3650
        %v3653 = vshrl.u32 %v3530, 16
        %v3655 = vrot.slane %v3653, 4
        %v3656 = vshll.u32 %v3530, 16
        %v3658 = vrot.slane %v3656, 5
        %v3659 = vor.u32 %v3655, %v3658
        %v3661 = vshrl.u32 %v3531, 16
        %v3663 = vrot.slane %v3661, 4
        %v3664 = vshll.u32 %v3531, 16
        %v3666 = vrot.slane %v3664, 5
        %v3667 = vor.u32 %v3663, %v3666
        %v3668 = vsel %vm1815, %v3659, %v3667
        %v3670 = vshrl.u32 %v3532, 16
        %v3672 = vrot.slane %v3670, 4
        %v3673 = vshll.u32 %v3532, 16
        %v3675 = vrot.slane %v3673, 5
        %v3676 = vor.u32 %v3672, %v3675
        %v3678 = vshrl.u32 %v3533, 16
        %v3680 = vrot.slane %v3678, 4
        %v3681 = vshll.u32 %v3533, 16
        %v3683 = vrot.slane %v3681, 5
        %v3684 = vor.u32 %v3680, %v3683
        %v3685 = vsel %vm1815, %v3676, %v3684
        %v3687 = vshrl.u32 %v3534, 16
        %v3689 = vrot.slane %v3687, 4
        %v3690 = vshll.u32 %v3534, 16
        %v3692 = vrot.slane %v3690, 5
        %v3693 = vor.u32 %v3689, %v3692
        %v3695 = vshrl.u32 %v3535, 16
        %v3697 = vrot.slane %v3695, 4
        %v3698 = vshll.u32 %v3535, 16
        %v3700 = vrot.slane %v3698, 5
        %v3701 = vor.u32 %v3697, %v3700
        %v3702 = vsel %vm1815, %v3693, %v3701
        %v3704 = vshrl.u32 %v3536, 16
        %v3706 = vrot.slane %v3704, 4
        %v3707 = vshll.u32 %v3536, 16
        %v3709 = vrot.slane %v3707, 5
        %v3710 = vor.u32 %v3706, %v3709
        %v3712 = vshrl.u32 %v3537, 16
        %v3714 = vrot.slane %v3712, 4
        %v3715 = vshll.u32 %v3537, 16
        %v3717 = vrot.slane %v3715, 5
        %v3718 = vor.u32 %v3714, %v3717
        %v3719 = vsel %vm1815, %v3710, %v3718
        %v3721 = vshrl.u32 %v3538, 16
        %v3723 = vrot.slane %v3721, 4
        %v3724 = vshll.u32 %v3538, 16
        %v3726 = vrot.slane %v3724, 5
        %v3727 = vor.u32 %v3723, %v3726
        %v3729 = vshrl.u32 %v3539, 16
        %v3731 = vrot.slane %v3729, 4
        %v3732 = vshll.u32 %v3539, 16
        %v3734 = vrot.slane %v3732, 5
        %v3735 = vor.u32 %v3731, %v3734
        %v3736 = vsel %vm1815, %v3727, %v3735
        %v3738 = vshrl.u32 %v3540, 16
        %v3740 = vrot.slane %v3738, 4
        %v3741 = vshll.u32 %v3540, 16
        %v3743 = vrot.slane %v3741, 5
        %v3744 = vor.u32 %v3740, %v3743
        %v3746 = vshrl.u32 %v3541, 16
        %v3748 = vrot.slane %v3746, 4
        %v3749 = vshll.u32 %v3541, 16
        %v3751 = vrot.slane %v3749, 5
        %v3752 = vor.u32 %v3748, %v3751
        %v3753 = vsel %vm1815, %v3744, %v3752
        %v3755 = vshrl.u32 %v3542, 16
        %v3757 = vrot.slane %v3755, 4
        %v3758 = vshll.u32 %v3542, 16
        %v3760 = vrot.slane %v3758, 5
        %v3761 = vor.u32 %v3757, %v3760
        %v3763 = vshrl.u32 %v3543, 16
        %v3765 = vrot.slane %v3763, 4
        %v3766 = vshll.u32 %v3543, 16
        %v3768 = vrot.slane %v3766, 5
        %v3769 = vor.u32 %v3765, %v3768
        %v3770 = vsel %vm1815, %v3761, %v3769
        %v3772 = vshrl.u32 %v3544, 16
        %v3774 = vrot.slane %v3772, 4
        %v3775 = vshll.u32 %v3544, 16
        %v3777 = vrot.slane %v3775, 5
        %v3778 = vor.u32 %v3774, %v3777
        %v3780 = vshrl.u32 %v3545, 16
        %v3782 = vrot.slane %v3780, 4
        %v3783 = vshll.u32 %v3545, 16
        %v3785 = vrot.slane %v3783, 5
        %v3786 = vor.u32 %v3782, %v3785
        %v3787 = vsel %vm1815, %v3778, %v3786
        %v3789 = vshrl.u32 %v3546, 16
        %v3791 = vrot.slane %v3789, 4
        %v3792 = vshll.u32 %v3546, 16
        %v3794 = vrot.slane %v3792, 5
        %v3795 = vor.u32 %v3791, %v3794
        %v3797 = vshrl.u32 %v3547, 16
        %v3799 = vrot.slane %v3797, 4
        %v3800 = vshll.u32 %v3547, 16
        %v3802 = vrot.slane %v3800, 5
        %v3803 = vor.u32 %v3799, %v3802
        %v3804 = vsel %vm1815, %v3795, %v3803
        %v3806 = vshrl.u32 %v3548, 16
        %v3808 = vrot.slane %v3806, 4
        %v3809 = vshll.u32 %v3548, 16
        %v3811 = vrot.slane %v3809, 5
        %v3812 = vor.u32 %v3808, %v3811
        %v3814 = vshrl.u32 %v3549, 16
        %v3816 = vrot.slane %v3814, 4
        %v3817 = vshll.u32 %v3549, 16
        %v3819 = vrot.slane %v3817, 5
        %v3820 = vor.u32 %v3816, %v3819
        %v3821 = vsel %vm1815, %v3812, %v3820
        %v3838 = vld [vmem:[#allocation3] sm:$0xff]
        %v3839 = vld [vmem:[#allocation3 + $0x8] sm:$0xff]
        %v3840 = vld [vmem:[#allocation3 + $0x10] sm:$0xff]
        %v3841 = vld [vmem:[#allocation3 + $0x18] sm:$0xff]
        %v3842 = vld [vmem:[#allocation3 + $0x20] sm:$0xff]
        %v3843 = vld [vmem:[#allocation3 + $0x28] sm:$0xff]
        %v3844 = vld [vmem:[#allocation3 + $0x30] sm:$0xff]
        %v3845 = vld [vmem:[#allocation3 + $0x38] sm:$0xff]
        %v3846 = vld [vmem:[#allocation3 + $0x40] sm:$0xff]
        %v3847 = vld [vmem:[#allocation3 + $0x48] sm:$0xff]
        %v3848 = vld [vmem:[#allocation3 + $0x50] sm:$0xff]
        %v3849 = vld [vmem:[#allocation3 + $0x58] sm:$0xff]
        %v3850 = vld [vmem:[#allocation3 + $0x60] sm:$0xff]
        %v3851 = vld [vmem:[#allocation3 + $0x68] sm:$0xff]
        %v3852 = vld [vmem:[#allocation3 + $0x70] sm:$0xff]
        %v3853 = vld [vmem:[#allocation3 + $0x78] sm:$0xff]
        %v3854 = vld [vmem:[#allocation3 + $0x80] sm:$0xff]
        %v3855 = vld [vmem:[#allocation3 + $0x88] sm:$0xff]
        %v3856 = vld [vmem:[#allocation3 + $0x90] sm:$0xff]
        %v3857 = vld [vmem:[#allocation3 + $0x98] sm:$0xff]
        %v3858 = vld [vmem:[#allocation3 + $0xa0] sm:$0xff]
        %v3859 = vld [vmem:[#allocation3 + $0xa8] sm:$0xff]
        %v3860 = vld [vmem:[#allocation3 + $0xb0] sm:$0xff]
        %v3861 = vld [vmem:[#allocation3 + $0xb8] sm:$0xff]
        %v3862 = vld [vmem:[#allocation3 + $0xc0] sm:$0xff]
        %v3863 = vld [vmem:[#allocation3 + $0xc8] sm:$0xff]
        %v3864 = vld [vmem:[#allocation3 + $0xd0] sm:$0xff]
        %v3865 = vld [vmem:[#allocation3 + $0xd8] sm:$0xff]
        %v3866 = vld [vmem:[#allocation3 + $0xe0] sm:$0xff]
        %v3867 = vld [vmem:[#allocation3 + $0xe8] sm:$0xff]
        %v3868 = vld [vmem:[#allocation3 + $0xf0] sm:$0xff]
        %v3869 = vld [vmem:[#allocation3 + $0xf8] sm:$0xff]
        %s3870 = scalar_lea.vmem [#allocation10], 320
        %v3871 = vld [vmem:[%s3870] sm:$0xf]
        %v3872 = vld [vmem:[%s3870 + $0x4] sm:$0xf]
        %v3873 = vld [vmem:[%s3870 + $0x8] sm:$0xf]
        %v3874 = vld [vmem:[%s3870 + $0xc] sm:$0xf]
        %v3875 = vld [vmem:[%s3870 + $0x10] sm:$0xf]
        %v3876 = vld [vmem:[%s3870 + $0x14] sm:$0xf]
        %v3877 = vld [vmem:[%s3870 + $0x18] sm:$0xf]
        %v3878 = vld [vmem:[%s3870 + $0x1c] sm:$0xf]
        %v3879 = vld [vmem:[%s3870 + $0x20] sm:$0xf]
        %v3880 = vld [vmem:[%s3870 + $0x24] sm:$0xf]
        %v3881 = vld [vmem:[%s3870 + $0x28] sm:$0xf]
        %v3882 = vld [vmem:[%s3870 + $0x2c] sm:$0xf]
        %v3883 = vld [vmem:[%s3870 + $0x30] sm:$0xf]
        %v3884 = vld [vmem:[%s3870 + $0x34] sm:$0xf]
        %v3885 = vld [vmem:[%s3870 + $0x38] sm:$0xf]
        %v3886 = vld [vmem:[%s3870 + $0x3c] sm:$0xf]
        %v3903 = vunpack.c.l.b16 %v3871
        %v3904 = vunpack.c.l.b16 %v3872
        %v3905 = vunpack.c.l.b16 %v3873
        %v3906 = vunpack.c.l.b16 %v3874
        %v3907 = vunpack.c.l.b16 %v3875
        %v3908 = vunpack.c.l.b16 %v3876
        %v3909 = vunpack.c.l.b16 %v3877
        %v3910 = vunpack.c.l.b16 %v3878
        %v3911 = vunpack.c.l.b16 %v3879
        %v3912 = vunpack.c.l.b16 %v3880
        %v3913 = vunpack.c.l.b16 %v3881
        %v3914 = vunpack.c.l.b16 %v3882
        %v3915 = vunpack.c.l.b16 %v3883
        %v3916 = vunpack.c.l.b16 %v3884
        %v3917 = vunpack.c.l.b16 %v3885
        %v3918 = vunpack.c.l.b16 %v3886
        %v3919 = vpack.c.b16 %v3904, %v3903
        %v3920 = vpack.c.b16 %v3906, %v3905
        %v3921 = vpack.c.b16 %v3908, %v3907
        %v3922 = vpack.c.b16 %v3910, %v3909
        %v3923 = vpack.c.b16 %v3912, %v3911
        %v3924 = vpack.c.b16 %v3914, %v3913
        %v3925 = vpack.c.b16 %v3916, %v3915
        %v3926 = vpack.c.b16 %v3918, %v3917
        %3935 = vmatprep.subr.bf16.mxu0 0
        %3936 = vmatpush1.bf16.msra.mxu0 %v3919
        %3937 = vmatprep.subr.bf16.mxu0 0
        %3938 = vmatpush1.bf16.msra.mxu0 %v3920
        %3939 = vmatprep.subr.bf16.mxu0 0
        %3940 = vmatpush1.bf16.msra.mxu0 %v3921
        %3941 = vmatprep.subr.bf16.mxu0 0
        %3942 = vmatpush1.bf16.msra.mxu0 %v3922
        %3943 = vmatprep.subr.bf16.mxu0 0
        %3944 = vmatpush1.bf16.msra.mxu0 %v3923
        %3945 = vmatprep.subr.bf16.mxu0 0
        %3946 = vmatpush1.bf16.msra.mxu0 %v3924
        %3947 = vmatprep.subr.bf16.mxu0 0
        %3948 = vmatpush1.bf16.msra.mxu0 %v3925
        %3949 = vmatprep.subr.bf16.mxu0 0
        %3950 = vmatpush1.bf16.msra.mxu0 %v3926
        %3951 = vmatprep.subr.bf16.mxu0 0
        %3952 = vmatpush1.bf16.msra.mxu0 0
        %3953 = vmatprep.subr.bf16.mxu0 0
        %3954 = vmatpush1.bf16.msra.mxu0 0
        %3955 = vmatprep.subr.bf16.mxu0 0
        %3956 = vmatpush1.bf16.msra.mxu0 0
        %3957 = vmatprep.subr.bf16.mxu0 0
        %3958 = vmatpush1.bf16.msra.mxu0 0
        %3959 = vmatprep.subr.bf16.mxu0 0
        %3960 = vmatpush1.bf16.msra.mxu0 0
        %3961 = vmatprep.subr.bf16.mxu0 0
        %3962 = vmatpush1.bf16.msra.mxu0 0
        %3963 = vmatprep.subr.bf16.mxu0 0
        %3964 = vmatpush1.bf16.msra.mxu0 0
        %3965 = vmatprep.subr.bf16.mxu0 0
        %3966 = vmatpush1.bf16.msra.mxu0 0
        %3967 = vmatprep.mubr.bf16.mxu0 0
        %3968 = vmatmul.mubr.bf16.gmra.mrb[0].mxu0 %v3566
        %v3969 = vpop.f32.mrb[0].mxu0
        %v3970 = vadd.f32 0.0, %v3969
        %v3971 = vpop.f32.mrb[0].mxu0
        %v3972 = vpop.f32.mrb[0].mxu0
        %v3973 = vadd.f32 0.0, %v3972
        %v3974 = vpop.f32.mrb[0].mxu0
        %3975 = vmatprep.mubr.bf16.mxu0 0
        %3976 = vmatmul.mubr.bf16.gmra.mrb[0].mxu0 %v3583
        %v3977 = vpop.f32.mrb[0].mxu0
        %v3978 = vadd.f32 0.0, %v3977
        %v3979 = vpop.f32.mrb[0].mxu0
        %v3980 = vpop.f32.mrb[0].mxu0
        %v3981 = vadd.f32 0.0, %v3980
        %v3982 = vpop.f32.mrb[0].mxu0
        %3983 = vmatprep.mubr.bf16.mxu0 0
        %3984 = vmatmul.mubr.bf16.gmra.mrb[0].mxu0 %v3600
        %v3985 = vpop.f32.mrb[0].mxu0
        %v3986 = vadd.f32 0.0, %v3985
        %v3987 = vpop.f32.mrb[0].mxu0
        %v3988 = vpop.f32.mrb[0].mxu0
        %v3989 = vadd.f32 0.0, %v3988
        %v3990 = vpop.f32.mrb[0].mxu0
        %3991 = vmatprep.mubr.bf16.mxu0 0
        %3992 = vmatmul.mubr.bf16.gmra.mrb[0].mxu0 %v3617
        %v3993 = vpop.f32.mrb[0].mxu0
        %v3994 = vadd.f32 0.0, %v3993
        %v3995 = vpop.f32.mrb[0].mxu0
        %v3996 = vpop.f32.mrb[0].mxu0
        %v3997 = vadd.f32 0.0, %v3996
        %v3998 = vpop.f32.mrb[0].mxu0
        %3999 = vmatprep.mubr.bf16.mxu0 0
        %4000 = vmatmul.mubr.bf16.gmra.mrb[0].mxu0 %v3634
        %v4001 = vpop.f32.mrb[0].mxu0
        %v4002 = vadd.f32 0.0, %v4001
        %v4003 = vpop.f32.mrb[0].mxu0
        %v4004 = vpop.f32.mrb[0].mxu0
        %v4005 = vadd.f32 0.0, %v4004
        %v4006 = vpop.f32.mrb[0].mxu0
        %4007 = vmatprep.mubr.bf16.mxu0 0
        %4008 = vmatmul.mubr.bf16.gmra.mrb[0].mxu0 %v3651
        %v4009 = vpop.f32.mrb[0].mxu0
        %v4010 = vadd.f32 0.0, %v4009
        %v4011 = vpop.f32.mrb[0].mxu0
        %v4012 = vpop.f32.mrb[0].mxu0
        %v4013 = vadd.f32 0.0, %v4012
        %v4014 = vpop.f32.mrb[0].mxu0
        %4015 = vmatprep.mubr.bf16.mxu0 0
        %4016 = vmatmul.mubr.bf16.gmra.mrb[0].mxu0 %v3668
        %v4017 = vpop.f32.mrb[0].mxu0
        %v4018 = vadd.f32 0.0, %v4017
        %v4019 = vpop.f32.mrb[0].mxu0
        %v4020 = vpop.f32.mrb[0].mxu0
        %v4021 = vadd.f32 0.0, %v4020
        %v4022 = vpop.f32.mrb[0].mxu0
        %4023 = vmatprep.mubr.bf16.mxu0 0
        %4024 = vmatmul.mubr.bf16.gmra.mrb[0].mxu0 %v3685
        %v4025 = vpop.f32.mrb[0].mxu0
        %v4026 = vadd.f32 0.0, %v4025
        %v4027 = vpop.f32.mrb[0].mxu0
        %v4028 = vpop.f32.mrb[0].mxu0
        %v4029 = vadd.f32 0.0, %v4028
        %v4030 = vpop.f32.mrb[0].mxu0
        %4031 = vmatprep.mubr.bf16.mxu0 0
        %4032 = vmatmul.mubr.bf16.gmra.mrb[0].mxu0 %v3702
        %v4033 = vpop.f32.mrb[0].mxu0
        %v4034 = vadd.f32 0.0, %v4033
        %v4035 = vpop.f32.mrb[0].mxu0
        %v4036 = vpop.f32.mrb[0].mxu0
        %v4037 = vadd.f32 0.0, %v4036
        %v4038 = vpop.f32.mrb[0].mxu0
        %4039 = vmatprep.mubr.bf16.mxu0 0
        %4040 = vmatmul.mubr.bf16.gmra.mrb[0].mxu0 %v3719
        %v4041 = vpop.f32.mrb[0].mxu0
        %v4042 = vadd.f32 0.0, %v4041
        %v4043 = vpop.f32.mrb[0].mxu0
        %v4044 = vpop.f32.mrb[0].mxu0
        %v4045 = vadd.f32 0.0, %v4044
        %v4046 = vpop.f32.mrb[0].mxu0
        %4047 = vmatprep.mubr.bf16.mxu0 0
        %4048 = vmatmul.mubr.bf16.gmra.mrb[0].mxu0 %v3736
        %v4049 = vpop.f32.mrb[0].mxu0
        %v4050 = vadd.f32 0.0, %v4049
        %v4051 = vpop.f32.mrb[0].mxu0
        %v4052 = vpop.f32.mrb[0].mxu0
        %v4053 = vadd.f32 0.0, %v4052
        %v4054 = vpop.f32.mrb[0].mxu0
        %4055 = vmatprep.mubr.bf16.mxu0 0
        %4056 = vmatmul.mubr.bf16.gmra.mrb[0].mxu0 %v3753
        %v4057 = vpop.f32.mrb[0].mxu0
        %v4058 = vadd.f32 0.0, %v4057
        %v4059 = vpop.f32.mrb[0].mxu0
        %v4060 = vpop.f32.mrb[0].mxu0
        %v4061 = vadd.f32 0.0, %v4060
        %v4062 = vpop.f32.mrb[0].mxu0
        %4063 = vmatprep.mubr.bf16.mxu0 0
        %4064 = vmatmul.mubr.bf16.gmra.mrb[0].mxu0 %v3770
        %v4065 = vpop.f32.mrb[0].mxu0
        %v4066 = vadd.f32 0.0, %v4065
        %v4067 = vpop.f32.mrb[0].mxu0
        %v4068 = vpop.f32.mrb[0].mxu0
        %v4069 = vadd.f32 0.0, %v4068
        %v4070 = vpop.f32.mrb[0].mxu0
        %4071 = vmatprep.mubr.bf16.mxu0 0
        %4072 = vmatmul.mubr.bf16.gmra.mrb[0].mxu0 %v3787
        %v4073 = vpop.f32.mrb[0].mxu0
        %v4074 = vadd.f32 0.0, %v4073
        %v4075 = vpop.f32.mrb[0].mxu0
        %v4076 = vpop.f32.mrb[0].mxu0
        %v4077 = vadd.f32 0.0, %v4076
        %v4078 = vpop.f32.mrb[0].mxu0
        %4079 = vmatprep.mubr.bf16.mxu0 0
        %4080 = vmatmul.mubr.bf16.gmra.mrb[0].mxu0 %v3804
        %v4081 = vpop.f32.mrb[0].mxu0
        %v4082 = vadd.f32 0.0, %v4081
        %v4083 = vpop.f32.mrb[0].mxu0
        %v4084 = vpop.f32.mrb[0].mxu0
        %v4085 = vadd.f32 0.0, %v4084
        %v4086 = vpop.f32.mrb[0].mxu0
        %4087 = vmatprep.mubr.bf16.mxu0 0
        %4088 = vmatmul.mubr.bf16.gmra.mrb[0].mxu0 %v3821
        %v4089 = vpop.f32.mrb[0].mxu0
        %v4090 = vadd.f32 0.0, %v4089
        %v4091 = vpop.f32.mrb[0].mxu0
        %v4092 = vpop.f32.mrb[0].mxu0
        %v4093 = vadd.f32 0.0, %v4092
        %v4094 = vpop.f32.mrb[0].mxu0
        %4095 = vdwg.mxu0
        %v4096 = vadd.f32 %v3838, %v3970
        %v4097 = vadd.f32 %v3839, %v3973
        %v4098 = vadd.f32 %v3840, %v3978
        %v4099 = vadd.f32 %v3841, %v3981
        %v4100 = vadd.f32 %v3842, %v3986
        %v4101 = vadd.f32 %v3843, %v3989
        %v4102 = vadd.f32 %v3844, %v3994
        %v4103 = vadd.f32 %v3845, %v3997
        %v4104 = vadd.f32 %v3846, %v4002
        %v4105 = vadd.f32 %v3847, %v4005
        %v4106 = vadd.f32 %v3848, %v4010
        %v4107 = vadd.f32 %v3849, %v4013
        %v4108 = vadd.f32 %v3850, %v4018
        %v4109 = vadd.f32 %v3851, %v4021
        %v4110 = vadd.f32 %v3852, %v4026
        %v4111 = vadd.f32 %v3853, %v4029
        %v4112 = vadd.f32 %v3854, %v4034
        %v4113 = vadd.f32 %v3855, %v4037
        %v4114 = vadd.f32 %v3856, %v4042
        %v4115 = vadd.f32 %v3857, %v4045
        %v4116 = vadd.f32 %v3858, %v4050
        %v4117 = vadd.f32 %v3859, %v4053
        %v4118 = vadd.f32 %v3860, %v4058
        %v4119 = vadd.f32 %v3861, %v4061
        %v4120 = vadd.f32 %v3862, %v4066
        %v4121 = vadd.f32 %v3863, %v4069
        %v4122 = vadd.f32 %v3864, %v4074
        %v4123 = vadd.f32 %v3865, %v4077
        %v4124 = vadd.f32 %v3866, %v4082
        %v4125 = vadd.f32 %v3867, %v4085
        %v4126 = vadd.f32 %v3868, %v4090
        %v4127 = vadd.f32 %v3869, %v4093
        %4128 = vst [vmem:[#allocation3] sm:$0xff] %v4096
        %4129 = vst [vmem:[#allocation3 + $0x8] sm:$0xff] %v4097
        %4130 = vst [vmem:[#allocation3 + $0x10] sm:$0xff] %v4098
        %4131 = vst [vmem:[#allocation3 + $0x18] sm:$0xff] %v4099
        %4132 = vst [vmem:[#allocation3 + $0x20] sm:$0xff] %v4100
        %4133 = vst [vmem:[#allocation3 + $0x28] sm:$0xff] %v4101
        %4134 = vst [vmem:[#allocation3 + $0x30] sm:$0xff] %v4102
        %4135 = vst [vmem:[#allocation3 + $0x38] sm:$0xff] %v4103
        %4136 = vst [vmem:[#allocation3 + $0x40] sm:$0xff] %v4104
        %4137 = vst [vmem:[#allocation3 + $0x48] sm:$0xff] %v4105
        %4138 = vst [vmem:[#allocation3 + $0x50] sm:$0xff] %v4106
        %4139 = vst [vmem:[#allocation3 + $0x58] sm:$0xff] %v4107
        %4140 = vst [vmem:[#allocation3 + $0x60] sm:$0xff] %v4108
        %4141 = vst [vmem:[#allocation3 + $0x68] sm:$0xff] %v4109
        %4142 = vst [vmem:[#allocation3 + $0x70] sm:$0xff] %v4110
        %4143 = vst [vmem:[#allocation3 + $0x78] sm:$0xff] %v4111
        %4144 = vst [vmem:[#allocation3 + $0x80] sm:$0xff] %v4112
        %4145 = vst [vmem:[#allocation3 + $0x88] sm:$0xff] %v4113
        %4146 = vst [vmem:[#allocation3 + $0x90] sm:$0xff] %v4114
        %4147 = vst [vmem:[#allocation3 + $0x98] sm:$0xff] %v4115
        %4148 = vst [vmem:[#allocation3 + $0xa0] sm:$0xff] %v4116
        %4149 = vst [vmem:[#allocation3 + $0xa8] sm:$0xff] %v4117
        %4150 = vst [vmem:[#allocation3 + $0xb0] sm:$0xff] %v4118
        %4151 = vst [vmem:[#allocation3 + $0xb8] sm:$0xff] %v4119
        %4152 = vst [vmem:[#allocation3 + $0xc0] sm:$0xff] %v4120
        %4153 = vst [vmem:[#allocation3 + $0xc8] sm:$0xff] %v4121
        %4154 = vst [vmem:[#allocation3 + $0xd0] sm:$0xff] %v4122
        %4155 = vst [vmem:[#allocation3 + $0xd8] sm:$0xff] %v4123
        %4156 = vst [vmem:[#allocation3 + $0xe0] sm:$0xff] %v4124
        %4157 = vst [vmem:[#allocation3 + $0xe8] sm:$0xff] %v4125
        %4158 = vst [vmem:[#allocation3 + $0xf0] sm:$0xff] %v4126
        %4159 = vst [vmem:[#allocation3 + $0xf8] sm:$0xff] %v4127
        %s4160 = scalar_lea.vmem [#allocation2], 32
        %v4161 = vld [vmem:[%s4160] sm:$0xf8]
        %v4162 = vld [vmem:[%s4160 + $0x8] sm:$0xf]
        %v4163 = vld [vmem:[%s4160 + $0x10] sm:$0xf8]
        %v4164 = vld [vmem:[%s4160 + $0x18] sm:$0xf]
        %v4165 = vld [vmem:[%s4160 + $0x20] sm:$0xf8]
        %v4166 = vld [vmem:[%s4160 + $0x28] sm:$0xf]
        %v4167 = vld [vmem:[%s4160 + $0x30] sm:$0xf8]
        %v4168 = vld [vmem:[%s4160 + $0x38] sm:$0xf]
        %v4169 = vld [vmem:[%s4160 + $0x40] sm:$0xf8]
        %v4170 = vld [vmem:[%s4160 + $0x48] sm:$0xf]
        %v4171 = vld [vmem:[%s4160 + $0x50] sm:$0xf8]
        %v4172 = vld [vmem:[%s4160 + $0x58] sm:$0xf]
        %v4173 = vld [vmem:[%s4160 + $0x60] sm:$0xf8]
        %v4174 = vld [vmem:[%s4160 + $0x68] sm:$0xf]
        %v4175 = vld [vmem:[%s4160 + $0x70] sm:$0xf8]
        %v4176 = vld [vmem:[%s4160 + $0x78] sm:$0xf]
        %v4177 = vld [vmem:[%s4160 + $0x80] sm:$0xf8]
        %v4178 = vld [vmem:[%s4160 + $0x88] sm:$0xf]
        %v4179 = vld [vmem:[%s4160 + $0x90] sm:$0xf8]
        %v4180 = vld [vmem:[%s4160 + $0x98] sm:$0xf]
        %v4181 = vld [vmem:[%s4160 + $0xa0] sm:$0xf8]
        %v4182 = vld [vmem:[%s4160 + $0xa8] sm:$0xf]
        %v4183 = vld [vmem:[%s4160 + $0xb0] sm:$0xf8]
        %v4184 = vld [vmem:[%s4160 + $0xb8] sm:$0xf]
        %v4185 = vld [vmem:[%s4160 + $0xc0] sm:$0xf8]
        %v4186 = vld [vmem:[%s4160 + $0xc8] sm:$0xf]
        %v4187 = vld [vmem:[%s4160 + $0xd0] sm:$0xf8]
        %v4188 = vld [vmem:[%s4160 + $0xd8] sm:$0xf]
        %v4189 = vld [vmem:[%s4160 + $0xe0] sm:$0xf8]
        %v4190 = vld [vmem:[%s4160 + $0xe8] sm:$0xf]
        %v4191 = vld [vmem:[%s4160 + $0xf0] sm:$0xf8]
        %v4192 = vld [vmem:[%s4160 + $0xf8] sm:$0xf]
        %v4194 = vshrl.u32 %v4161, 16
        %v4196 = vrot.slane %v4194, 3
        %v4197 = vshll.u32 %v4161, 16
        %v4199 = vrot.slane %v4197, 4
        %v4200 = vor.u32 %v4196, %v4199
        %v4202 = vshrl.u32 %v4162, 16
        %v4204 = vrot.slane %v4202, 3
        %v4205 = vshll.u32 %v4162, 16
        %v4207 = vrot.slane %v4205, 4
        %v4208 = vor.u32 %v4204, %v4207
        %v4209 = vsel %vm722, %v4200, %v4208
        %v4211 = vshrl.u32 %v4163, 16
        %v4213 = vrot.slane %v4211, 3
        %v4214 = vshll.u32 %v4163, 16
        %v4216 = vrot.slane %v4214, 4
        %v4217 = vor.u32 %v4213, %v4216
        %v4219 = vshrl.u32 %v4164, 16
        %v4221 = vrot.slane %v4219, 3
        %v4222 = vshll.u32 %v4164, 16
        %v4224 = vrot.slane %v4222, 4
        %v4225 = vor.u32 %v4221, %v4224
        %v4226 = vsel %vm722, %v4217, %v4225
        %v4228 = vshrl.u32 %v4165, 16
        %v4230 = vrot.slane %v4228, 3
        %v4231 = vshll.u32 %v4165, 16
        %v4233 = vrot.slane %v4231, 4
        %v4234 = vor.u32 %v4230, %v4233
        %v4236 = vshrl.u32 %v4166, 16
        %v4238 = vrot.slane %v4236, 3
        %v4239 = vshll.u32 %v4166, 16
        %v4241 = vrot.slane %v4239, 4
        %v4242 = vor.u32 %v4238, %v4241
        %v4243 = vsel %vm722, %v4234, %v4242
        %v4245 = vshrl.u32 %v4167, 16
        %v4247 = vrot.slane %v4245, 3
        %v4248 = vshll.u32 %v4167, 16
        %v4250 = vrot.slane %v4248, 4
        %v4251 = vor.u32 %v4247, %v4250
        %v4253 = vshrl.u32 %v4168, 16
        %v4255 = vrot.slane %v4253, 3
        %v4256 = vshll.u32 %v4168, 16
        %v4258 = vrot.slane %v4256, 4
        %v4259 = vor.u32 %v4255, %v4258
        %v4260 = vsel %vm722, %v4251, %v4259
        %v4262 = vshrl.u32 %v4169, 16
        %v4264 = vrot.slane %v4262, 3
        %v4265 = vshll.u32 %v4169, 16
        %v4267 = vrot.slane %v4265, 4
        %v4268 = vor.u32 %v4264, %v4267
        %v4270 = vshrl.u32 %v4170, 16
        %v4272 = vrot.slane %v4270, 3
        %v4273 = vshll.u32 %v4170, 16
        %v4275 = vrot.slane %v4273, 4
        %v4276 = vor.u32 %v4272, %v4275
        %v4277 = vsel %vm722, %v4268, %v4276
        %v4279 = vshrl.u32 %v4171, 16
        %v4281 = vrot.slane %v4279, 3
        %v4282 = vshll.u32 %v4171, 16
        %v4284 = vrot.slane %v4282, 4
        %v4285 = vor.u32 %v4281, %v4284
        %v4287 = vshrl.u32 %v4172, 16
        %v4289 = vrot.slane %v4287, 3
        %v4290 = vshll.u32 %v4172, 16
        %v4292 = vrot.slane %v4290, 4
        %v4293 = vor.u32 %v4289, %v4292
        %v4294 = vsel %vm722, %v4285, %v4293
        %v4296 = vshrl.u32 %v4173, 16
        %v4298 = vrot.slane %v4296, 3
        %v4299 = vshll.u32 %v4173, 16
        %v4301 = vrot.slane %v4299, 4
        %v4302 = vor.u32 %v4298, %v4301
        %v4304 = vshrl.u32 %v4174, 16
        %v4306 = vrot.slane %v4304, 3
        %v4307 = vshll.u32 %v4174, 16
        %v4309 = vrot.slane %v4307, 4
        %v4310 = vor.u32 %v4306, %v4309
        %v4311 = vsel %vm722, %v4302, %v4310
        %v4313 = vshrl.u32 %v4175, 16
        %v4315 = vrot.slane %v4313, 3
        %v4316 = vshll.u32 %v4175, 16
        %v4318 = vrot.slane %v4316, 4
        %v4319 = vor.u32 %v4315, %v4318
        %v4321 = vshrl.u32 %v4176, 16
        %v4323 = vrot.slane %v4321, 3
        %v4324 = vshll.u32 %v4176, 16
        %v4326 = vrot.slane %v4324, 4
        %v4327 = vor.u32 %v4323, %v4326
        %v4328 = vsel %vm722, %v4319, %v4327
        %v4330 = vshrl.u32 %v4177, 16
        %v4332 = vrot.slane %v4330, 3
        %v4333 = vshll.u32 %v4177, 16
        %v4335 = vrot.slane %v4333, 4
        %v4336 = vor.u32 %v4332, %v4335
        %v4338 = vshrl.u32 %v4178, 16
        %v4340 = vrot.slane %v4338, 3
        %v4341 = vshll.u32 %v4178, 16
        %v4343 = vrot.slane %v4341, 4
        %v4344 = vor.u32 %v4340, %v4343
        %v4345 = vsel %vm722, %v4336, %v4344
        %v4347 = vshrl.u32 %v4179, 16
        %v4349 = vrot.slane %v4347, 3
        %v4350 = vshll.u32 %v4179, 16
        %v4352 = vrot.slane %v4350, 4
        %v4353 = vor.u32 %v4349, %v4352
        %v4355 = vshrl.u32 %v4180, 16
        %v4357 = vrot.slane %v4355, 3
        %v4358 = vshll.u32 %v4180, 16
        %v4360 = vrot.slane %v4358, 4
        %v4361 = vor.u32 %v4357, %v4360
        %v4362 = vsel %vm722, %v4353, %v4361
        %v4364 = vshrl.u32 %v4181, 16
        %v4366 = vrot.slane %v4364, 3
        %v4367 = vshll.u32 %v4181, 16
        %v4369 = vrot.slane %v4367, 4
        %v4370 = vor.u32 %v4366, %v4369
        %v4372 = vshrl.u32 %v4182, 16
        %v4374 = vrot.slane %v4372, 3
        %v4375 = vshll.u32 %v4182, 16
        %v4377 = vrot.slane %v4375, 4
        %v4378 = vor.u32 %v4374, %v4377
        %v4379 = vsel %vm722, %v4370, %v4378
        %v4381 = vshrl.u32 %v4183, 16
        %v4383 = vrot.slane %v4381, 3
        %v4384 = vshll.u32 %v4183, 16
        %v4386 = vrot.slane %v4384, 4
        %v4387 = vor.u32 %v4383, %v4386
        %v4389 = vshrl.u32 %v4184, 16
        %v4391 = vrot.slane %v4389, 3
        %v4392 = vshll.u32 %v4184, 16
        %v4394 = vrot.slane %v4392, 4
        %v4395 = vor.u32 %v4391, %v4394
        %v4396 = vsel %vm722, %v4387, %v4395
        %v4398 = vshrl.u32 %v4185, 16
        %v4400 = vrot.slane %v4398, 3
        %v4401 = vshll.u32 %v4185, 16
        %v4403 = vrot.slane %v4401, 4
        %v4404 = vor.u32 %v4400, %v4403
        %v4406 = vshrl.u32 %v4186, 16
        %v4408 = vrot.slane %v4406, 3
        %v4409 = vshll.u32 %v4186, 16
        %v4411 = vrot.slane %v4409, 4
        %v4412 = vor.u32 %v4408, %v4411
        %v4413 = vsel %vm722, %v4404, %v4412
        %v4415 = vshrl.u32 %v4187, 16
        %v4417 = vrot.slane %v4415, 3
        %v4418 = vshll.u32 %v4187, 16
        %v4420 = vrot.slane %v4418, 4
        %v4421 = vor.u32 %v4417, %v4420
        %v4423 = vshrl.u32 %v4188, 16
        %v4425 = vrot.slane %v4423, 3
        %v4426 = vshll.u32 %v4188, 16
        %v4428 = vrot.slane %v4426, 4
        %v4429 = vor.u32 %v4425, %v4428
        %v4430 = vsel %vm722, %v4421, %v4429
        %v4432 = vshrl.u32 %v4189, 16
        %v4434 = vrot.slane %v4432, 3
        %v4435 = vshll.u32 %v4189, 16
        %v4437 = vrot.slane %v4435, 4
        %v4438 = vor.u32 %v4434, %v4437
        %v4440 = vshrl.u32 %v4190, 16
        %v4442 = vrot.slane %v4440, 3
        %v4443 = vshll.u32 %v4190, 16
        %v4445 = vrot.slane %v4443, 4
        %v4446 = vor.u32 %v4442, %v4445
        %v4447 = vsel %vm722, %v4438, %v4446
        %v4449 = vshrl.u32 %v4191, 16
        %v4451 = vrot.slane %v4449, 3
        %v4452 = vshll.u32 %v4191, 16
        %v4454 = vrot.slane %v4452, 4
        %v4455 = vor.u32 %v4451, %v4454
        %v4457 = vshrl.u32 %v4192, 16
        %v4459 = vrot.slane %v4457, 3
        %v4460 = vshll.u32 %v4192, 16
        %v4462 = vrot.slane %v4460, 4
        %v4463 = vor.u32 %v4459, %v4462
        %v4464 = vsel %vm722, %v4455, %v4463
        %v4481 = vld [vmem:[#allocation3] sm:$0xff]
        %v4482 = vld [vmem:[#allocation3 + $0x8] sm:$0xff]
        %v4483 = vld [vmem:[#allocation3 + $0x10] sm:$0xff]
        %v4484 = vld [vmem:[#allocation3 + $0x18] sm:$0xff]
        %v4485 = vld [vmem:[#allocation3 + $0x20] sm:$0xff]
        %v4486 = vld [vmem:[#allocation3 + $0x28] sm:$0xff]
        %v4487 = vld [vmem:[#allocation3 + $0x30] sm:$0xff]
        %v4488 = vld [vmem:[#allocation3 + $0x38] sm:$0xff]
        %v4489 = vld [vmem:[#allocation3 + $0x40] sm:$0xff]
        %v4490 = vld [vmem:[#allocation3 + $0x48] sm:$0xff]
        %v4491 = vld [vmem:[#allocation3 + $0x50] sm:$0xff]
        %v4492 = vld [vmem:[#allocation3 + $0x58] sm:$0xff]
        %v4493 = vld [vmem:[#allocation3 + $0x60] sm:$0xff]
        %v4494 = vld [vmem:[#allocation3 + $0x68] sm:$0xff]
        %v4495 = vld [vmem:[#allocation3 + $0x70] sm:$0xff]
        %v4496 = vld [vmem:[#allocation3 + $0x78] sm:$0xff]
        %v4497 = vld [vmem:[#allocation3 + $0x80] sm:$0xff]
        %v4498 = vld [vmem:[#allocation3 + $0x88] sm:$0xff]
        %v4499 = vld [vmem:[#allocation3 + $0x90] sm:$0xff]
        %v4500 = vld [vmem:[#allocation3 + $0x98] sm:$0xff]
        %v4501 = vld [vmem:[#allocation3 + $0xa0] sm:$0xff]
        %v4502 = vld [vmem:[#allocation3 + $0xa8] sm:$0xff]
        %v4503 = vld [vmem:[#allocation3 + $0xb0] sm:$0xff]
        %v4504 = vld [vmem:[#allocation3 + $0xb8] sm:$0xff]
        %v4505 = vld [vmem:[#allocation3 + $0xc0] sm:$0xff]
        %v4506 = vld [vmem:[#allocation3 + $0xc8] sm:$0xff]
        %v4507 = vld [vmem:[#allocation3 + $0xd0] sm:$0xff]
        %v4508 = vld [vmem:[#allocation3 + $0xd8] sm:$0xff]
        %v4509 = vld [vmem:[#allocation3 + $0xe0] sm:$0xff]
        %v4510 = vld [vmem:[#allocation3 + $0xe8] sm:$0xff]
        %v4511 = vld [vmem:[#allocation3 + $0xf0] sm:$0xff]
        %v4512 = vld [vmem:[#allocation3 + $0xf8] sm:$0xff]
        %s4513 = scalar_lea.vmem [#allocation10], 384
        %v4514 = vld [vmem:[%s4513] sm:$0xf]
        %v4515 = vld [vmem:[%s4513 + $0x4] sm:$0xf]
        %v4516 = vld [vmem:[%s4513 + $0x8] sm:$0xf]
        %v4517 = vld [vmem:[%s4513 + $0xc] sm:$0xf]
        %v4518 = vld [vmem:[%s4513 + $0x10] sm:$0xf]
        %v4519 = vld [vmem:[%s4513 + $0x14] sm:$0xf]
        %v4520 = vld [vmem:[%s4513 + $0x18] sm:$0xf]
        %v4521 = vld [vmem:[%s4513 + $0x1c] sm:$0xf]
        %v4522 = vld [vmem:[%s4513 + $0x20] sm:$0xf]
        %v4523 = vld [vmem:[%s4513 + $0x24] sm:$0xf]
        %v4524 = vld [vmem:[%s4513 + $0x28] sm:$0xf]
        %v4525 = vld [vmem:[%s4513 + $0x2c] sm:$0xf]
        %v4526 = vld [vmem:[%s4513 + $0x30] sm:$0xf]
        %v4527 = vld [vmem:[%s4513 + $0x34] sm:$0xf]
        %v4528 = vld [vmem:[%s4513 + $0x38] sm:$0xf]
        %v4529 = vld [vmem:[%s4513 + $0x3c] sm:$0xf]
        %v4546 = vunpack.c.l.b16 %v4514
        %v4547 = vunpack.c.l.b16 %v4515
        %v4548 = vunpack.c.l.b16 %v4516
        %v4549 = vunpack.c.l.b16 %v4517
        %v4550 = vunpack.c.l.b16 %v4518
        %v4551 = vunpack.c.l.b16 %v4519
        %v4552 = vunpack.c.l.b16 %v4520
        %v4553 = vunpack.c.l.b16 %v4521
        %v4554 = vunpack.c.l.b16 %v4522
        %v4555 = vunpack.c.l.b16 %v4523
        %v4556 = vunpack.c.l.b16 %v4524
        %v4557 = vunpack.c.l.b16 %v4525
        %v4558 = vunpack.c.l.b16 %v4526
        %v4559 = vunpack.c.l.b16 %v4527
        %v4560 = vunpack.c.l.b16 %v4528
        %v4561 = vunpack.c.l.b16 %v4529
        %v4562 = vpack.c.b16 %v4547, %v4546
        %v4563 = vpack.c.b16 %v4549, %v4548
        %v4564 = vpack.c.b16 %v4551, %v4550
        %v4565 = vpack.c.b16 %v4553, %v4552
        %v4566 = vpack.c.b16 %v4555, %v4554
        %v4567 = vpack.c.b16 %v4557, %v4556
        %v4568 = vpack.c.b16 %v4559, %v4558
        %v4569 = vpack.c.b16 %v4561, %v4560
        %4578 = vmatprep.subr.bf16.mxu0 0
        %4579 = vmatpush1.bf16.msra.mxu0 %v4562
        %4580 = vmatprep.subr.bf16.mxu0 0
        %4581 = vmatpush1.bf16.msra.mxu0 %v4563
        %4582 = vmatprep.subr.bf16.mxu0 0
        %4583 = vmatpush1.bf16.msra.mxu0 %v4564
        %4584 = vmatprep.subr.bf16.mxu0 0
        %4585 = vmatpush1.bf16.msra.mxu0 %v4565
        %4586 = vmatprep.subr.bf16.mxu0 0
        %4587 = vmatpush1.bf16.msra.mxu0 %v4566
        %4588 = vmatprep.subr.bf16.mxu0 0
        %4589 = vmatpush1.bf16.msra.mxu0 %v4567
        %4590 = vmatprep.subr.bf16.mxu0 0
        %4591 = vmatpush1.bf16.msra.mxu0 %v4568
        %4592 = vmatprep.subr.bf16.mxu0 0
        %4593 = vmatpush1.bf16.msra.mxu0 %v4569
        %4594 = vmatprep.subr.bf16.mxu0 0
        %4595 = vmatpush1.bf16.msra.mxu0 0
        %4596 = vmatprep.subr.bf16.mxu0 0
        %4597 = vmatpush1.bf16.msra.mxu0 0
        %4598 = vmatprep.subr.bf16.mxu0 0
        %4599 = vmatpush1.bf16.msra.mxu0 0
        %4600 = vmatprep.subr.bf16.mxu0 0
        %4601 = vmatpush1.bf16.msra.mxu0 0
        %4602 = vmatprep.subr.bf16.mxu0 0
        %4603 = vmatpush1.bf16.msra.mxu0 0
        %4604 = vmatprep.subr.bf16.mxu0 0
        %4605 = vmatpush1.bf16.msra.mxu0 0
        %4606 = vmatprep.subr.bf16.mxu0 0
        %4607 = vmatpush1.bf16.msra.mxu0 0
        %4608 = vmatprep.subr.bf16.mxu0 0
        %4609 = vmatpush1.bf16.msra.mxu0 0
        %4610 = vmatprep.mubr.bf16.mxu0 0
        %4611 = vmatmul.mubr.bf16.gmra.mrb[0].mxu0 %v4209
        %v4612 = vpop.f32.mrb[0].mxu0
        %v4613 = vadd.f32 0.0, %v4612
        %v4614 = vpop.f32.mrb[0].mxu0
        %v4615 = vpop.f32.mrb[0].mxu0
        %v4616 = vadd.f32 0.0, %v4615
        %v4617 = vpop.f32.mrb[0].mxu0
        %4618 = vmatprep.mubr.bf16.mxu0 0
        %4619 = vmatmul.mubr.bf16.gmra.mrb[0].mxu0 %v4226
        %v4620 = vpop.f32.mrb[0].mxu0
        %v4621 = vadd.f32 0.0, %v4620
        %v4622 = vpop.f32.mrb[0].mxu0
        %v4623 = vpop.f32.mrb[0].mxu0
        %v4624 = vadd.f32 0.0, %v4623
        %v4625 = vpop.f32.mrb[0].mxu0
        %4626 = vmatprep.mubr.bf16.mxu0 0
        %4627 = vmatmul.mubr.bf16.gmra.mrb[0].mxu0 %v4243
        %v4628 = vpop.f32.mrb[0].mxu0
        %v4629 = vadd.f32 0.0, %v4628
        %v4630 = vpop.f32.mrb[0].mxu0
        %v4631 = vpop.f32.mrb[0].mxu0
        %v4632 = vadd.f32 0.0, %v4631
        %v4633 = vpop.f32.mrb[0].mxu0
        %4634 = vmatprep.mubr.bf16.mxu0 0
        %4635 = vmatmul.mubr.bf16.gmra.mrb[0].mxu0 %v4260
        %v4636 = vpop.f32.mrb[0].mxu0
        %v4637 = vadd.f32 0.0, %v4636
        %v4638 = vpop.f32.mrb[0].mxu0
        %v4639 = vpop.f32.mrb[0].mxu0
        %v4640 = vadd.f32 0.0, %v4639
        %v4641 = vpop.f32.mrb[0].mxu0
        %4642 = vmatprep.mubr.bf16.mxu0 0
        %4643 = vmatmul.mubr.bf16.gmra.mrb[0].mxu0 %v4277
        %v4644 = vpop.f32.mrb[0].mxu0
        %v4645 = vadd.f32 0.0, %v4644
        %v4646 = vpop.f32.mrb[0].mxu0
        %v4647 = vpop.f32.mrb[0].mxu0
        %v4648 = vadd.f32 0.0, %v4647
        %v4649 = vpop.f32.mrb[0].mxu0
        %4650 = vmatprep.mubr.bf16.mxu0 0
        %4651 = vmatmul.mubr.bf16.gmra.mrb[0].mxu0 %v4294
        %v4652 = vpop.f32.mrb[0].mxu0
        %v4653 = vadd.f32 0.0, %v4652
        %v4654 = vpop.f32.mrb[0].mxu0
        %v4655 = vpop.f32.mrb[0].mxu0
        %v4656 = vadd.f32 0.0, %v4655
        %v4657 = vpop.f32.mrb[0].mxu0
        %4658 = vmatprep.mubr.bf16.mxu0 0
        %4659 = vmatmul.mubr.bf16.gmra.mrb[0].mxu0 %v4311
        %v4660 = vpop.f32.mrb[0].mxu0
        %v4661 = vadd.f32 0.0, %v4660
        %v4662 = vpop.f32.mrb[0].mxu0
        %v4663 = vpop.f32.mrb[0].mxu0
        %v4664 = vadd.f32 0.0, %v4663
        %v4665 = vpop.f32.mrb[0].mxu0
        %4666 = vmatprep.mubr.bf16.mxu0 0
        %4667 = vmatmul.mubr.bf16.gmra.mrb[0].mxu0 %v4328
        %v4668 = vpop.f32.mrb[0].mxu0
        %v4669 = vadd.f32 0.0, %v4668
        %v4670 = vpop.f32.mrb[0].mxu0
        %v4671 = vpop.f32.mrb[0].mxu0
        %v4672 = vadd.f32 0.0, %v4671
        %v4673 = vpop.f32.mrb[0].mxu0
        %4674 = vmatprep.mubr.bf16.mxu0 0
        %4675 = vmatmul.mubr.bf16.gmra.mrb[0].mxu0 %v4345
        %v4676 = vpop.f32.mrb[0].mxu0
        %v4677 = vadd.f32 0.0, %v4676
        %v4678 = vpop.f32.mrb[0].mxu0
        %v4679 = vpop.f32.mrb[0].mxu0
        %v4680 = vadd.f32 0.0, %v4679
        %v4681 = vpop.f32.mrb[0].mxu0
        %4682 = vmatprep.mubr.bf16.mxu0 0
        %4683 = vmatmul.mubr.bf16.gmra.mrb[0].mxu0 %v4362
        %v4684 = vpop.f32.mrb[0].mxu0
        %v4685 = vadd.f32 0.0, %v4684
        %v4686 = vpop.f32.mrb[0].mxu0
        %v4687 = vpop.f32.mrb[0].mxu0
        %v4688 = vadd.f32 0.0, %v4687
        %v4689 = vpop.f32.mrb[0].mxu0
        %4690 = vmatprep.mubr.bf16.mxu0 0
        %4691 = vmatmul.mubr.bf16.gmra.mrb[0].mxu0 %v4379
        %v4692 = vpop.f32.mrb[0].mxu0
        %v4693 = vadd.f32 0.0, %v4692
        %v4694 = vpop.f32.mrb[0].mxu0
        %v4695 = vpop.f32.mrb[0].mxu0
        %v4696 = vadd.f32 0.0, %v4695
        %v4697 = vpop.f32.mrb[0].mxu0
        %4698 = vmatprep.mubr.bf16.mxu0 0
        %4699 = vmatmul.mubr.bf16.gmra.mrb[0].mxu0 %v4396
        %v4700 = vpop.f32.mrb[0].mxu0
        %v4701 = vadd.f32 0.0, %v4700
        %v4702 = vpop.f32.mrb[0].mxu0
        %v4703 = vpop.f32.mrb[0].mxu0
        %v4704 = vadd.f32 0.0, %v4703
        %v4705 = vpop.f32.mrb[0].mxu0
        %4706 = vmatprep.mubr.bf16.mxu0 0
        %4707 = vmatmul.mubr.bf16.gmra.mrb[0].mxu0 %v4413
        %v4708 = vpop.f32.mrb[0].mxu0
        %v4709 = vadd.f32 0.0, %v4708
        %v4710 = vpop.f32.mrb[0].mxu0
        %v4711 = vpop.f32.mrb[0].mxu0
        %v4712 = vadd.f32 0.0, %v4711
        %v4713 = vpop.f32.mrb[0].mxu0
        %4714 = vmatprep.mubr.bf16.mxu0 0
        %4715 = vmatmul.mubr.bf16.gmra.mrb[0].mxu0 %v4430
        %v4716 = vpop.f32.mrb[0].mxu0
        %v4717 = vadd.f32 0.0, %v4716
        %v4718 = vpop.f32.mrb[0].mxu0
        %v4719 = vpop.f32.mrb[0].mxu0
        %v4720 = vadd.f32 0.0, %v4719
        %v4721 = vpop.f32.mrb[0].mxu0
        %4722 = vmatprep.mubr.bf16.mxu0 0
        %4723 = vmatmul.mubr.bf16.gmra.mrb[0].mxu0 %v4447
        %v4724 = vpop.f32.mrb[0].mxu0
        %v4725 = vadd.f32 0.0, %v4724
        %v4726 = vpop.f32.mrb[0].mxu0
        %v4727 = vpop.f32.mrb[0].mxu0
        %v4728 = vadd.f32 0.0, %v4727
        %v4729 = vpop.f32.mrb[0].mxu0
        %4730 = vmatprep.mubr.bf16.mxu0 0
        %4731 = vmatmul.mubr.bf16.gmra.mrb[0].mxu0 %v4464
        %v4732 = vpop.f32.mrb[0].mxu0
        %v4733 = vadd.f32 0.0, %v4732
        %v4734 = vpop.f32.mrb[0].mxu0
        %v4735 = vpop.f32.mrb[0].mxu0
        %v4736 = vadd.f32 0.0, %v4735
        %v4737 = vpop.f32.mrb[0].mxu0
        %4738 = vdwg.mxu0
        %v4739 = vadd.f32 %v4481, %v4613
        %v4740 = vadd.f32 %v4482, %v4616
        %v4741 = vadd.f32 %v4483, %v4621
        %v4742 = vadd.f32 %v4484, %v4624
        %v4743 = vadd.f32 %v4485, %v4629
        %v4744 = vadd.f32 %v4486, %v4632
        %v4745 = vadd.f32 %v4487, %v4637
        %v4746 = vadd.f32 %v4488, %v4640
        %v4747 = vadd.f32 %v4489, %v4645
        %v4748 = vadd.f32 %v4490, %v4648
        %v4749 = vadd.f32 %v4491, %v4653
        %v4750 = vadd.f32 %v4492, %v4656
        %v4751 = vadd.f32 %v4493, %v4661
        %v4752 = vadd.f32 %v4494, %v4664
        %v4753 = vadd.f32 %v4495, %v4669
        %v4754 = vadd.f32 %v4496, %v4672
        %v4755 = vadd.f32 %v4497, %v4677
        %v4756 = vadd.f32 %v4498, %v4680
        %v4757 = vadd.f32 %v4499, %v4685
        %v4758 = vadd.f32 %v4500, %v4688
        %v4759 = vadd.f32 %v4501, %v4693
        %v4760 = vadd.f32 %v4502, %v4696
        %v4761 = vadd.f32 %v4503, %v4701
        %v4762 = vadd.f32 %v4504, %v4704
        %v4763 = vadd.f32 %v4505, %v4709
        %v4764 = vadd.f32 %v4506, %v4712
        %v4765 = vadd.f32 %v4507, %v4717
        %v4766 = vadd.f32 %v4508, %v4720
        %v4767 = vadd.f32 %v4509, %v4725
        %v4768 = vadd.f32 %v4510, %v4728
        %v4769 = vadd.f32 %v4511, %v4733
        %v4770 = vadd.f32 %v4512, %v4736
        %4771 = vst [vmem:[#allocation3] sm:$0xff] %v4739
        %4772 = vst [vmem:[#allocation3 + $0x8] sm:$0xff] %v4740
        %4773 = vst [vmem:[#allocation3 + $0x10] sm:$0xff] %v4741
        %4774 = vst [vmem:[#allocation3 + $0x18] sm:$0xff] %v4742
        %4775 = vst [vmem:[#allocation3 + $0x20] sm:$0xff] %v4743
        %4776 = vst [vmem:[#allocation3 + $0x28] sm:$0xff] %v4744
        %4777 = vst [vmem:[#allocation3 + $0x30] sm:$0xff] %v4745
        %4778 = vst [vmem:[#allocation3 + $0x38] sm:$0xff] %v4746
        %4779 = vst [vmem:[#allocation3 + $0x40] sm:$0xff] %v4747
        %4780 = vst [vmem:[#allocation3 + $0x48] sm:$0xff] %v4748
        %4781 = vst [vmem:[#allocation3 + $0x50] sm:$0xff] %v4749
        %4782 = vst [vmem:[#allocation3 + $0x58] sm:$0xff] %v4750
        %4783 = vst [vmem:[#allocation3 + $0x60] sm:$0xff] %v4751
        %4784 = vst [vmem:[#allocation3 + $0x68] sm:$0xff] %v4752
        %4785 = vst [vmem:[#allocation3 + $0x70] sm:$0xff] %v4753
        %4786 = vst [vmem:[#allocation3 + $0x78] sm:$0xff] %v4754
        %4787 = vst [vmem:[#allocation3 + $0x80] sm:$0xff] %v4755
        %4788 = vst [vmem:[#allocation3 + $0x88] sm:$0xff] %v4756
        %4789 = vst [vmem:[#allocation3 + $0x90] sm:$0xff] %v4757
        %4790 = vst [vmem:[#allocation3 + $0x98] sm:$0xff] %v4758
        %4791 = vst [vmem:[#allocation3 + $0xa0] sm:$0xff] %v4759
        %4792 = vst [vmem:[#allocation3 + $0xa8] sm:$0xff] %v4760
        %4793 = vst [vmem:[#allocation3 + $0xb0] sm:$0xff] %v4761
        %4794 = vst [vmem:[#allocation3 + $0xb8] sm:$0xff] %v4762
        %4795 = vst [vmem:[#allocation3 + $0xc0] sm:$0xff] %v4763
        %4796 = vst [vmem:[#allocation3 + $0xc8] sm:$0xff] %v4764
        %4797 = vst [vmem:[#allocation3 + $0xd0] sm:$0xff] %v4765
        %4798 = vst [vmem:[#allocation3 + $0xd8] sm:$0xff] %v4766
        %4799 = vst [vmem:[#allocation3 + $0xe0] sm:$0xff] %v4767
        %4800 = vst [vmem:[#allocation3 + $0xe8] sm:$0xff] %v4768
        %4801 = vst [vmem:[#allocation3 + $0xf0] sm:$0xff] %v4769
        %4802 = vst [vmem:[#allocation3 + $0xf8] sm:$0xff] %v4770
        %v4803 = vld [vmem:[%s4160] sm:$0xf0]
        %v4804 = vld [vmem:[%s4160 + $0x8] sm:$0xf]
        %v4805 = vld [vmem:[%s4160 + $0x10] sm:$0xf0]
        %v4806 = vld [vmem:[%s4160 + $0x18] sm:$0xf]
        %v4807 = vld [vmem:[%s4160 + $0x20] sm:$0xf0]
        %v4808 = vld [vmem:[%s4160 + $0x28] sm:$0xf]
        %v4809 = vld [vmem:[%s4160 + $0x30] sm:$0xf0]
        %v4810 = vld [vmem:[%s4160 + $0x38] sm:$0xf]
        %v4811 = vld [vmem:[%s4160 + $0x40] sm:$0xf0]
        %v4812 = vld [vmem:[%s4160 + $0x48] sm:$0xf]
        %v4813 = vld [vmem:[%s4160 + $0x50] sm:$0xf0]
        %v4814 = vld [vmem:[%s4160 + $0x58] sm:$0xf]
        %v4815 = vld [vmem:[%s4160 + $0x60] sm:$0xf0]
        %v4816 = vld [vmem:[%s4160 + $0x68] sm:$0xf]
        %v4817 = vld [vmem:[%s4160 + $0x70] sm:$0xf0]
        %v4818 = vld [vmem:[%s4160 + $0x78] sm:$0xf]
        %v4819 = vld [vmem:[%s4160 + $0x80] sm:$0xf0]
        %v4820 = vld [vmem:[%s4160 + $0x88] sm:$0xf]
        %v4821 = vld [vmem:[%s4160 + $0x90] sm:$0xf0]
        %v4822 = vld [vmem:[%s4160 + $0x98] sm:$0xf]
        %v4823 = vld [vmem:[%s4160 + $0xa0] sm:$0xf0]
        %v4824 = vld [vmem:[%s4160 + $0xa8] sm:$0xf]
        %v4825 = vld [vmem:[%s4160 + $0xb0] sm:$0xf0]
        %v4826 = vld [vmem:[%s4160 + $0xb8] sm:$0xf]
        %v4827 = vld [vmem:[%s4160 + $0xc0] sm:$0xf0]
        %v4828 = vld [vmem:[%s4160 + $0xc8] sm:$0xf]
        %v4829 = vld [vmem:[%s4160 + $0xd0] sm:$0xf0]
        %v4830 = vld [vmem:[%s4160 + $0xd8] sm:$0xf]
        %v4831 = vld [vmem:[%s4160 + $0xe0] sm:$0xf0]
        %v4832 = vld [vmem:[%s4160 + $0xe8] sm:$0xf]
        %v4833 = vld [vmem:[%s4160 + $0xf0] sm:$0xf0]
        %v4834 = vld [vmem:[%s4160 + $0xf8] sm:$0xf]
        %v4867 = vrot.slane %v4803, 4
        %v4868 = vrot.slane %v4804, 4
        %v4869 = vsel %vm1396, %v4867, %v4868
        %v4870 = vrot.slane %v4805, 4
        %v4871 = vrot.slane %v4806, 4
        %v4872 = vsel %vm1396, %v4870, %v4871
        %v4873 = vrot.slane %v4807, 4
        %v4874 = vrot.slane %v4808, 4
        %v4875 = vsel %vm1396, %v4873, %v4874
        %v4876 = vrot.slane %v4809, 4
        %v4877 = vrot.slane %v4810, 4
        %v4878 = vsel %vm1396, %v4876, %v4877
        %v4879 = vrot.slane %v4811, 4
        %v4880 = vrot.slane %v4812, 4
        %v4881 = vsel %vm1396, %v4879, %v4880
        %v4882 = vrot.slane %v4813, 4
        %v4883 = vrot.slane %v4814, 4
        %v4884 = vsel %vm1396, %v4882, %v4883
        %v4885 = vrot.slane %v4815, 4
        %v4886 = vrot.slane %v4816, 4
        %v4887 = vsel %vm1396, %v4885, %v4886
        %v4888 = vrot.slane %v4817, 4
        %v4889 = vrot.slane %v4818, 4
        %v4890 = vsel %vm1396, %v4888, %v4889
        %v4891 = vrot.slane %v4819, 4
        %v4892 = vrot.slane %v4820, 4
        %v4893 = vsel %vm1396, %v4891, %v4892
        %v4894 = vrot.slane %v4821, 4
        %v4895 = vrot.slane %v4822, 4
        %v4896 = vsel %vm1396, %v4894, %v4895
        %v4897 = vrot.slane %v4823, 4
        %v4898 = vrot.slane %v4824, 4
        %v4899 = vsel %vm1396, %v4897, %v4898
        %v4900 = vrot.slane %v4825, 4
        %v4901 = vrot.slane %v4826, 4
        %v4902 = vsel %vm1396, %v4900, %v4901
        %v4903 = vrot.slane %v4827, 4
        %v4904 = vrot.slane %v4828, 4
        %v4905 = vsel %vm1396, %v4903, %v4904
        %v4906 = vrot.slane %v4829, 4
        %v4907 = vrot.slane %v4830, 4
        %v4908 = vsel %vm1396, %v4906, %v4907
        %v4909 = vrot.slane %v4831, 4
        %v4910 = vrot.slane %v4832, 4
        %v4911 = vsel %vm1396, %v4909, %v4910
        %v4912 = vrot.slane %v4833, 4
        %v4913 = vrot.slane %v4834, 4
        %v4914 = vsel %vm1396, %v4912, %v4913
        %v4931 = vld [vmem:[#allocation3] sm:$0xff]
        %v4932 = vld [vmem:[#allocation3 + $0x8] sm:$0xff]
        %v4933 = vld [vmem:[#allocation3 + $0x10] sm:$0xff]
        %v4934 = vld [vmem:[#allocation3 + $0x18] sm:$0xff]
        %v4935 = vld [vmem:[#allocation3 + $0x20] sm:$0xff]
        %v4936 = vld [vmem:[#allocation3 + $0x28] sm:$0xff]
        %v4937 = vld [vmem:[#allocation3 + $0x30] sm:$0xff]
        %v4938 = vld [vmem:[#allocation3 + $0x38] sm:$0xff]
        %v4939 = vld [vmem:[#allocation3 + $0x40] sm:$0xff]
        %v4940 = vld [vmem:[#allocation3 + $0x48] sm:$0xff]
        %v4941 = vld [vmem:[#allocation3 + $0x50] sm:$0xff]
        %v4942 = vld [vmem:[#allocation3 + $0x58] sm:$0xff]
        %v4943 = vld [vmem:[#allocation3 + $0x60] sm:$0xff]
        %v4944 = vld [vmem:[#allocation3 + $0x68] sm:$0xff]
        %v4945 = vld [vmem:[#allocation3 + $0x70] sm:$0xff]
        %v4946 = vld [vmem:[#allocation3 + $0x78] sm:$0xff]
        %v4947 = vld [vmem:[#allocation3 + $0x80] sm:$0xff]
        %v4948 = vld [vmem:[#allocation3 + $0x88] sm:$0xff]
        %v4949 = vld [vmem:[#allocation3 + $0x90] sm:$0xff]
        %v4950 = vld [vmem:[#allocation3 + $0x98] sm:$0xff]
        %v4951 = vld [vmem:[#allocation3 + $0xa0] sm:$0xff]
        %v4952 = vld [vmem:[#allocation3 + $0xa8] sm:$0xff]
        %v4953 = vld [vmem:[#allocation3 + $0xb0] sm:$0xff]
        %v4954 = vld [vmem:[#allocation3 + $0xb8] sm:$0xff]
        %v4955 = vld [vmem:[#allocation3 + $0xc0] sm:$0xff]
        %v4956 = vld [vmem:[#allocation3 + $0xc8] sm:$0xff]
        %v4957 = vld [vmem:[#allocation3 + $0xd0] sm:$0xff]
        %v4958 = vld [vmem:[#allocation3 + $0xd8] sm:$0xff]
        %v4959 = vld [vmem:[#allocation3 + $0xe0] sm:$0xff]
        %v4960 = vld [vmem:[#allocation3 + $0xe8] sm:$0xff]
        %v4961 = vld [vmem:[#allocation3 + $0xf0] sm:$0xff]
        %v4962 = vld [vmem:[#allocation3 + $0xf8] sm:$0xff]
        %s4963 = scalar_lea.vmem [#allocation10], 448
        %v4964 = vld [vmem:[%s4963] sm:$0xf]
        %v4965 = vld [vmem:[%s4963 + $0x4] sm:$0xf]
        %v4966 = vld [vmem:[%s4963 + $0x8] sm:$0xf]
        %v4967 = vld [vmem:[%s4963 + $0xc] sm:$0xf]
        %v4968 = vld [vmem:[%s4963 + $0x10] sm:$0xf]
        %v4969 = vld [vmem:[%s4963 + $0x14] sm:$0xf]
        %v4970 = vld [vmem:[%s4963 + $0x18] sm:$0xf]
        %v4971 = vld [vmem:[%s4963 + $0x1c] sm:$0xf]
        %v4972 = vld [vmem:[%s4963 + $0x20] sm:$0xf]
        %v4973 = vld [vmem:[%s4963 + $0x24] sm:$0xf]
        %v4974 = vld [vmem:[%s4963 + $0x28] sm:$0xf]
        %v4975 = vld [vmem:[%s4963 + $0x2c] sm:$0xf]
        %v4976 = vld [vmem:[%s4963 + $0x30] sm:$0xf]
        %v4977 = vld [vmem:[%s4963 + $0x34] sm:$0xf]
        %v4978 = vld [vmem:[%s4963 + $0x38] sm:$0xf]
        %v4979 = vld [vmem:[%s4963 + $0x3c] sm:$0xf]
        %v4996 = vunpack.c.l.b16 %v4964
        %v4997 = vunpack.c.l.b16 %v4965
        %v4998 = vunpack.c.l.b16 %v4966
        %v4999 = vunpack.c.l.b16 %v4967
        %v5000 = vunpack.c.l.b16 %v4968
        %v5001 = vunpack.c.l.b16 %v4969
        %v5002 = vunpack.c.l.b16 %v4970
        %v5003 = vunpack.c.l.b16 %v4971
        %v5004 = vunpack.c.l.b16 %v4972
        %v5005 = vunpack.c.l.b16 %v4973
        %v5006 = vunpack.c.l.b16 %v4974
        %v5007 = vunpack.c.l.b16 %v4975
        %v5008 = vunpack.c.l.b16 %v4976
        %v5009 = vunpack.c.l.b16 %v4977
        %v5010 = vunpack.c.l.b16 %v4978
        %v5011 = vunpack.c.l.b16 %v4979
        %v5012 = vpack.c.b16 %v4997, %v4996
        %v5013 = vpack.c.b16 %v4999, %v4998
        %v5014 = vpack.c.b16 %v5001, %v5000
        %v5015 = vpack.c.b16 %v5003, %v5002
        %v5016 = vpack.c.b16 %v5005, %v5004
        %v5017 = vpack.c.b16 %v5007, %v5006
        %v5018 = vpack.c.b16 %v5009, %v5008
        %v5019 = vpack.c.b16 %v5011, %v5010
        %5028 = vmatprep.subr.bf16.mxu0 0
        %5029 = vmatpush1.bf16.msra.mxu0 %v5012
        %5030 = vmatprep.subr.bf16.mxu0 0
        %5031 = vmatpush1.bf16.msra.mxu0 %v5013
        %5032 = vmatprep.subr.bf16.mxu0 0
        %5033 = vmatpush1.bf16.msra.mxu0 %v5014
        %5034 = vmatprep.subr.bf16.mxu0 0
        %5035 = vmatpush1.bf16.msra.mxu0 %v5015
        %5036 = vmatprep.subr.bf16.mxu0 0
        %5037 = vmatpush1.bf16.msra.mxu0 %v5016
        %5038 = vmatprep.subr.bf16.mxu0 0
        %5039 = vmatpush1.bf16.msra.mxu0 %v5017
        %5040 = vmatprep.subr.bf16.mxu0 0
        %5041 = vmatpush1.bf16.msra.mxu0 %v5018
        %5042 = vmatprep.subr.bf16.mxu0 0
        %5043 = vmatpush1.bf16.msra.mxu0 %v5019
        %5044 = vmatprep.subr.bf16.mxu0 0
        %5045 = vmatpush1.bf16.msra.mxu0 0
        %5046 = vmatprep.subr.bf16.mxu0 0
        %5047 = vmatpush1.bf16.msra.mxu0 0
        %5048 = vmatprep.subr.bf16.mxu0 0
        %5049 = vmatpush1.bf16.msra.mxu0 0
        %5050 = vmatprep.subr.bf16.mxu0 0
        %5051 = vmatpush1.bf16.msra.mxu0 0
        %5052 = vmatprep.subr.bf16.mxu0 0
        %5053 = vmatpush1.bf16.msra.mxu0 0
        %5054 = vmatprep.subr.bf16.mxu0 0
        %5055 = vmatpush1.bf16.msra.mxu0 0
        %5056 = vmatprep.subr.bf16.mxu0 0
        %5057 = vmatpush1.bf16.msra.mxu0 0
        %5058 = vmatprep.subr.bf16.mxu0 0
        %5059 = vmatpush1.bf16.msra.mxu0 0
        %5060 = vmatprep.mubr.bf16.mxu0 0
        %5061 = vmatmul.mubr.bf16.gmra.mrb[0].mxu0 %v4869
        %v5062 = vpop.f32.mrb[0].mxu0
        %v5063 = vadd.f32 0.0, %v5062
        %v5064 = vpop.f32.mrb[0].mxu0
        %v5065 = vpop.f32.mrb[0].mxu0
        %v5066 = vadd.f32 0.0, %v5065
        %v5067 = vpop.f32.mrb[0].mxu0
        %5068 = vmatprep.mubr.bf16.mxu0 0
        %5069 = vmatmul.mubr.bf16.gmra.mrb[0].mxu0 %v4872
        %v5070 = vpop.f32.mrb[0].mxu0
        %v5071 = vadd.f32 0.0, %v5070
        %v5072 = vpop.f32.mrb[0].mxu0
        %v5073 = vpop.f32.mrb[0].mxu0
        %v5074 = vadd.f32 0.0, %v5073
        %v5075 = vpop.f32.mrb[0].mxu0
        %5076 = vmatprep.mubr.bf16.mxu0 0
        %5077 = vmatmul.mubr.bf16.gmra.mrb[0].mxu0 %v4875
        %v5078 = vpop.f32.mrb[0].mxu0
        %v5079 = vadd.f32 0.0, %v5078
        %v5080 = vpop.f32.mrb[0].mxu0
        %v5081 = vpop.f32.mrb[0].mxu0
        %v5082 = vadd.f32 0.0, %v5081
        %v5083 = vpop.f32.mrb[0].mxu0
        %5084 = vmatprep.mubr.bf16.mxu0 0
        %5085 = vmatmul.mubr.bf16.gmra.mrb[0].mxu0 %v4878
        %v5086 = vpop.f32.mrb[0].mxu0
        %v5087 = vadd.f32 0.0, %v5086
        %v5088 = vpop.f32.mrb[0].mxu0
        %v5089 = vpop.f32.mrb[0].mxu0
        %v5090 = vadd.f32 0.0, %v5089
        %v5091 = vpop.f32.mrb[0].mxu0
        %5092 = vmatprep.mubr.bf16.mxu0 0
        %5093 = vmatmul.mubr.bf16.gmra.mrb[0].mxu0 %v4881
        %v5094 = vpop.f32.mrb[0].mxu0
        %v5095 = vadd.f32 0.0, %v5094
        %v5096 = vpop.f32.mrb[0].mxu0
        %v5097 = vpop.f32.mrb[0].mxu0
        %v5098 = vadd.f32 0.0, %v5097
        %v5099 = vpop.f32.mrb[0].mxu0
        %5100 = vmatprep.mubr.bf16.mxu0 0
        %5101 = vmatmul.mubr.bf16.gmra.mrb[0].mxu0 %v4884
        %v5102 = vpop.f32.mrb[0].mxu0
        %v5103 = vadd.f32 0.0, %v5102
        %v5104 = vpop.f32.mrb[0].mxu0
        %v5105 = vpop.f32.mrb[0].mxu0
        %v5106 = vadd.f32 0.0, %v5105
        %v5107 = vpop.f32.mrb[0].mxu0
        %5108 = vmatprep.mubr.bf16.mxu0 0
        %5109 = vmatmul.mubr.bf16.gmra.mrb[0].mxu0 %v4887
        %v5110 = vpop.f32.mrb[0].mxu0
        %v5111 = vadd.f32 0.0, %v5110
        %v5112 = vpop.f32.mrb[0].mxu0
        %v5113 = vpop.f32.mrb[0].mxu0
        %v5114 = vadd.f32 0.0, %v5113
        %v5115 = vpop.f32.mrb[0].mxu0
        %5116 = vmatprep.mubr.bf16.mxu0 0
        %5117 = vmatmul.mubr.bf16.gmra.mrb[0].mxu0 %v4890
        %v5118 = vpop.f32.mrb[0].mxu0
        %v5119 = vadd.f32 0.0, %v5118
        %v5120 = vpop.f32.mrb[0].mxu0
        %v5121 = vpop.f32.mrb[0].mxu0
        %v5122 = vadd.f32 0.0, %v5121
        %v5123 = vpop.f32.mrb[0].mxu0
        %5124 = vmatprep.mubr.bf16.mxu0 0
        %5125 = vmatmul.mubr.bf16.gmra.mrb[0].mxu0 %v4893
        %v5126 = vpop.f32.mrb[0].mxu0
        %v5127 = vadd.f32 0.0, %v5126
        %v5128 = vpop.f32.mrb[0].mxu0
        %v5129 = vpop.f32.mrb[0].mxu0
        %v5130 = vadd.f32 0.0, %v5129
        %v5131 = vpop.f32.mrb[0].mxu0
        %5132 = vmatprep.mubr.bf16.mxu0 0
        %5133 = vmatmul.mubr.bf16.gmra.mrb[0].mxu0 %v4896
        %v5134 = vpop.f32.mrb[0].mxu0
        %v5135 = vadd.f32 0.0, %v5134
        %v5136 = vpop.f32.mrb[0].mxu0
        %v5137 = vpop.f32.mrb[0].mxu0
        %v5138 = vadd.f32 0.0, %v5137
        %v5139 = vpop.f32.mrb[0].mxu0
        %5140 = vmatprep.mubr.bf16.mxu0 0
        %5141 = vmatmul.mubr.bf16.gmra.mrb[0].mxu0 %v4899
        %v5142 = vpop.f32.mrb[0].mxu0
        %v5143 = vadd.f32 0.0, %v5142
        %v5144 = vpop.f32.mrb[0].mxu0
        %v5145 = vpop.f32.mrb[0].mxu0
        %v5146 = vadd.f32 0.0, %v5145
        %v5147 = vpop.f32.mrb[0].mxu0
        %5148 = vmatprep.mubr.bf16.mxu0 0
        %5149 = vmatmul.mubr.bf16.gmra.mrb[0].mxu0 %v4902
        %v5150 = vpop.f32.mrb[0].mxu0
        %v5151 = vadd.f32 0.0, %v5150
        %v5152 = vpop.f32.mrb[0].mxu0
        %v5153 = vpop.f32.mrb[0].mxu0
        %v5154 = vadd.f32 0.0, %v5153
        %v5155 = vpop.f32.mrb[0].mxu0
        %5156 = vmatprep.mubr.bf16.mxu0 0
        %5157 = vmatmul.mubr.bf16.gmra.mrb[0].mxu0 %v4905
        %v5158 = vpop.f32.mrb[0].mxu0
        %v5159 = vadd.f32 0.0, %v5158
        %v5160 = vpop.f32.mrb[0].mxu0
        %v5161 = vpop.f32.mrb[0].mxu0
        %v5162 = vadd.f32 0.0, %v5161
        %v5163 = vpop.f32.mrb[0].mxu0
        %5164 = vmatprep.mubr.bf16.mxu0 0
        %5165 = vmatmul.mubr.bf16.gmra.mrb[0].mxu0 %v4908
        %v5166 = vpop.f32.mrb[0].mxu0
        %v5167 = vadd.f32 0.0, %v5166
        %v5168 = vpop.f32.mrb[0].mxu0
        %v5169 = vpop.f32.mrb[0].mxu0
        %v5170 = vadd.f32 0.0, %v5169
        %v5171 = vpop.f32.mrb[0].mxu0
        %5172 = vmatprep.mubr.bf16.mxu0 0
        %5173 = vmatmul.mubr.bf16.gmra.mrb[0].mxu0 %v4911
        %v5174 = vpop.f32.mrb[0].mxu0
        %v5175 = vadd.f32 0.0, %v5174
        %v5176 = vpop.f32.mrb[0].mxu0
        %v5177 = vpop.f32.mrb[0].mxu0
        %v5178 = vadd.f32 0.0, %v5177
        %v5179 = vpop.f32.mrb[0].mxu0
        %5180 = vmatprep.mubr.bf16.mxu0 0
        %5181 = vmatmul.mubr.bf16.gmra.mrb[0].mxu0 %v4914
        %v5182 = vpop.f32.mrb[0].mxu0
        %v5183 = vadd.f32 0.0, %v5182
        %v5184 = vpop.f32.mrb[0].mxu0
        %v5185 = vpop.f32.mrb[0].mxu0
        %v5186 = vadd.f32 0.0, %v5185
        %v5187 = vpop.f32.mrb[0].mxu0
        %5188 = vdwg.mxu0
        %v5189 = vadd.f32 %v4931, %v5063
        %v5190 = vadd.f32 %v4932, %v5066
        %v5191 = vadd.f32 %v4933, %v5071
        %v5192 = vadd.f32 %v4934, %v5074
        %v5193 = vadd.f32 %v4935, %v5079
        %v5194 = vadd.f32 %v4936, %v5082
        %v5195 = vadd.f32 %v4937, %v5087
        %v5196 = vadd.f32 %v4938, %v5090
        %v5197 = vadd.f32 %v4939, %v5095
        %v5198 = vadd.f32 %v4940, %v5098
        %v5199 = vadd.f32 %v4941, %v5103
        %v5200 = vadd.f32 %v4942, %v5106
        %v5201 = vadd.f32 %v4943, %v5111
        %v5202 = vadd.f32 %v4944, %v5114
        %v5203 = vadd.f32 %v4945, %v5119
        %v5204 = vadd.f32 %v4946, %v5122
        %v5205 = vadd.f32 %v4947, %v5127
        %v5206 = vadd.f32 %v4948, %v5130
        %v5207 = vadd.f32 %v4949, %v5135
        %v5208 = vadd.f32 %v4950, %v5138
        %v5209 = vadd.f32 %v4951, %v5143
        %v5210 = vadd.f32 %v4952, %v5146
        %v5211 = vadd.f32 %v4953, %v5151
        %v5212 = vadd.f32 %v4954, %v5154
        %v5213 = vadd.f32 %v4955, %v5159
        %v5214 = vadd.f32 %v4956, %v5162
        %v5215 = vadd.f32 %v4957, %v5167
        %v5216 = vadd.f32 %v4958, %v5170
        %v5217 = vadd.f32 %v4959, %v5175
        %v5218 = vadd.f32 %v4960, %v5178
        %v5219 = vadd.f32 %v4961, %v5183
        %v5220 = vadd.f32 %v4962, %v5186
        %5221 = vst [vmem:[#allocation3] sm:$0xff] %v5189
        %5222 = vst [vmem:[#allocation3 + $0x8] sm:$0xff] %v5190
        %5223 = vst [vmem:[#allocation3 + $0x10] sm:$0xff] %v5191
        %5224 = vst [vmem:[#allocation3 + $0x18] sm:$0xff] %v5192
        %5225 = vst [vmem:[#allocation3 + $0x20] sm:$0xff] %v5193
        %5226 = vst [vmem:[#allocation3 + $0x28] sm:$0xff] %v5194
        %5227 = vst [vmem:[#allocation3 + $0x30] sm:$0xff] %v5195
        %5228 = vst [vmem:[#allocation3 + $0x38] sm:$0xff] %v5196
        %5229 = vst [vmem:[#allocation3 + $0x40] sm:$0xff] %v5197
        %5230 = vst [vmem:[#allocation3 + $0x48] sm:$0xff] %v5198
        %5231 = vst [vmem:[#allocation3 + $0x50] sm:$0xff] %v5199
        %5232 = vst [vmem:[#allocation3 + $0x58] sm:$0xff] %v5200
        %5233 = vst [vmem:[#allocation3 + $0x60] sm:$0xff] %v5201
        %5234 = vst [vmem:[#allocation3 + $0x68] sm:$0xff] %v5202
        %5235 = vst [vmem:[#allocation3 + $0x70] sm:$0xff] %v5203
        %5236 = vst [vmem:[#allocation3 + $0x78] sm:$0xff] %v5204
        %5237 = vst [vmem:[#allocation3 + $0x80] sm:$0xff] %v5205
        %5238 = vst [vmem:[#allocation3 + $0x88] sm:$0xff] %v5206
        %5239 = vst [vmem:[#allocation3 + $0x90] sm:$0xff] %v5207
        %5240 = vst [vmem:[#allocation3 + $0x98] sm:$0xff] %v5208
        %5241 = vst [vmem:[#allocation3 + $0xa0] sm:$0xff] %v5209
        %5242 = vst [vmem:[#allocation3 + $0xa8] sm:$0xff] %v5210
        %5243 = vst [vmem:[#allocation3 + $0xb0] sm:$0xff] %v5211
        %5244 = vst [vmem:[#allocation3 + $0xb8] sm:$0xff] %v5212
        %5245 = vst [vmem:[#allocation3 + $0xc0] sm:$0xff] %v5213
        %5246 = vst [vmem:[#allocation3 + $0xc8] sm:$0xff] %v5214
        %5247 = vst [vmem:[#allocation3 + $0xd0] sm:$0xff] %v5215
        %5248 = vst [vmem:[#allocation3 + $0xd8] sm:$0xff] %v5216
        %5249 = vst [vmem:[#allocation3 + $0xe0] sm:$0xff] %v5217
        %5250 = vst [vmem:[#allocation3 + $0xe8] sm:$0xff] %v5218
        %5251 = vst [vmem:[#allocation3 + $0xf0] sm:$0xff] %v5219
        %5252 = vst [vmem:[#allocation3 + $0xf8] sm:$0xff] %v5220
        %v5253 = vld [vmem:[%s4160] sm:$0xf0]
        %v5254 = vld [vmem:[%s4160 + $0x8] sm:$0x1f]
        %v5255 = vld [vmem:[%s4160 + $0x10] sm:$0xf0]
        %v5256 = vld [vmem:[%s4160 + $0x18] sm:$0x1f]
        %v5257 = vld [vmem:[%s4160 + $0x20] sm:$0xf0]
        %v5258 = vld [vmem:[%s4160 + $0x28] sm:$0x1f]
        %v5259 = vld [vmem:[%s4160 + $0x30] sm:$0xf0]
        %v5260 = vld [vmem:[%s4160 + $0x38] sm:$0x1f]
        %v5261 = vld [vmem:[%s4160 + $0x40] sm:$0xf0]
        %v5262 = vld [vmem:[%s4160 + $0x48] sm:$0x1f]
        %v5263 = vld [vmem:[%s4160 + $0x50] sm:$0xf0]
        %v5264 = vld [vmem:[%s4160 + $0x58] sm:$0x1f]
        %v5265 = vld [vmem:[%s4160 + $0x60] sm:$0xf0]
        %v5266 = vld [vmem:[%s4160 + $0x68] sm:$0x1f]
        %v5267 = vld [vmem:[%s4160 + $0x70] sm:$0xf0]
        %v5268 = vld [vmem:[%s4160 + $0x78] sm:$0x1f]
        %v5269 = vld [vmem:[%s4160 + $0x80] sm:$0xf0]
        %v5270 = vld [vmem:[%s4160 + $0x88] sm:$0x1f]
        %v5271 = vld [vmem:[%s4160 + $0x90] sm:$0xf0]
        %v5272 = vld [vmem:[%s4160 + $0x98] sm:$0x1f]
        %v5273 = vld [vmem:[%s4160 + $0xa0] sm:$0xf0]
        %v5274 = vld [vmem:[%s4160 + $0xa8] sm:$0x1f]
        %v5275 = vld [vmem:[%s4160 + $0xb0] sm:$0xf0]
        %v5276 = vld [vmem:[%s4160 + $0xb8] sm:$0x1f]
        %v5277 = vld [vmem:[%s4160 + $0xc0] sm:$0xf0]
        %v5278 = vld [vmem:[%s4160 + $0xc8] sm:$0x1f]
        %v5279 = vld [vmem:[%s4160 + $0xd0] sm:$0xf0]
        %v5280 = vld [vmem:[%s4160 + $0xd8] sm:$0x1f]
        %v5281 = vld [vmem:[%s4160 + $0xe0] sm:$0xf0]
        %v5282 = vld [vmem:[%s4160 + $0xe8] sm:$0x1f]
        %v5283 = vld [vmem:[%s4160 + $0xf0] sm:$0xf0]
        %v5284 = vld [vmem:[%s4160 + $0xf8] sm:$0x1f]
        %v5286 = vshrl.u32 %v5253, 16
        %v5288 = vrot.slane %v5286, 4
        %v5289 = vshll.u32 %v5253, 16
        %v5291 = vrot.slane %v5289, 5
        %v5292 = vor.u32 %v5288, %v5291
        %v5294 = vshrl.u32 %v5254, 16
        %v5296 = vrot.slane %v5294, 4
        %v5297 = vshll.u32 %v5254, 16
        %v5299 = vrot.slane %v5297, 5
        %v5300 = vor.u32 %v5296, %v5299
        %v5301 = vsel %vm1815, %v5292, %v5300
        %v5303 = vshrl.u32 %v5255, 16
        %v5305 = vrot.slane %v5303, 4
        %v5306 = vshll.u32 %v5255, 16
        %v5308 = vrot.slane %v5306, 5
        %v5309 = vor.u32 %v5305, %v5308
        %v5311 = vshrl.u32 %v5256, 16
        %v5313 = vrot.slane %v5311, 4
        %v5314 = vshll.u32 %v5256, 16
        %v5316 = vrot.slane %v5314, 5
        %v5317 = vor.u32 %v5313, %v5316
        %v5318 = vsel %vm1815, %v5309, %v5317
        %v5320 = vshrl.u32 %v5257, 16
        %v5322 = vrot.slane %v5320, 4
        %v5323 = vshll.u32 %v5257, 16
        %v5325 = vrot.slane %v5323, 5
        %v5326 = vor.u32 %v5322, %v5325
        %v5328 = vshrl.u32 %v5258, 16
        %v5330 = vrot.slane %v5328, 4
        %v5331 = vshll.u32 %v5258, 16
        %v5333 = vrot.slane %v5331, 5
        %v5334 = vor.u32 %v5330, %v5333
        %v5335 = vsel %vm1815, %v5326, %v5334
        %v5337 = vshrl.u32 %v5259, 16
        %v5339 = vrot.slane %v5337, 4
        %v5340 = vshll.u32 %v5259, 16
        %v5342 = vrot.slane %v5340, 5
        %v5343 = vor.u32 %v5339, %v5342
        %v5345 = vshrl.u32 %v5260, 16
        %v5347 = vrot.slane %v5345, 4
        %v5348 = vshll.u32 %v5260, 16
        %v5350 = vrot.slane %v5348, 5
        %v5351 = vor.u32 %v5347, %v5350
        %v5352 = vsel %vm1815, %v5343, %v5351
        %v5354 = vshrl.u32 %v5261, 16
        %v5356 = vrot.slane %v5354, 4
        %v5357 = vshll.u32 %v5261, 16
        %v5359 = vrot.slane %v5357, 5
        %v5360 = vor.u32 %v5356, %v5359
        %v5362 = vshrl.u32 %v5262, 16
        %v5364 = vrot.slane %v5362, 4
        %v5365 = vshll.u32 %v5262, 16
        %v5367 = vrot.slane %v5365, 5
        %v5368 = vor.u32 %v5364, %v5367
        %v5369 = vsel %vm1815, %v5360, %v5368
        %v5371 = vshrl.u32 %v5263, 16
        %v5373 = vrot.slane %v5371, 4
        %v5374 = vshll.u32 %v5263, 16
        %v5376 = vrot.slane %v5374, 5
        %v5377 = vor.u32 %v5373, %v5376
        %v5379 = vshrl.u32 %v5264, 16
        %v5381 = vrot.slane %v5379, 4
        %v5382 = vshll.u32 %v5264, 16
        %v5384 = vrot.slane %v5382, 5
        %v5385 = vor.u32 %v5381, %v5384
        %v5386 = vsel %vm1815, %v5377, %v5385
        %v5388 = vshrl.u32 %v5265, 16
        %v5390 = vrot.slane %v5388, 4
        %v5391 = vshll.u32 %v5265, 16
        %v5393 = vrot.slane %v5391, 5
        %v5394 = vor.u32 %v5390, %v5393
        %v5396 = vshrl.u32 %v5266, 16
        %v5398 = vrot.slane %v5396, 4
        %v5399 = vshll.u32 %v5266, 16
        %v5401 = vrot.slane %v5399, 5
        %v5402 = vor.u32 %v5398, %v5401
        %v5403 = vsel %vm1815, %v5394, %v5402
        %v5405 = vshrl.u32 %v5267, 16
        %v5407 = vrot.slane %v5405, 4
        %v5408 = vshll.u32 %v5267, 16
        %v5410 = vrot.slane %v5408, 5
        %v5411 = vor.u32 %v5407, %v5410
        %v5413 = vshrl.u32 %v5268, 16
        %v5415 = vrot.slane %v5413, 4
        %v5416 = vshll.u32 %v5268, 16
        %v5418 = vrot.slane %v5416, 5
        %v5419 = vor.u32 %v5415, %v5418
        %v5420 = vsel %vm1815, %v5411, %v5419
        %v5422 = vshrl.u32 %v5269, 16
        %v5424 = vrot.slane %v5422, 4
        %v5425 = vshll.u32 %v5269, 16
        %v5427 = vrot.slane %v5425, 5
        %v5428 = vor.u32 %v5424, %v5427
        %v5430 = vshrl.u32 %v5270, 16
        %v5432 = vrot.slane %v5430, 4
        %v5433 = vshll.u32 %v5270, 16
        %v5435 = vrot.slane %v5433, 5
        %v5436 = vor.u32 %v5432, %v5435
        %v5437 = vsel %vm1815, %v5428, %v5436
        %v5439 = vshrl.u32 %v5271, 16
        %v5441 = vrot.slane %v5439, 4
        %v5442 = vshll.u32 %v5271, 16
        %v5444 = vrot.slane %v5442, 5
        %v5445 = vor.u32 %v5441, %v5444
        %v5447 = vshrl.u32 %v5272, 16
        %v5449 = vrot.slane %v5447, 4
        %v5450 = vshll.u32 %v5272, 16
        %v5452 = vrot.slane %v5450, 5
        %v5453 = vor.u32 %v5449, %v5452
        %v5454 = vsel %vm1815, %v5445, %v5453
        %v5456 = vshrl.u32 %v5273, 16
        %v5458 = vrot.slane %v5456, 4
        %v5459 = vshll.u32 %v5273, 16
        %v5461 = vrot.slane %v5459, 5
        %v5462 = vor.u32 %v5458, %v5461
        %v5464 = vshrl.u32 %v5274, 16
        %v5466 = vrot.slane %v5464, 4
        %v5467 = vshll.u32 %v5274, 16
        %v5469 = vrot.slane %v5467, 5
        %v5470 = vor.u32 %v5466, %v5469
        %v5471 = vsel %vm1815, %v5462, %v5470
        %v5473 = vshrl.u32 %v5275, 16
        %v5475 = vrot.slane %v5473, 4
        %v5476 = vshll.u32 %v5275, 16
        %v5478 = vrot.slane %v5476, 5
        %v5479 = vor.u32 %v5475, %v5478
        %v5481 = vshrl.u32 %v5276, 16
        %v5483 = vrot.slane %v5481, 4
        %v5484 = vshll.u32 %v5276, 16
        %v5486 = vrot.slane %v5484, 5
        %v5487 = vor.u32 %v5483, %v5486
        %v5488 = vsel %vm1815, %v5479, %v5487
        %v5490 = vshrl.u32 %v5277, 16
        %v5492 = vrot.slane %v5490, 4
        %v5493 = vshll.u32 %v5277, 16
        %v5495 = vrot.slane %v5493, 5
        %v5496 = vor.u32 %v5492, %v5495
        %v5498 = vshrl.u32 %v5278, 16
        %v5500 = vrot.slane %v5498, 4
        %v5501 = vshll.u32 %v5278, 16
        %v5503 = vrot.slane %v5501, 5
        %v5504 = vor.u32 %v5500, %v5503
        %v5505 = vsel %vm1815, %v5496, %v5504
        %v5507 = vshrl.u32 %v5279, 16
        %v5509 = vrot.slane %v5507, 4
        %v5510 = vshll.u32 %v5279, 16
        %v5512 = vrot.slane %v5510, 5
        %v5513 = vor.u32 %v5509, %v5512
        %v5515 = vshrl.u32 %v5280, 16
        %v5517 = vrot.slane %v5515, 4
        %v5518 = vshll.u32 %v5280, 16
        %v5520 = vrot.slane %v5518, 5
        %v5521 = vor.u32 %v5517, %v5520
        %v5522 = vsel %vm1815, %v5513, %v5521
        %v5524 = vshrl.u32 %v5281, 16
        %v5526 = vrot.slane %v5524, 4
        %v5527 = vshll.u32 %v5281, 16
        %v5529 = vrot.slane %v5527, 5
        %v5530 = vor.u32 %v5526, %v5529
        %v5532 = vshrl.u32 %v5282, 16
        %v5534 = vrot.slane %v5532, 4
        %v5535 = vshll.u32 %v5282, 16
        %v5537 = vrot.slane %v5535, 5
        %v5538 = vor.u32 %v5534, %v5537
        %v5539 = vsel %vm1815, %v5530, %v5538
        %v5541 = vshrl.u32 %v5283, 16
        %v5543 = vrot.slane %v5541, 4
        %v5544 = vshll.u32 %v5283, 16
        %v5546 = vrot.slane %v5544, 5
        %v5547 = vor.u32 %v5543, %v5546
        %v5549 = vshrl.u32 %v5284, 16
        %v5551 = vrot.slane %v5549, 4
        %v5552 = vshll.u32 %v5284, 16
        %v5554 = vrot.slane %v5552, 5
        %v5555 = vor.u32 %v5551, %v5554
        %v5556 = vsel %vm1815, %v5547, %v5555
        %v5573 = vld [vmem:[#allocation3] sm:$0xff]
        %v5574 = vld [vmem:[#allocation3 + $0x8] sm:$0xff]
        %v5575 = vld [vmem:[#allocation3 + $0x10] sm:$0xff]
        %v5576 = vld [vmem:[#allocation3 + $0x18] sm:$0xff]
        %v5577 = vld [vmem:[#allocation3 + $0x20] sm:$0xff]
        %v5578 = vld [vmem:[#allocation3 + $0x28] sm:$0xff]
        %v5579 = vld [vmem:[#allocation3 + $0x30] sm:$0xff]
        %v5580 = vld [vmem:[#allocation3 + $0x38] sm:$0xff]
        %v5581 = vld [vmem:[#allocation3 + $0x40] sm:$0xff]
        %v5582 = vld [vmem:[#allocation3 + $0x48] sm:$0xff]
        %v5583 = vld [vmem:[#allocation3 + $0x50] sm:$0xff]
        %v5584 = vld [vmem:[#allocation3 + $0x58] sm:$0xff]
        %v5585 = vld [vmem:[#allocation3 + $0x60] sm:$0xff]
        %v5586 = vld [vmem:[#allocation3 + $0x68] sm:$0xff]
        %v5587 = vld [vmem:[#allocation3 + $0x70] sm:$0xff]
        %v5588 = vld [vmem:[#allocation3 + $0x78] sm:$0xff]
        %v5589 = vld [vmem:[#allocation3 + $0x80] sm:$0xff]
        %v5590 = vld [vmem:[#allocation3 + $0x88] sm:$0xff]
        %v5591 = vld [vmem:[#allocation3 + $0x90] sm:$0xff]
        %v5592 = vld [vmem:[#allocation3 + $0x98] sm:$0xff]
        %v5593 = vld [vmem:[#allocation3 + $0xa0] sm:$0xff]
        %v5594 = vld [vmem:[#allocation3 + $0xa8] sm:$0xff]
        %v5595 = vld [vmem:[#allocation3 + $0xb0] sm:$0xff]
        %v5596 = vld [vmem:[#allocation3 + $0xb8] sm:$0xff]
        %v5597 = vld [vmem:[#allocation3 + $0xc0] sm:$0xff]
        %v5598 = vld [vmem:[#allocation3 + $0xc8] sm:$0xff]
        %v5599 = vld [vmem:[#allocation3 + $0xd0] sm:$0xff]
        %v5600 = vld [vmem:[#allocation3 + $0xd8] sm:$0xff]
        %v5601 = vld [vmem:[#allocation3 + $0xe0] sm:$0xff]
        %v5602 = vld [vmem:[#allocation3 + $0xe8] sm:$0xff]
        %v5603 = vld [vmem:[#allocation3 + $0xf0] sm:$0xff]
        %v5604 = vld [vmem:[#allocation3 + $0xf8] sm:$0xff]
        %s5605 = scalar_lea.vmem [#allocation10], 512
        %v5606 = vld [vmem:[%s5605] sm:$0xf]
        %v5607 = vld [vmem:[%s5605 + $0x4] sm:$0xf]
        %v5608 = vld [vmem:[%s5605 + $0x8] sm:$0xf]
        %v5609 = vld [vmem:[%s5605 + $0xc] sm:$0xf]
        %v5610 = vld [vmem:[%s5605 + $0x10] sm:$0xf]
        %v5611 = vld [vmem:[%s5605 + $0x14] sm:$0xf]
        %v5612 = vld [vmem:[%s5605 + $0x18] sm:$0xf]
        %v5613 = vld [vmem:[%s5605 + $0x1c] sm:$0xf]
        %v5614 = vld [vmem:[%s5605 + $0x20] sm:$0xf]
        %v5615 = vld [vmem:[%s5605 + $0x24] sm:$0xf]
        %v5616 = vld [vmem:[%s5605 + $0x28] sm:$0xf]
        %v5617 = vld [vmem:[%s5605 + $0x2c] sm:$0xf]
        %v5618 = vld [vmem:[%s5605 + $0x30] sm:$0xf]
        %v5619 = vld [vmem:[%s5605 + $0x34] sm:$0xf]
        %v5620 = vld [vmem:[%s5605 + $0x38] sm:$0xf]
        %v5621 = vld [vmem:[%s5605 + $0x3c] sm:$0xf]
        %v5638 = vunpack.c.l.b16 %v5606
        %v5639 = vunpack.c.l.b16 %v5607
        %v5640 = vunpack.c.l.b16 %v5608
        %v5641 = vunpack.c.l.b16 %v5609
        %v5642 = vunpack.c.l.b16 %v5610
        %v5643 = vunpack.c.l.b16 %v5611
        %v5644 = vunpack.c.l.b16 %v5612
        %v5645 = vunpack.c.l.b16 %v5613
        %v5646 = vunpack.c.l.b16 %v5614
        %v5647 = vunpack.c.l.b16 %v5615
        %v5648 = vunpack.c.l.b16 %v5616
        %v5649 = vunpack.c.l.b16 %v5617
        %v5650 = vunpack.c.l.b16 %v5618
        %v5651 = vunpack.c.l.b16 %v5619
        %v5652 = vunpack.c.l.b16 %v5620
        %v5653 = vunpack.c.l.b16 %v5621
        %v5654 = vpack.c.b16 %v5639, %v5638
        %v5655 = vpack.c.b16 %v5641, %v5640
        %v5656 = vpack.c.b16 %v5643, %v5642
        %v5657 = vpack.c.b16 %v5645, %v5644
        %v5658 = vpack.c.b16 %v5647, %v5646
        %v5659 = vpack.c.b16 %v5649, %v5648
        %v5660 = vpack.c.b16 %v5651, %v5650
        %v5661 = vpack.c.b16 %v5653, %v5652
        %5670 = vmatprep.subr.bf16.mxu0 0
        %5671 = vmatpush1.bf16.msra.mxu0 %v5654
        %5672 = vmatprep.subr.bf16.mxu0 0
        %5673 = vmatpush1.bf16.msra.mxu0 %v5655
        %5674 = vmatprep.subr.bf16.mxu0 0
        %5675 = vmatpush1.bf16.msra.mxu0 %v5656
        %5676 = vmatprep.subr.bf16.mxu0 0
        %5677 = vmatpush1.bf16.msra.mxu0 %v5657
        %5678 = vmatprep.subr.bf16.mxu0 0
        %5679 = vmatpush1.bf16.msra.mxu0 %v5658
        %5680 = vmatprep.subr.bf16.mxu0 0
        %5681 = vmatpush1.bf16.msra.mxu0 %v5659
        %5682 = vmatprep.subr.bf16.mxu0 0
        %5683 = vmatpush1.bf16.msra.mxu0 %v5660
        %5684 = vmatprep.subr.bf16.mxu0 0
        %5685 = vmatpush1.bf16.msra.mxu0 %v5661
        %5686 = vmatprep.subr.bf16.mxu0 0
        %5687 = vmatpush1.bf16.msra.mxu0 0
        %5688 = vmatprep.subr.bf16.mxu0 0
        %5689 = vmatpush1.bf16.msra.mxu0 0
        %5690 = vmatprep.subr.bf16.mxu0 0
        %5691 = vmatpush1.bf16.msra.mxu0 0
        %5692 = vmatprep.subr.bf16.mxu0 0
        %5693 = vmatpush1.bf16.msra.mxu0 0
        %5694 = vmatprep.subr.bf16.mxu0 0
        %5695 = vmatpush1.bf16.msra.mxu0 0
        %5696 = vmatprep.subr.bf16.mxu0 0
        %5697 = vmatpush1.bf16.msra.mxu0 0
        %5698 = vmatprep.subr.bf16.mxu0 0
        %5699 = vmatpush1.bf16.msra.mxu0 0
        %5700 = vmatprep.subr.bf16.mxu0 0
        %5701 = vmatpush1.bf16.msra.mxu0 0
        %5702 = vmatprep.mubr.bf16.mxu0 0
        %5703 = vmatmul.mubr.bf16.gmra.mrb[0].mxu0 %v5301
        %v5704 = vpop.f32.mrb[0].mxu0
        %v5705 = vadd.f32 0.0, %v5704
        %v5706 = vpop.f32.mrb[0].mxu0
        %v5707 = vpop.f32.mrb[0].mxu0
        %v5708 = vadd.f32 0.0, %v5707
        %v5709 = vpop.f32.mrb[0].mxu0
        %5710 = vmatprep.mubr.bf16.mxu0 0
        %5711 = vmatmul.mubr.bf16.gmra.mrb[0].mxu0 %v5318
        %v5712 = vpop.f32.mrb[0].mxu0
        %v5713 = vadd.f32 0.0, %v5712
        %v5714 = vpop.f32.mrb[0].mxu0
        %v5715 = vpop.f32.mrb[0].mxu0
        %v5716 = vadd.f32 0.0, %v5715
        %v5717 = vpop.f32.mrb[0].mxu0
        %5718 = vmatprep.mubr.bf16.mxu0 0
        %5719 = vmatmul.mubr.bf16.gmra.mrb[0].mxu0 %v5335
        %v5720 = vpop.f32.mrb[0].mxu0
        %v5721 = vadd.f32 0.0, %v5720
        %v5722 = vpop.f32.mrb[0].mxu0
        %v5723 = vpop.f32.mrb[0].mxu0
        %v5724 = vadd.f32 0.0, %v5723
        %v5725 = vpop.f32.mrb[0].mxu0
        %5726 = vmatprep.mubr.bf16.mxu0 0
        %5727 = vmatmul.mubr.bf16.gmra.mrb[0].mxu0 %v5352
        %v5728 = vpop.f32.mrb[0].mxu0
        %v5729 = vadd.f32 0.0, %v5728
        %v5730 = vpop.f32.mrb[0].mxu0
        %v5731 = vpop.f32.mrb[0].mxu0
        %v5732 = vadd.f32 0.0, %v5731
        %v5733 = vpop.f32.mrb[0].mxu0
        %5734 = vmatprep.mubr.bf16.mxu0 0
        %5735 = vmatmul.mubr.bf16.gmra.mrb[0].mxu0 %v5369
        %v5736 = vpop.f32.mrb[0].mxu0
        %v5737 = vadd.f32 0.0, %v5736
        %v5738 = vpop.f32.mrb[0].mxu0
        %v5739 = vpop.f32.mrb[0].mxu0
        %v5740 = vadd.f32 0.0, %v5739
        %v5741 = vpop.f32.mrb[0].mxu0
        %5742 = vmatprep.mubr.bf16.mxu0 0
        %5743 = vmatmul.mubr.bf16.gmra.mrb[0].mxu0 %v5386
        %v5744 = vpop.f32.mrb[0].mxu0
        %v5745 = vadd.f32 0.0, %v5744
        %v5746 = vpop.f32.mrb[0].mxu0
        %v5747 = vpop.f32.mrb[0].mxu0
        %v5748 = vadd.f32 0.0, %v5747
        %v5749 = vpop.f32.mrb[0].mxu0
        %5750 = vmatprep.mubr.bf16.mxu0 0
        %5751 = vmatmul.mubr.bf16.gmra.mrb[0].mxu0 %v5403
        %v5752 = vpop.f32.mrb[0].mxu0
        %v5753 = vadd.f32 0.0, %v5752
        %v5754 = vpop.f32.mrb[0].mxu0
        %v5755 = vpop.f32.mrb[0].mxu0
        %v5756 = vadd.f32 0.0, %v5755
        %v5757 = vpop.f32.mrb[0].mxu0
        %5758 = vmatprep.mubr.bf16.mxu0 0
        %5759 = vmatmul.mubr.bf16.gmra.mrb[0].mxu0 %v5420
        %v5760 = vpop.f32.mrb[0].mxu0
        %v5761 = vadd.f32 0.0, %v5760
        %v5762 = vpop.f32.mrb[0].mxu0
        %v5763 = vpop.f32.mrb[0].mxu0
        %v5764 = vadd.f32 0.0, %v5763
        %v5765 = vpop.f32.mrb[0].mxu0
        %5766 = vmatprep.mubr.bf16.mxu0 0
        %5767 = vmatmul.mubr.bf16.gmra.mrb[0].mxu0 %v5437
        %v5768 = vpop.f32.mrb[0].mxu0
        %v5769 = vadd.f32 0.0, %v5768
        %v5770 = vpop.f32.mrb[0].mxu0
        %v5771 = vpop.f32.mrb[0].mxu0
        %v5772 = vadd.f32 0.0, %v5771
        %v5773 = vpop.f32.mrb[0].mxu0
        %5774 = vmatprep.mubr.bf16.mxu0 0
        %5775 = vmatmul.mubr.bf16.gmra.mrb[0].mxu0 %v5454
        %v5776 = vpop.f32.mrb[0].mxu0
        %v5777 = vadd.f32 0.0, %v5776
        %v5778 = vpop.f32.mrb[0].mxu0
        %v5779 = vpop.f32.mrb[0].mxu0
        %v5780 = vadd.f32 0.0, %v5779
        %v5781 = vpop.f32.mrb[0].mxu0
        %5782 = vmatprep.mubr.bf16.mxu0 0
        %5783 = vmatmul.mubr.bf16.gmra.mrb[0].mxu0 %v5471
        %v5784 = vpop.f32.mrb[0].mxu0
        %v5785 = vadd.f32 0.0, %v5784
        %v5786 = vpop.f32.mrb[0].mxu0
        %v5787 = vpop.f32.mrb[0].mxu0
        %v5788 = vadd.f32 0.0, %v5787
        %v5789 = vpop.f32.mrb[0].mxu0
        %5790 = vmatprep.mubr.bf16.mxu0 0
        %5791 = vmatmul.mubr.bf16.gmra.mrb[0].mxu0 %v5488
        %v5792 = vpop.f32.mrb[0].mxu0
        %v5793 = vadd.f32 0.0, %v5792
        %v5794 = vpop.f32.mrb[0].mxu0
        %v5795 = vpop.f32.mrb[0].mxu0
        %v5796 = vadd.f32 0.0, %v5795
        %v5797 = vpop.f32.mrb[0].mxu0
        %5798 = vmatprep.mubr.bf16.mxu0 0
        %5799 = vmatmul.mubr.bf16.gmra.mrb[0].mxu0 %v5505
        %v5800 = vpop.f32.mrb[0].mxu0
        %v5801 = vadd.f32 0.0, %v5800
        %v5802 = vpop.f32.mrb[0].mxu0
        %v5803 = vpop.f32.mrb[0].mxu0
        %v5804 = vadd.f32 0.0, %v5803
        %v5805 = vpop.f32.mrb[0].mxu0
        %5806 = vmatprep.mubr.bf16.mxu0 0
        %5807 = vmatmul.mubr.bf16.gmra.mrb[0].mxu0 %v5522
        %v5808 = vpop.f32.mrb[0].mxu0
        %v5809 = vadd.f32 0.0, %v5808
        %v5810 = vpop.f32.mrb[0].mxu0
        %v5811 = vpop.f32.mrb[0].mxu0
        %v5812 = vadd.f32 0.0, %v5811
        %v5813 = vpop.f32.mrb[0].mxu0
        %5814 = vmatprep.mubr.bf16.mxu0 0
        %5815 = vmatmul.mubr.bf16.gmra.mrb[0].mxu0 %v5539
        %v5816 = vpop.f32.mrb[0].mxu0
        %v5817 = vadd.f32 0.0, %v5816
        %v5818 = vpop.f32.mrb[0].mxu0
        %v5819 = vpop.f32.mrb[0].mxu0
        %v5820 = vadd.f32 0.0, %v5819
        %v5821 = vpop.f32.mrb[0].mxu0
        %5822 = vmatprep.mubr.bf16.mxu0 0
        %5823 = vmatmul.mubr.bf16.gmra.mrb[0].mxu0 %v5556
        %v5824 = vpop.f32.mrb[0].mxu0
        %v5825 = vadd.f32 0.0, %v5824
        %v5826 = vpop.f32.mrb[0].mxu0
        %v5827 = vpop.f32.mrb[0].mxu0
        %v5828 = vadd.f32 0.0, %v5827
        %v5829 = vpop.f32.mrb[0].mxu0
        %5830 = vdwg.mxu0
        %v5831 = vadd.f32 %v5573, %v5705
        %v5832 = vadd.f32 %v5574, %v5708
        %v5833 = vadd.f32 %v5575, %v5713
        %v5834 = vadd.f32 %v5576, %v5716
        %v5835 = vadd.f32 %v5577, %v5721
        %v5836 = vadd.f32 %v5578, %v5724
        %v5837 = vadd.f32 %v5579, %v5729
        %v5838 = vadd.f32 %v5580, %v5732
        %v5839 = vadd.f32 %v5581, %v5737
        %v5840 = vadd.f32 %v5582, %v5740
        %v5841 = vadd.f32 %v5583, %v5745
        %v5842 = vadd.f32 %v5584, %v5748
        %v5843 = vadd.f32 %v5585, %v5753
        %v5844 = vadd.f32 %v5586, %v5756
        %v5845 = vadd.f32 %v5587, %v5761
        %v5846 = vadd.f32 %v5588, %v5764
        %v5847 = vadd.f32 %v5589, %v5769
        %v5848 = vadd.f32 %v5590, %v5772
        %v5849 = vadd.f32 %v5591, %v5777
        %v5850 = vadd.f32 %v5592, %v5780
        %v5851 = vadd.f32 %v5593, %v5785
        %v5852 = vadd.f32 %v5594, %v5788
        %v5853 = vadd.f32 %v5595, %v5793
        %v5854 = vadd.f32 %v5596, %v5796
        %v5855 = vadd.f32 %v5597, %v5801
        %v5856 = vadd.f32 %v5598, %v5804
        %v5857 = vadd.f32 %v5599, %v5809
        %v5858 = vadd.f32 %v5600, %v5812
        %v5859 = vadd.f32 %v5601, %v5817
        %v5860 = vadd.f32 %v5602, %v5820
        %v5861 = vadd.f32 %v5603, %v5825
        %v5862 = vadd.f32 %v5604, %v5828
        %5863 = vst [vmem:[#allocation3] sm:$0xff] %v5831
        %5864 = vst [vmem:[#allocation3 + $0x8] sm:$0xff] %v5832
        %5865 = vst [vmem:[#allocation3 + $0x10] sm:$0xff] %v5833
        %5866 = vst [vmem:[#allocation3 + $0x18] sm:$0xff] %v5834
        %5867 = vst [vmem:[#allocation3 + $0x20] sm:$0xff] %v5835
        %5868 = vst [vmem:[#allocation3 + $0x28] sm:$0xff] %v5836
        %5869 = vst [vmem:[#allocation3 + $0x30] sm:$0xff] %v5837
        %5870 = vst [vmem:[#allocation3 + $0x38] sm:$0xff] %v5838
        %5871 = vst [vmem:[#allocation3 + $0x40] sm:$0xff] %v5839
        %5872 = vst [vmem:[#allocation3 + $0x48] sm:$0xff] %v5840
        %5873 = vst [vmem:[#allocation3 + $0x50] sm:$0xff] %v5841
        %5874 = vst [vmem:[#allocation3 + $0x58] sm:$0xff] %v5842
        %5875 = vst [vmem:[#allocation3 + $0x60] sm:$0xff] %v5843
        %5876 = vst [vmem:[#allocation3 + $0x68] sm:$0xff] %v5844
        %5877 = vst [vmem:[#allocation3 + $0x70] sm:$0xff] %v5845
        %5878 = vst [vmem:[#allocation3 + $0x78] sm:$0xff] %v5846
        %5879 = vst [vmem:[#allocation3 + $0x80] sm:$0xff] %v5847
        %5880 = vst [vmem:[#allocation3 + $0x88] sm:$0xff] %v5848
        %5881 = vst [vmem:[#allocation3 + $0x90] sm:$0xff] %v5849
        %5882 = vst [vmem:[#allocation3 + $0x98] sm:$0xff] %v5850
        %5883 = vst [vmem:[#allocation3 + $0xa0] sm:$0xff] %v5851
        %5884 = vst [vmem:[#allocation3 + $0xa8] sm:$0xff] %v5852
        %5885 = vst [vmem:[#allocation3 + $0xb0] sm:$0xff] %v5853
        %5886 = vst [vmem:[#allocation3 + $0xb8] sm:$0xff] %v5854
        %5887 = vst [vmem:[#allocation3 + $0xc0] sm:$0xff] %v5855
        %5888 = vst [vmem:[#allocation3 + $0xc8] sm:$0xff] %v5856
        %5889 = vst [vmem:[#allocation3 + $0xd0] sm:$0xff] %v5857
        %5890 = vst [vmem:[#allocation3 + $0xd8] sm:$0xff] %v5858
        %5891 = vst [vmem:[#allocation3 + $0xe0] sm:$0xff] %v5859
        %5892 = vst [vmem:[#allocation3 + $0xe8] sm:$0xff] %v5860
        %5893 = vst [vmem:[#allocation3 + $0xf0] sm:$0xff] %v5861
        %5894 = vst [vmem:[#allocation3 + $0xf8] sm:$0xff] %v5862
        %v5895 = vld [vmem:[#allocation3] sm:$0xff]
        %v5896 = vld [vmem:[#allocation3 + $0x8] sm:$0xff]
        %v5897 = vld [vmem:[#allocation3 + $0x10] sm:$0xff]
        %v5898 = vld [vmem:[#allocation3 + $0x18] sm:$0xff]
        %v5899 = vld [vmem:[#allocation3 + $0x20] sm:$0xff]
        %v5900 = vld [vmem:[#allocation3 + $0x28] sm:$0xff]
        %v5901 = vld [vmem:[#allocation3 + $0x30] sm:$0xff]
        %v5902 = vld [vmem:[#allocation3 + $0x38] sm:$0xff]
        %v5903 = vld [vmem:[#allocation3 + $0x40] sm:$0xff]
        %v5904 = vld [vmem:[#allocation3 + $0x48] sm:$0xff]
        %v5905 = vld [vmem:[#allocation3 + $0x50] sm:$0xff]
        %v5906 = vld [vmem:[#allocation3 + $0x58] sm:$0xff]
        %v5907 = vld [vmem:[#allocation3 + $0x60] sm:$0xff]
        %v5908 = vld [vmem:[#allocation3 + $0x68] sm:$0xff]
        %v5909 = vld [vmem:[#allocation3 + $0x70] sm:$0xff]
        %v5910 = vld [vmem:[#allocation3 + $0x78] sm:$0xff]
        %v5911 = vld [vmem:[#allocation3 + $0x80] sm:$0xff]
        %v5912 = vld [vmem:[#allocation3 + $0x88] sm:$0xff]
        %v5913 = vld [vmem:[#allocation3 + $0x90] sm:$0xff]
        %v5914 = vld [vmem:[#allocation3 + $0x98] sm:$0xff]
        %v5915 = vld [vmem:[#allocation3 + $0xa0] sm:$0xff]
        %v5916 = vld [vmem:[#allocation3 + $0xa8] sm:$0xff]
        %v5917 = vld [vmem:[#allocation3 + $0xb0] sm:$0xff]
        %v5918 = vld [vmem:[#allocation3 + $0xb8] sm:$0xff]
        %v5919 = vld [vmem:[#allocation3 + $0xc0] sm:$0xff]
        %v5920 = vld [vmem:[#allocation3 + $0xc8] sm:$0xff]
        %v5921 = vld [vmem:[#allocation3 + $0xd0] sm:$0xff]
        %v5922 = vld [vmem:[#allocation3 + $0xd8] sm:$0xff]
        %v5923 = vld [vmem:[#allocation3 + $0xe0] sm:$0xff]
        %v5924 = vld [vmem:[#allocation3 + $0xe8] sm:$0xff]
        %v5925 = vld [vmem:[#allocation3 + $0xf0] sm:$0xff]
        %v5926 = vld [vmem:[#allocation3 + $0xf8] sm:$0xff]
        %v5927 = vpack.c.bf16 %v5896, %v5895
        %v5928 = vpack.c.bf16 %v5898, %v5897
        %v5929 = vpack.c.bf16 %v5900, %v5899
        %v5930 = vpack.c.bf16 %v5902, %v5901
        %v5931 = vpack.c.bf16 %v5904, %v5903
        %v5932 = vpack.c.bf16 %v5906, %v5905
        %v5933 = vpack.c.bf16 %v5908, %v5907
        %v5934 = vpack.c.bf16 %v5910, %v5909
        %v5935 = vpack.c.bf16 %v5912, %v5911
        %v5936 = vpack.c.bf16 %v5914, %v5913
        %v5937 = vpack.c.bf16 %v5916, %v5915
        %v5938 = vpack.c.bf16 %v5918, %v5917
        %v5939 = vpack.c.bf16 %v5920, %v5919
        %v5940 = vpack.c.bf16 %v5922, %v5921
        %v5941 = vpack.c.bf16 %v5924, %v5923
        %v5942 = vpack.c.bf16 %v5926, %v5925
        %v5959 = vunpack.c.l.b16 %v5927
        %v5960 = vunpack.c.h.b16 %v5927
        %v5961 = vunpack.c.l.b16 %v5928
        %v5962 = vunpack.c.h.b16 %v5928
        %v5963 = vunpack.c.l.b16 %v5929
        %v5964 = vunpack.c.h.b16 %v5929
        %v5965 = vunpack.c.l.b16 %v5930
        %v5966 = vunpack.c.h.b16 %v5930
        %v5967 = vunpack.c.l.b16 %v5931
        %v5968 = vunpack.c.h.b16 %v5931
        %v5969 = vunpack.c.l.b16 %v5932
        %v5970 = vunpack.c.h.b16 %v5932
        %v5971 = vunpack.c.l.b16 %v5933
        %v5972 = vunpack.c.h.b16 %v5933
        %v5973 = vunpack.c.l.b16 %v5934
        %v5974 = vunpack.c.h.b16 %v5934
        %v5975 = vunpack.c.l.b16 %v5935
        %v5976 = vunpack.c.h.b16 %v5935
        %v5977 = vunpack.c.l.b16 %v5936
        %v5978 = vunpack.c.h.b16 %v5936
        %v5979 = vunpack.c.l.b16 %v5937
        %v5980 = vunpack.c.h.b16 %v5937
        %v5981 = vunpack.c.l.b16 %v5938
        %v5982 = vunpack.c.h.b16 %v5938
        %v5983 = vunpack.c.l.b16 %v5939
        %v5984 = vunpack.c.h.b16 %v5939
        %v5985 = vunpack.c.l.b16 %v5940
        %v5986 = vunpack.c.h.b16 %v5940
        %v5987 = vunpack.c.l.b16 %v5941
        %v5988 = vunpack.c.h.b16 %v5941
        %v5989 = vunpack.c.l.b16 %v5942
        %v5990 = vunpack.c.h.b16 %v5942
        %v5991 = vpack.c.b16 %v5959, %v5959
        %v5992 = vpack.c.b16 %v5960, %v5960
        %v5993 = vpack.c.b16 %v5961, %v5961
        %v5994 = vpack.c.b16 %v5962, %v5962
        %v5995 = vpack.c.b16 %v5963, %v5963
        %v5996 = vpack.c.b16 %v5964, %v5964
        %v5997 = vpack.c.b16 %v5965, %v5965
        %v5998 = vpack.c.b16 %v5966, %v5966
        %v5999 = vpack.c.b16 %v5967, %v5967
        %v6000 = vpack.c.b16 %v5968, %v5968
        %v6001 = vpack.c.b16 %v5969, %v5969
        %v6002 = vpack.c.b16 %v5970, %v5970
        %v6003 = vpack.c.b16 %v5971, %v5971
        %v6004 = vpack.c.b16 %v5972, %v5972
        %v6005 = vpack.c.b16 %v5973, %v5973
        %v6006 = vpack.c.b16 %v5974, %v5974
        %v6007 = vpack.c.b16 %v5975, %v5975
        %v6008 = vpack.c.b16 %v5976, %v5976
        %v6009 = vpack.c.b16 %v5977, %v5977
        %v6010 = vpack.c.b16 %v5978, %v5978
        %v6011 = vpack.c.b16 %v5979, %v5979
        %v6012 = vpack.c.b16 %v5980, %v5980
        %v6013 = vpack.c.b16 %v5981, %v5981
        %v6014 = vpack.c.b16 %v5982, %v5982
        %v6015 = vpack.c.b16 %v5983, %v5983
        %v6016 = vpack.c.b16 %v5984, %v5984
        %v6017 = vpack.c.b16 %v5985, %v5985
        %v6018 = vpack.c.b16 %v5986, %v5986
        %v6019 = vpack.c.b16 %v5987, %v5987
        %v6020 = vpack.c.b16 %v5988, %v5988
        %v6021 = vpack.c.b16 %v5989, %v5989
        %v6022 = vpack.c.b16 %v5990, %v5990
        %6055 = vst [vmem:[%s325] sm:$0xf] %v5991
        %6056 = vst [vmem:[%s325 + $0x4] sm:$0xf] %v5992
        %6057 = vst [vmem:[%s325 + $0x8] sm:$0xf] %v5993
        %6058 = vst [vmem:[%s325 + $0xc] sm:$0xf] %v5994
        %6059 = vst [vmem:[%s325 + $0x10] sm:$0xf] %v5995
        %6060 = vst [vmem:[%s325 + $0x14] sm:$0xf] %v5996
        %6061 = vst [vmem:[%s325 + $0x18] sm:$0xf] %v5997
        %6062 = vst [vmem:[%s325 + $0x1c] sm:$0xf] %v5998
        %6063 = vst [vmem:[%s325 + $0x20] sm:$0xf] %v5999
        %6064 = vst [vmem:[%s325 + $0x24] sm:$0xf] %v6000
        %6065 = vst [vmem:[%s325 + $0x28] sm:$0xf] %v6001
        %6066 = vst [vmem:[%s325 + $0x2c] sm:$0xf] %v6002
        %6067 = vst [vmem:[%s325 + $0x30] sm:$0xf] %v6003
        %6068 = vst [vmem:[%s325 + $0x34] sm:$0xf] %v6004
        %6069 = vst [vmem:[%s325 + $0x38] sm:$0xf] %v6005
        %6070 = vst [vmem:[%s325 + $0x3c] sm:$0xf] %v6006
        %6071 = vst [vmem:[%s325 + $0x40] sm:$0xf] %v6007
        %6072 = vst [vmem:[%s325 + $0x44] sm:$0xf] %v6008
        %6073 = vst [vmem:[%s325 + $0x48] sm:$0xf] %v6009
        %6074 = vst [vmem:[%s325 + $0x4c] sm:$0xf] %v6010
        %6075 = vst [vmem:[%s325 + $0x50] sm:$0xf] %v6011
        %6076 = vst [vmem:[%s325 + $0x54] sm:$0xf] %v6012
        %6077 = vst [vmem:[%s325 + $0x58] sm:$0xf] %v6013
        %6078 = vst [vmem:[%s325 + $0x5c] sm:$0xf] %v6014
        %6079 = vst [vmem:[%s325 + $0x60] sm:$0xf] %v6015
        %6080 = vst [vmem:[%s325 + $0x64] sm:$0xf] %v6016
        %6081 = vst [vmem:[%s325 + $0x68] sm:$0xf] %v6017
        %6082 = vst [vmem:[%s325 + $0x6c] sm:$0xf] %v6018
        %6083 = vst [vmem:[%s325 + $0x70] sm:$0xf] %v6019
        %6084 = vst [vmem:[%s325 + $0x74] sm:$0xf] %v6020
        %6085 = vst [vmem:[%s325 + $0x78] sm:$0xf] %v6021
        %6086 = vst [vmem:[%s325 + $0x7c] sm:$0xf] %v6022
        %v6087 = vadd.f32 %v5895, %v5896
        %v6088 = vadd.f32 %v6087, %v5897
        %v6089 = vadd.f32 %v6088, %v5898
        %v6090 = vadd.f32 %v6089, %v5899
        %v6091 = vadd.f32 %v6090, %v5900
        %v6092 = vadd.f32 %v6091, %v5901
        %v6093 = vadd.f32 %v6092, %v5902
        %v6094 = vadd.f32 %v6093, %v5903
        %v6095 = vadd.f32 %v6094, %v5904
        %v6096 = vadd.f32 %v6095, %v5905
        %v6097 = vadd.f32 %v6096, %v5906
        %v6098 = vadd.f32 %v6097, %v5907
        %v6099 = vadd.f32 %v6098, %v5908
        %v6100 = vadd.f32 %v6099, %v5909
        %v6101 = vadd.f32 %v6100, %v5910
        %v6102 = vadd.f32 %v6101, %v5911
        %v6103 = vadd.f32 %v6102, %v5912
        %v6104 = vadd.f32 %v6103, %v5913
        %v6105 = vadd.f32 %v6104, %v5914
        %v6106 = vadd.f32 %v6105, %v5915
        %v6107 = vadd.f32 %v6106, %v5916
        %v6108 = vadd.f32 %v6107, %v5917
        %v6109 = vadd.f32 %v6108, %v5918
        %v6110 = vadd.f32 %v6109, %v5919
        %v6111 = vadd.f32 %v6110, %v5920
        %v6112 = vadd.f32 %v6111, %v5921
        %v6113 = vadd.f32 %v6112, %v5922
        %v6114 = vadd.f32 %v6113, %v5923
        %v6115 = vadd.f32 %v6114, %v5924
        %v6116 = vadd.f32 %v6115, %v5925
        %v6117 = vadd.f32 %v6116, %v5926
        %v6118 = vrot.slane %v6117, 4
        %v6119 = vadd.f32 %v6117, %v6118
        %v6120 = vrot.slane %v6119, 2
        %v6121 = vadd.f32 %v6119, %v6120
        %v6122 = vrot.slane %v6121, 1
        %v6123 = vadd.f32 %v6121, %v6122
        %v6124 = vmul.f32 %v6123, 0.00390625
        %v6125 = vsub.f32 %v5895, %v6124
        %v6126 = vsub.f32 %v5896, %v6124
        %v6127 = vsub.f32 %v5897, %v6124
        %v6128 = vsub.f32 %v5898, %v6124
        %v6129 = vsub.f32 %v5899, %v6124
        %v6130 = vsub.f32 %v5900, %v6124
        %v6131 = vsub.f32 %v5901, %v6124
        %v6132 = vsub.f32 %v5902, %v6124
        %v6133 = vsub.f32 %v5903, %v6124
        %v6134 = vsub.f32 %v5904, %v6124
        %v6135 = vsub.f32 %v5905, %v6124
        %v6136 = vsub.f32 %v5906, %v6124
        %v6137 = vsub.f32 %v5907, %v6124
        %v6138 = vsub.f32 %v5908, %v6124
        %v6139 = vsub.f32 %v5909, %v6124
        %v6140 = vsub.f32 %v5910, %v6124
        %v6141 = vsub.f32 %v5911, %v6124
        %v6142 = vsub.f32 %v5912, %v6124
        %v6143 = vsub.f32 %v5913, %v6124
        %v6144 = vsub.f32 %v5914, %v6124
        %v6145 = vsub.f32 %v5915, %v6124
        %v6146 = vsub.f32 %v5916, %v6124
        %v6147 = vsub.f32 %v5917, %v6124
        %v6148 = vsub.f32 %v5918, %v6124
        %v6149 = vsub.f32 %v5919, %v6124
        %v6150 = vsub.f32 %v5920, %v6124
        %v6151 = vsub.f32 %v5921, %v6124
        %v6152 = vsub.f32 %v5922, %v6124
        %v6153 = vsub.f32 %v5923, %v6124
        %v6154 = vsub.f32 %v5924, %v6124
        %v6155 = vsub.f32 %v5925, %v6124
        %v6156 = vsub.f32 %v5926, %v6124
        %6157 = vst [vmem:[%s332] sm:$0x1] %v6123
        %v6158 = vmul.f32 %v6125, %v6125
        %v6159 = vmul.f32 %v6126, %v6126
        %v6160 = vmul.f32 %v6127, %v6127
        %v6161 = vmul.f32 %v6128, %v6128
        %v6162 = vmul.f32 %v6129, %v6129
        %v6163 = vmul.f32 %v6130, %v6130
        %v6164 = vmul.f32 %v6131, %v6131
        %v6165 = vmul.f32 %v6132, %v6132
        %v6166 = vmul.f32 %v6133, %v6133
        %v6167 = vmul.f32 %v6134, %v6134
        %v6168 = vmul.f32 %v6135, %v6135
        %v6169 = vmul.f32 %v6136, %v6136
        %v6170 = vmul.f32 %v6137, %v6137
        %v6171 = vmul.f32 %v6138, %v6138
        %v6172 = vmul.f32 %v6139, %v6139
        %v6173 = vmul.f32 %v6140, %v6140
        %v6174 = vmul.f32 %v6141, %v6141
        %v6175 = vmul.f32 %v6142, %v6142
        %v6176 = vmul.f32 %v6143, %v6143
        %v6177 = vmul.f32 %v6144, %v6144
        %v6178 = vmul.f32 %v6145, %v6145
        %v6179 = vmul.f32 %v6146, %v6146
        %v6180 = vmul.f32 %v6147, %v6147
        %v6181 = vmul.f32 %v6148, %v6148
        %v6182 = vmul.f32 %v6149, %v6149
        %v6183 = vmul.f32 %v6150, %v6150
        %v6184 = vmul.f32 %v6151, %v6151
        %v6185 = vmul.f32 %v6152, %v6152
        %v6186 = vmul.f32 %v6153, %v6153
        %v6187 = vmul.f32 %v6154, %v6154
        %v6188 = vmul.f32 %v6155, %v6155
        %v6189 = vmul.f32 %v6156, %v6156
        %v6190 = vadd.f32 %v6158, %v6159
        %v6191 = vadd.f32 %v6190, %v6160
        %v6192 = vadd.f32 %v6191, %v6161
        %v6193 = vadd.f32 %v6192, %v6162
        %v6194 = vadd.f32 %v6193, %v6163
        %v6195 = vadd.f32 %v6194, %v6164
        %v6196 = vadd.f32 %v6195, %v6165
        %v6197 = vadd.f32 %v6196, %v6166
        %v6198 = vadd.f32 %v6197, %v6167
        %v6199 = vadd.f32 %v6198, %v6168
        %v6200 = vadd.f32 %v6199, %v6169
        %v6201 = vadd.f32 %v6200, %v6170
        %v6202 = vadd.f32 %v6201, %v6171
        %v6203 = vadd.f32 %v6202, %v6172
        %v6204 = vadd.f32 %v6203, %v6173
        %v6205 = vadd.f32 %v6204, %v6174
        %v6206 = vadd.f32 %v6205, %v6175
        %v6207 = vadd.f32 %v6206, %v6176
        %v6208 = vadd.f32 %v6207, %v6177
        %v6209 = vadd.f32 %v6208, %v6178
        %v6210 = vadd.f32 %v6209, %v6179
        %v6211 = vadd.f32 %v6210, %v6180
        %v6212 = vadd.f32 %v6211, %v6181
        %v6213 = vadd.f32 %v6212, %v6182
        %v6214 = vadd.f32 %v6213, %v6183
        %v6215 = vadd.f32 %v6214, %v6184
        %v6216 = vadd.f32 %v6215, %v6185
        %v6217 = vadd.f32 %v6216, %v6186
        %v6218 = vadd.f32 %v6217, %v6187
        %v6219 = vadd.f32 %v6218, %v6188
        %v6220 = vadd.f32 %v6219, %v6189
        %v6221 = vrot.slane %v6220, 4
        %v6222 = vadd.f32 %v6220, %v6221
        %v6223 = vrot.slane %v6222, 2
        %v6224 = vadd.f32 %v6222, %v6223
        %v6225 = vrot.slane %v6224, 1
        %v6226 = vadd.f32 %v6224, %v6225
        %6227 = vst [vmem:[%s332 + $0x1] sm:$0x1] %v6226
        %s6228 = sand.u32 %s147, 1
        %s6229 = scalar_lea.sflag [#allocation6], %s6228
        %s6230 = sand.u32 %s147, 1
        %s6231 = smul.addr %s6230, 128
        %s6232 = scalar_lea.vmem [#allocation13], %s6231
        %s6233 = sand.u32 %s173, 1
        %s6234 = scalar_lea.sflag [#allocation15], %s6233
        %s6235 = sand.u32 %s173, 1
        %s6236 = smul.addr %s6235, 2
        %s6237 = scalar_lea.vmem [#allocation14], %s6236
        // Predicated region
        $region61: #{double_conv_forward.4} parent=39 // pred_check
          %p6238 = pneg %p157
        $region62: #{double_conv_forward.4} parent=39 // pred_check_branch
          %6240 = sbr.rel (%p6238) target = $region64
        $region63: #{double_conv_forward.4} parent=39 // pred_region
          %s6242 = ssub.s32 2048, 2048
          %6243 = vsyncadd %s6229, %s6242
          %s6244 = smul.addr %s29, 32
          %s6245 = smul.addr %s6244, 64
          %s6246 = scalar_lea.hbm %s5, %s6245
          %s6247 = sshll.u32 %s6232, 4
          %s6248 = int_to_ptr.vmem [resolvable:$true] %s6247
          %6253 = dma.vmem_to_hbm [thread:$0]  %s6248, 2048, %s6246, %s6229, 64, 64, 4
        $region64: #{double_conv_forward.4} parent=39 // pred_fallthru
          _
        // Predicated region
        $region65: #{double_conv_forward.4} parent=39 // pred_check
          %p6254 = pneg %p183
        $region66: #{double_conv_forward.4} parent=39 // pred_check_branch
          %6256 = sbr.rel (%p6254) target = $region68
        $region67: #{double_conv_forward.4} parent=39 // pred_region
          %s6258 = ssub.s32 32, 32
          %6259 = vsyncadd %s6234, %s6258
          %s6260 = smul.addr %s29, 32
          %s6261 = scalar_lea.hbm %s6, %s6260
          %s6263 = sshll.u32 %s6237, 4
          %s6264 = int_to_ptr.vmem [resolvable:$true] %s6263
          %6266 = dma.vmem_to_hbm [thread:$0]  %s6264, 32, %s6261, %s6234
        $region68: #{double_conv_forward.4} parent=39 // pred_fallthru
          _
      $region40: #{double_conv_forward.4} parent=5 // pred_fallthru
        _
      %p6267 = scmp.le.s32.totalorder 2, %s24
      // Predicated region
      $region69: #{double_conv_forward.4} parent=5 // pred_check
        %p6268 = pneg %p6267
      $region70: #{double_conv_forward.4} parent=5 // pred_check_branch
        %6270 = sbr.rel (%p6268) target = $region72
      $region71: #{double_conv_forward.4} parent=5 // pred_region
        %s6271 = ssub.s32 %s24, 2
        // Predicated region
        $region73: #{double_conv_forward.4} parent=71 // pred_check
          %p6272 = pneg %p163
        $region74: #{double_conv_forward.4} parent=71 // pred_check_branch
          %6274 = sbr.rel (%p6272) target = $region76
        $region75: #{double_conv_forward.4} parent=71 // pred_region
          %s6275 = sand.u32 %s148, 1
          %s6276 = scalar_lea.sflag [#allocation6], %s6275
          %s6277 = sand.u32 %s148, 1
          %s6278 = smul.addr %s6277, 128
          %s6279 = scalar_lea.vmem [#allocation13], %s6278
          %6280 = dma.done %s6276, 2048
        $region76: #{double_conv_forward.4} parent=71 // pred_fallthru
          _
        // Predicated region
        $region77: #{double_conv_forward.4} parent=71 // pred_check
          %p6281 = pneg %p189
        $region78: #{double_conv_forward.4} parent=71 // pred_check_branch
          %6283 = sbr.rel (%p6281) target = $region80
        $region79: #{double_conv_forward.4} parent=71 // pred_region
          %s6284 = sand.u32 %s174, 1
          %s6285 = scalar_lea.sflag [#allocation15], %s6284
          %s6286 = sand.u32 %s174, 1
          %s6287 = smul.addr %s6286, 2
          %s6288 = scalar_lea.vmem [#allocation14], %s6287
          %6289 = dma.done %s6285, 32
        $region80: #{double_conv_forward.4} parent=71 // pred_fallthru
          _
      $region72: #{double_conv_forward.4} parent=5 // pred_fallthru
        _
    $region6: #{double_conv_forward.4} parent=1 // loop_footer
      %s28 = sadd.s32 1, %s24
    $region7: #{double_conv_forward.4} parent=1 // loop_footer_branch
      %23 = sbr.rel target = $region3
    $region8: #{double_conv_forward.4} parent=1 // loop_exit
      _
    %6290 = vsyncpa [#allocation5], 1
    %s6291 = scalar_lea.sflag [#allocation5], 1
    %6292 = vsyncpa %s6291, 1
    %6293 = vsyncpa [#allocation8], 1
    %6294 = vsyncpa [#allocation11], 1
    %6295 = vsyncpa [#allocation6], 1
    %s6296 = scalar_lea.sflag [#allocation6], 1
    %6297 = vsyncpa %s6296, 1
    %6298 = vsyncpa [#allocation15], 1
    %s6299 = scalar_lea.sflag [#allocation15], 1
    %6300 = vsyncpa %s6299, 1

</llo_original>
